<compile_context>
chip_gen: v7x
topology: tpu7x:2x2x1
jax: 0.10.0
libtpu: 0.0.40
codegen_flags: <defaults>
</compile_context>

<pallas_src>
import functools

import numpy as np

import jax
import jax.numpy as jnp
from jax.experimental import pallas as pl
from jax.experimental.pallas import tpu as pltpu


def _default_vmem_limit():
    """Generation-aware scoped-VMEM limit (~60% of physical, capped at 96 MiB):
    ~38 MiB on v7x (64 MiB VMEM), ~76 MiB on v5e/v6e (128 MiB VMEM)."""
    try:
        cap = int(pltpu.get_tpu_info().vmem_capacity_bytes)
    except Exception:  # API unavailable -> conservative default
        cap = 128 * 1024 * 1024
    return max(32 * 1024 * 1024, min(int(cap * 0.6), 96 * 1024 * 1024))


_VMEM_LIMIT = _default_vmem_limit()


def _compiler_params(semantics):
    return pltpu.CompilerParams(
        dimension_semantics=semantics,
        vmem_limit_bytes=_VMEM_LIMIT,
    )


# ----------------------------------------------------------------------------
# Kernels
# ----------------------------------------------------------------------------

def _rmsnorm_matmul_kernel(x_ref, g_ref, w_ref, o_ref, xn_ref, acc_ref, *,
                           eps, n_k, tk):
    """o = (RMSNorm(x) * g) @ W with K-tiled weight and cached normalized x.

    x_ref:(tm,H) f32 (resident per row tile), g_ref:(1,H) f32,
    w_ref:(tk,tn) bf16, o_ref:(tm,tn) bf16,
    xn_ref:(n_k,tm,tk) bf16 scratch (normalized x, computed once per row tile),
    acc_ref:(tm,tn) f32 accumulator.
    """
    j = pl.program_id(1)
    k = pl.program_id(2)

    @pl.when(jnp.logical_and(j == 0, k == 0))
    def _():
        x = x_ref[...].astype(jnp.float32)
        var = jnp.mean(x * x, axis=-1, keepdims=True)
        xn = (x * jax.lax.rsqrt(var + eps)
              * g_ref[...].astype(jnp.float32)).astype(jnp.bfloat16)
        for kk in range(n_k):                       # static unroll
            xn_ref[kk] = xn[:, kk * tk:(kk + 1) * tk]

    @pl.when(k == 0)
    def _():
        acc_ref[...] = jnp.zeros_like(acc_ref)

    acc_ref[...] += jnp.dot(xn_ref[k], w_ref[...],
                            preferred_element_type=jnp.float32)

    @pl.when(k == n_k - 1)
    def _():
        o_ref[...] = acc_ref[...].astype(o_ref.dtype)


def _matmul_residual_kernel(x_ref, w_ref, r_ref, o_ref, acc_ref):
    """o = x @ W + residual, K-tiled; residual buffer aliased with the output."""
    k = pl.program_id(2)

    @pl.when(k == 0)
    def _():
        acc_ref[...] = r_ref[...]

    acc_ref[...] += jnp.dot(x_ref[...].astype(jnp.bfloat16), w_ref[...],
                            preferred_element_type=jnp.float32)

    @pl.when(k == pl.num_programs(2) - 1)
    def _():
        o_ref[...] = acc_ref[...]


def _swiglu_down_kernel(g_ref, u_ref, w_ref, r_ref, o_ref, acc_ref):
    """o = (silu(gate) * up) @ W_down + residual, K-tiled over the intermediate
    dim.  gate / up arrive as two independent (tm, tk) blocks (two in_specs
    over the same fused gate_up activation)."""
    k = pl.program_id(2)

    @pl.when(k == 0)
    def _():
        acc_ref[...] = r_ref[...]

    x1 = g_ref[...].astype(jnp.float32)
    x2 = u_ref[...].astype(jnp.float32)
    h = (x1 * jax.nn.sigmoid(x1) * x2).astype(jnp.bfloat16)
    acc_ref[...] += jnp.dot(h, w_ref[...], preferred_element_type=jnp.float32)

    @pl.when(k == pl.num_programs(2) - 1)
    def _():
        o_ref[...] = acc_ref[...]


def _flash_gqa_kernel(q_ref, kv_ref, o_ref, qs_ref, m_ref, l_ref, acc_ref, *,
                      sm_scale, group, head_dim, tq, tkv):
    """Flash-style causal GQA for one (batch, kv_head, q_tile, kv_tile) cell.

    q_ref : (tq, group*d) bf16  -- all q heads of this kv group
    kv_ref: (tkv, 2*d)    bf16  -- [K | V] slab of this kv head
    o_ref : (tq, group*d) bf16
    qs_ref: (group*tq, d) bf16 scratch -- q heads stacked along rows
    m/l   : (group*tq, 1) f32 online-softmax state, acc: (group*tq, d) f32
    """
    qi = pl.program_id(2)
    ki = pl.program_id(3)
    d = head_dim

    @pl.when(ki == 0)
    def _():
        # Stack the `group` q heads along rows once per q tile so QK^T / P.V
        # are single larger MXU dots (K/V pushed once per kv tile, not per head).
        for h in range(group):
            qs_ref[h * tq:(h + 1) * tq, :] = q_ref[:, h * d:(h + 1) * d]
        m_ref[...] = jnp.full_like(m_ref, -jnp.inf)
        l_ref[...] = jnp.zeros_like(l_ref)
        acc_ref[...] = jnp.zeros_like(acc_ref)

    # Causal tile skip: only process kv tiles that overlap the causal region.
    @pl.when(ki * tkv < (qi + 1) * tq)
    def _():
        kmat = kv_ref[:, :d]
        vmat = kv_ref[:, d:]
        s = jax.lax.dot_general(qs_ref[...], kmat, (((1,), (1,)), ((), ())),
                                preferred_element_type=jnp.float32) * sm_scale
        rows = jax.lax.broadcasted_iota(jnp.int32, (group * tq, tkv), 0)
        cols = jax.lax.broadcasted_iota(jnp.int32, (group * tq, tkv), 1)
        q_pos = qi * tq + rows % tq
        k_pos = ki * tkv + cols
        # Finite large-negative mask (avoids inf-inf -> NaN hazards).
        s = jnp.where(k_pos <= q_pos, s, -1e30)

        m_prev = m_ref[...]
        m_new = jnp.maximum(m_prev, jnp.max(s, axis=-1, keepdims=True))
        alpha = jnp.exp(m_prev - m_new)
        p = jnp.exp(s - m_new)
        l_ref[...] = alpha * l_ref[...] + jnp.sum(p, axis=-1, keepdims=True)
        acc_ref[...] = alpha * acc_ref[...] + jnp.dot(
            p.astype(jnp.bfloat16), vmat, preferred_element_type=jnp.float32)
        m_ref[...] = m_new

    @pl.when(ki == pl.num_programs(3) - 1)
    def _():
        out = acc_ref[...] / l_ref[...]           # exact softmax normalization
        for h in range(group):                    # un-stack heads back to lanes
            o_ref[:, h * d:(h + 1) * d] = (
                out[h * tq:(h + 1) * tq, :].astype(o_ref.dtype))


# ----------------------------------------------------------------------------
# Pallas wrappers
# ----------------------------------------------------------------------------

def rmsnorm_matmul(x2d, gamma, w, eps, *, tm=256, tn=256, tk=128):
    """(RMSNorm(x) * gamma) @ W -> bf16, f32 accumulation, K-tiled."""
    N, H = x2d.shape
    O = w.shape[1]
    tm, tn, tk = min(tm, N), min(tn, O), min(tk, H)
    assert N % tm == 0 and O % tn == 0 and H % tk == 0
    n_k = H // tk
    cost = pl.CostEstimate(
        flops=2 * N * H * O + 6 * N * H, transcendentals=N,
        bytes_accessed=4 * N * H + 2 * H * O + 2 * N * O + 4 * H)
    return pl.pallas_call(
        functools.partial(_rmsnorm_matmul_kernel, eps=eps, n_k=n_k, tk=tk),
        out_shape=jax.ShapeDtypeStruct((N, O), jnp.bfloat16),
        grid=(N // tm, O // tn, n_k),
        in_specs=[
            pl.BlockSpec((tm, H), lambda i, j, k: (i, 0)),   # x rows (resident per i)
            pl.BlockSpec((1, H), lambda i, j, k: (0, 0)),    # gamma
            pl.BlockSpec((tk, tn), lambda i, j, k: (k, j)),  # weight K-tile
        ],
        out_specs=pl.BlockSpec((tm, tn), lambda i, j, k: (i, j)),
        scratch_shapes=[pltpu.VMEM((n_k, tm, tk), jnp.bfloat16),  # cached norm'd x
                        pltpu.VMEM((tm, tn), jnp.float32)],       # K accumulator
        # j is "arbitrary": the normalized-x cache is reused across output
        # column tiles, so megacore splits only on the row axis.
        compiler_params=_compiler_params(("parallel", "arbitrary", "arbitrary")),
        cost_estimate=cost,
    )(x2d, gamma.reshape(1, H), w)


def matmul_residual(x2d, w, residual, *, tm=256, tn=256, tk=256):
    """x @ W + residual (f32), K-tiled, accumulating in place into residual."""
    N, K = x2d.shape
    O = w.shape[1]
    tm, tn, tk = min(tm, N), min(tn, O), min(tk, K)
    assert N % tm == 0 and O % tn == 0 and K % tk == 0
    cost = pl.CostEstimate(
        flops=2 * N * K * O + N * O, transcendentals=0,
        bytes_accessed=2 * N * K + 2 * K * O + 8 * N * O)
    return pl.pallas_call(
        _matmul_residual_kernel,
        out_shape=jax.ShapeDtypeStruct((N, O), jnp.float32),
        grid=(N // tm, O // tn, K // tk),
        in_specs=[
            pl.BlockSpec((tm, tk), lambda i, j, k: (i, k)),
            pl.BlockSpec((tk, tn), lambda i, j, k: (k, j)),
            pl.BlockSpec((tm, tn), lambda i, j, k: (i, j)),   # residual (aliased)
        ],
        out_specs=pl.BlockSpec((tm, tn), lambda i, j, k: (i, j)),
        scratch_shapes=[pltpu.VMEM((tm, tn), jnp.float32)],
        input_output_aliases={2: 0},
        compiler_params=_compiler_params(("parallel", "parallel", "arbitrary")),
        cost_estimate=cost,
    )(x2d, w, residual)


def swiglu_down_residual(gu2d, w_down, residual, *, tm=256, tn=256, tk=128):
    """(silu(gate) * up) @ W_down + residual, K-tiled over the intermediate dim."""
    N, I2 = gu2d.shape
    I = I2 // 2
    O = w_down.shape[1]
    tm, tn, tk = min(tm, N), min(tn, O), min(tk, I)
    assert N % tm == 0 and O % tn == 0 and I % tk == 0
    n_k = I // tk
    cost = pl.CostEstimate(
        flops=2 * N * I * O + 4 * N * I, transcendentals=N * I,
        bytes_accessed=2 * N * 2 * I + 2 * I * O + 8 * N * O)
    return pl.pallas_call(
        _swiglu_down_kernel,
        out_shape=jax.ShapeDtypeStruct((N, O), jnp.float32),
        grid=(N // tm, O // tn, n_k),
        in_specs=[
            pl.BlockSpec((tm, tk), lambda i, j, k: (i, k)),        # gate K-tile
            pl.BlockSpec((tm, tk), lambda i, j, k: (i, n_k + k)),  # up K-tile
            pl.BlockSpec((tk, tn), lambda i, j, k: (k, j)),
            pl.BlockSpec((tm, tn), lambda i, j, k: (i, j)),        # residual (aliased)
        ],
        out_specs=pl.BlockSpec((tm, tn), lambda i, j, k: (i, j)),
        scratch_shapes=[pltpu.VMEM((tm, tn), jnp.float32)],
        input_output_aliases={3: 0},
        compiler_params=_compiler_params(("parallel", "parallel", "arbitrary")),
        cost_estimate=cost,
    )(gu2d, gu2d, w_down, residual)


def causal_gqa_attention(qkv3, *, num_q_heads, num_kv_heads, head_dim, sm_scale,
                         tq=128, tkv=128):
    """Flash-style causal GQA attention reading q / [k|v] directly from the
    fused qkv activation (kv-interleaved column layout).  Returns bf16
    (B, S, Hq*d), ready for o_proj with no transpose."""
    B, S, _ = qkv3.shape
    assert num_q_heads % num_kv_heads == 0
    group = num_q_heads // num_kv_heads
    qo = group * head_dim
    tq, tkv = min(tq, S), min(tkv, S)
    assert S % tq == 0 and S % tkv == 0
    # TODO(synk): for configs where group*head_dim is not a multiple of 128
    # (e.g. 14 q heads / 2 kv heads / d=64 -> 448) fall back to per-head q
    # blocks or pad the q column layout.
    assert qo % 128 == 0, "q columns per kv group must be lane-aligned"
    assert (num_q_heads * head_dim) % (2 * head_dim) == 0
    kv_block_base = (num_q_heads * head_dim) // (2 * head_dim)
    cost = pl.CostEstimate(
        flops=2 * B * num_q_heads * S * S * head_dim,          # ~causal half
        transcendentals=B * num_q_heads * S * S // 2,
        bytes_accessed=2 * B * S * (2 * num_q_heads + 2 * num_kv_heads) * head_dim)
    return pl.pallas_call(
        functools.partial(_flash_gqa_kernel, sm_scale=sm_scale, group=group,
                          head_dim=head_dim, tq=tq, tkv=tkv),
        out_shape=jax.ShapeDtypeStruct((B, S, num_q_heads * head_dim),
                                       jnp.bfloat16),
        grid=(B, num_kv_heads, S // tq, S // tkv),
        in_specs=[
            # q heads of kv group g live at columns [g*group*d, (g+1)*group*d).
            pl.BlockSpec((None, tq, qo), lambda b, g, qi, ki: (b, qi, g)),
            # [k_g | v_g] slab: 2*d wide, 128-aligned (interleaved kv layout).
            pl.BlockSpec((None, tkv, 2 * head_dim),
                         lambda b, g, qi, ki: (b, ki, kv_block_base + g)),
        ],
        out_specs=pl.BlockSpec((None, tq, qo), lambda b, g, qi, ki: (b, qi, g)),
        scratch_shapes=[
            pltpu.VMEM((group * tq, head_dim), jnp.bfloat16),  # stacked q heads
            pltpu.VMEM((group * tq, 1), jnp.float32),          # running max
            pltpu.VMEM((group * tq, 1), jnp.float32),          # running denom
            pltpu.VMEM((group * tq, head_dim), jnp.float32),   # output accumulator
        ],
        compiler_params=_compiler_params(
            ("parallel", "parallel", "parallel", "arbitrary")),
        cost_estimate=cost,
    )(qkv3, qkv3)


# ----------------------------------------------------------------------------
# Decoder layer (glue in plain JAX, hot paths in Pallas)
# ----------------------------------------------------------------------------

def _interleave_kv_columns(w_qkv, num_q_heads, num_kv_heads, head_dim):
    """Reorder fused-QKV weight columns [Q | K_all | V_all] -> [Q | k0 v0 | k1 v1 ...]
    so each kv head's K/V is one contiguous 128-aligned 2*head_dim slab that the
    attention BlockSpec reads directly (no HBM slice copies / relayout).
    Identity for num_kv_heads == 1; in production this is a one-time offline
    weight-preprocessing step."""
    q_dim = num_q_heads * head_dim
    kv_dim = num_kv_heads * head_dim
    perm = list(range(q_dim))
    for g in range(num_kv_heads):
        perm += list(range(q_dim + g * head_dim, q_dim + (g + 1) * head_dim))
        perm += list(range(q_dim + kv_dim + g * head_dim,
                           q_dim + kv_dim + (g + 1) * head_dim))
    perm = np.asarray(perm)
    if np.array_equal(perm, np.arange(w_qkv.shape[1])):
        return w_qkv
    return w_qkv[:, perm]


def qwen_decoder_layer(hidden_states, params, *, num_q_heads, num_kv_heads,
                       head_dim, intermediate_size, eps):
    B, S, H = hidden_states.shape
    N = B * S
    assert params["w_down"].shape[0] == intermediate_size
    x2d = hidden_states.reshape(N, H).astype(jnp.float32)   # residual chain: f32

    w_qkv = _interleave_kv_columns(params["w_qkv"], num_q_heads, num_kv_heads,
                                   head_dim)

    # --- self-attention block -------------------------------------------------
    # qkv = qkv_proj(input_layernorm(x))  (fused RMSNorm + K-tiled GEMM, bf16 out)
    qkv = rmsnorm_matmul(x2d, params["ln1_g"], w_qkv, eps)
    qkv3 = qkv.reshape(B, S, (num_q_heads + 2 * num_kv_heads) * head_dim)

    # TODO(synk): the real module consumes a PagedKVCache (incremental decode);
    # this is the equivalent prefill-from-empty-cache causal GQA attention.
    attn = causal_gqa_attention(
        qkv3, num_q_heads=num_q_heads, num_kv_heads=num_kv_heads,
        head_dim=head_dim, sm_scale=head_dim ** -0.5)          # (B, S, Hq*d) bf16
    attn2d = attn.reshape(N, num_q_heads * head_dim)

    # hidden += o_proj(attn)   (residual fused + aliased in place)
    x2d = matmul_residual(attn2d, params["w_o"], x2d)

    # --- MLP block --------------------------------------------------------------
    gu = rmsnorm_matmul(x2d, params["ln2_g"], params["w_gate_up"], eps)  # bf16
    x2d = swiglu_down_residual(gu, params["w_down"], x2d)

    return x2d.reshape(B, S, H)


# ----------------------------------------------------------------------------
# Pure-JAX reference (f32 end-to-end) for a sanity check
# ----------------------------------------------------------------------------

def _reference(hidden_states, params, *, num_q_heads, num_kv_heads, head_dim,
               intermediate_size, eps):
    w_qkv = params["w_qkv"].astype(jnp.float32)
    w_o = params["w_o"].astype(jnp.float32)
    w_gu = params["w_gate_up"].astype(jnp.float32)
    w_dn = params["w_down"].astype(jnp.float32)

    def rms(x, g):
        var = jnp.mean(x * x, axis=-1, keepdims=True)
        return x * jax.lax.rsqrt(var + eps) * g

    B, S, H = hidden_states.shape
    x = hidden_states
    h = rms(x, params["ln1_g"])
    qkv = h @ w_qkv
    qkv = qkv.reshape(B, S, num_q_heads + 2 * num_kv_heads, head_dim)
    q = jnp.transpose(qkv[:, :, :num_q_heads], (0, 2, 1, 3))
    k = jnp.transpose(qkv[:, :, num_q_heads:num_q_heads + num_kv_heads], (0, 2, 1, 3))
    v = jnp.transpose(qkv[:, :, num_q_heads + num_kv_heads:], (0, 2, 1, 3))
    group = num_q_heads // num_kv_heads
    k = jnp.repeat(k, group, axis=1)
    v = jnp.repeat(v, group, axis=1)
    s = jnp.einsum("bhqd,bhkd->bhqk", q, k) * head_dim ** -0.5
    mask = jnp.tril(jnp.ones((S, S), bool))
    s = jnp.where(mask[None, None], s, -jnp.inf)
    p = jax.nn.softmax(s, axis=-1)
    attn = jnp.einsum("bhqk,bhkd->bhqd", p, v)
    attn = jnp.transpose(attn, (0, 2, 1, 3)).reshape(B, S, num_q_heads * head_dim)
    x = x + attn @ w_o
    h = rms(x, params["ln2_g"])
    gu = h @ w_gu
    x1, x2 = jnp.split(gu, 2, axis=-1)
    x = x + (x1 * jax.nn.sigmoid(x1) * x2) @ w_dn
    return x


# ----------------------------------------------------------------------------
# Main
# ----------------------------------------------------------------------------

if __name__ == "__main__":
    # Scaled-down Qwen config.
    H = 128          # hidden_size
    I = 256          # intermediate_size
    HQ = 2           # num_attention_heads
    HKV = 1          # num_key_value_heads
    D = 64           # head_dim
    EPS = 1e-6
    B, S = 2, 256    # S=256 exercises multi-tile flash attention + causal skip

    key = jax.random.PRNGKey(0)
    ks = jax.random.split(key, 5)
    scale = 0.02
    params = {
        # nn.Linear(in, out, bias=False): y = x @ W  (stored (in, out), bf16 in HBM)
        "w_qkv":     (scale * jax.random.normal(ks[0], (H, (HQ + 2 * HKV) * D), jnp.float32)).astype(jnp.bfloat16),
        "w_o":       (scale * jax.random.normal(ks[1], (HQ * D, H), jnp.float32)).astype(jnp.bfloat16),
        "w_gate_up": (scale * jax.random.normal(ks[2], (H, 2 * I), jnp.float32)).astype(jnp.bfloat16),
        "w_down":    (scale * jax.random.normal(ks[3], (I, H), jnp.float32)).astype(jnp.bfloat16),
        # RMSNorm weights (init to ones, like nn.RMSNorm default affine weight)
        "ln1_g":     jnp.ones((H,), jnp.float32),
        "ln2_g":     jnp.ones((H,), jnp.float32),
    }

    x = jax.random.normal(ks[4], (B, S, H), jnp.float32)

    layer = jax.jit(
        qwen_decoder_layer,
        static_argnames=("num_q_heads", "num_kv_heads", "head_dim",
                         "intermediate_size", "eps"))
    out = layer(x, params, num_q_heads=HQ, num_kv_heads=HKV, head_dim=D,
                intermediate_size=I, eps=EPS)
    out = jax.block_until_ready(out)

    ref = _reference(x, params, num_q_heads=HQ, num_kv_heads=HKV, head_dim=D,
                     intermediate_size=I, eps=EPS)
    assert out.shape == (B, S, H)
    # bf16 intermediate activations + bf16 MXU operands vs an all-f32 reference.
    assert jnp.allclose(out, ref, atol=3e-2, rtol=3e-2), "mismatch vs reference"

    print("KERNEL_OK")
</pallas_src>

<mosaic_0001>
module attributes {stable_mosaic.version = 11 : i64} {
  func.func @_matmul_residual_kernel(%arg0: i32, %arg1: i32, %arg2: i32, %arg3: memref<256x128xbf16, #tpu.memory_space<vmem>>, %arg4: memref<128x128xbf16, #tpu.memory_space<vmem>>, %arg5: memref<256x128xf32, #tpu.memory_space<vmem>>, %arg6: memref<256x128xf32, #tpu.memory_space<vmem>>, %arg7: memref<256x128xf32, #tpu.memory_space<vmem>>) attributes {dimension_semantics = [#tpu.dimension_semantics<parallel>, #tpu.dimension_semantics<parallel>, #tpu.dimension_semantics<arbitrary>], iteration_bounds = array<i64: 2, 1, 1>, scalar_prefetch = 0 : i64, scratch_operands = 1 : i64, tpu.core_type = #tpu.core_type<tc>, window_params = [{transform_indices = @transform_0, window_bounds = array<i64: 256, 128>}, {transform_indices = @transform_1, window_bounds = array<i64: 128, 128>}, {transform_indices = @transform_2, window_bounds = array<i64: 256, 128>}, {transform_indices = @transform_3, window_bounds = array<i64: 256, 128>}]} {
    %c0_i32 = arith.constant 0 : i32
    %0 = arith.cmpi eq, %arg2, %c0_i32 : i32
    %1 = arith.extui %0 : i1 to i32
    %c0_i32_0 = arith.constant 0 : i32
    %2 = arith.cmpi ne, %1, %c0_i32_0 : i32
    scf.if %2 {
      %c0_10 = arith.constant 0 : index
      %c0_11 = arith.constant 0 : index
      %12 = vector.load %arg5[%c0_10, %c0_11] : memref<256x128xf32, #tpu.memory_space<vmem>>, vector<256x128xf32>
      %c0_12 = arith.constant 0 : index
      %c0_13 = arith.constant 0 : index
      %13 = vector.load %arg7[%c0_12, %c0_13] : memref<256x128xf32, #tpu.memory_space<vmem>>, vector<256x128xf32>
      tpu.vector_store %arg7[%c0_12, %c0_13], %12 {strides = array<i32>} : memref<256x128xf32, #tpu.memory_space<vmem>>, vector<256x128xf32>,
    } else {
    }
    %c0 = arith.constant 0 : index
    %c0_1 = arith.constant 0 : index
    %3 = vector.load %arg7[%c0, %c0_1] : memref<256x128xf32, #tpu.memory_space<vmem>>, vector<256x128xf32>
    %c0_2 = arith.constant 0 : index
    %c0_3 = arith.constant 0 : index
    %4 = vector.load %arg3[%c0_2, %c0_3] : memref<256x128xbf16, #tpu.memory_space<vmem>>, vector<256x128xbf16>
    %c0_4 = arith.constant 0 : index
    %c0_5 = arith.constant 0 : index
    %5 = vector.load %arg4[%c0_4, %c0_5] : memref<128x128xbf16, #tpu.memory_space<vmem>>, vector<128x128xbf16>
    %cst = arith.constant dense<0.000000e+00> : vector<256x128xf32>
    %6 = tpu.matmul %4, %5, %cst {dimension_numbers = #tpu.dot_dimension_numbers<[1], [0], [0], [1], [0, 0, 1, 1], [], []>} : vector<256x128xbf16>, vector<128x128xbf16>, vector<256x128xf32> -> vector<256x128xf32>
    %7 = arith.addf %3, %6 : vector<256x128xf32>
    %c0_6 = arith.constant 0 : index
    %c0_7 = arith.constant 0 : index
    %8 = vector.load %arg7[%c0_6, %c0_7] : memref<256x128xf32, #tpu.memory_space<vmem>>, vector<256x128xf32>
    tpu.vector_store %arg7[%c0_6, %c0_7], %7 {strides = array<i32>} : memref<256x128xf32, #tpu.memory_space<vmem>>, vector<256x128xf32>,
    %c0_i32_8 = arith.constant 0 : i32
    %9 = arith.cmpi eq, %arg2, %c0_i32_8 : i32
    %10 = arith.extui %9 : i1 to i32
    %c0_i32_9 = arith.constant 0 : i32
    %11 = arith.cmpi ne, %10, %c0_i32_9 : i32
    scf.if %11 {
      %c0_10 = arith.constant 0 : index
      %c0_11 = arith.constant 0 : index
      %12 = vector.load %arg7[%c0_10, %c0_11] : memref<256x128xf32, #tpu.memory_space<vmem>>, vector<256x128xf32>
      %c0_12 = arith.constant 0 : index
      %c0_13 = arith.constant 0 : index
      %13 = vector.load %arg6[%c0_12, %c0_13] : memref<256x128xf32, #tpu.memory_space<vmem>>, vector<256x128xf32>
      tpu.vector_store %arg6[%c0_12, %c0_13], %12 {strides = array<i32>} : memref<256x128xf32, #tpu.memory_space<vmem>>, vector<256x128xf32>,
    } else {
    }
    return
  }
  func.func @transform_0(%arg0: i32, %arg1: i32, %arg2: i32) -> (i32, i32) {
    %c0_i32 = arith.constant 0 : i32
    return %arg0, %arg2 : i32, i32
  }
  func.func @transform_1(%arg0: i32, %arg1: i32, %arg2: i32) -> (i32, i32) {
    %c0_i32 = arith.constant 0 : i32
    return %arg2, %arg1 : i32, i32
  }
  func.func @transform_2(%arg0: i32, %arg1: i32, %arg2: i32) -> (i32, i32) {
    %c0_i32 = arith.constant 0 : i32
    return %arg0, %arg1 : i32, i32
  }
  func.func @transform_3(%arg0: i32, %arg1: i32, %arg2: i32) -> (i32, i32) {
    %c0_i32 = arith.constant 0 : i32
    return %arg0, %arg1 : i32, i32
  }
}

module attributes {stable_mosaic.version = 11 : i64} {
  func.func @_rmsnorm_matmul_kernel(%arg0: i32, %arg1: i32, %arg2: i32, %arg3: memref<256x128xf32, #tpu.memory_space<vmem>>, %arg4: memref<1x128xf32, #tpu.memory_space<vmem>>, %arg5: memref<128x256xbf16, #tpu.memory_space<vmem>>, %arg6: memref<256x256xbf16, #tpu.memory_space<vmem>>, %arg7: memref<1x256x128xbf16, #tpu.memory_space<vmem>>, %arg8: memref<256x256xf32, #tpu.memory_space<vmem>>) attributes {dimension_semantics = [#tpu.dimension_semantics<parallel>, #tpu.dimension_semantics<arbitrary>, #tpu.dimension_semantics<arbitrary>], iteration_bounds = array<i64: 2, 1, 1>, scalar_prefetch = 0 : i64, scratch_operands = 2 : i64, tpu.core_type = #tpu.core_type<tc>, window_params = [{transform_indices = @transform_0, window_bounds = array<i64: 256, 128>}, {pipeline_mode = #tpu.pipeline_mode<synchronous>, transform_indices = @transform_1, window_bounds = array<i64: 1, 128>}, {transform_indices = @transform_2, window_bounds = array<i64: 128, 256>}, {transform_indices = @transform_3, window_bounds = array<i64: 256, 256>}]} {
    %c0_i32 = arith.constant 0 : i32
    %0 = arith.cmpi eq, %arg1, %c0_i32 : i32
    %c0_i32_0 = arith.constant 0 : i32
    %1 = arith.cmpi eq, %arg2, %c0_i32_0 : i32
    %2 = arith.andi %0, %1 : i1
    %3 = arith.extui %2 : i1 to i32
    %c0_i32_1 = arith.constant 0 : i32
    %4 = arith.cmpi ne, %3, %c0_i32_1 : i32
    scf.if %4 {
      %c0_13 = arith.constant 0 : index
      %c0_14 = arith.constant 0 : index
      %19 = vector.load %arg3[%c0_13, %c0_14] : memref<256x128xf32, #tpu.memory_space<vmem>>, vector<256x128xf32>
      %20 = arith.mulf %19, %19 : vector<256x128xf32>
      %cst_15 = arith.constant dense<0.000000e+00> : vector<256xf32>
      %21 = vector.multi_reduction <add>, %20, %cst_15 [1] : vector<256x128xf32> to vector<256xf32>
      %22 = vector.shape_cast %21 : vector<256xf32> to vector<256x1xf32>
      %cst_16 = arith.constant 1.280000e+02 : f32
      %23 = vector.broadcast %cst_16 : f32 to vector<256x1xf32>
      %24 = arith.divf %22, %23 : vector<256x1xf32>
      %cst_17 = arith.constant 9.99999997E-7 : f32
      %25 = vector.broadcast %cst_17 : f32 to vector<256x1xf32>
      %26 = arith.addf %24, %25 : vector<256x1xf32>
      %27 = math.rsqrt %26 : vector<256x1xf32>
      %28 = vector.broadcast %27 : vector<256x1xf32> to vector<256x128xf32>
      %29 = arith.mulf %19, %28 : vector<256x128xf32>
      %c0_18 = arith.constant 0 : index
      %c0_19 = arith.constant 0 : index
      %30 = vector.load %arg4[%c0_18, %c0_19] : memref<1x128xf32, #tpu.memory_space<vmem>>, vector<1x128xf32>
      %31 = vector.broadcast %30 : vector<1x128xf32> to vector<256x128xf32>
      %32 = arith.mulf %29, %31 : vector<256x128xf32>
      %33 = arith.truncf %32 : vector<256x128xf32> to vector<256x128xbf16>
      %c0_20 = arith.constant 0 : index
      %c0_21 = arith.constant 0 : index
      %c0_22 = arith.constant 0 : index
      %34 = vector.load %arg7[%c0_20, %c0_21, %c0_22] : memref<1x256x128xbf16, #tpu.memory_space<vmem>>, vector<1x256x128xbf16>
      %35 = vector.shape_cast %34 : vector<1x256x128xbf16> to vector<256x128xbf16>
      %36 = vector.shape_cast %33 : vector<256x128xbf16> to vector<1x256x128xbf16>
      tpu.vector_store %arg7[%c0_20, %c0_21, %c0_22], %36 {strides = array<i32>} : memref<1x256x128xbf16, #tpu.memory_space<vmem>>, vector<1x256x128xbf16>,
    } else {
    }
    %c0_i32_2 = arith.constant 0 : i32
    %5 = arith.cmpi eq, %arg2, %c0_i32_2 : i32
    %6 = arith.extui %5 : i1 to i32
    %c0_i32_3 = arith.constant 0 : i32
    %7 = arith.cmpi ne, %6, %c0_i32_3 : i32
    scf.if %7 {
      %cst_13 = arith.constant 0.000000e+00 : f32
      %19 = vector.broadcast %cst_13 : f32 to vector<256x256xf32>
      %c0_14 = arith.constant 0 : index
      %c0_15 = arith.constant 0 : index
      %20 = vector.load %arg8[%c0_14, %c0_15] : memref<256x256xf32, #tpu.memory_space<vmem>>, vector<256x256xf32>
      tpu.vector_store %arg8[%c0_14, %c0_15], %19 {strides = array<i32>} : memref<256x256xf32, #tpu.memory_space<vmem>>, vector<256x256xf32>,
    } else {
    }
    %c0 = arith.constant 0 : index
    %c0_4 = arith.constant 0 : index
    %8 = vector.load %arg8[%c0, %c0_4] : memref<256x256xf32, #tpu.memory_space<vmem>>, vector<256x256xf32>
    %9 = arith.index_cast %arg2 : i32 to index
    %c0_5 = arith.constant 0 : index
    %c0_6 = arith.constant 0 : index
    %10 = vector.load %arg7[%9, %c0_5, %c0_6] : memref<1x256x128xbf16, #tpu.memory_space<vmem>>, vector<1x256x128xbf16>
    %11 = vector.shape_cast %10 : vector<1x256x128xbf16> to vector<256x128xbf16>
    %c0_7 = arith.constant 0 : index
    %c0_8 = arith.constant 0 : index
    %12 = vector.load %arg5[%c0_7, %c0_8] : memref<128x256xbf16, #tpu.memory_space<vmem>>, vector<128x256xbf16>
    %cst = arith.constant dense<0.000000e+00> : vector<256x256xf32>
    %13 = tpu.matmul %11, %12, %cst {dimension_numbers = #tpu.dot_dimension_numbers<[1], [0], [0], [1], [0, 0, 1, 1], [], []>} : vector<256x128xbf16>, vector<128x256xbf16>, vector<256x256xf32> -> vector<256x256xf32>
    %14 = arith.addf %8, %13 : vector<256x256xf32>
    %c0_9 = arith.constant 0 : index
    %c0_10 = arith.constant 0 : index
    %15 = vector.load %arg8[%c0_9, %c0_10] : memref<256x256xf32, #tpu.memory_space<vmem>>, vector<256x256xf32>
    tpu.vector_store %arg8[%c0_9, %c0_10], %14 {strides = array<i32>} : memref<256x256xf32, #tpu.memory_space<vmem>>, vector<256x256xf32>,
    %c0_i32_11 = arith.constant 0 : i32
    %16 = arith.cmpi eq, %arg2, %c0_i32_11 : i32
    %17 = arith.extui %16 : i1 to i32
    %c0_i32_12 = arith.constant 0 : i32
    %18 = arith.cmpi ne, %17, %c0_i32_12 : i32
    scf.if %18 {
      %c0_13 = arith.constant 0 : index
      %c0_14 = arith.constant 0 : index
      %19 = vector.load %arg8[%c0_13, %c0_14] : memref<256x256xf32, #tpu.memory_space<vmem>>, vector<256x256xf32>
      %20 = arith.truncf %19 : vector<256x256xf32> to vector<256x256xbf16>
      %c0_15 = arith.constant 0 : index
      %c0_16 = arith.constant 0 : index
      %21 = vector.load %arg6[%c0_15, %c0_16] : memref<256x256xbf16, #tpu.memory_space<vmem>>, vector<256x256xbf16>
      tpu.vector_store %arg6[%c0_15, %c0_16], %20 {strides = array<i32>} : memref<256x256xbf16, #tpu.memory_space<vmem>>, vector<256x256xbf16>,
    } else {
    }
    return
  }
  func.func @transform_0(%arg0: i32, %arg1: i32, %arg2: i32) -> (i32, i32) {
    %c0_i32 = arith.constant 0 : i32
    %c0_i32_0 = arith.constant 0 : i32
    return %arg0, %c0_i32 : i32, i32
  }
  func.func @transform_1(%arg0: i32, %arg1: i32, %arg2: i32) -> (i32, i32) {
    %c0_i32 = arith.constant 0 : i32
    %c0_i32_0 = arith.constant 0 : i32
    %c0_i32_1 = arith.constant 0 : i32
    return %c0_i32, %c0_i32_0 : i32, i32
  }
  func.func @transform_2(%arg0: i32, %arg1: i32, %arg2: i32) -> (i32, i32) {
    %c0_i32 = arith.constant 0 : i32
    return %arg2, %arg1 : i32, i32
  }
  func.func @transform_3(%arg0: i32, %arg1: i32, %arg2: i32) -> (i32, i32) {
    %c0_i32 = arith.constant 0 : i32
    return %arg0, %arg1 : i32, i32
  }
}

module attributes {stable_mosaic.version = 11 : i64} {
  func.func @_flash_gqa_kernel(%arg0: i32, %arg1: i32, %arg2: i32, %arg3: i32, %arg4: memref<1x128x128xbf16, #tpu.memory_space<vmem>>, %arg5: memref<1x128x128xbf16, #tpu.memory_space<vmem>>, %arg6: memref<1x128x128xbf16, #tpu.memory_space<vmem>>, %arg7: memref<256x64xbf16, #tpu.memory_space<vmem>>, %arg8: memref<256x1xf32, #tpu.memory_space<vmem>>, %arg9: memref<256x1xf32, #tpu.memory_space<vmem>>, %arg10: memref<256x64xf32, #tpu.memory_space<vmem>>) attributes {dimension_semantics = [#tpu.dimension_semantics<parallel>, #tpu.dimension_semantics<parallel>, #tpu.dimension_semantics<parallel>, #tpu.dimension_semantics<arbitrary>], iteration_bounds = array<i64: 2, 1, 2, 2>, scalar_prefetch = 0 : i64, scratch_operands = 4 : i64, tpu.core_type = #tpu.core_type<tc>, window_params = [{transform_indices = @transform_0, window_bounds = array<i64: 1, 128, 128>}, {transform_indices = @transform_1, window_bounds = array<i64: 1, 128, 128>}, {transform_indices = @transform_2, window_bounds = array<i64: 1, 128, 128>}]} {
    %c0_i32 = arith.constant 0 : i32
    %0 = arith.cmpi eq, %arg3, %c0_i32 : i32
    %1 = arith.extui %0 : i1 to i32
    %c0_i32_0 = arith.constant 0 : i32
    %2 = arith.cmpi ne, %1, %c0_i32_0 : i32
    scf.if %2 {
      %c0 = arith.constant 0 : index
      %c0_5 = arith.constant 0 : index
      %c0_6 = arith.constant 0 : index
      %12 = vector.load %arg4[%c0, %c0_5, %c0_6] : memref<1x128x128xbf16, #tpu.memory_space<vmem>>, vector<1x128x64xbf16>
      %13 = vector.shape_cast %12 : vector<1x128x64xbf16> to vector<128x64xbf16>
      %c0_7 = arith.constant 0 : index
      %c0_8 = arith.constant 0 : index
      %14 = vector.load %arg7[%c0_7, %c0_8] : memref<256x64xbf16, #tpu.memory_space<vmem>>, vector<128x64xbf16>
      tpu.vector_store %arg7[%c0_7, %c0_8], %13 {strides = array<i32>} : memref<256x64xbf16, #tpu.memory_space<vmem>>, vector<128x64xbf16>,
      %c0_9 = arith.constant 0 : index
      %c0_10 = arith.constant 0 : index
      %c64 = arith.constant 64 : index
      %15 = vector.load %arg4[%c0_9, %c0_10, %c64] : memref<1x128x128xbf16, #tpu.memory_space<vmem>>, vector<1x128x64xbf16>
      %16 = vector.shape_cast %15 : vector<1x128x64xbf16> to vector<128x64xbf16>
      %c128 = arith.constant 128 : index
      %c0_11 = arith.constant 0 : index
      %17 = vector.load %arg7[%c128, %c0_11] : memref<256x64xbf16, #tpu.memory_space<vmem>>, vector<128x64xbf16>
      tpu.vector_store %arg7[%c128, %c0_11], %16 {strides = array<i32>} : memref<256x64xbf16, #tpu.memory_space<vmem>>, vector<128x64xbf16>,
      %cst = arith.constant 0xFF800000 : f32
      %18 = vector.broadcast %cst : f32 to vector<256x1xf32>
      %c0_12 = arith.constant 0 : index
      %c0_13 = arith.constant 0 : index
      %19 = vector.load %arg8[%c0_12, %c0_13] : memref<256x1xf32, #tpu.memory_space<vmem>>, vector<256x1xf32>
      tpu.vector_store %arg8[%c0_12, %c0_13], %18 {strides = array<i32>} : memref<256x1xf32, #tpu.memory_space<vmem>>, vector<256x1xf32>,
      %cst_14 = arith.constant 0.000000e+00 : f32
      %20 = vector.broadcast %cst_14 : f32 to vector<256x1xf32>
      %c0_15 = arith.constant 0 : index
      %c0_16 = arith.constant 0 : index
      %21 = vector.load %arg9[%c0_15, %c0_16] : memref<256x1xf32, #tpu.memory_space<vmem>>, vector<256x1xf32>
      tpu.vector_store %arg9[%c0_15, %c0_16], %20 {strides = array<i32>} : memref<256x1xf32, #tpu.memory_space<vmem>>, vector<256x1xf32>,
      %cst_17 = arith.constant 0.000000e+00 : f32
      %22 = vector.broadcast %cst_17 : f32 to vector<256x64xf32>
      %c0_18 = arith.constant 0 : index
      %c0_19 = arith.constant 0 : index
      %23 = vector.load %arg10[%c0_18, %c0_19] : memref<256x64xf32, #tpu.memory_space<vmem>>, vector<256x64xf32>
      tpu.vector_store %arg10[%c0_18, %c0_19], %22 {strides = array<i32>} : memref<256x64xf32, #tpu.memory_space<vmem>>, vector<256x64xf32>,
    } else {
    }
    %c128_i32 = arith.constant 128 : i32
    %3 = arith.muli %arg3, %c128_i32 : i32
    %c1_i32 = arith.constant 1 : i32
    %4 = arith.addi %arg2, %c1_i32 : i32
    %c128_i32_1 = arith.constant 128 : i32
    %5 = arith.muli %4, %c128_i32_1 : i32
    %6 = arith.cmpi slt, %3, %5 : i32
    %7 = arith.extui %6 : i1 to i32
    %c0_i32_2 = arith.constant 0 : i32
    %8 = arith.cmpi ne, %7, %c0_i32_2 : i32
    scf.if %8 {
      %c0 = arith.constant 0 : index
      %c0_5 = arith.constant 0 : index
      %c0_6 = arith.constant 0 : index
      %12 = vector.load %arg5[%c0, %c0_5, %c0_6] : memref<1x128x128xbf16, #tpu.memory_space<vmem>>, vector<1x128x64xbf16>
      %13 = vector.shape_cast %12 : vector<1x128x64xbf16> to vector<128x64xbf16>
      %c0_7 = arith.constant 0 : index
      %c0_8 = arith.constant 0 : index
      %c64 = arith.constant 64 : index
      %14 = vector.load %arg5[%c0_7, %c0_8, %c64] : memref<1x128x128xbf16, #tpu.memory_space<vmem>>, vector<1x128x64xbf16>
      %15 = vector.shape_cast %14 : vector<1x128x64xbf16> to vector<128x64xbf16>
      %c0_9 = arith.constant 0 : index
      %c0_10 = arith.constant 0 : index
      %16 = vector.load %arg7[%c0_9, %c0_10] : memref<256x64xbf16, #tpu.memory_space<vmem>>, vector<256x64xbf16>
      %cst = arith.constant dense<0.000000e+00> : vector<256x128xf32>
      %17 = tpu.matmul %16, %13, %cst {dimension_numbers = #tpu.dot_dimension_numbers<[1], [1], [0], [0], [0, 0, 1, 0], [], []>} : vector<256x64xbf16>, vector<128x64xbf16>, vector<256x128xf32> -> vector<256x128xf32>
      %cst_11 = arith.constant 1.250000e-01 : f32
      %18 = vector.broadcast %cst_11 : f32 to vector<256x128xf32>
      %19 = arith.mulf %17, %18 : vector<256x128xf32>
      %20 = tpu.iota {dimensions = array<i32: 0>} : vector<256x128xi32>
      %21 = tpu.iota {dimensions = array<i32: 1>} : vector<256x128xi32>
      %c128_i32_12 = arith.constant 128 : i32
      %22 = arith.muli %arg2, %c128_i32_12 : i32
      %c128_i32_13 = arith.constant 128 : i32
      %c0_i32_14 = arith.constant 0 : i32
      %23 = arith.cmpi eq, %c128_i32_13, %c0_i32_14 : i32
      %c1_i32_15 = arith.constant 1 : i32
      %24 = arith.select %23, %c1_i32_15, %c128_i32_13 : i32
      %25 = vector.broadcast %24 : i32 to vector<256x128xi32>
      %26 = arith.remsi %20, %25 : vector<256x128xi32>
      %c0_i32_16 = arith.constant 0 : i32
      %27 = vector.broadcast %c0_i32_16 : i32 to vector<256x128xi32>
      %28 = arith.cmpi ne, %26, %27 : vector<256x128xi32>
      %c0_i32_17 = arith.constant 0 : i32
      %29 = vector.broadcast %c0_i32_17 : i32 to vector<256x128xi32>
      %30 = arith.cmpi slt, %26, %29 : vector<256x128xi32>
      %c0_i32_18 = arith.constant 0 : i32
      %31 = arith.cmpi slt, %24, %c0_i32_18 : i32
      %32 = vector.broadcast %31 : i1 to vector<256x128xi1>
      %33 = vector.broadcast %32 : vector<256x128xi1> to vector<256x128xi1>
      %34 = arith.xori %30, %33 : vector<256x128xi1>
      %35 = arith.andi %34, %28 : vector<256x128xi1>
      %36 = vector.broadcast %24 : i32 to vector<256x128xi32>
      %37 = arith.addi %26, %36 : vector<256x128xi32>
      %38 = arith.select %35, %37, %26 : vector<256x128xi1>, vector<256x128xi32>
      %39 = vector.broadcast %22 : i32 to vector<256x128xi32>
      %40 = arith.addi %39, %38 : vector<256x128xi32>
      %c128_i32_19 = arith.constant 128 : i32
      %41 = arith.muli %arg3, %c128_i32_19 : i32
      %42 = vector.broadcast %41 : i32 to vector<256x128xi32>
      %43 = arith.addi %42, %21 : vector<256x128xi32>
      %44 = arith.cmpi sle, %43, %40 : vector<256x128xi32>
      %cst_20 = arith.constant -1.000000e+30 : f32
      %45 = vector.broadcast %cst_20 : f32 to vector<256x128xf32>
      %46 = arith.select %44, %19, %45 : vector<256x128xi1>, vector<256x128xf32>
      %c0_21 = arith.constant 0 : index
      %c0_22 = arith.constant 0 : index
      %47 = vector.load %arg8[%c0_21, %c0_22] : memref<256x1xf32, #tpu.memory_space<vmem>>, vector<256x1xf32>
      %cst_23 = arith.constant dense<0xFF800000> : vector<256xf32>
      %48 = vector.multi_reduction <maximumf>, %46, %cst_23 [1] : vector<256x128xf32> to vector<256xf32>
      %49 = vector.shape_cast %48 : vector<256xf32> to vector<256x1xf32>
      %50 = arith.maximumf %47, %49 : vector<256x1xf32>
      %51 = arith.subf %47, %50 : vector<256x1xf32>
      %52 = math.exp %51 : vector<256x1xf32>
      %53 = vector.broadcast %50 : vector<256x1xf32> to vector<256x128xf32>
      %54 = arith.subf %46, %53 : vector<256x128xf32>
      %55 = math.exp %54 : vector<256x128xf32>
      %c0_24 = arith.constant 0 : index
      %c0_25 = arith.constant 0 : index
      %56 = vector.load %arg9[%c0_24, %c0_25] : memref<256x1xf32, #tpu.memory_space<vmem>>, vector<256x1xf32>
      %57 = arith.mulf %52, %56 : vector<256x1xf32>
      %cst_26 = arith.constant dense<0.000000e+00> : vector<256xf32>
      %58 = vector.multi_reduction <add>, %55, %cst_26 [1] : vector<256x128xf32> to vector<256xf32>
      %59 = vector.shape_cast %58 : vector<256xf32> to vector<256x1xf32>
      %60 = arith.addf %57, %59 : vector<256x1xf32>
      %c0_27 = arith.constant 0 : index
      %c0_28 = arith.constant 0 : index
      %61 = vector.load %arg9[%c0_27, %c0_28] : memref<256x1xf32, #tpu.memory_space<vmem>>, vector<256x1xf32>
      tpu.vector_store %arg9[%c0_27, %c0_28], %60 {strides = array<i32>} : memref<256x1xf32, #tpu.memory_space<vmem>>, vector<256x1xf32>,
      %c0_29 = arith.constant 0 : index
      %c0_30 = arith.constant 0 : index
      %62 = vector.load %arg10[%c0_29, %c0_30] : memref<256x64xf32, #tpu.memory_space<vmem>>, vector<256x64xf32>
      %63 = vector.broadcast %52 : vector<256x1xf32> to vector<256x64xf32>
      %64 = arith.mulf %63, %62 : vector<256x64xf32>
      %65 = arith.truncf %55 : vector<256x128xf32> to vector<256x128xbf16>
      %cst_31 = arith.constant dense<0.000000e+00> : vector<256x64xf32>
      %66 = tpu.matmul %65, %15, %cst_31 {dimension_numbers = #tpu.dot_dimension_numbers<[1], [0], [0], [1], [0, 0, 1, 1], [], []>} : vector<256x128xbf16>, vector<128x64xbf16>, vector<256x64xf32> -> vector<256x64xf32>
      %67 = arith.addf %64, %66 : vector<256x64xf32>
      %c0_32 = arith.constant 0 : index
      %c0_33 = arith.constant 0 : index
      %68 = vector.load %arg10[%c0_32, %c0_33] : memref<256x64xf32, #tpu.memory_space<vmem>>, vector<256x64xf32>
      tpu.vector_store %arg10[%c0_32, %c0_33], %67 {strides = array<i32>} : memref<256x64xf32, #tpu.memory_space<vmem>>, vector<256x64xf32>,
      %c0_34 = arith.constant 0 : index
      %c0_35 = arith.constant 0 : index
      %69 = vector.load %arg8[%c0_34, %c0_35] : memref<256x1xf32, #tpu.memory_space<vmem>>, vector<256x1xf32>
      tpu.vector_store %arg8[%c0_34, %c0_35], %50 {strides = array<i32>} : memref<256x1xf32, #tpu.memory_space<vmem>>, vector<256x1xf32>,
    } else {
    }
    %c1_i32_3 = arith.constant 1 : i32
    %9 = arith.cmpi eq, %arg3, %c1_i32_3 : i32
    %10 = arith.extui %9 : i1 to i32
    %c0_i32_4 = arith.constant 0 : i32
    %11 = arith.cmpi ne, %10, %c0_i32_4 : i32
    scf.if %11 {
      %c0 = arith.constant 0 : index
      %c0_5 = arith.constant 0 : index
      %12 = vector.load %arg10[%c0, %c0_5] : memref<256x64xf32, #tpu.memory_space<vmem>>, vector<256x64xf32>
      %c0_6 = arith.constant 0 : index
      %c0_7 = arith.constant 0 : index
      %13 = vector.load %arg9[%c0_6, %c0_7] : memref<256x1xf32, #tpu.memory_space<vmem>>, vector<256x1xf32>
      %14 = vector.broadcast %13 : vector<256x1xf32> to vector<256x64xf32>
      %15 = arith.divf %12, %14 : vector<256x64xf32>
      %16 = vector.extract_strided_slice %15 {offsets = [0, 0], sizes = [128, 64], strides = [1, 1]} : vector<256x64xf32> to vector<128x64xf32>
      %17 = arith.truncf %16 : vector<128x64xf32> to vector<128x64xbf16>
      %c0_8 = arith.constant 0 : index
      %c0_9 = arith.constant 0 : index
      %c0_10 = arith.constant 0 : index
      %18 = vector.load %arg6[%c0_8, %c0_9, %c0_10] : memref<1x128x128xbf16, #tpu.memory_space<vmem>>, vector<1x128x64xbf16>
      %19 = vector.shape_cast %18 : vector<1x128x64xbf16> to vector<128x64xbf16>
      %20 = vector.shape_cast %17 : vector<128x64xbf16> to vector<1x128x64xbf16>
      tpu.vector_store %arg6[%c0_8, %c0_9, %c0_10], %20 {strides = array<i32>} : memref<1x128x128xbf16, #tpu.memory_space<vmem>>, vector<1x128x64xbf16>,
      %21 = vector.extract_strided_slice %15 {offsets = [128, 0], sizes = [128, 64], strides = [1, 1]} : vector<256x64xf32> to vector<128x64xf32>
      %22 = arith.truncf %21 : vector<128x64xf32> to vector<128x64xbf16>
      %c0_11 = arith.constant 0 : index
      %c0_12 = arith.constant 0 : index
      %c64 = arith.constant 64 : index
      %23 = vector.load %arg6[%c0_11, %c0_12, %c64] : memref<1x128x128xbf16, #tpu.memory_space<vmem>>, vector<1x128x64xbf16>
      %24 = vector.shape_cast %23 : vector<1x128x64xbf16> to vector<128x64xbf16>
      %25 = vector.shape_cast %22 : vector<128x64xbf16> to vector<1x128x64xbf16>
      tpu.vector_store %arg6[%c0_11, %c0_12, %c64], %25 {strides = array<i32>} : memref<1x128x128xbf16, #tpu.memory_space<vmem>>, vector<1x128x64xbf16>,
    } else {
    }
    return
  }
  func.func @transform_0(%arg0: i32, %arg1: i32, %arg2: i32, %arg3: i32) -> (i32, i32, i32) {
    %c0_i32 = arith.constant 0 : i32
    return %arg0, %arg2, %arg1 : i32, i32, i32
  }
  func.func @transform_1(%arg0: i32, %arg1: i32, %arg2: i32, %arg3: i32) -> (i32, i32, i32) {
    %c1_i32 = arith.constant 1 : i32
    %0 = arith.addi %c1_i32, %arg1 : i32
    %c0_i32 = arith.constant 0 : i32
    return %arg0, %arg3, %0 : i32, i32, i32
  }
  func.func @transform_2(%arg0: i32, %arg1: i32, %arg2: i32, %arg3: i32) -> (i32, i32, i32) {
    %c0_i32 = arith.constant 0 : i32
    return %arg0, %arg2, %arg1 : i32, i32, i32
  }
}

module attributes {stable_mosaic.version = 11 : i64} {
  func.func @_rmsnorm_matmul_kernel(%arg0: i32, %arg1: i32, %arg2: i32, %arg3: memref<256x128xf32, #tpu.memory_space<vmem>>, %arg4: memref<1x128xf32, #tpu.memory_space<vmem>>, %arg5: memref<128x256xbf16, #tpu.memory_space<vmem>>, %arg6: memref<256x256xbf16, #tpu.memory_space<vmem>>, %arg7: memref<1x256x128xbf16, #tpu.memory_space<vmem>>, %arg8: memref<256x256xf32, #tpu.memory_space<vmem>>) attributes {dimension_semantics = [#tpu.dimension_semantics<parallel>, #tpu.dimension_semantics<arbitrary>, #tpu.dimension_semantics<arbitrary>], iteration_bounds = array<i64: 2, 2, 1>, scalar_prefetch = 0 : i64, scratch_operands = 2 : i64, tpu.core_type = #tpu.core_type<tc>, window_params = [{transform_indices = @transform_0, window_bounds = array<i64: 256, 128>}, {pipeline_mode = #tpu.pipeline_mode<synchronous>, transform_indices = @transform_1, window_bounds = array<i64: 1, 128>}, {transform_indices = @transform_2, window_bounds = array<i64: 128, 256>}, {transform_indices = @transform_3, window_bounds = array<i64: 256, 256>}]} {
    %c0_i32 = arith.constant 0 : i32
    %0 = arith.cmpi eq, %arg1, %c0_i32 : i32
    %c0_i32_0 = arith.constant 0 : i32
    %1 = arith.cmpi eq, %arg2, %c0_i32_0 : i32
    %2 = arith.andi %0, %1 : i1
    %3 = arith.extui %2 : i1 to i32
    %c0_i32_1 = arith.constant 0 : i32
    %4 = arith.cmpi ne, %3, %c0_i32_1 : i32
    scf.if %4 {
      %c0_13 = arith.constant 0 : index
      %c0_14 = arith.constant 0 : index
      %19 = vector.load %arg3[%c0_13, %c0_14] : memref<256x128xf32, #tpu.memory_space<vmem>>, vector<256x128xf32>
      %20 = arith.mulf %19, %19 : vector<256x128xf32>
      %cst_15 = arith.constant dense<0.000000e+00> : vector<256xf32>
      %21 = vector.multi_reduction <add>, %20, %cst_15 [1] : vector<256x128xf32> to vector<256xf32>
      %22 = vector.shape_cast %21 : vector<256xf32> to vector<256x1xf32>
      %cst_16 = arith.constant 1.280000e+02 : f32
      %23 = vector.broadcast %cst_16 : f32 to vector<256x1xf32>
      %24 = arith.divf %22, %23 : vector<256x1xf32>
      %cst_17 = arith.constant 9.99999997E-7 : f32
      %25 = vector.broadcast %cst_17 : f32 to vector<256x1xf32>
      %26 = arith.addf %24, %25 : vector<256x1xf32>
      %27 = math.rsqrt %26 : vector<256x1xf32>
      %28 = vector.broadcast %27 : vector<256x1xf32> to vector<256x128xf32>
      %29 = arith.mulf %19, %28 : vector<256x128xf32>
      %c0_18 = arith.constant 0 : index
      %c0_19 = arith.constant 0 : index
      %30 = vector.load %arg4[%c0_18, %c0_19] : memref<1x128xf32, #tpu.memory_space<vmem>>, vector<1x128xf32>
      %31 = vector.broadcast %30 : vector<1x128xf32> to vector<256x128xf32>
      %32 = arith.mulf %29, %31 : vector<256x128xf32>
      %33 = arith.truncf %32 : vector<256x128xf32> to vector<256x128xbf16>
      %c0_20 = arith.constant 0 : index
      %c0_21 = arith.constant 0 : index
      %c0_22 = arith.constant 0 : index
      %34 = vector.load %arg7[%c0_20, %c0_21, %c0_22] : memref<1x256x128xbf16, #tpu.memory_space<vmem>>, vector<1x256x128xbf16>
      %35 = vector.shape_cast %34 : vector<1x256x128xbf16> to vector<256x128xbf16>
      %36 = vector.shape_cast %33 : vector<256x128xbf16> to vector<1x256x128xbf16>
      tpu.vector_store %arg7[%c0_20, %c0_21, %c0_22], %36 {strides = array<i32>} : memref<1x256x128xbf16, #tpu.memory_space<vmem>>, vector<1x256x128xbf16>,
    } else {
    }
    %c0_i32_2 = arith.constant 0 : i32
    %5 = arith.cmpi eq, %arg2, %c0_i32_2 : i32
    %6 = arith.extui %5 : i1 to i32
    %c0_i32_3 = arith.constant 0 : i32
    %7 = arith.cmpi ne, %6, %c0_i32_3 : i32
    scf.if %7 {
      %cst_13 = arith.constant 0.000000e+00 : f32
      %19 = vector.broadcast %cst_13 : f32 to vector<256x256xf32>
      %c0_14 = arith.constant 0 : index
      %c0_15 = arith.constant 0 : index
      %20 = vector.load %arg8[%c0_14, %c0_15] : memref<256x256xf32, #tpu.memory_space<vmem>>, vector<256x256xf32>
      tpu.vector_store %arg8[%c0_14, %c0_15], %19 {strides = array<i32>} : memref<256x256xf32, #tpu.memory_space<vmem>>, vector<256x256xf32>,
    } else {
    }
    %c0 = arith.constant 0 : index
    %c0_4 = arith.constant 0 : index
    %8 = vector.load %arg8[%c0, %c0_4] : memref<256x256xf32, #tpu.memory_space<vmem>>, vector<256x256xf32>
    %9 = arith.index_cast %arg2 : i32 to index
    %c0_5 = arith.constant 0 : index
    %c0_6 = arith.constant 0 : index
    %10 = vector.load %arg7[%9, %c0_5, %c0_6] : memref<1x256x128xbf16, #tpu.memory_space<vmem>>, vector<1x256x128xbf16>
    %11 = vector.shape_cast %10 : vector<1x256x128xbf16> to vector<256x128xbf16>
    %c0_7 = arith.constant 0 : index
    %c0_8 = arith.constant 0 : index
    %12 = vector.load %arg5[%c0_7, %c0_8] : memref<128x256xbf16, #tpu.memory_space<vmem>>, vector<128x256xbf16>
    %cst = arith.constant dense<0.000000e+00> : vector<256x256xf32>
    %13 = tpu.matmul %11, %12, %cst {dimension_numbers = #tpu.dot_dimension_numbers<[1], [0], [0], [1], [0, 0, 1, 1], [], []>} : vector<256x128xbf16>, vector<128x256xbf16>, vector<256x256xf32> -> vector<256x256xf32>
    %14 = arith.addf %8, %13 : vector<256x256xf32>
    %c0_9 = arith.constant 0 : index
    %c0_10 = arith.constant 0 : index
    %15 = vector.load %arg8[%c0_9, %c0_10] : memref<256x256xf32, #tpu.memory_space<vmem>>, vector<256x256xf32>
    tpu.vector_store %arg8[%c0_9, %c0_10], %14 {strides = array<i32>} : memref<256x256xf32, #tpu.memory_space<vmem>>, vector<256x256xf32>,
    %c0_i32_11 = arith.constant 0 : i32
    %16 = arith.cmpi eq, %arg2, %c0_i32_11 : i32
    %17 = arith.extui %16 : i1 to i32
    %c0_i32_12 = arith.constant 0 : i32
    %18 = arith.cmpi ne, %17, %c0_i32_12 : i32
    scf.if %18 {
      %c0_13 = arith.constant 0 : index
      %c0_14 = arith.constant 0 : index
      %19 = vector.load %arg8[%c0_13, %c0_14] : memref<256x256xf32, #tpu.memory_space<vmem>>, vector<256x256xf32>
      %20 = arith.truncf %19 : vector<256x256xf32> to vector<256x256xbf16>
      %c0_15 = arith.constant 0 : index
      %c0_16 = arith.constant 0 : index
      %21 = vector.load %arg6[%c0_15, %c0_16] : memref<256x256xbf16, #tpu.memory_space<vmem>>, vector<256x256xbf16>
      tpu.vector_store %arg6[%c0_15, %c0_16], %20 {strides = array<i32>} : memref<256x256xbf16, #tpu.memory_space<vmem>>, vector<256x256xbf16>,
    } else {
    }
    return
  }
  func.func @transform_0(%arg0: i32, %arg1: i32, %arg2: i32) -> (i32, i32) {
    %c0_i32 = arith.constant 0 : i32
    %c0_i32_0 = arith.constant 0 : i32
    return %arg0, %c0_i32 : i32, i32
  }
  func.func @transform_1(%arg0: i32, %arg1: i32, %arg2: i32) -> (i32, i32) {
    %c0_i32 = arith.constant 0 : i32
    %c0_i32_0 = arith.constant 0 : i32
    %c0_i32_1 = arith.constant 0 : i32
    return %c0_i32, %c0_i32_0 : i32, i32
  }
  func.func @transform_2(%arg0: i32, %arg1: i32, %arg2: i32) -> (i32, i32) {
    %c0_i32 = arith.constant 0 : i32
    return %arg2, %arg1 : i32, i32
  }
  func.func @transform_3(%arg0: i32, %arg1: i32, %arg2: i32) -> (i32, i32) {
    %c0_i32 = arith.constant 0 : i32
    return %arg0, %arg1 : i32, i32
  }
}

module attributes {stable_mosaic.version = 11 : i64} {
  func.func @_swiglu_down_kernel(%arg0: i32, %arg1: i32, %arg2: i32, %arg3: memref<256x128xbf16, #tpu.memory_space<vmem>>, %arg4: memref<256x128xbf16, #tpu.memory_space<vmem>>, %arg5: memref<128x128xbf16, #tpu.memory_space<vmem>>, %arg6: memref<256x128xf32, #tpu.memory_space<vmem>>, %arg7: memref<256x128xf32, #tpu.memory_space<vmem>>, %arg8: memref<256x128xf32, #tpu.memory_space<vmem>>) attributes {dimension_semantics = [#tpu.dimension_semantics<parallel>, #tpu.dimension_semantics<parallel>, #tpu.dimension_semantics<arbitrary>], iteration_bounds = array<i64: 2, 1, 2>, scalar_prefetch = 0 : i64, scratch_operands = 1 : i64, tpu.core_type = #tpu.core_type<tc>, window_params = [{transform_indices = @transform_0, window_bounds = array<i64: 256, 128>}, {transform_indices = @transform_1, window_bounds = array<i64: 256, 128>}, {transform_indices = @transform_2, window_bounds = array<i64: 128, 128>}, {transform_indices = @transform_3, window_bounds = array<i64: 256, 128>}, {transform_indices = @transform_4, window_bounds = array<i64: 256, 128>}]} {
    %c0_i32 = arith.constant 0 : i32
    %0 = arith.cmpi eq, %arg2, %c0_i32 : i32
    %1 = arith.extui %0 : i1 to i32
    %c0_i32_0 = arith.constant 0 : i32
    %2 = arith.cmpi ne, %1, %c0_i32_0 : i32
    scf.if %2 {
      %c0_12 = arith.constant 0 : index
      %c0_13 = arith.constant 0 : index
      %23 = vector.load %arg6[%c0_12, %c0_13] : memref<256x128xf32, #tpu.memory_space<vmem>>, vector<256x128xf32>
      %c0_14 = arith.constant 0 : index
      %c0_15 = arith.constant 0 : index
      %24 = vector.load %arg8[%c0_14, %c0_15] : memref<256x128xf32, #tpu.memory_space<vmem>>, vector<256x128xf32>
      tpu.vector_store %arg8[%c0_14, %c0_15], %23 {strides = array<i32>} : memref<256x128xf32, #tpu.memory_space<vmem>>, vector<256x128xf32>,
    } else {
    }
    %c0 = arith.constant 0 : index
    %c0_1 = arith.constant 0 : index
    %3 = vector.load %arg3[%c0, %c0_1] : memref<256x128xbf16, #tpu.memory_space<vmem>>, vector<256x128xbf16>
    %4 = arith.extf %3 : vector<256x128xbf16> to vector<256x128xf32>
    %c0_2 = arith.constant 0 : index
    %c0_3 = arith.constant 0 : index
    %5 = vector.load %arg4[%c0_2, %c0_3] : memref<256x128xbf16, #tpu.memory_space<vmem>>, vector<256x128xbf16>
    %6 = arith.extf %5 : vector<256x128xbf16> to vector<256x128xf32>
    %7 = arith.negf %4 : vector<256x128xf32>
    %8 = math.exp %7 : vector<256x128xf32>
    %cst = arith.constant 1.000000e+00 : f32
    %9 = vector.broadcast %cst : f32 to vector<256x128xf32>
    %10 = arith.addf %9, %8 : vector<256x128xf32>
    %11 = arith.divf %9, %10 : vector<256x128xf32>
    %12 = arith.mulf %4, %11 : vector<256x128xf32>
    %13 = arith.mulf %12, %6 : vector<256x128xf32>
    %14 = arith.truncf %13 : vector<256x128xf32> to vector<256x128xbf16>
    %c0_4 = arith.constant 0 : index
    %c0_5 = arith.constant 0 : index
    %15 = vector.load %arg8[%c0_4, %c0_5] : memref<256x128xf32, #tpu.memory_space<vmem>>, vector<256x128xf32>
    %c0_6 = arith.constant 0 : index
    %c0_7 = arith.constant 0 : index
    %16 = vector.load %arg5[%c0_6, %c0_7] : memref<128x128xbf16, #tpu.memory_space<vmem>>, vector<128x128xbf16>
    %cst_8 = arith.constant dense<0.000000e+00> : vector<256x128xf32>
    %17 = tpu.matmul %14, %16, %cst_8 {dimension_numbers = #tpu.dot_dimension_numbers<[1], [0], [0], [1], [0, 0, 1, 1], [], []>} : vector<256x128xbf16>, vector<128x128xbf16>, vector<256x128xf32> -> vector<256x128xf32>
    %18 = arith.addf %15, %17 : vector<256x128xf32>
    %c0_9 = arith.constant 0 : index
    %c0_10 = arith.constant 0 : index
    %19 = vector.load %arg8[%c0_9, %c0_10] : memref<256x128xf32, #tpu.memory_space<vmem>>, vector<256x128xf32>
    tpu.vector_store %arg8[%c0_9, %c0_10], %18 {strides = array<i32>} : memref<256x128xf32, #tpu.memory_space<vmem>>, vector<256x128xf32>,
    %c1_i32 = arith.constant 1 : i32
    %20 = arith.cmpi eq, %arg2, %c1_i32 : i32
    %21 = arith.extui %20 : i1 to i32
    %c0_i32_11 = arith.constant 0 : i32
    %22 = arith.cmpi ne, %21, %c0_i32_11 : i32
    scf.if %22 {
      %c0_12 = arith.constant 0 : index
      %c0_13 = arith.constant 0 : index
      %23 = vector.load %arg8[%c0_12, %c0_13] : memref<256x128xf32, #tpu.memory_space<vmem>>, vector<256x128xf32>
      %c0_14 = arith.constant 0 : index
      %c0_15 = arith.constant 0 : index
      %24 = vector.load %arg7[%c0_14, %c0_15] : memref<256x128xf32, #tpu.memory_space<vmem>>, vector<256x128xf32>
      tpu.vector_store %arg7[%c0_14, %c0_15], %23 {strides = array<i32>} : memref<256x128xf32, #tpu.memory_space<vmem>>, vector<256x128xf32>,
    } else {
    }
    return
  }
  func.func @transform_0(%arg0: i32, %arg1: i32, %arg2: i32) -> (i32, i32) {
    %c0_i32 = arith.constant 0 : i32
    return %arg0, %arg2 : i32, i32
  }
  func.func @transform_1(%arg0: i32, %arg1: i32, %arg2: i32) -> (i32, i32) {
    %c2_i32 = arith.constant 2 : i32
    %0 = arith.addi %c2_i32, %arg2 : i32
    %c0_i32 = arith.constant 0 : i32
    return %arg0, %0 : i32, i32
  }
  func.func @transform_2(%arg0: i32, %arg1: i32, %arg2: i32) -> (i32, i32) {
    %c0_i32 = arith.constant 0 : i32
    return %arg2, %arg1 : i32, i32
  }
  func.func @transform_3(%arg0: i32, %arg1: i32, %arg2: i32) -> (i32, i32) {
    %c0_i32 = arith.constant 0 : i32
    return %arg0, %arg1 : i32, i32
  }
  func.func @transform_4(%arg0: i32, %arg1: i32, %arg2: i32) -> (i32, i32) {
    %c0_i32 = arith.constant 0 : i32
    return %arg0, %arg1 : i32, i32
  }
}

</mosaic_0001>

<llo_original>
// kernel: qwen_decoder_layer.7
$region0: #{qwen_decoder_layer.7}
  #allocation0 [shape = 'u32[]', space=smem, size = 0x4, offset = 0x4, fixed_abs, tag = 'smem constant byte address 0x4 - core index']
  #allocation1 [shape = 'u32[144,128]{1,0:T(1,128)}', space=vmem, size = 0x12000, scoped, tag = 'internal scratch']
  #allocation2 [shape = 'f32[256,128]{1,0:T(8,128)}', space=vmem, size = 0x20000, scoped, tag = 'scratch operand']
  %s0 = inlined_call_operand.hbm [shape: bf16[512,128], index: 0, kind: input, shape index: {}]
  %s1 = inlined_call_operand.hbm [shape: bf16[128,128], index: 1, kind: input, shape index: {}]
  %s2 = inlined_call_operand.hbm [shape: f32[512,128], index: 2, kind: input, shape index: {}, may-alias: {2,3}]
  %s3 = inlined_call_operand.hbm [shape: f32[512,128], index: 3, kind: output, shape index: {}, may-alias: {2,3}]
  %s4 = sld [smem:[#allocation0]]
  $region65: #{qwen_decoder_layer.7} parent=0
    _
  %s6 = ssub.s32 1, %s4
  %s7 = scalar_select 0, %s6, %s4
  $region1: #{qwen_decoder_layer.7} parent=0
    #allocation3 [shape = 'u8[131072]{0}', space=vmem, size = 0x20000, scoped, tag = 'input window, operand 0']
    #allocation4 [shape = 's32[2]{0}', space=sflag, size = 0x8, scoped, tag = 'scoped memory for qwen_decoder_layer.7']
    #allocation5 [shape = 's32[2]{0}', space=sflag, size = 0x8, scoped, tag = 'scoped memory for qwen_decoder_layer.7']
    #allocation6 [shape = 'u8[32768]{0}', space=vmem, size = 0x8000, scoped, tag = 'input window, operand 1, single buffered']
    #allocation7 [shape = 's32[1]{0}', space=sflag, size = 0x4, scoped, tag = 'scoped memory for qwen_decoder_layer.7']
    #allocation8 [shape = 'u8[262144]{0}', space=vmem, size = 0x40000, scoped, tag = 'input window, operand 2']
    #allocation9 [shape = 'u8[262144]{0}', space=vmem, size = 0x40000, scoped, tag = 'output window, operand 0']
    %8 = vsyncpa [#allocation4], 0
    %s9 = scalar_lea.sflag [#allocation4], 1
    %10 = vsyncpa %s9, 0
    %11 = vsyncpa [#allocation7], 0
    %12 = vsyncpa [#allocation5], 0
    %s13 = scalar_lea.sflag [#allocation5], 1
    %14 = vsyncpa %s13, 0
    loop: start=0, step=1, limit=4
    $region2: #{qwen_decoder_layer.7} parent=1 // loop_pre_header
      _
    $region3: #{qwen_decoder_layer.7} parent=1 // loop_header
      %s16 = sphi 0, %s20
      %p17 = scmp.ge.s32.totalorder %s16, 4
      %s23 = sphi 0, %s42
      %s24 = sphi 0, %s38
      %s25 = sphi 0, %s34
      %s26 = sphi 0, %s23
      %s27 = sphi 0, %s24
      %s28 = sphi 0, %s25
      %s29 = sphi 0, %s26
      %s30 = sphi 0, %s27
      %s31 = sphi 0, %s28
      %s47 = sphi 0, %s49
      %s50 = sphi 0, %s47
      %s51 = sphi 0, %s50
      %s67 = sphi 0, %s51
      %s75 = sphi 0, %s77
      %s78 = sphi 0, %s75
      %s79 = sphi 0, %s78
      %s95 = sphi 0, %s79
      %s103 = sphi 0, %s105
      %s106 = sphi 0, %s103
      %s107 = sphi 0, %s106
      %s123 = sphi 0, %s107
      %s131 = sphi 0, %s133
      %s134 = sphi 0, %s131
      %s135 = sphi 0, %s134
      %s151 = sphi 0, %s135
    $region4: #{qwen_decoder_layer.7} parent=1 // loop_header_branch
      %19 = sbr.rel (%p17) target = $region8
    $region5: #{qwen_decoder_layer.7} parent=1 // loop_body
      %s21 = ssub.s32 %s16, 1
      %s22 = ssub.s32 %s16, 2
      %s32 = sadd.s32 1, %s25
      %p33 = scmp.ge.s32.totalorder %s32, 1
      %s34 = scalar_select %p33, 0, %s32
      %s35 = sadd.s32 1, %s24
      %s36 = scalar_select %p33, %s35, %s24
      %p37 = scmp.ge.s32.totalorder %s36, 1
      %s38 = scalar_select %p37, 0, %s36
      %s39 = sadd.s32 1, %s23
      %s40 = scalar_select %p37, %s39, %s23
      %p41 = scmp.ge.s32.totalorder %s40, 2
      %s42 = scalar_select %p41, 0, %s40
      %s43 = ssub.s32 %s23, %s42
      %s44 = ssub.s32 %s25, %s34
      %s45 = sor.u32 %s43, %s44
      %p46 = scmp.eq.s32.totalorder %s45, 0
      %s48 = sadd.s32 %s47, 1
      %s49 = scalar_select %p46, %s47, %s48
      %p52 = pneg %p46
      %p53 = scmp.eq.s32.totalorder %s16, 1
      %p54 = por %p52, %p53
      %p55 = scmp.ne.s32.totalorder %s47, %s50
      %p56 = scmp.eq.s32.totalorder %s16, 0
      %p57 = por %p55, %p56
      %p58 = scmp.ne.s32.totalorder %s47, %s50
      %p59 = scmp.eq.s32.totalorder %s21, 1
      %p60 = por %p58, %p59
      %p61 = scmp.ne.s32.totalorder %s50, %s51
      %p62 = scmp.eq.s32.totalorder %s21, 0
      %p63 = por %p61, %p62
      %p64 = scmp.ne.s32.totalorder %s50, %s51
      %p65 = scmp.eq.s32.totalorder %s22, 1
      %p66 = por %p64, %p65
      %p68 = scmp.ne.s32.totalorder %s51, %s67
      %p69 = scmp.eq.s32.totalorder %s22, 0
      %p70 = por %p68, %p69
      %s71 = ssub.s32 %s25, %s34
      %s72 = ssub.s32 %s24, %s38
      %s73 = sor.u32 %s71, %s72
      %p74 = scmp.eq.s32.totalorder %s73, 0
      %s76 = sadd.s32 %s75, 1
      %s77 = scalar_select %p74, %s75, %s76
      %p80 = pneg %p74
      %p81 = scmp.eq.s32.totalorder %s16, 1
      %p82 = por %p80, %p81
      %p83 = scmp.ne.s32.totalorder %s75, %s78
      %p84 = scmp.eq.s32.totalorder %s16, 0
      %p85 = por %p83, %p84
      %p86 = scmp.ne.s32.totalorder %s75, %s78
      %p87 = scmp.eq.s32.totalorder %s21, 1
      %p88 = por %p86, %p87
      %p89 = scmp.ne.s32.totalorder %s78, %s79
      %p90 = scmp.eq.s32.totalorder %s21, 0
      %p91 = por %p89, %p90
      %p92 = scmp.ne.s32.totalorder %s78, %s79
      %p93 = scmp.eq.s32.totalorder %s22, 1
      %p94 = por %p92, %p93
      %p96 = scmp.ne.s32.totalorder %s79, %s95
      %p97 = scmp.eq.s32.totalorder %s22, 0
      %p98 = por %p96, %p97
      %s99 = ssub.s32 %s23, %s42
      %s100 = ssub.s32 %s24, %s38
      %s101 = sor.u32 %s99, %s100
      %p102 = scmp.eq.s32.totalorder %s101, 0
      %s104 = sadd.s32 %s103, 1
      %s105 = scalar_select %p102, %s103, %s104
      %p108 = pneg %p102
      %p109 = scmp.eq.s32.totalorder %s16, 1
      %p110 = por %p108, %p109
      %p111 = scmp.ne.s32.totalorder %s103, %s106
      %p112 = scmp.eq.s32.totalorder %s16, 0
      %p113 = por %p111, %p112
      %p114 = scmp.ne.s32.totalorder %s103, %s106
      %p115 = scmp.eq.s32.totalorder %s21, 1
      %p116 = por %p114, %p115
      %p117 = scmp.ne.s32.totalorder %s106, %s107
      %p118 = scmp.eq.s32.totalorder %s21, 0
      %p119 = por %p117, %p118
      %p120 = scmp.ne.s32.totalorder %s106, %s107
      %p121 = scmp.eq.s32.totalorder %s22, 1
      %p122 = por %p120, %p121
      %p124 = scmp.ne.s32.totalorder %s107, %s123
      %p125 = scmp.eq.s32.totalorder %s22, 0
      %p126 = por %p124, %p125
      %s127 = ssub.s32 %s23, %s42
      %s128 = ssub.s32 %s24, %s38
      %s129 = sor.u32 %s127, %s128
      %p130 = scmp.eq.s32.totalorder %s129, 0
      %s132 = sadd.s32 %s131, 1
      %s133 = scalar_select %p130, %s131, %s132
      %p136 = pneg %p130
      %p137 = scmp.eq.s32.totalorder %s16, 1
      %p138 = por %p136, %p137
      %p139 = scmp.ne.s32.totalorder %s131, %s134
      %p140 = scmp.eq.s32.totalorder %s16, 0
      %p141 = por %p139, %p140
      %p142 = scmp.ne.s32.totalorder %s131, %s134
      %p143 = scmp.eq.s32.totalorder %s21, 1
      %p144 = por %p142, %p143
      %p145 = scmp.ne.s32.totalorder %s134, %s135
      %p146 = scmp.eq.s32.totalorder %s21, 0
      %p147 = por %p145, %p146
      %p148 = scmp.ne.s32.totalorder %s134, %s135
      %p149 = scmp.eq.s32.totalorder %s22, 1
      %p150 = por %p148, %p149
      %p152 = scmp.ne.s32.totalorder %s135, %s151
      %p153 = scmp.eq.s32.totalorder %s22, 0
      %p154 = por %p152, %p153
      %p155 = scmp.le.s32.totalorder 1, %s16
      %p156 = scmp.lt.s32.totalorder %s16, 3
      %p157 = pnand %p155, %p156
      %p158 = pneg %p157
      // Predicated region
      $region9: #{qwen_decoder_layer.7} parent=5 // pred_check
        _
      $region10: #{qwen_decoder_layer.7} parent=5 // pred_check_branch
        %160 = sbr.rel (%p157) target = $region12
      $region11: #{qwen_decoder_layer.7} parent=5 // pred_region
        %s161 = ssub.s32 %s16, 1
        // Predicated region
        $region13: #{qwen_decoder_layer.7} parent=11 // pred_check
          %p162 = pneg %p91
        $region14: #{qwen_decoder_layer.7} parent=11 // pred_check_branch
          %164 = sbr.rel (%p162) target = $region16
        $region15: #{qwen_decoder_layer.7} parent=11 // pred_region
          %s165 = smul.u32 16, %s28
          %s167 = ssub.s32 1024, 1024
          %168 = vsyncadd [#allocation7], %s167
          %s169 = sadd.s32 %s27, %s165
          %s170 = smul.addr %s169, 64
          %s171 = scalar_lea.hbm %s1, %s170
          %s172 = sshll.u32 [#allocation6], 4
          %s173 = int_to_ptr.vmem [resolvable:$true] %s172
          %178 = dma.hbm_to_vmem [thread:$0]  %s171, 1024, %s173, [#allocation7], 64, 64, 4
        $region16: #{qwen_decoder_layer.7} parent=11 // pred_fallthru
          _
      $region12: #{qwen_decoder_layer.7} parent=5 // pred_fallthru
        _
      %p179 = scmp.lt.s32.totalorder %s16, 2
      // Predicated region
      $region17: #{qwen_decoder_layer.7} parent=5 // pred_check
        %p180 = pneg %p179
      $region18: #{qwen_decoder_layer.7} parent=5 // pred_check_branch
        %182 = sbr.rel (%p180) target = $region20
      $region19: #{qwen_decoder_layer.7} parent=5 // pred_region
        // Predicated region
        $region21: #{qwen_decoder_layer.7} parent=19 // pred_check
          %p183 = pneg %p57
        $region22: #{qwen_decoder_layer.7} parent=19 // pred_check_branch
          %185 = sbr.rel (%p183) target = $region24
        $region23: #{qwen_decoder_layer.7} parent=19 // pred_region
          %s186 = sand.u32 %s16, 1
          %s187 = scalar_lea.sflag [#allocation4], %s186
          %s188 = sand.u32 %s47, 1
          %s189 = smul.addr %s188, 128
          %s190 = scalar_lea.vmem [#allocation3], %s189
          %s191 = smul.u32 32, %s23
          %s193 = ssub.s32 2048, 2048
          %194 = vsyncadd %s187, %s193
          %s195 = sadd.s32 %s25, %s191
          %s196 = smul.addr %s195, 64
          %s197 = scalar_lea.hbm %s0, %s196
          %s198 = sshll.u32 %s190, 4
          %s199 = int_to_ptr.vmem [resolvable:$true] %s198
          %204 = dma.hbm_to_vmem [thread:$0]  %s197, 2048, %s199, %s187, 64, 64, 4
        $region24: #{qwen_decoder_layer.7} parent=19 // pred_fallthru
          _
        // Predicated region
        $region25: #{qwen_decoder_layer.7} parent=19 // pred_check
          %p205 = pneg %p113
        $region26: #{qwen_decoder_layer.7} parent=19 // pred_check_branch
          %207 = sbr.rel (%p205) target = $region28
        $region27: #{qwen_decoder_layer.7} parent=19 // pred_region
          %s208 = sand.u32 %s16, 1
          %s209 = scalar_lea.sflag [#allocation4], %s208
          %s210 = sand.u32 %s103, 1
          %s211 = smul.addr %s210, 256
          %s212 = scalar_lea.vmem [#allocation8], %s211
          %s213 = smul.u32 32, %s23
          %s215 = ssub.s32 4096, 4096
          %216 = vsyncadd %s209, %s215
          %s217 = sadd.s32 %s24, %s213
          %s218 = smul.addr %s217, 128
          %s219 = scalar_lea.hbm %s2, %s218
          %s220 = sshll.u32 %s212, 4
          %s221 = int_to_ptr.vmem [resolvable:$true] %s220
          %226 = dma.hbm_to_vmem [thread:$0]  %s219, 4096, %s221, %s209, 128, 128, 8
        $region28: #{qwen_decoder_layer.7} parent=19 // pred_fallthru
          _
      $region20: #{qwen_decoder_layer.7} parent=5 // pred_fallthru
        _
      %p227 = scmp.le.s32.totalorder 1, %s16
      %p228 = scmp.lt.s32.totalorder %s16, 3
      %p229 = pnand %p227, %p228
      %p230 = pneg %p229
      // Predicated region
      $region29: #{qwen_decoder_layer.7} parent=5 // pred_check
        _
      $region30: #{qwen_decoder_layer.7} parent=5 // pred_check_branch
        %232 = sbr.rel (%p229) target = $region32
      $region31: #{qwen_decoder_layer.7} parent=5 // pred_region
        %s233 = ssub.s32 %s16, 1
        %s234 = sand.u32 %s21, 1
        %s235 = scalar_lea.sflag [#allocation4], %s234
        %s236 = sand.u32 %s50, 1
        %s237 = smul.addr %s236, 128
        %s238 = scalar_lea.vmem [#allocation3], %s237
        // Predicated region
        $region33: #{qwen_decoder_layer.7} parent=31 // pred_check
          %p239 = pneg %p63
        $region34: #{qwen_decoder_layer.7} parent=31 // pred_check_branch
          %241 = sbr.rel (%p239) target = $region36
        $region35: #{qwen_decoder_layer.7} parent=31 // pred_region
          %242 = dma.done %s235, 2048
        $region36: #{qwen_decoder_layer.7} parent=31 // pred_fallthru
          _
        // Predicated region
        $region37: #{qwen_decoder_layer.7} parent=31 // pred_check
          %p243 = pneg %p91
        $region38: #{qwen_decoder_layer.7} parent=31 // pred_check_branch
          %245 = sbr.rel (%p243) target = $region40
        $region39: #{qwen_decoder_layer.7} parent=31 // pred_region
          %246 = dma.done [#allocation7], 1024
        $region40: #{qwen_decoder_layer.7} parent=31 // pred_fallthru
          _
        %s247 = sand.u32 %s21, 1
        %s248 = scalar_lea.sflag [#allocation4], %s247
        %s249 = sand.u32 %s106, 1
        %s250 = smul.addr %s249, 256
        %s251 = scalar_lea.vmem [#allocation8], %s250
        // Predicated region
        $region41: #{qwen_decoder_layer.7} parent=31 // pred_check
          %p252 = pneg %p119
        $region42: #{qwen_decoder_layer.7} parent=31 // pred_check_branch
          %254 = sbr.rel (%p252) target = $region44
        $region43: #{qwen_decoder_layer.7} parent=31 // pred_region
          %255 = dma.done %s248, 4096
        $region44: #{qwen_decoder_layer.7} parent=31 // pred_fallthru
          _
        %s256 = sand.u32 %s21, 1
        %s257 = scalar_lea.sflag [#allocation4], %s256
        %s258 = sand.u32 %s50, 1
        %s259 = smul.addr %s258, 128
        %s260 = scalar_lea.vmem [#allocation3], %s259
        %p261 = pneg %p63
        %p262 = pneg %p60
        %p263 = pneg %p91
        %p264 = pneg %p88
        %s265 = sand.u32 %s21, 1
        %s266 = scalar_lea.sflag [#allocation4], %s265
        %s267 = sand.u32 %s106, 1
        %s268 = smul.addr %s267, 256
        %s269 = scalar_lea.vmem [#allocation8], %s268
        %p270 = pneg %p119
        %p271 = pneg %p116
        %p272 = pneg %p147
        %p273 = pneg %p144
        %s274 = sand.u32 %s134, 1
        %s275 = scalar_lea.sflag [#allocation5], %s274
        %s276 = sand.u32 %s134, 1
        %s277 = smul.addr %s276, 256
        %s278 = scalar_lea.vmem [#allocation9], %s277
        %s279 = smul.u32 32, %s26
        %s280 = smul.u32 16, %s28
        %s281 = smul.u32 32, %s26
        %s282 = smul.u32 32, %s26
        %p284 = scmp.eq.s32.totalorder %s28, 0
        // Predicated region
        $region45: #{qwen_decoder_layer.7} parent=31 // pred_check
          %p285 = pneg %p284
        $region46: #{qwen_decoder_layer.7} parent=31 // pred_check_branch
          %287 = sbr.rel (%p285) target = $region48
        $region47: #{qwen_decoder_layer.7} parent=31 // pred_region
          %v288 = vld [vmem:[%s251] sm:$0xff]
          %v289 = vld [vmem:[%s251 + $0x8] sm:$0xff]
          %v290 = vld [vmem:[%s251 + $0x10] sm:$0xff]
          %v291 = vld [vmem:[%s251 + $0x18] sm:$0xff]
          %v292 = vld [vmem:[%s251 + $0x20] sm:$0xff]
          %v293 = vld [vmem:[%s251 + $0x28] sm:$0xff]
          %v294 = vld [vmem:[%s251 + $0x30] sm:$0xff]
          %v295 = vld [vmem:[%s251 + $0x38] sm:$0xff]
          %v296 = vld [vmem:[%s251 + $0x40] sm:$0xff]
          %v297 = vld [vmem:[%s251 + $0x48] sm:$0xff]
          %v298 = vld [vmem:[%s251 + $0x50] sm:$0xff]
          %v299 = vld [vmem:[%s251 + $0x58] sm:$0xff]
          %v300 = vld [vmem:[%s251 + $0x60] sm:$0xff]
          %v301 = vld [vmem:[%s251 + $0x68] sm:$0xff]
          %v302 = vld [vmem:[%s251 + $0x70] sm:$0xff]
          %v303 = vld [vmem:[%s251 + $0x78] sm:$0xff]
          %v304 = vld [vmem:[%s251 + $0x80] sm:$0xff]
          %v305 = vld [vmem:[%s251 + $0x88] sm:$0xff]
          %v306 = vld [vmem:[%s251 + $0x90] sm:$0xff]
          %v307 = vld [vmem:[%s251 + $0x98] sm:$0xff]
          %v308 = vld [vmem:[%s251 + $0xa0] sm:$0xff]
          %v309 = vld [vmem:[%s251 + $0xa8] sm:$0xff]
          %v310 = vld [vmem:[%s251 + $0xb0] sm:$0xff]
          %v311 = vld [vmem:[%s251 + $0xb8] sm:$0xff]
          %v312 = vld [vmem:[%s251 + $0xc0] sm:$0xff]
          %v313 = vld [vmem:[%s251 + $0xc8] sm:$0xff]
          %v314 = vld [vmem:[%s251 + $0xd0] sm:$0xff]
          %v315 = vld [vmem:[%s251 + $0xd8] sm:$0xff]
          %v316 = vld [vmem:[%s251 + $0xe0] sm:$0xff]
          %v317 = vld [vmem:[%s251 + $0xe8] sm:$0xff]
          %v318 = vld [vmem:[%s251 + $0xf0] sm:$0xff]
          %v319 = vld [vmem:[%s251 + $0xf8] sm:$0xff]
          %320 = vst [vmem:[#allocation2] sm:$0xff] %v288
          %321 = vst [vmem:[#allocation2 + $0x8] sm:$0xff] %v289
          %322 = vst [vmem:[#allocation2 + $0x10] sm:$0xff] %v290
          %323 = vst [vmem:[#allocation2 + $0x18] sm:$0xff] %v291
          %324 = vst [vmem:[#allocation2 + $0x20] sm:$0xff] %v292
          %325 = vst [vmem:[#allocation2 + $0x28] sm:$0xff] %v293
          %326 = vst [vmem:[#allocation2 + $0x30] sm:$0xff] %v294
          %327 = vst [vmem:[#allocation2 + $0x38] sm:$0xff] %v295
          %328 = vst [vmem:[#allocation2 + $0x40] sm:$0xff] %v296
          %329 = vst [vmem:[#allocation2 + $0x48] sm:$0xff] %v297
          %330 = vst [vmem:[#allocation2 + $0x50] sm:$0xff] %v298
          %331 = vst [vmem:[#allocation2 + $0x58] sm:$0xff] %v299
          %332 = vst [vmem:[#allocation2 + $0x60] sm:$0xff] %v300
          %333 = vst [vmem:[#allocation2 + $0x68] sm:$0xff] %v301
          %334 = vst [vmem:[#allocation2 + $0x70] sm:$0xff] %v302
          %335 = vst [vmem:[#allocation2 + $0x78] sm:$0xff] %v303
          %336 = vst [vmem:[#allocation2 + $0x80] sm:$0xff] %v304
          %337 = vst [vmem:[#allocation2 + $0x88] sm:$0xff] %v305
          %338 = vst [vmem:[#allocation2 + $0x90] sm:$0xff] %v306
          %339 = vst [vmem:[#allocation2 + $0x98] sm:$0xff] %v307
          %340 = vst [vmem:[#allocation2 + $0xa0] sm:$0xff] %v308
          %341 = vst [vmem:[#allocation2 + $0xa8] sm:$0xff] %v309
          %342 = vst [vmem:[#allocation2 + $0xb0] sm:$0xff] %v310
          %343 = vst [vmem:[#allocation2 + $0xb8] sm:$0xff] %v311
          %344 = vst [vmem:[#allocation2 + $0xc0] sm:$0xff] %v312
          %345 = vst [vmem:[#allocation2 + $0xc8] sm:$0xff] %v313
          %346 = vst [vmem:[#allocation2 + $0xd0] sm:$0xff] %v314
          %347 = vst [vmem:[#allocation2 + $0xd8] sm:$0xff] %v315
          %348 = vst [vmem:[#allocation2 + $0xe0] sm:$0xff] %v316
          %349 = vst [vmem:[#allocation2 + $0xe8] sm:$0xff] %v317
          %350 = vst [vmem:[#allocation2 + $0xf0] sm:$0xff] %v318
          %351 = vst [vmem:[#allocation2 + $0xf8] sm:$0xff] %v319
        $region48: #{qwen_decoder_layer.7} parent=31 // pred_fallthru
          _
        %v352 = vld [vmem:[#allocation2] sm:$0xff]
        %v353 = vld [vmem:[#allocation2 + $0x8] sm:$0xff]
        %v354 = vld [vmem:[#allocation2 + $0x10] sm:$0xff]
        %v355 = vld [vmem:[#allocation2 + $0x18] sm:$0xff]
        %v356 = vld [vmem:[#allocation2 + $0x20] sm:$0xff]
        %v357 = vld [vmem:[#allocation2 + $0x28] sm:$0xff]
        %v358 = vld [vmem:[#allocation2 + $0x30] sm:$0xff]
        %v359 = vld [vmem:[#allocation2 + $0x38] sm:$0xff]
        %v360 = vld [vmem:[#allocation2 + $0x40] sm:$0xff]
        %v361 = vld [vmem:[#allocation2 + $0x48] sm:$0xff]
        %v362 = vld [vmem:[#allocation2 + $0x50] sm:$0xff]
        %v363 = vld [vmem:[#allocation2 + $0x58] sm:$0xff]
        %v364 = vld [vmem:[#allocation2 + $0x60] sm:$0xff]
        %v365 = vld [vmem:[#allocation2 + $0x68] sm:$0xff]
        %v366 = vld [vmem:[#allocation2 + $0x70] sm:$0xff]
        %v367 = vld [vmem:[#allocation2 + $0x78] sm:$0xff]
        %v368 = vld [vmem:[#allocation2 + $0x80] sm:$0xff]
        %v369 = vld [vmem:[#allocation2 + $0x88] sm:$0xff]
        %v370 = vld [vmem:[#allocation2 + $0x90] sm:$0xff]
        %v371 = vld [vmem:[#allocation2 + $0x98] sm:$0xff]
        %v372 = vld [vmem:[#allocation2 + $0xa0] sm:$0xff]
        %v373 = vld [vmem:[#allocation2 + $0xa8] sm:$0xff]
        %v374 = vld [vmem:[#allocation2 + $0xb0] sm:$0xff]
        %v375 = vld [vmem:[#allocation2 + $0xb8] sm:$0xff]
        %v376 = vld [vmem:[#allocation2 + $0xc0] sm:$0xff]
        %v377 = vld [vmem:[#allocation2 + $0xc8] sm:$0xff]
        %v378 = vld [vmem:[#allocation2 + $0xd0] sm:$0xff]
        %v379 = vld [vmem:[#allocation2 + $0xd8] sm:$0xff]
        %v380 = vld [vmem:[#allocation2 + $0xe0] sm:$0xff]
        %v381 = vld [vmem:[#allocation2 + $0xe8] sm:$0xff]
        %v382 = vld [vmem:[#allocation2 + $0xf0] sm:$0xff]
        %v383 = vld [vmem:[#allocation2 + $0xf8] sm:$0xff]
        %v384 = vld [vmem:[%s238] sm:$0xf]
        %v385 = vld [vmem:[%s238 + $0x4] sm:$0xf]
        %v386 = vld [vmem:[%s238 + $0x8] sm:$0xf]
        %v387 = vld [vmem:[%s238 + $0xc] sm:$0xf]
        %v388 = vld [vmem:[%s238 + $0x10] sm:$0xf]
        %v389 = vld [vmem:[%s238 + $0x14] sm:$0xf]
        %v390 = vld [vmem:[%s238 + $0x18] sm:$0xf]
        %v391 = vld [vmem:[%s238 + $0x1c] sm:$0xf]
        %v392 = vld [vmem:[%s238 + $0x20] sm:$0xf]
        %v393 = vld [vmem:[%s238 + $0x24] sm:$0xf]
        %v394 = vld [vmem:[%s238 + $0x28] sm:$0xf]
        %v395 = vld [vmem:[%s238 + $0x2c] sm:$0xf]
        %v396 = vld [vmem:[%s238 + $0x30] sm:$0xf]
        %v397 = vld [vmem:[%s238 + $0x34] sm:$0xf]
        %v398 = vld [vmem:[%s238 + $0x38] sm:$0xf]
        %v399 = vld [vmem:[%s238 + $0x3c] sm:$0xf]
        %v400 = vld [vmem:[%s238 + $0x40] sm:$0xf]
        %v401 = vld [vmem:[%s238 + $0x44] sm:$0xf]
        %v402 = vld [vmem:[%s238 + $0x48] sm:$0xf]
        %v403 = vld [vmem:[%s238 + $0x4c] sm:$0xf]
        %v404 = vld [vmem:[%s238 + $0x50] sm:$0xf]
        %v405 = vld [vmem:[%s238 + $0x54] sm:$0xf]
        %v406 = vld [vmem:[%s238 + $0x58] sm:$0xf]
        %v407 = vld [vmem:[%s238 + $0x5c] sm:$0xf]
        %v408 = vld [vmem:[%s238 + $0x60] sm:$0xf]
        %v409 = vld [vmem:[%s238 + $0x64] sm:$0xf]
        %v410 = vld [vmem:[%s238 + $0x68] sm:$0xf]
        %v411 = vld [vmem:[%s238 + $0x6c] sm:$0xf]
        %v412 = vld [vmem:[%s238 + $0x70] sm:$0xf]
        %v413 = vld [vmem:[%s238 + $0x74] sm:$0xf]
        %v414 = vld [vmem:[%s238 + $0x78] sm:$0xf]
        %v415 = vld [vmem:[%s238 + $0x7c] sm:$0xf]
        %v416 = vld [vmem:[#allocation6] sm:$0xf]
        %v417 = vld [vmem:[#allocation6 + $0x4] sm:$0xf]
        %v418 = vld [vmem:[#allocation6 + $0x8] sm:$0xf]
        %v419 = vld [vmem:[#allocation6 + $0xc] sm:$0xf]
        %v420 = vld [vmem:[#allocation6 + $0x10] sm:$0xf]
        %v421 = vld [vmem:[#allocation6 + $0x14] sm:$0xf]
        %v422 = vld [vmem:[#allocation6 + $0x18] sm:$0xf]
        %v423 = vld [vmem:[#allocation6 + $0x1c] sm:$0xf]
        %v424 = vld [vmem:[#allocation6 + $0x20] sm:$0xf]
        %v425 = vld [vmem:[#allocation6 + $0x24] sm:$0xf]
        %v426 = vld [vmem:[#allocation6 + $0x28] sm:$0xf]
        %v427 = vld [vmem:[#allocation6 + $0x2c] sm:$0xf]
        %v428 = vld [vmem:[#allocation6 + $0x30] sm:$0xf]
        %v429 = vld [vmem:[#allocation6 + $0x34] sm:$0xf]
        %v430 = vld [vmem:[#allocation6 + $0x38] sm:$0xf]
        %v431 = vld [vmem:[#allocation6 + $0x3c] sm:$0xf]
        %v464 = vunpack.c.l.b16 %v384
        %v465 = vunpack.c.l.b16 %v385
        %v466 = vunpack.c.l.b16 %v386
        %v467 = vunpack.c.l.b16 %v387
        %v468 = vunpack.c.l.b16 %v388
        %v469 = vunpack.c.l.b16 %v389
        %v470 = vunpack.c.l.b16 %v390
        %v471 = vunpack.c.l.b16 %v391
        %v472 = vunpack.c.l.b16 %v392
        %v473 = vunpack.c.l.b16 %v393
        %v474 = vunpack.c.l.b16 %v394
        %v475 = vunpack.c.l.b16 %v395
        %v476 = vunpack.c.l.b16 %v396
        %v477 = vunpack.c.l.b16 %v397
        %v478 = vunpack.c.l.b16 %v398
        %v479 = vunpack.c.l.b16 %v399
        %v480 = vunpack.c.l.b16 %v400
        %v481 = vunpack.c.l.b16 %v401
        %v482 = vunpack.c.l.b16 %v402
        %v483 = vunpack.c.l.b16 %v403
        %v484 = vunpack.c.l.b16 %v404
        %v485 = vunpack.c.l.b16 %v405
        %v486 = vunpack.c.l.b16 %v406
        %v487 = vunpack.c.l.b16 %v407
        %v488 = vunpack.c.l.b16 %v408
        %v489 = vunpack.c.l.b16 %v409
        %v490 = vunpack.c.l.b16 %v410
        %v491 = vunpack.c.l.b16 %v411
        %v492 = vunpack.c.l.b16 %v412
        %v493 = vunpack.c.l.b16 %v413
        %v494 = vunpack.c.l.b16 %v414
        %v495 = vunpack.c.l.b16 %v415
        %v496 = vpack.c.b16 %v465, %v464
        %v497 = vpack.c.b16 %v467, %v466
        %v498 = vpack.c.b16 %v469, %v468
        %v499 = vpack.c.b16 %v471, %v470
        %v500 = vpack.c.b16 %v473, %v472
        %v501 = vpack.c.b16 %v475, %v474
        %v502 = vpack.c.b16 %v477, %v476
        %v503 = vpack.c.b16 %v479, %v478
        %v504 = vpack.c.b16 %v481, %v480
        %v505 = vpack.c.b16 %v483, %v482
        %v506 = vpack.c.b16 %v485, %v484
        %v507 = vpack.c.b16 %v487, %v486
        %v508 = vpack.c.b16 %v489, %v488
        %v509 = vpack.c.b16 %v491, %v490
        %v510 = vpack.c.b16 %v493, %v492
        %v511 = vpack.c.b16 %v495, %v494
        %v544 = vunpack.c.l.b16 %v416
        %v545 = vunpack.c.l.b16 %v417
        %v546 = vunpack.c.l.b16 %v418
        %v547 = vunpack.c.l.b16 %v419
        %v548 = vunpack.c.l.b16 %v420
        %v549 = vunpack.c.l.b16 %v421
        %v550 = vunpack.c.l.b16 %v422
        %v551 = vunpack.c.l.b16 %v423
        %v552 = vunpack.c.l.b16 %v424
        %v553 = vunpack.c.l.b16 %v425
        %v554 = vunpack.c.l.b16 %v426
        %v555 = vunpack.c.l.b16 %v427
        %v556 = vunpack.c.l.b16 %v428
        %v557 = vunpack.c.l.b16 %v429
        %v558 = vunpack.c.l.b16 %v430
        %v559 = vunpack.c.l.b16 %v431
        %v560 = vpack.c.b16 %v545, %v544
        %v561 = vpack.c.b16 %v547, %v546
        %v562 = vpack.c.b16 %v549, %v548
        %v563 = vpack.c.b16 %v551, %v550
        %v564 = vpack.c.b16 %v553, %v552
        %v565 = vpack.c.b16 %v555, %v554
        %v566 = vpack.c.b16 %v557, %v556
        %v567 = vpack.c.b16 %v559, %v558
        %576 = vmatprep.subr.bf16.mxu0 0
        %577 = vmatpush1.bf16.msra.mxu0 %v560
        %578 = vmatprep.subr.bf16.mxu0 0
        %579 = vmatpush1.bf16.msra.mxu0 %v561
        %580 = vmatprep.subr.bf16.mxu0 0
        %581 = vmatpush1.bf16.msra.mxu0 %v562
        %582 = vmatprep.subr.bf16.mxu0 0
        %583 = vmatpush1.bf16.msra.mxu0 %v563
        %584 = vmatprep.subr.bf16.mxu0 0
        %585 = vmatpush1.bf16.msra.mxu0 %v564
        %586 = vmatprep.subr.bf16.mxu0 0
        %587 = vmatpush1.bf16.msra.mxu0 %v565
        %588 = vmatprep.subr.bf16.mxu0 0
        %589 = vmatpush1.bf16.msra.mxu0 %v566
        %590 = vmatprep.subr.bf16.mxu0 0
        %591 = vmatpush1.bf16.msra.mxu0 %v567
        %592 = vmatprep.subr.bf16.mxu0 0
        %593 = vmatpush1.bf16.msra.mxu0 0
        %594 = vmatprep.subr.bf16.mxu0 0
        %595 = vmatpush1.bf16.msra.mxu0 0
        %596 = vmatprep.subr.bf16.mxu0 0
        %597 = vmatpush1.bf16.msra.mxu0 0
        %598 = vmatprep.subr.bf16.mxu0 0
        %599 = vmatpush1.bf16.msra.mxu0 0
        %600 = vmatprep.subr.bf16.mxu0 0
        %601 = vmatpush1.bf16.msra.mxu0 0
        %602 = vmatprep.subr.bf16.mxu0 0
        %603 = vmatpush1.bf16.msra.mxu0 0
        %604 = vmatprep.subr.bf16.mxu0 0
        %605 = vmatpush1.bf16.msra.mxu0 0
        %606 = vmatprep.subr.bf16.mxu0 0
        %607 = vmatpush1.bf16.msra.mxu0 0
        %608 = vmatprep.mubr.bf16.mxu0 0
        %609 = vmatmul.mubr.bf16.gmra.mrb[0].mxu0 %v496
        %v610 = vpop.f32.mrb[0].mxu0
        %v611 = vadd.f32 0.0, %v610
        %v612 = vpop.f32.mrb[0].mxu0
        %v613 = vpop.f32.mrb[0].mxu0
        %v614 = vadd.f32 0.0, %v613
        %v615 = vpop.f32.mrb[0].mxu0
        %616 = vmatprep.mubr.bf16.mxu0 0
        %617 = vmatmul.mubr.bf16.gmra.mrb[0].mxu0 %v497
        %v618 = vpop.f32.mrb[0].mxu0
        %v619 = vadd.f32 0.0, %v618
        %v620 = vpop.f32.mrb[0].mxu0
        %v621 = vpop.f32.mrb[0].mxu0
        %v622 = vadd.f32 0.0, %v621
        %v623 = vpop.f32.mrb[0].mxu0
        %624 = vmatprep.mubr.bf16.mxu0 0
        %625 = vmatmul.mubr.bf16.gmra.mrb[0].mxu0 %v498
        %v626 = vpop.f32.mrb[0].mxu0
        %v627 = vadd.f32 0.0, %v626
        %v628 = vpop.f32.mrb[0].mxu0
        %v629 = vpop.f32.mrb[0].mxu0
        %v630 = vadd.f32 0.0, %v629
        %v631 = vpop.f32.mrb[0].mxu0
        %632 = vmatprep.mubr.bf16.mxu0 0
        %633 = vmatmul.mubr.bf16.gmra.mrb[0].mxu0 %v499
        %v634 = vpop.f32.mrb[0].mxu0
        %v635 = vadd.f32 0.0, %v634
        %v636 = vpop.f32.mrb[0].mxu0
        %v637 = vpop.f32.mrb[0].mxu0
        %v638 = vadd.f32 0.0, %v637
        %v639 = vpop.f32.mrb[0].mxu0
        %640 = vmatprep.mubr.bf16.mxu0 0
        %641 = vmatmul.mubr.bf16.gmra.mrb[0].mxu0 %v500
        %v642 = vpop.f32.mrb[0].mxu0
        %v643 = vadd.f32 0.0, %v642
        %v644 = vpop.f32.mrb[0].mxu0
        %v645 = vpop.f32.mrb[0].mxu0
        %v646 = vadd.f32 0.0, %v645
        %v647 = vpop.f32.mrb[0].mxu0
        %648 = vmatprep.mubr.bf16.mxu0 0
        %649 = vmatmul.mubr.bf16.gmra.mrb[0].mxu0 %v501
        %v650 = vpop.f32.mrb[0].mxu0
        %v651 = vadd.f32 0.0, %v650
        %v652 = vpop.f32.mrb[0].mxu0
        %v653 = vpop.f32.mrb[0].mxu0
        %v654 = vadd.f32 0.0, %v653
        %v655 = vpop.f32.mrb[0].mxu0
        %656 = vmatprep.mubr.bf16.mxu0 0
        %657 = vmatmul.mubr.bf16.gmra.mrb[0].mxu0 %v502
        %v658 = vpop.f32.mrb[0].mxu0
        %v659 = vadd.f32 0.0, %v658
        %v660 = vpop.f32.mrb[0].mxu0
        %v661 = vpop.f32.mrb[0].mxu0
        %v662 = vadd.f32 0.0, %v661
        %v663 = vpop.f32.mrb[0].mxu0
        %664 = vmatprep.mubr.bf16.mxu0 0
        %665 = vmatmul.mubr.bf16.gmra.mrb[0].mxu0 %v503
        %v666 = vpop.f32.mrb[0].mxu0
        %v667 = vadd.f32 0.0, %v666
        %v668 = vpop.f32.mrb[0].mxu0
        %v669 = vpop.f32.mrb[0].mxu0
        %v670 = vadd.f32 0.0, %v669
        %v671 = vpop.f32.mrb[0].mxu0
        %672 = vmatprep.mubr.bf16.mxu0 0
        %673 = vmatmul.mubr.bf16.gmra.mrb[0].mxu0 %v504
        %v674 = vpop.f32.mrb[0].mxu0
        %v675 = vadd.f32 0.0, %v674
        %v676 = vpop.f32.mrb[0].mxu0
        %v677 = vpop.f32.mrb[0].mxu0
        %v678 = vadd.f32 0.0, %v677
        %v679 = vpop.f32.mrb[0].mxu0
        %680 = vmatprep.mubr.bf16.mxu0 0
        %681 = vmatmul.mubr.bf16.gmra.mrb[0].mxu0 %v505
        %v682 = vpop.f32.mrb[0].mxu0
        %v683 = vadd.f32 0.0, %v682
        %v684 = vpop.f32.mrb[0].mxu0
        %v685 = vpop.f32.mrb[0].mxu0
        %v686 = vadd.f32 0.0, %v685
        %v687 = vpop.f32.mrb[0].mxu0
        %688 = vmatprep.mubr.bf16.mxu0 0
        %689 = vmatmul.mubr.bf16.gmra.mrb[0].mxu0 %v506
        %v690 = vpop.f32.mrb[0].mxu0
        %v691 = vadd.f32 0.0, %v690
        %v692 = vpop.f32.mrb[0].mxu0
        %v693 = vpop.f32.mrb[0].mxu0
        %v694 = vadd.f32 0.0, %v693
        %v695 = vpop.f32.mrb[0].mxu0
        %696 = vmatprep.mubr.bf16.mxu0 0
        %697 = vmatmul.mubr.bf16.gmra.mrb[0].mxu0 %v507
        %v698 = vpop.f32.mrb[0].mxu0
        %v699 = vadd.f32 0.0, %v698
        %v700 = vpop.f32.mrb[0].mxu0
        %v701 = vpop.f32.mrb[0].mxu0
        %v702 = vadd.f32 0.0, %v701
        %v703 = vpop.f32.mrb[0].mxu0
        %704 = vmatprep.mubr.bf16.mxu0 0
        %705 = vmatmul.mubr.bf16.gmra.mrb[0].mxu0 %v508
        %v706 = vpop.f32.mrb[0].mxu0
        %v707 = vadd.f32 0.0, %v706
        %v708 = vpop.f32.mrb[0].mxu0
        %v709 = vpop.f32.mrb[0].mxu0
        %v710 = vadd.f32 0.0, %v709
        %v711 = vpop.f32.mrb[0].mxu0
        %712 = vmatprep.mubr.bf16.mxu0 0
        %713 = vmatmul.mubr.bf16.gmra.mrb[0].mxu0 %v509
        %v714 = vpop.f32.mrb[0].mxu0
        %v715 = vadd.f32 0.0, %v714
        %v716 = vpop.f32.mrb[0].mxu0
        %v717 = vpop.f32.mrb[0].mxu0
        %v718 = vadd.f32 0.0, %v717
        %v719 = vpop.f32.mrb[0].mxu0
        %720 = vmatprep.mubr.bf16.mxu0 0
        %721 = vmatmul.mubr.bf16.gmra.mrb[0].mxu0 %v510
        %v722 = vpop.f32.mrb[0].mxu0
        %v723 = vadd.f32 0.0, %v722
        %v724 = vpop.f32.mrb[0].mxu0
        %v725 = vpop.f32.mrb[0].mxu0
        %v726 = vadd.f32 0.0, %v725
        %v727 = vpop.f32.mrb[0].mxu0
        %728 = vmatprep.mubr.bf16.mxu0 0
        %729 = vmatmul.mubr.bf16.gmra.mrb[0].mxu0 %v511
        %v730 = vpop.f32.mrb[0].mxu0
        %v731 = vadd.f32 0.0, %v730
        %v732 = vpop.f32.mrb[0].mxu0
        %v733 = vpop.f32.mrb[0].mxu0
        %v734 = vadd.f32 0.0, %v733
        %v735 = vpop.f32.mrb[0].mxu0
        %736 = vdwg.mxu0
        %v737 = vadd.f32 %v352, %v611
        %v738 = vadd.f32 %v353, %v614
        %v739 = vadd.f32 %v354, %v619
        %v740 = vadd.f32 %v355, %v622
        %v741 = vadd.f32 %v356, %v627
        %v742 = vadd.f32 %v357, %v630
        %v743 = vadd.f32 %v358, %v635
        %v744 = vadd.f32 %v359, %v638
        %v745 = vadd.f32 %v360, %v643
        %v746 = vadd.f32 %v361, %v646
        %v747 = vadd.f32 %v362, %v651
        %v748 = vadd.f32 %v363, %v654
        %v749 = vadd.f32 %v364, %v659
        %v750 = vadd.f32 %v365, %v662
        %v751 = vadd.f32 %v366, %v667
        %v752 = vadd.f32 %v367, %v670
        %v753 = vadd.f32 %v368, %v675
        %v754 = vadd.f32 %v369, %v678
        %v755 = vadd.f32 %v370, %v683
        %v756 = vadd.f32 %v371, %v686
        %v757 = vadd.f32 %v372, %v691
        %v758 = vadd.f32 %v373, %v694
        %v759 = vadd.f32 %v374, %v699
        %v760 = vadd.f32 %v375, %v702
        %v761 = vadd.f32 %v376, %v707
        %v762 = vadd.f32 %v377, %v710
        %v763 = vadd.f32 %v378, %v715
        %v764 = vadd.f32 %v379, %v718
        %v765 = vadd.f32 %v380, %v723
        %v766 = vadd.f32 %v381, %v726
        %v767 = vadd.f32 %v382, %v731
        %v768 = vadd.f32 %v383, %v734
        %769 = vst [vmem:[#allocation2] sm:$0xff] %v737
        %770 = vst [vmem:[#allocation2 + $0x8] sm:$0xff] %v738
        %771 = vst [vmem:[#allocation2 + $0x10] sm:$0xff] %v739
        %772 = vst [vmem:[#allocation2 + $0x18] sm:$0xff] %v740
        %773 = vst [vmem:[#allocation2 + $0x20] sm:$0xff] %v741
        %774 = vst [vmem:[#allocation2 + $0x28] sm:$0xff] %v742
        %775 = vst [vmem:[#allocation2 + $0x30] sm:$0xff] %v743
        %776 = vst [vmem:[#allocation2 + $0x38] sm:$0xff] %v744
        %777 = vst [vmem:[#allocation2 + $0x40] sm:$0xff] %v745
        %778 = vst [vmem:[#allocation2 + $0x48] sm:$0xff] %v746
        %779 = vst [vmem:[#allocation2 + $0x50] sm:$0xff] %v747
        %780 = vst [vmem:[#allocation2 + $0x58] sm:$0xff] %v748
        %781 = vst [vmem:[#allocation2 + $0x60] sm:$0xff] %v749
        %782 = vst [vmem:[#allocation2 + $0x68] sm:$0xff] %v750
        %783 = vst [vmem:[#allocation2 + $0x70] sm:$0xff] %v751
        %784 = vst [vmem:[#allocation2 + $0x78] sm:$0xff] %v752
        %785 = vst [vmem:[#allocation2 + $0x80] sm:$0xff] %v753
        %786 = vst [vmem:[#allocation2 + $0x88] sm:$0xff] %v754
        %787 = vst [vmem:[#allocation2 + $0x90] sm:$0xff] %v755
        %788 = vst [vmem:[#allocation2 + $0x98] sm:$0xff] %v756
        %789 = vst [vmem:[#allocation2 + $0xa0] sm:$0xff] %v757
        %790 = vst [vmem:[#allocation2 + $0xa8] sm:$0xff] %v758
        %791 = vst [vmem:[#allocation2 + $0xb0] sm:$0xff] %v759
        %792 = vst [vmem:[#allocation2 + $0xb8] sm:$0xff] %v760
        %793 = vst [vmem:[#allocation2 + $0xc0] sm:$0xff] %v761
        %794 = vst [vmem:[#allocation2 + $0xc8] sm:$0xff] %v762
        %795 = vst [vmem:[#allocation2 + $0xd0] sm:$0xff] %v763
        %796 = vst [vmem:[#allocation2 + $0xd8] sm:$0xff] %v764
        %797 = vst [vmem:[#allocation2 + $0xe0] sm:$0xff] %v765
        %798 = vst [vmem:[#allocation2 + $0xe8] sm:$0xff] %v766
        %799 = vst [vmem:[#allocation2 + $0xf0] sm:$0xff] %v767
        %800 = vst [vmem:[#allocation2 + $0xf8] sm:$0xff] %v768
        // Predicated region
        $region49: #{qwen_decoder_layer.7} parent=31 // pred_check
          %p801 = pneg %p284
        $region50: #{qwen_decoder_layer.7} parent=31 // pred_check_branch
          %803 = sbr.rel (%p801) target = $region52
        $region51: #{qwen_decoder_layer.7} parent=31 // pred_region
          %v804 = vld [vmem:[#allocation2] sm:$0xff]
          %v805 = vld [vmem:[#allocation2 + $0x8] sm:$0xff]
          %v806 = vld [vmem:[#allocation2 + $0x10] sm:$0xff]
          %v807 = vld [vmem:[#allocation2 + $0x18] sm:$0xff]
          %v808 = vld [vmem:[#allocation2 + $0x20] sm:$0xff]
          %v809 = vld [vmem:[#allocation2 + $0x28] sm:$0xff]
          %v810 = vld [vmem:[#allocation2 + $0x30] sm:$0xff]
          %v811 = vld [vmem:[#allocation2 + $0x38] sm:$0xff]
          %v812 = vld [vmem:[#allocation2 + $0x40] sm:$0xff]
          %v813 = vld [vmem:[#allocation2 + $0x48] sm:$0xff]
          %v814 = vld [vmem:[#allocation2 + $0x50] sm:$0xff]
          %v815 = vld [vmem:[#allocation2 + $0x58] sm:$0xff]
          %v816 = vld [vmem:[#allocation2 + $0x60] sm:$0xff]
          %v817 = vld [vmem:[#allocation2 + $0x68] sm:$0xff]
          %v818 = vld [vmem:[#allocation2 + $0x70] sm:$0xff]
          %v819 = vld [vmem:[#allocation2 + $0x78] sm:$0xff]
          %v820 = vld [vmem:[#allocation2 + $0x80] sm:$0xff]
          %v821 = vld [vmem:[#allocation2 + $0x88] sm:$0xff]
          %v822 = vld [vmem:[#allocation2 + $0x90] sm:$0xff]
          %v823 = vld [vmem:[#allocation2 + $0x98] sm:$0xff]
          %v824 = vld [vmem:[#allocation2 + $0xa0] sm:$0xff]
          %v825 = vld [vmem:[#allocation2 + $0xa8] sm:$0xff]
          %v826 = vld [vmem:[#allocation2 + $0xb0] sm:$0xff]
          %v827 = vld [vmem:[#allocation2 + $0xb8] sm:$0xff]
          %v828 = vld [vmem:[#allocation2 + $0xc0] sm:$0xff]
          %v829 = vld [vmem:[#allocation2 + $0xc8] sm:$0xff]
          %v830 = vld [vmem:[#allocation2 + $0xd0] sm:$0xff]
          %v831 = vld [vmem:[#allocation2 + $0xd8] sm:$0xff]
          %v832 = vld [vmem:[#allocation2 + $0xe0] sm:$0xff]
          %v833 = vld [vmem:[#allocation2 + $0xe8] sm:$0xff]
          %v834 = vld [vmem:[#allocation2 + $0xf0] sm:$0xff]
          %v835 = vld [vmem:[#allocation2 + $0xf8] sm:$0xff]
          %836 = vst [vmem:[%s278] sm:$0xff] %v804
          %837 = vst [vmem:[%s278 + $0x8] sm:$0xff] %v805
          %838 = vst [vmem:[%s278 + $0x10] sm:$0xff] %v806
          %839 = vst [vmem:[%s278 + $0x18] sm:$0xff] %v807
          %840 = vst [vmem:[%s278 + $0x20] sm:$0xff] %v808
          %841 = vst [vmem:[%s278 + $0x28] sm:$0xff] %v809
          %842 = vst [vmem:[%s278 + $0x30] sm:$0xff] %v810
          %843 = vst [vmem:[%s278 + $0x38] sm:$0xff] %v811
          %844 = vst [vmem:[%s278 + $0x40] sm:$0xff] %v812
          %845 = vst [vmem:[%s278 + $0x48] sm:$0xff] %v813
          %846 = vst [vmem:[%s278 + $0x50] sm:$0xff] %v814
          %847 = vst [vmem:[%s278 + $0x58] sm:$0xff] %v815
          %848 = vst [vmem:[%s278 + $0x60] sm:$0xff] %v816
          %849 = vst [vmem:[%s278 + $0x68] sm:$0xff] %v817
          %850 = vst [vmem:[%s278 + $0x70] sm:$0xff] %v818
          %851 = vst [vmem:[%s278 + $0x78] sm:$0xff] %v819
          %852 = vst [vmem:[%s278 + $0x80] sm:$0xff] %v820
          %853 = vst [vmem:[%s278 + $0x88] sm:$0xff] %v821
          %854 = vst [vmem:[%s278 + $0x90] sm:$0xff] %v822
          %855 = vst [vmem:[%s278 + $0x98] sm:$0xff] %v823
          %856 = vst [vmem:[%s278 + $0xa0] sm:$0xff] %v824
          %857 = vst [vmem:[%s278 + $0xa8] sm:$0xff] %v825
          %858 = vst [vmem:[%s278 + $0xb0] sm:$0xff] %v826
          %859 = vst [vmem:[%s278 + $0xb8] sm:$0xff] %v827
          %860 = vst [vmem:[%s278 + $0xc0] sm:$0xff] %v828
          %861 = vst [vmem:[%s278 + $0xc8] sm:$0xff] %v829
          %862 = vst [vmem:[%s278 + $0xd0] sm:$0xff] %v830
          %863 = vst [vmem:[%s278 + $0xd8] sm:$0xff] %v831
          %864 = vst [vmem:[%s278 + $0xe0] sm:$0xff] %v832
          %865 = vst [vmem:[%s278 + $0xe8] sm:$0xff] %v833
          %866 = vst [vmem:[%s278 + $0xf0] sm:$0xff] %v834
          %867 = vst [vmem:[%s278 + $0xf8] sm:$0xff] %v835
        $region52: #{qwen_decoder_layer.7} parent=31 // pred_fallthru
          _
        %s868 = sand.u32 %s134, 1
        %s869 = scalar_lea.sflag [#allocation5], %s868
        %s870 = sand.u32 %s134, 1
        %s871 = smul.addr %s870, 256
        %s872 = scalar_lea.vmem [#allocation9], %s871
        // Predicated region
        $region53: #{qwen_decoder_layer.7} parent=31 // pred_check
          %p873 = pneg %p144
        $region54: #{qwen_decoder_layer.7} parent=31 // pred_check_branch
          %875 = sbr.rel (%p873) target = $region56
        $region55: #{qwen_decoder_layer.7} parent=31 // pred_region
          %s876 = smul.u32 32, %s26
          %s878 = ssub.s32 4096, 4096
          %879 = vsyncadd %s869, %s878
          %s880 = sadd.s32 %s27, %s876
          %s881 = smul.addr %s880, 128
          %s882 = scalar_lea.hbm %s3, %s881
          %s883 = sshll.u32 %s872, 4
          %s884 = int_to_ptr.vmem [resolvable:$true] %s883
          %889 = dma.vmem_to_hbm [thread:$0]  %s884, 4096, %s882, %s869, 128, 128, 8
        $region56: #{qwen_decoder_layer.7} parent=31 // pred_fallthru
          _
      $region32: #{qwen_decoder_layer.7} parent=5 // pred_fallthru
        _
      %p890 = scmp.le.s32.totalorder 2, %s16
      // Predicated region
      $region57: #{qwen_decoder_layer.7} parent=5 // pred_check
        %p891 = pneg %p890
      $region58: #{qwen_decoder_layer.7} parent=5 // pred_check_branch
        %893 = sbr.rel (%p891) target = $region60
      $region59: #{qwen_decoder_layer.7} parent=5 // pred_region
        %s894 = ssub.s32 %s16, 2
        // Predicated region
        $region61: #{qwen_decoder_layer.7} parent=59 // pred_check
          %p895 = pneg %p150
        $region62: #{qwen_decoder_layer.7} parent=59 // pred_check_branch
          %897 = sbr.rel (%p895) target = $region64
        $region63: #{qwen_decoder_layer.7} parent=59 // pred_region
          %s898 = sand.u32 %s135, 1
          %s899 = scalar_lea.sflag [#allocation5], %s898
          %s900 = sand.u32 %s135, 1
          %s901 = smul.addr %s900, 256
          %s902 = scalar_lea.vmem [#allocation9], %s901
          %903 = dma.done %s899, 4096
        $region64: #{qwen_decoder_layer.7} parent=59 // pred_fallthru
          _
      $region60: #{qwen_decoder_layer.7} parent=5 // pred_fallthru
        _
    $region6: #{qwen_decoder_layer.7} parent=1 // loop_footer
      %s20 = sadd.s32 1, %s16
    $region7: #{qwen_decoder_layer.7} parent=1 // loop_footer_branch
      %15 = sbr.rel target = $region3
    $region8: #{qwen_decoder_layer.7} parent=1 // loop_exit
      _
    %904 = vsyncpa [#allocation4], 1
    %s905 = scalar_lea.sflag [#allocation4], 1
    %906 = vsyncpa %s905, 1
    %907 = vsyncpa [#allocation7], 1
    %908 = vsyncpa [#allocation5], 1
    %s909 = scalar_lea.sflag [#allocation5], 1
    %910 = vsyncpa %s909, 1

// kernel: qwen_decoder_layer.5
$region0: #{qwen_decoder_layer.5}
  #allocation0 [shape = 'u32[]', space=smem, size = 0x4, offset = 0x4, fixed_abs, tag = 'smem constant byte address 0x4 - core index']
  #allocation1 [shape = 'u32[144,128]{1,0:T(1,128)}', space=vmem, size = 0x12000, scoped, tag = 'internal scratch']
  #allocation2 [shape = 'bf16[1,256,128]{2,1,0:T(16,128)(2,1)}', space=vmem, size = 0x10000, scoped, tag = 'scratch operand']
  #allocation3 [shape = 'f32[256,256]{1,0:T(8,128)}', space=vmem, size = 0x40000, scoped, tag = 'scratch operand']
  %s0 = inlined_call_operand.hbm [shape: f32[512,128], index: 0, kind: input, shape index: {}]
  %s1 = inlined_call_operand.hbm [shape: f32[1,128], index: 1, kind: input, shape index: {}]
  %s2 = inlined_call_operand.hbm [shape: bf16[128,256], index: 2, kind: input, shape index: {}]
  %s3 = inlined_call_operand.hbm [shape: bf16[512,256], index: 3, kind: output, shape index: {}]
  %s4 = sld [smem:[#allocation0]]
  $region69: #{qwen_decoder_layer.5} parent=0
    _
  %s6 = ssub.s32 1, %s4
  %s7 = scalar_select 0, %s6, %s4
  $region1: #{qwen_decoder_layer.5} parent=0
    #allocation4 [shape = 'u8[262144]{0}', space=vmem, size = 0x40000, scoped, tag = 'input window, operand 0']
    #allocation5 [shape = 's32[2]{0}', space=sflag, size = 0x8, scoped, tag = 'scoped memory for qwen_decoder_layer.5']
    #allocation6 [shape = 's32[2]{0}', space=sflag, size = 0x8, scoped, tag = 'scoped memory for qwen_decoder_layer.5']
    #allocation7 [shape = 'u8[512]{0}', space=vmem, size = 0x400, scoped, tag = 'input window, operand 1, single buffered']
    #allocation8 [shape = 's32[1]{0}', space=sflag, size = 0x4, scoped, tag = 'scoped memory for qwen_decoder_layer.5']
    #allocation9 [shape = 'u8[65536]{0}', space=vmem, size = 0x10000, scoped, tag = 'input window, operand 2, single buffered']
    #allocation10 [shape = 'u8[262144]{0}', space=vmem, size = 0x40000, scoped, tag = 'output window, operand 0']
    %8 = vsyncpa [#allocation5], 0
    %s9 = scalar_lea.sflag [#allocation5], 1
    %10 = vsyncpa %s9, 0
    %11 = vsyncpa [#allocation8], 0
    %12 = vsyncpa [#allocation6], 0
    %s13 = scalar_lea.sflag [#allocation6], 1
    %14 = vsyncpa %s13, 0
    loop: start=0, step=1, limit=4
    $region2: #{qwen_decoder_layer.5} parent=1 // loop_pre_header
      _
    $region3: #{qwen_decoder_layer.5} parent=1 // loop_header
      %s16 = sphi 0, %s20
      %p17 = scmp.ge.s32.totalorder %s16, 4
      %s23 = sphi 0, %s42
      %s24 = sphi 0, %s38
      %s25 = sphi 0, %s34
      %s26 = sphi 0, %s23
      %s27 = sphi 0, %s24
      %s28 = sphi 0, %s25
      %s29 = sphi 0, %s26
      %s30 = sphi 0, %s27
      %s31 = sphi 0, %s28
      %s45 = sphi 0, %s47
      %s48 = sphi 0, %s45
      %s49 = sphi 0, %s48
      %s65 = sphi 0, %s49
      %s69 = sphi 0, %s69
      %s71 = sphi 0, %s69
      %s72 = sphi 0, %s71
      %s86 = sphi 0, %s72
      %s94 = sphi 0, %s96
      %s97 = sphi 0, %s94
      %s98 = sphi 0, %s97
      %s114 = sphi 0, %s98
      %s122 = sphi 0, %s124
      %s125 = sphi 0, %s122
      %s126 = sphi 0, %s125
      %s142 = sphi 0, %s126
    $region4: #{qwen_decoder_layer.5} parent=1 // loop_header_branch
      %19 = sbr.rel (%p17) target = $region8
    $region5: #{qwen_decoder_layer.5} parent=1 // loop_body
      %s21 = ssub.s32 %s16, 1
      %s22 = ssub.s32 %s16, 2
      %s32 = sadd.s32 1, %s25
      %p33 = scmp.ge.s32.totalorder %s32, 1
      %s34 = scalar_select %p33, 0, %s32
      %s35 = sadd.s32 1, %s24
      %s36 = scalar_select %p33, %s35, %s24
      %p37 = scmp.ge.s32.totalorder %s36, 1
      %s38 = scalar_select %p37, 0, %s36
      %s39 = sadd.s32 1, %s23
      %s40 = scalar_select %p37, %s39, %s23
      %p41 = scmp.ge.s32.totalorder %s40, 2
      %s42 = scalar_select %p41, 0, %s40
      %s43 = ssub.s32 %s23, %s42
      %p44 = scmp.eq.s32.totalorder %s43, 0
      %s46 = sadd.s32 %s45, 1
      %s47 = scalar_select %p44, %s45, %s46
      %p50 = pneg %p44
      %p51 = scmp.eq.s32.totalorder %s16, 1
      %p52 = por %p50, %p51
      %p53 = scmp.ne.s32.totalorder %s45, %s48
      %p54 = scmp.eq.s32.totalorder %s16, 0
      %p55 = por %p53, %p54
      %p56 = scmp.ne.s32.totalorder %s45, %s48
      %p57 = scmp.eq.s32.totalorder %s21, 1
      %p58 = por %p56, %p57
      %p59 = scmp.ne.s32.totalorder %s48, %s49
      %p60 = scmp.eq.s32.totalorder %s21, 0
      %p61 = por %p59, %p60
      %p62 = scmp.ne.s32.totalorder %s48, %s49
      %p63 = scmp.eq.s32.totalorder %s22, 1
      %p64 = por %p62, %p63
      %p66 = scmp.ne.s32.totalorder %s49, %s65
      %p67 = scmp.eq.s32.totalorder %s22, 0
      %p68 = por %p66, %p67
      %s70 = sadd.s32 %s69, 1
      %p73 = scmp.eq.s32.totalorder %s16, 1
      %p74 = scmp.ne.s32.totalorder %s69, %s71
      %p75 = scmp.eq.s32.totalorder %s16, 0
      %p76 = por %p74, %p75
      %p77 = scmp.ne.s32.totalorder %s69, %s71
      %p78 = scmp.eq.s32.totalorder %s21, 1
      %p79 = por %p77, %p78
      %p80 = scmp.ne.s32.totalorder %s71, %s72
      %p81 = scmp.eq.s32.totalorder %s21, 0
      %p82 = por %p80, %p81
      %p83 = scmp.ne.s32.totalorder %s71, %s72
      %p84 = scmp.eq.s32.totalorder %s22, 1
      %p85 = por %p83, %p84
      %p87 = scmp.ne.s32.totalorder %s72, %s86
      %p88 = scmp.eq.s32.totalorder %s22, 0
      %p89 = por %p87, %p88
      %s90 = ssub.s32 %s25, %s34
      %s91 = ssub.s32 %s24, %s38
      %s92 = sor.u32 %s90, %s91
      %p93 = scmp.eq.s32.totalorder %s92, 0
      %s95 = sadd.s32 %s94, 1
      %s96 = scalar_select %p93, %s94, %s95
      %p99 = pneg %p93
      %p100 = scmp.eq.s32.totalorder %s16, 1
      %p101 = por %p99, %p100
      %p102 = scmp.ne.s32.totalorder %s94, %s97
      %p103 = scmp.eq.s32.totalorder %s16, 0
      %p104 = por %p102, %p103
      %p105 = scmp.ne.s32.totalorder %s94, %s97
      %p106 = scmp.eq.s32.totalorder %s21, 1
      %p107 = por %p105, %p106
      %p108 = scmp.ne.s32.totalorder %s97, %s98
      %p109 = scmp.eq.s32.totalorder %s21, 0
      %p110 = por %p108, %p109
      %p111 = scmp.ne.s32.totalorder %s97, %s98
      %p112 = scmp.eq.s32.totalorder %s22, 1
      %p113 = por %p111, %p112
      %p115 = scmp.ne.s32.totalorder %s98, %s114
      %p116 = scmp.eq.s32.totalorder %s22, 0
      %p117 = por %p115, %p116
      %s118 = ssub.s32 %s23, %s42
      %s119 = ssub.s32 %s24, %s38
      %s120 = sor.u32 %s118, %s119
      %p121 = scmp.eq.s32.totalorder %s120, 0
      %s123 = sadd.s32 %s122, 1
      %s124 = scalar_select %p121, %s122, %s123
      %p127 = pneg %p121
      %p128 = scmp.eq.s32.totalorder %s16, 1
      %p129 = por %p127, %p128
      %p130 = scmp.ne.s32.totalorder %s122, %s125
      %p131 = scmp.eq.s32.totalorder %s16, 0
      %p132 = por %p130, %p131
      %p133 = scmp.ne.s32.totalorder %s122, %s125
      %p134 = scmp.eq.s32.totalorder %s21, 1
      %p135 = por %p133, %p134
      %p136 = scmp.ne.s32.totalorder %s125, %s126
      %p137 = scmp.eq.s32.totalorder %s21, 0
      %p138 = por %p136, %p137
      %p139 = scmp.ne.s32.totalorder %s125, %s126
      %p140 = scmp.eq.s32.totalorder %s22, 1
      %p141 = por %p139, %p140
      %p143 = scmp.ne.s32.totalorder %s126, %s142
      %p144 = scmp.eq.s32.totalorder %s22, 0
      %p145 = por %p143, %p144
      %p146 = scmp.le.s32.totalorder 1, %s16
      %p147 = scmp.lt.s32.totalorder %s16, 3
      %p148 = pnand %p146, %p147
      %p149 = pneg %p148
      // Predicated region
      $region9: #{qwen_decoder_layer.5} parent=5 // pred_check
        _
      $region10: #{qwen_decoder_layer.5} parent=5 // pred_check_branch
        %151 = sbr.rel (%p148) target = $region12
      $region11: #{qwen_decoder_layer.5} parent=5 // pred_region
        %s152 = ssub.s32 %s16, 1
        // Predicated region
        $region13: #{qwen_decoder_layer.5} parent=11 // pred_check
          %p153 = pneg %p82
        $region14: #{qwen_decoder_layer.5} parent=11 // pred_check_branch
          %155 = sbr.rel (%p153) target = $region16
        $region15: #{qwen_decoder_layer.5} parent=11 // pred_region
          %s157 = ssub.s32 16, 16
          %158 = vsyncadd [#allocation8], %s157
          %s160 = sshll.u32 [#allocation7], 4
          %s161 = int_to_ptr.vmem [resolvable:$true] %s160
          %163 = dma.hbm_to_vmem [thread:$0]  %s1, 16, %s161, [#allocation8]
        $region16: #{qwen_decoder_layer.5} parent=11 // pred_fallthru
          _
        // Predicated region
        $region17: #{qwen_decoder_layer.5} parent=11 // pred_check
          %p164 = pneg %p110
        $region18: #{qwen_decoder_layer.5} parent=11 // pred_check_branch
          %166 = sbr.rel (%p164) target = $region20
        $region19: #{qwen_decoder_layer.5} parent=11 // pred_region
          %s167 = smul.u32 16, %s28
          %s168 = smul.u32 2, %s27
          %s170 = ssub.s32 2048, 2048
          %171 = vsyncadd [#allocation8], %s170
          %s172 = smul.addr %s167, 2
          %s173 = sadd.s32 %s168, %s172
          %s174 = smul.addr %s173, 64
          %s175 = scalar_lea.hbm %s2, %s174
          %s176 = sshll.u32 [#allocation9], 4
          %s177 = int_to_ptr.vmem [resolvable:$true] %s176
          %182 = dma.hbm_to_vmem [thread:$0]  %s175, 2048, %s177, [#allocation8], 128, 128, 8
        $region20: #{qwen_decoder_layer.5} parent=11 // pred_fallthru
          _
      $region12: #{qwen_decoder_layer.5} parent=5 // pred_fallthru
        _
      %p183 = scmp.lt.s32.totalorder %s16, 2
      // Predicated region
      $region21: #{qwen_decoder_layer.5} parent=5 // pred_check
        %p184 = pneg %p183
      $region22: #{qwen_decoder_layer.5} parent=5 // pred_check_branch
        %186 = sbr.rel (%p184) target = $region24
      $region23: #{qwen_decoder_layer.5} parent=5 // pred_region
        // Predicated region
        $region25: #{qwen_decoder_layer.5} parent=23 // pred_check
          %p187 = pneg %p55
        $region26: #{qwen_decoder_layer.5} parent=23 // pred_check_branch
          %189 = sbr.rel (%p187) target = $region28
        $region27: #{qwen_decoder_layer.5} parent=23 // pred_region
          %s190 = sand.u32 %s45, 1
          %s191 = scalar_lea.sflag [#allocation5], %s190
          %s192 = sand.u32 %s45, 1
          %s193 = smul.addr %s192, 256
          %s194 = scalar_lea.vmem [#allocation4], %s193
          %s195 = smul.u32 32, %s23
          %s197 = ssub.s32 4096, 4096
          %198 = vsyncadd %s191, %s197
          %s199 = smul.addr %s195, 128
          %s200 = scalar_lea.hbm %s0, %s199
          %s201 = sshll.u32 %s194, 4
          %s202 = int_to_ptr.vmem [resolvable:$true] %s201
          %207 = dma.hbm_to_vmem [thread:$0]  %s200, 4096, %s202, %s191, 128, 128, 8
        $region28: #{qwen_decoder_layer.5} parent=23 // pred_fallthru
          _
      $region24: #{qwen_decoder_layer.5} parent=5 // pred_fallthru
        _
      %p208 = scmp.le.s32.totalorder 1, %s16
      %p209 = scmp.lt.s32.totalorder %s16, 3
      %p210 = pnand %p208, %p209
      %p211 = pneg %p210
      // Predicated region
      $region29: #{qwen_decoder_layer.5} parent=5 // pred_check
        _
      $region30: #{qwen_decoder_layer.5} parent=5 // pred_check_branch
        %213 = sbr.rel (%p210) target = $region32
      $region31: #{qwen_decoder_layer.5} parent=5 // pred_region
        %s214 = ssub.s32 %s16, 1
        %s215 = sand.u32 %s48, 1
        %s216 = scalar_lea.sflag [#allocation5], %s215
        %s217 = sand.u32 %s48, 1
        %s218 = smul.addr %s217, 256
        %s219 = scalar_lea.vmem [#allocation4], %s218
        // Predicated region
        $region33: #{qwen_decoder_layer.5} parent=31 // pred_check
          %p220 = pneg %p61
        $region34: #{qwen_decoder_layer.5} parent=31 // pred_check_branch
          %222 = sbr.rel (%p220) target = $region36
        $region35: #{qwen_decoder_layer.5} parent=31 // pred_region
          %223 = dma.done %s216, 4096
        $region36: #{qwen_decoder_layer.5} parent=31 // pred_fallthru
          _
        // Predicated region
        $region37: #{qwen_decoder_layer.5} parent=31 // pred_check
          %p224 = pneg %p82
        $region38: #{qwen_decoder_layer.5} parent=31 // pred_check_branch
          %226 = sbr.rel (%p224) target = $region40
        $region39: #{qwen_decoder_layer.5} parent=31 // pred_region
          %227 = dma.done [#allocation8], 16
        $region40: #{qwen_decoder_layer.5} parent=31 // pred_fallthru
          _
        // Predicated region
        $region41: #{qwen_decoder_layer.5} parent=31 // pred_check
          %p228 = pneg %p110
        $region42: #{qwen_decoder_layer.5} parent=31 // pred_check_branch
          %230 = sbr.rel (%p228) target = $region44
        $region43: #{qwen_decoder_layer.5} parent=31 // pred_region
          %231 = dma.done [#allocation8], 2048
        $region44: #{qwen_decoder_layer.5} parent=31 // pred_fallthru
          _
        %s232 = sand.u32 %s48, 1
        %s233 = scalar_lea.sflag [#allocation5], %s232
        %s234 = sand.u32 %s48, 1
        %s235 = smul.addr %s234, 256
        %s236 = scalar_lea.vmem [#allocation4], %s235
        %p237 = pneg %p61
        %p238 = pneg %p58
        %p239 = pneg %p82
        %p240 = pneg %p79
        %p241 = pneg %p110
        %p242 = pneg %p107
        %p243 = pneg %p138
        %p244 = pneg %p135
        %s245 = sand.u32 %s125, 1
        %s246 = scalar_lea.sflag [#allocation6], %s245
        %s247 = sand.u32 %s125, 1
        %s248 = smul.addr %s247, 256
        %s249 = scalar_lea.vmem [#allocation10], %s248
        %s250 = smul.u32 32, %s26
        %s251 = smul.u32 16, %s28
        %s252 = smul.u32 2, %s27
        %s253 = smul.u32 32, %s26
        %s254 = smul.u32 2, %s27
        %p256 = scmp.eq.s32.totalorder %s27, 0
        %p257 = scmp.eq.s32.totalorder %s28, 0
        %p258 = pnand %p256, %p257
        %p259 = pneg %p258
        // Predicated region
        $region45: #{qwen_decoder_layer.5} parent=31 // pred_check
          _
        $region46: #{qwen_decoder_layer.5} parent=31 // pred_check_branch
          %261 = sbr.rel (%p258) target = $region48
        $region47: #{qwen_decoder_layer.5} parent=31 // pred_region
          %v262 = vld [vmem:[%s219] sm:$0xff]
          %v263 = vld [vmem:[%s219 + $0x8] sm:$0xff]
          %v264 = vld [vmem:[%s219 + $0x10] sm:$0xff]
          %v265 = vld [vmem:[%s219 + $0x18] sm:$0xff]
          %v266 = vld [vmem:[%s219 + $0x20] sm:$0xff]
          %v267 = vld [vmem:[%s219 + $0x28] sm:$0xff]
          %v268 = vld [vmem:[%s219 + $0x30] sm:$0xff]
          %v269 = vld [vmem:[%s219 + $0x38] sm:$0xff]
          %v270 = vld [vmem:[%s219 + $0x40] sm:$0xff]
          %v271 = vld [vmem:[%s219 + $0x48] sm:$0xff]
          %v272 = vld [vmem:[%s219 + $0x50] sm:$0xff]
          %v273 = vld [vmem:[%s219 + $0x58] sm:$0xff]
          %v274 = vld [vmem:[%s219 + $0x60] sm:$0xff]
          %v275 = vld [vmem:[%s219 + $0x68] sm:$0xff]
          %v276 = vld [vmem:[%s219 + $0x70] sm:$0xff]
          %v277 = vld [vmem:[%s219 + $0x78] sm:$0xff]
          %v278 = vld [vmem:[%s219 + $0x80] sm:$0xff]
          %v279 = vld [vmem:[%s219 + $0x88] sm:$0xff]
          %v280 = vld [vmem:[%s219 + $0x90] sm:$0xff]
          %v281 = vld [vmem:[%s219 + $0x98] sm:$0xff]
          %v282 = vld [vmem:[%s219 + $0xa0] sm:$0xff]
          %v283 = vld [vmem:[%s219 + $0xa8] sm:$0xff]
          %v284 = vld [vmem:[%s219 + $0xb0] sm:$0xff]
          %v285 = vld [vmem:[%s219 + $0xb8] sm:$0xff]
          %v286 = vld [vmem:[%s219 + $0xc0] sm:$0xff]
          %v287 = vld [vmem:[%s219 + $0xc8] sm:$0xff]
          %v288 = vld [vmem:[%s219 + $0xd0] sm:$0xff]
          %v289 = vld [vmem:[%s219 + $0xd8] sm:$0xff]
          %v290 = vld [vmem:[%s219 + $0xe0] sm:$0xff]
          %v291 = vld [vmem:[%s219 + $0xe8] sm:$0xff]
          %v292 = vld [vmem:[%s219 + $0xf0] sm:$0xff]
          %v293 = vld [vmem:[%s219 + $0xf8] sm:$0xff]
          %v294 = vmul.f32 %v262, %v262
          %v295 = vmul.f32 %v263, %v263
          %v296 = vmul.f32 %v264, %v264
          %v297 = vmul.f32 %v265, %v265
          %v298 = vmul.f32 %v266, %v266
          %v299 = vmul.f32 %v267, %v267
          %v300 = vmul.f32 %v268, %v268
          %v301 = vmul.f32 %v269, %v269
          %v302 = vmul.f32 %v270, %v270
          %v303 = vmul.f32 %v271, %v271
          %v304 = vmul.f32 %v272, %v272
          %v305 = vmul.f32 %v273, %v273
          %v306 = vmul.f32 %v274, %v274
          %v307 = vmul.f32 %v275, %v275
          %v308 = vmul.f32 %v276, %v276
          %v309 = vmul.f32 %v277, %v277
          %v310 = vmul.f32 %v278, %v278
          %v311 = vmul.f32 %v279, %v279
          %v312 = vmul.f32 %v280, %v280
          %v313 = vmul.f32 %v281, %v281
          %v314 = vmul.f32 %v282, %v282
          %v315 = vmul.f32 %v283, %v283
          %v316 = vmul.f32 %v284, %v284
          %v317 = vmul.f32 %v285, %v285
          %v318 = vmul.f32 %v286, %v286
          %v319 = vmul.f32 %v287, %v287
          %v320 = vmul.f32 %v288, %v288
          %v321 = vmul.f32 %v289, %v289
          %v322 = vmul.f32 %v290, %v290
          %v323 = vmul.f32 %v291, %v291
          %v324 = vmul.f32 %v292, %v292
          %v325 = vmul.f32 %v293, %v293
          %326 = vadd.xlane.f32.xlu0 %v294
          %v327 = vpop.xlane.xlu0 %326
          %328 = vadd.xlane.f32.xlu0 %v295
          %v329 = vpop.xlane.xlu0 %328
          %330 = vadd.xlane.f32.xlu0 %v296
          %v331 = vpop.xlane.xlu0 %330
          %332 = vadd.xlane.f32.xlu0 %v297
          %v333 = vpop.xlane.xlu0 %332
          %334 = vadd.xlane.f32.xlu0 %v298
          %v335 = vpop.xlane.xlu0 %334
          %336 = vadd.xlane.f32.xlu0 %v299
          %v337 = vpop.xlane.xlu0 %336
          %338 = vadd.xlane.f32.xlu0 %v300
          %v339 = vpop.xlane.xlu0 %338
          %340 = vadd.xlane.f32.xlu0 %v301
          %v341 = vpop.xlane.xlu0 %340
          %342 = vadd.xlane.f32.xlu0 %v302
          %v343 = vpop.xlane.xlu0 %342
          %344 = vadd.xlane.f32.xlu0 %v303
          %v345 = vpop.xlane.xlu0 %344
          %346 = vadd.xlane.f32.xlu0 %v304
          %v347 = vpop.xlane.xlu0 %346
          %348 = vadd.xlane.f32.xlu0 %v305
          %v349 = vpop.xlane.xlu0 %348
          %350 = vadd.xlane.f32.xlu0 %v306
          %v351 = vpop.xlane.xlu0 %350
          %352 = vadd.xlane.f32.xlu0 %v307
          %v353 = vpop.xlane.xlu0 %352
          %354 = vadd.xlane.f32.xlu0 %v308
          %v355 = vpop.xlane.xlu0 %354
          %356 = vadd.xlane.f32.xlu0 %v309
          %v357 = vpop.xlane.xlu0 %356
          %358 = vadd.xlane.f32.xlu0 %v310
          %v359 = vpop.xlane.xlu0 %358
          %360 = vadd.xlane.f32.xlu0 %v311
          %v361 = vpop.xlane.xlu0 %360
          %362 = vadd.xlane.f32.xlu0 %v312
          %v363 = vpop.xlane.xlu0 %362
          %364 = vadd.xlane.f32.xlu0 %v313
          %v365 = vpop.xlane.xlu0 %364
          %366 = vadd.xlane.f32.xlu0 %v314
          %v367 = vpop.xlane.xlu0 %366
          %368 = vadd.xlane.f32.xlu0 %v315
          %v369 = vpop.xlane.xlu0 %368
          %370 = vadd.xlane.f32.xlu0 %v316
          %v371 = vpop.xlane.xlu0 %370
          %372 = vadd.xlane.f32.xlu0 %v317
          %v373 = vpop.xlane.xlu0 %372
          %374 = vadd.xlane.f32.xlu0 %v318
          %v375 = vpop.xlane.xlu0 %374
          %376 = vadd.xlane.f32.xlu0 %v319
          %v377 = vpop.xlane.xlu0 %376
          %378 = vadd.xlane.f32.xlu0 %v320
          %v379 = vpop.xlane.xlu0 %378
          %380 = vadd.xlane.f32.xlu0 %v321
          %v381 = vpop.xlane.xlu0 %380
          %382 = vadd.xlane.f32.xlu0 %v322
          %v383 = vpop.xlane.xlu0 %382
          %384 = vadd.xlane.f32.xlu0 %v323
          %v385 = vpop.xlane.xlu0 %384
          %386 = vadd.xlane.f32.xlu0 %v324
          %v387 = vpop.xlane.xlu0 %386
          %388 = vadd.xlane.f32.xlu0 %v325
          %v389 = vpop.xlane.xlu0 %388
          %v390 = vrcp.pop 128.0
          %v391 = vmul.f32 %v327, %v390
          %v392 = vmul.f32 %v329, %v390
          %v393 = vmul.f32 %v331, %v390
          %v394 = vmul.f32 %v333, %v390
          %v395 = vmul.f32 %v335, %v390
          %v396 = vmul.f32 %v337, %v390
          %v397 = vmul.f32 %v339, %v390
          %v398 = vmul.f32 %v341, %v390
          %v399 = vmul.f32 %v343, %v390
          %v400 = vmul.f32 %v345, %v390
          %v401 = vmul.f32 %v347, %v390
          %v402 = vmul.f32 %v349, %v390
          %v403 = vmul.f32 %v351, %v390
          %v404 = vmul.f32 %v353, %v390
          %v405 = vmul.f32 %v355, %v390
          %v406 = vmul.f32 %v357, %v390
          %v407 = vmul.f32 %v359, %v390
          %v408 = vmul.f32 %v361, %v390
          %v409 = vmul.f32 %v363, %v390
          %v410 = vmul.f32 %v365, %v390
          %v411 = vmul.f32 %v367, %v390
          %v412 = vmul.f32 %v369, %v390
          %v413 = vmul.f32 %v371, %v390
          %v414 = vmul.f32 %v373, %v390
          %v415 = vmul.f32 %v375, %v390
          %v416 = vmul.f32 %v377, %v390
          %v417 = vmul.f32 %v379, %v390
          %v418 = vmul.f32 %v381, %v390
          %v419 = vmul.f32 %v383, %v390
          %v420 = vmul.f32 %v385, %v390
          %v421 = vmul.f32 %v387, %v390
          %v422 = vmul.f32 %v389, %v390
          %v423 = vadd.f32 %v391, 1e-06
          %v424 = vadd.f32 %v392, 1e-06
          %v425 = vadd.f32 %v393, 1e-06
          %v426 = vadd.f32 %v394, 1e-06
          %v427 = vadd.f32 %v395, 1e-06
          %v428 = vadd.f32 %v396, 1e-06
          %v429 = vadd.f32 %v397, 1e-06
          %v430 = vadd.f32 %v398, 1e-06
          %v431 = vadd.f32 %v399, 1e-06
          %v432 = vadd.f32 %v400, 1e-06
          %v433 = vadd.f32 %v401, 1e-06
          %v434 = vadd.f32 %v402, 1e-06
          %v435 = vadd.f32 %v403, 1e-06
          %v436 = vadd.f32 %v404, 1e-06
          %v437 = vadd.f32 %v405, 1e-06
          %v438 = vadd.f32 %v406, 1e-06
          %v439 = vadd.f32 %v407, 1e-06
          %v440 = vadd.f32 %v408, 1e-06
          %v441 = vadd.f32 %v409, 1e-06
          %v442 = vadd.f32 %v410, 1e-06
          %v443 = vadd.f32 %v411, 1e-06
          %v444 = vadd.f32 %v412, 1e-06
          %v445 = vadd.f32 %v413, 1e-06
          %v446 = vadd.f32 %v414, 1e-06
          %v447 = vadd.f32 %v415, 1e-06
          %v448 = vadd.f32 %v416, 1e-06
          %v449 = vadd.f32 %v417, 1e-06
          %v450 = vadd.f32 %v418, 1e-06
          %v451 = vadd.f32 %v419, 1e-06
          %v452 = vadd.f32 %v420, 1e-06
          %v453 = vadd.f32 %v421, 1e-06
          %v454 = vadd.f32 %v422, 1e-06
          %v455 = vrsqrt.pop %v423
          %v456 = vrsqrt.pop %v424
          %v457 = vrsqrt.pop %v425
          %v458 = vrsqrt.pop %v426
          %v459 = vrsqrt.pop %v427
          %v460 = vrsqrt.pop %v428
          %v461 = vrsqrt.pop %v429
          %v462 = vrsqrt.pop %v430
          %v463 = vrsqrt.pop %v431
          %v464 = vrsqrt.pop %v432
          %v465 = vrsqrt.pop %v433
          %v466 = vrsqrt.pop %v434
          %v467 = vrsqrt.pop %v435
          %v468 = vrsqrt.pop %v436
          %v469 = vrsqrt.pop %v437
          %v470 = vrsqrt.pop %v438
          %v471 = vrsqrt.pop %v439
          %v472 = vrsqrt.pop %v440
          %v473 = vrsqrt.pop %v441
          %v474 = vrsqrt.pop %v442
          %v475 = vrsqrt.pop %v443
          %v476 = vrsqrt.pop %v444
          %v477 = vrsqrt.pop %v445
          %v478 = vrsqrt.pop %v446
          %v479 = vrsqrt.pop %v447
          %v480 = vrsqrt.pop %v448
          %v481 = vrsqrt.pop %v449
          %v482 = vrsqrt.pop %v450
          %v483 = vrsqrt.pop %v451
          %v484 = vrsqrt.pop %v452
          %v485 = vrsqrt.pop %v453
          %v486 = vrsqrt.pop %v454
          %v487 = vmul.f32 %v262, %v455
          %v488 = vmul.f32 %v263, %v456
          %v489 = vmul.f32 %v264, %v457
          %v490 = vmul.f32 %v265, %v458
          %v491 = vmul.f32 %v266, %v459
          %v492 = vmul.f32 %v267, %v460
          %v493 = vmul.f32 %v268, %v461
          %v494 = vmul.f32 %v269, %v462
          %v495 = vmul.f32 %v270, %v463
          %v496 = vmul.f32 %v271, %v464
          %v497 = vmul.f32 %v272, %v465
          %v498 = vmul.f32 %v273, %v466
          %v499 = vmul.f32 %v274, %v467
          %v500 = vmul.f32 %v275, %v468
          %v501 = vmul.f32 %v276, %v469
          %v502 = vmul.f32 %v277, %v470
          %v503 = vmul.f32 %v278, %v471
          %v504 = vmul.f32 %v279, %v472
          %v505 = vmul.f32 %v280, %v473
          %v506 = vmul.f32 %v281, %v474
          %v507 = vmul.f32 %v282, %v475
          %v508 = vmul.f32 %v283, %v476
          %v509 = vmul.f32 %v284, %v477
          %v510 = vmul.f32 %v285, %v478
          %v511 = vmul.f32 %v286, %v479
          %v512 = vmul.f32 %v287, %v480
          %v513 = vmul.f32 %v288, %v481
          %v514 = vmul.f32 %v289, %v482
          %v515 = vmul.f32 %v290, %v483
          %v516 = vmul.f32 %v291, %v484
          %v517 = vmul.f32 %v292, %v485
          %v518 = vmul.f32 %v293, %v486
          %v519 = vld [vmem:[#allocation7] sm:$0x1]
          %v521 = vlaneseq
          %v522 = vshrl.u32 %v521, 7
          %v523 = vsub.s32 0, %v522
          %v524 = vrot.slane %v519, %v523
          %v526 = vmul.f32 %v487, %v524
          %v527 = vmul.f32 %v488, %v524
          %v528 = vmul.f32 %v489, %v524
          %v529 = vmul.f32 %v490, %v524
          %v530 = vmul.f32 %v491, %v524
          %v531 = vmul.f32 %v492, %v524
          %v532 = vmul.f32 %v493, %v524
          %v533 = vmul.f32 %v494, %v524
          %v534 = vmul.f32 %v495, %v524
          %v535 = vmul.f32 %v496, %v524
          %v536 = vmul.f32 %v497, %v524
          %v537 = vmul.f32 %v498, %v524
          %v538 = vmul.f32 %v499, %v524
          %v539 = vmul.f32 %v500, %v524
          %v540 = vmul.f32 %v501, %v524
          %v541 = vmul.f32 %v502, %v524
          %v542 = vmul.f32 %v503, %v524
          %v543 = vmul.f32 %v504, %v524
          %v544 = vmul.f32 %v505, %v524
          %v545 = vmul.f32 %v506, %v524
          %v546 = vmul.f32 %v507, %v524
          %v547 = vmul.f32 %v508, %v524
          %v548 = vmul.f32 %v509, %v524
          %v549 = vmul.f32 %v510, %v524
          %v550 = vmul.f32 %v511, %v524
          %v551 = vmul.f32 %v512, %v524
          %v552 = vmul.f32 %v513, %v524
          %v553 = vmul.f32 %v514, %v524
          %v554 = vmul.f32 %v515, %v524
          %v555 = vmul.f32 %v516, %v524
          %v556 = vmul.f32 %v517, %v524
          %v557 = vmul.f32 %v518, %v524
          %v558 = vpack.c.bf16 %v527, %v526
          %v559 = vpack.c.bf16 %v529, %v528
          %v560 = vpack.c.bf16 %v531, %v530
          %v561 = vpack.c.bf16 %v533, %v532
          %v562 = vpack.c.bf16 %v535, %v534
          %v563 = vpack.c.bf16 %v537, %v536
          %v564 = vpack.c.bf16 %v539, %v538
          %v565 = vpack.c.bf16 %v541, %v540
          %v566 = vpack.c.bf16 %v543, %v542
          %v567 = vpack.c.bf16 %v545, %v544
          %v568 = vpack.c.bf16 %v547, %v546
          %v569 = vpack.c.bf16 %v549, %v548
          %v570 = vpack.c.bf16 %v551, %v550
          %v571 = vpack.c.bf16 %v553, %v552
          %v572 = vpack.c.bf16 %v555, %v554
          %v573 = vpack.c.bf16 %v557, %v556
          %574 = vst [vmem:[#allocation2] sm:$0xff] %v558
          %575 = vst [vmem:[#allocation2 + $0x8] sm:$0xff] %v559
          %576 = vst [vmem:[#allocation2 + $0x10] sm:$0xff] %v560
          %577 = vst [vmem:[#allocation2 + $0x18] sm:$0xff] %v561
          %578 = vst [vmem:[#allocation2 + $0x20] sm:$0xff] %v562
          %579 = vst [vmem:[#allocation2 + $0x28] sm:$0xff] %v563
          %580 = vst [vmem:[#allocation2 + $0x30] sm:$0xff] %v564
          %581 = vst [vmem:[#allocation2 + $0x38] sm:$0xff] %v565
          %582 = vst [vmem:[#allocation2 + $0x40] sm:$0xff] %v566
          %583 = vst [vmem:[#allocation2 + $0x48] sm:$0xff] %v567
          %584 = vst [vmem:[#allocation2 + $0x50] sm:$0xff] %v568
          %585 = vst [vmem:[#allocation2 + $0x58] sm:$0xff] %v569
          %586 = vst [vmem:[#allocation2 + $0x60] sm:$0xff] %v570
          %587 = vst [vmem:[#allocation2 + $0x68] sm:$0xff] %v571
          %588 = vst [vmem:[#allocation2 + $0x70] sm:$0xff] %v572
          %589 = vst [vmem:[#allocation2 + $0x78] sm:$0xff] %v573
        $region48: #{qwen_decoder_layer.5} parent=31 // pred_fallthru
          _
        // Predicated region
        $region49: #{qwen_decoder_layer.5} parent=31 // pred_check
          %p590 = pneg %p257
        $region50: #{qwen_decoder_layer.5} parent=31 // pred_check_branch
          %592 = sbr.rel (%p590) target = $region52
        $region51: #{qwen_decoder_layer.5} parent=31 // pred_region
          %593 = vst [vmem:[#allocation3] sm:$0xff] 0.0
          %594 = vst [vmem:[#allocation3 + $0x8] sm:$0xff] 0.0
          %595 = vst [vmem:[#allocation3 + $0x10] sm:$0xff] 0.0
          %596 = vst [vmem:[#allocation3 + $0x18] sm:$0xff] 0.0
          %597 = vst [vmem:[#allocation3 + $0x20] sm:$0xff] 0.0
          %598 = vst [vmem:[#allocation3 + $0x28] sm:$0xff] 0.0
          %599 = vst [vmem:[#allocation3 + $0x30] sm:$0xff] 0.0
          %600 = vst [vmem:[#allocation3 + $0x38] sm:$0xff] 0.0
          %601 = vst [vmem:[#allocation3 + $0x40] sm:$0xff] 0.0
          %602 = vst [vmem:[#allocation3 + $0x48] sm:$0xff] 0.0
          %603 = vst [vmem:[#allocation3 + $0x50] sm:$0xff] 0.0
          %604 = vst [vmem:[#allocation3 + $0x58] sm:$0xff] 0.0
          %605 = vst [vmem:[#allocation3 + $0x60] sm:$0xff] 0.0
          %606 = vst [vmem:[#allocation3 + $0x68] sm:$0xff] 0.0
          %607 = vst [vmem:[#allocation3 + $0x70] sm:$0xff] 0.0
          %608 = vst [vmem:[#allocation3 + $0x78] sm:$0xff] 0.0
          %609 = vst [vmem:[#allocation3 + $0x80] sm:$0xff] 0.0
          %610 = vst [vmem:[#allocation3 + $0x88] sm:$0xff] 0.0
          %611 = vst [vmem:[#allocation3 + $0x90] sm:$0xff] 0.0
          %612 = vst [vmem:[#allocation3 + $0x98] sm:$0xff] 0.0
          %613 = vst [vmem:[#allocation3 + $0xa0] sm:$0xff] 0.0
          %614 = vst [vmem:[#allocation3 + $0xa8] sm:$0xff] 0.0
          %615 = vst [vmem:[#allocation3 + $0xb0] sm:$0xff] 0.0
          %616 = vst [vmem:[#allocation3 + $0xb8] sm:$0xff] 0.0
          %617 = vst [vmem:[#allocation3 + $0xc0] sm:$0xff] 0.0
          %618 = vst [vmem:[#allocation3 + $0xc8] sm:$0xff] 0.0
          %619 = vst [vmem:[#allocation3 + $0xd0] sm:$0xff] 0.0
          %620 = vst [vmem:[#allocation3 + $0xd8] sm:$0xff] 0.0
          %621 = vst [vmem:[#allocation3 + $0xe0] sm:$0xff] 0.0
          %622 = vst [vmem:[#allocation3 + $0xe8] sm:$0xff] 0.0
          %623 = vst [vmem:[#allocation3 + $0xf0] sm:$0xff] 0.0
          %624 = vst [vmem:[#allocation3 + $0xf8] sm:$0xff] 0.0
          %625 = vst [vmem:[#allocation3 + $0x100] sm:$0xff] 0.0
          %626 = vst [vmem:[#allocation3 + $0x108] sm:$0xff] 0.0
          %627 = vst [vmem:[#allocation3 + $0x110] sm:$0xff] 0.0
          %628 = vst [vmem:[#allocation3 + $0x118] sm:$0xff] 0.0
          %629 = vst [vmem:[#allocation3 + $0x120] sm:$0xff] 0.0
          %630 = vst [vmem:[#allocation3 + $0x128] sm:$0xff] 0.0
          %631 = vst [vmem:[#allocation3 + $0x130] sm:$0xff] 0.0
          %632 = vst [vmem:[#allocation3 + $0x138] sm:$0xff] 0.0
          %633 = vst [vmem:[#allocation3 + $0x140] sm:$0xff] 0.0
          %634 = vst [vmem:[#allocation3 + $0x148] sm:$0xff] 0.0
          %635 = vst [vmem:[#allocation3 + $0x150] sm:$0xff] 0.0
          %636 = vst [vmem:[#allocation3 + $0x158] sm:$0xff] 0.0
          %637 = vst [vmem:[#allocation3 + $0x160] sm:$0xff] 0.0
          %638 = vst [vmem:[#allocation3 + $0x168] sm:$0xff] 0.0
          %639 = vst [vmem:[#allocation3 + $0x170] sm:$0xff] 0.0
          %640 = vst [vmem:[#allocation3 + $0x178] sm:$0xff] 0.0
          %641 = vst [vmem:[#allocation3 + $0x180] sm:$0xff] 0.0
          %642 = vst [vmem:[#allocation3 + $0x188] sm:$0xff] 0.0
          %643 = vst [vmem:[#allocation3 + $0x190] sm:$0xff] 0.0
          %644 = vst [vmem:[#allocation3 + $0x198] sm:$0xff] 0.0
          %645 = vst [vmem:[#allocation3 + $0x1a0] sm:$0xff] 0.0
          %646 = vst [vmem:[#allocation3 + $0x1a8] sm:$0xff] 0.0
          %647 = vst [vmem:[#allocation3 + $0x1b0] sm:$0xff] 0.0
          %648 = vst [vmem:[#allocation3 + $0x1b8] sm:$0xff] 0.0
          %649 = vst [vmem:[#allocation3 + $0x1c0] sm:$0xff] 0.0
          %650 = vst [vmem:[#allocation3 + $0x1c8] sm:$0xff] 0.0
          %651 = vst [vmem:[#allocation3 + $0x1d0] sm:$0xff] 0.0
          %652 = vst [vmem:[#allocation3 + $0x1d8] sm:$0xff] 0.0
          %653 = vst [vmem:[#allocation3 + $0x1e0] sm:$0xff] 0.0
          %654 = vst [vmem:[#allocation3 + $0x1e8] sm:$0xff] 0.0
          %655 = vst [vmem:[#allocation3 + $0x1f0] sm:$0xff] 0.0
          %656 = vst [vmem:[#allocation3 + $0x1f8] sm:$0xff] 0.0
        $region52: #{qwen_decoder_layer.5} parent=31 // pred_fallthru
          _
        %v657 = vld [vmem:[#allocation3] sm:$0xff]
        %v658 = vld [vmem:[#allocation3 + $0x8] sm:$0xff]
        %v659 = vld [vmem:[#allocation3 + $0x10] sm:$0xff]
        %v660 = vld [vmem:[#allocation3 + $0x18] sm:$0xff]
        %v661 = vld [vmem:[#allocation3 + $0x20] sm:$0xff]
        %v662 = vld [vmem:[#allocation3 + $0x28] sm:$0xff]
        %v663 = vld [vmem:[#allocation3 + $0x30] sm:$0xff]
        %v664 = vld [vmem:[#allocation3 + $0x38] sm:$0xff]
        %v665 = vld [vmem:[#allocation3 + $0x40] sm:$0xff]
        %v666 = vld [vmem:[#allocation3 + $0x48] sm:$0xff]
        %v667 = vld [vmem:[#allocation3 + $0x50] sm:$0xff]
        %v668 = vld [vmem:[#allocation3 + $0x58] sm:$0xff]
        %v669 = vld [vmem:[#allocation3 + $0x60] sm:$0xff]
        %v670 = vld [vmem:[#allocation3 + $0x68] sm:$0xff]
        %v671 = vld [vmem:[#allocation3 + $0x70] sm:$0xff]
        %v672 = vld [vmem:[#allocation3 + $0x78] sm:$0xff]
        %v673 = vld [vmem:[#allocation3 + $0x80] sm:$0xff]
        %v674 = vld [vmem:[#allocation3 + $0x88] sm:$0xff]
        %v675 = vld [vmem:[#allocation3 + $0x90] sm:$0xff]
        %v676 = vld [vmem:[#allocation3 + $0x98] sm:$0xff]
        %v677 = vld [vmem:[#allocation3 + $0xa0] sm:$0xff]
        %v678 = vld [vmem:[#allocation3 + $0xa8] sm:$0xff]
        %v679 = vld [vmem:[#allocation3 + $0xb0] sm:$0xff]
        %v680 = vld [vmem:[#allocation3 + $0xb8] sm:$0xff]
        %v681 = vld [vmem:[#allocation3 + $0xc0] sm:$0xff]
        %v682 = vld [vmem:[#allocation3 + $0xc8] sm:$0xff]
        %v683 = vld [vmem:[#allocation3 + $0xd0] sm:$0xff]
        %v684 = vld [vmem:[#allocation3 + $0xd8] sm:$0xff]
        %v685 = vld [vmem:[#allocation3 + $0xe0] sm:$0xff]
        %v686 = vld [vmem:[#allocation3 + $0xe8] sm:$0xff]
        %v687 = vld [vmem:[#allocation3 + $0xf0] sm:$0xff]
        %v688 = vld [vmem:[#allocation3 + $0xf8] sm:$0xff]
        %v689 = vld [vmem:[#allocation3 + $0x100] sm:$0xff]
        %v690 = vld [vmem:[#allocation3 + $0x108] sm:$0xff]
        %v691 = vld [vmem:[#allocation3 + $0x110] sm:$0xff]
        %v692 = vld [vmem:[#allocation3 + $0x118] sm:$0xff]
        %v693 = vld [vmem:[#allocation3 + $0x120] sm:$0xff]
        %v694 = vld [vmem:[#allocation3 + $0x128] sm:$0xff]
        %v695 = vld [vmem:[#allocation3 + $0x130] sm:$0xff]
        %v696 = vld [vmem:[#allocation3 + $0x138] sm:$0xff]
        %v697 = vld [vmem:[#allocation3 + $0x140] sm:$0xff]
        %v698 = vld [vmem:[#allocation3 + $0x148] sm:$0xff]
        %v699 = vld [vmem:[#allocation3 + $0x150] sm:$0xff]
        %v700 = vld [vmem:[#allocation3 + $0x158] sm:$0xff]
        %v701 = vld [vmem:[#allocation3 + $0x160] sm:$0xff]
        %v702 = vld [vmem:[#allocation3 + $0x168] sm:$0xff]
        %v703 = vld [vmem:[#allocation3 + $0x170] sm:$0xff]
        %v704 = vld [vmem:[#allocation3 + $0x178] sm:$0xff]
        %v705 = vld [vmem:[#allocation3 + $0x180] sm:$0xff]
        %v706 = vld [vmem:[#allocation3 + $0x188] sm:$0xff]
        %v707 = vld [vmem:[#allocation3 + $0x190] sm:$0xff]
        %v708 = vld [vmem:[#allocation3 + $0x198] sm:$0xff]
        %v709 = vld [vmem:[#allocation3 + $0x1a0] sm:$0xff]
        %v710 = vld [vmem:[#allocation3 + $0x1a8] sm:$0xff]
        %v711 = vld [vmem:[#allocation3 + $0x1b0] sm:$0xff]
        %v712 = vld [vmem:[#allocation3 + $0x1b8] sm:$0xff]
        %v713 = vld [vmem:[#allocation3 + $0x1c0] sm:$0xff]
        %v714 = vld [vmem:[#allocation3 + $0x1c8] sm:$0xff]
        %v715 = vld [vmem:[#allocation3 + $0x1d0] sm:$0xff]
        %v716 = vld [vmem:[#allocation3 + $0x1d8] sm:$0xff]
        %v717 = vld [vmem:[#allocation3 + $0x1e0] sm:$0xff]
        %v718 = vld [vmem:[#allocation3 + $0x1e8] sm:$0xff]
        %v719 = vld [vmem:[#allocation3 + $0x1f0] sm:$0xff]
        %v720 = vld [vmem:[#allocation3 + $0x1f8] sm:$0xff]
        %s721 = smul.u32 %s28, 16
        %s722 = smul.addr %s721, 8
        %s723 = scalar_lea.vmem [#allocation2], %s722
        %v724 = vld [vmem:[%s723] sm:$0xff]
        %v725 = vld [vmem:[%s723 + $0x8] sm:$0xff]
        %v726 = vld [vmem:[%s723 + $0x10] sm:$0xff]
        %v727 = vld [vmem:[%s723 + $0x18] sm:$0xff]
        %v728 = vld [vmem:[%s723 + $0x20] sm:$0xff]
        %v729 = vld [vmem:[%s723 + $0x28] sm:$0xff]
        %v730 = vld [vmem:[%s723 + $0x30] sm:$0xff]
        %v731 = vld [vmem:[%s723 + $0x38] sm:$0xff]
        %v732 = vld [vmem:[%s723 + $0x40] sm:$0xff]
        %v733 = vld [vmem:[%s723 + $0x48] sm:$0xff]
        %v734 = vld [vmem:[%s723 + $0x50] sm:$0xff]
        %v735 = vld [vmem:[%s723 + $0x58] sm:$0xff]
        %v736 = vld [vmem:[%s723 + $0x60] sm:$0xff]
        %v737 = vld [vmem:[%s723 + $0x68] sm:$0xff]
        %v738 = vld [vmem:[%s723 + $0x70] sm:$0xff]
        %v739 = vld [vmem:[%s723 + $0x78] sm:$0xff]
        %v740 = vld [vmem:[#allocation9] sm:$0xff]
        %v741 = vld [vmem:[#allocation9 + $0x8] sm:$0xff]
        %v742 = vld [vmem:[#allocation9 + $0x10] sm:$0xff]
        %v743 = vld [vmem:[#allocation9 + $0x18] sm:$0xff]
        %v744 = vld [vmem:[#allocation9 + $0x20] sm:$0xff]
        %v745 = vld [vmem:[#allocation9 + $0x28] sm:$0xff]
        %v746 = vld [vmem:[#allocation9 + $0x30] sm:$0xff]
        %v747 = vld [vmem:[#allocation9 + $0x38] sm:$0xff]
        %v748 = vld [vmem:[#allocation9 + $0x40] sm:$0xff]
        %v749 = vld [vmem:[#allocation9 + $0x48] sm:$0xff]
        %v750 = vld [vmem:[#allocation9 + $0x50] sm:$0xff]
        %v751 = vld [vmem:[#allocation9 + $0x58] sm:$0xff]
        %v752 = vld [vmem:[#allocation9 + $0x60] sm:$0xff]
        %v753 = vld [vmem:[#allocation9 + $0x68] sm:$0xff]
        %v754 = vld [vmem:[#allocation9 + $0x70] sm:$0xff]
        %v755 = vld [vmem:[#allocation9 + $0x78] sm:$0xff]
        %v772 = vunpack.c.l.b16 %v740
        %v773 = vunpack.c.h.b16 %v740
        %v774 = vunpack.c.l.b16 %v741
        %v775 = vunpack.c.h.b16 %v741
        %v776 = vunpack.c.l.b16 %v742
        %v777 = vunpack.c.h.b16 %v742
        %v778 = vunpack.c.l.b16 %v743
        %v779 = vunpack.c.h.b16 %v743
        %v780 = vunpack.c.l.b16 %v744
        %v781 = vunpack.c.h.b16 %v744
        %v782 = vunpack.c.l.b16 %v745
        %v783 = vunpack.c.h.b16 %v745
        %v784 = vunpack.c.l.b16 %v746
        %v785 = vunpack.c.h.b16 %v746
        %v786 = vunpack.c.l.b16 %v747
        %v787 = vunpack.c.h.b16 %v747
        %v788 = vunpack.c.l.b16 %v748
        %v789 = vunpack.c.h.b16 %v748
        %v790 = vunpack.c.l.b16 %v749
        %v791 = vunpack.c.h.b16 %v749
        %v792 = vunpack.c.l.b16 %v750
        %v793 = vunpack.c.h.b16 %v750
        %v794 = vunpack.c.l.b16 %v751
        %v795 = vunpack.c.h.b16 %v751
        %v796 = vunpack.c.l.b16 %v752
        %v797 = vunpack.c.h.b16 %v752
        %v798 = vunpack.c.l.b16 %v753
        %v799 = vunpack.c.h.b16 %v753
        %v800 = vunpack.c.l.b16 %v754
        %v801 = vunpack.c.h.b16 %v754
        %v802 = vunpack.c.l.b16 %v755
        %v803 = vunpack.c.h.b16 %v755
        %v804 = vpack.c.b16 %v774, %v772
        %v805 = vpack.c.b16 %v775, %v773
        %v806 = vpack.c.b16 %v778, %v776
        %v807 = vpack.c.b16 %v779, %v777
        %v808 = vpack.c.b16 %v782, %v780
        %v809 = vpack.c.b16 %v783, %v781
        %v810 = vpack.c.b16 %v786, %v784
        %v811 = vpack.c.b16 %v787, %v785
        %v812 = vpack.c.b16 %v790, %v788
        %v813 = vpack.c.b16 %v791, %v789
        %v814 = vpack.c.b16 %v794, %v792
        %v815 = vpack.c.b16 %v795, %v793
        %v816 = vpack.c.b16 %v798, %v796
        %v817 = vpack.c.b16 %v799, %v797
        %v818 = vpack.c.b16 %v802, %v800
        %v819 = vpack.c.b16 %v803, %v801
        %836 = vmatprep.subr.bf16.mxu0 %v805
        %837 = vmatpush1.bf16.msra.mxu0 %v804
        %838 = vmatprep.subr.bf16.mxu0 %v807
        %839 = vmatpush1.bf16.msra.mxu0 %v806
        %840 = vmatprep.subr.bf16.mxu0 %v809
        %841 = vmatpush1.bf16.msra.mxu0 %v808
        %842 = vmatprep.subr.bf16.mxu0 %v811
        %843 = vmatpush1.bf16.msra.mxu0 %v810
        %844 = vmatprep.subr.bf16.mxu0 %v813
        %845 = vmatpush1.bf16.msra.mxu0 %v812
        %846 = vmatprep.subr.bf16.mxu0 %v815
        %847 = vmatpush1.bf16.msra.mxu0 %v814
        %848 = vmatprep.subr.bf16.mxu0 %v817
        %849 = vmatpush1.bf16.msra.mxu0 %v816
        %850 = vmatprep.subr.bf16.mxu0 %v819
        %851 = vmatpush1.bf16.msra.mxu0 %v818
        %852 = vmatprep.subr.bf16.mxu0 0
        %853 = vmatpush1.bf16.msra.mxu0 0
        %854 = vmatprep.subr.bf16.mxu0 0
        %855 = vmatpush1.bf16.msra.mxu0 0
        %856 = vmatprep.subr.bf16.mxu0 0
        %857 = vmatpush1.bf16.msra.mxu0 0
        %858 = vmatprep.subr.bf16.mxu0 0
        %859 = vmatpush1.bf16.msra.mxu0 0
        %860 = vmatprep.subr.bf16.mxu0 0
        %861 = vmatpush1.bf16.msra.mxu0 0
        %862 = vmatprep.subr.bf16.mxu0 0
        %863 = vmatpush1.bf16.msra.mxu0 0
        %864 = vmatprep.subr.bf16.mxu0 0
        %865 = vmatpush1.bf16.msra.mxu0 0
        %866 = vmatprep.subr.bf16.mxu0 0
        %867 = vmatpush1.bf16.msra.mxu0 0
        %868 = vmatprep.mubr.bf16.mxu0 0
        %869 = vmatmul.mubr.bf16.gmra.mrb[0].mxu0 %v724
        %v870 = vpop.f32.mrb[0].mxu0
        %v871 = vadd.f32 0.0, %v870
        %v872 = vpop.f32.mrb[0].mxu0
        %v873 = vadd.f32 0.0, %v872
        %v874 = vpop.f32.mrb[0].mxu0
        %v875 = vadd.f32 0.0, %v874
        %v876 = vpop.f32.mrb[0].mxu0
        %v877 = vadd.f32 0.0, %v876
        %878 = vmatprep.mubr.bf16.mxu0 0
        %879 = vmatmul.mubr.bf16.gmra.mrb[0].mxu0 %v725
        %v880 = vpop.f32.mrb[0].mxu0
        %v881 = vadd.f32 0.0, %v880
        %v882 = vpop.f32.mrb[0].mxu0
        %v883 = vadd.f32 0.0, %v882
        %v884 = vpop.f32.mrb[0].mxu0
        %v885 = vadd.f32 0.0, %v884
        %v886 = vpop.f32.mrb[0].mxu0
        %v887 = vadd.f32 0.0, %v886
        %888 = vmatprep.mubr.bf16.mxu0 0
        %889 = vmatmul.mubr.bf16.gmra.mrb[0].mxu0 %v726
        %v890 = vpop.f32.mrb[0].mxu0
        %v891 = vadd.f32 0.0, %v890
        %v892 = vpop.f32.mrb[0].mxu0
        %v893 = vadd.f32 0.0, %v892
        %v894 = vpop.f32.mrb[0].mxu0
        %v895 = vadd.f32 0.0, %v894
        %v896 = vpop.f32.mrb[0].mxu0
        %v897 = vadd.f32 0.0, %v896
        %898 = vmatprep.mubr.bf16.mxu0 0
        %899 = vmatmul.mubr.bf16.gmra.mrb[0].mxu0 %v727
        %v900 = vpop.f32.mrb[0].mxu0
        %v901 = vadd.f32 0.0, %v900
        %v902 = vpop.f32.mrb[0].mxu0
        %v903 = vadd.f32 0.0, %v902
        %v904 = vpop.f32.mrb[0].mxu0
        %v905 = vadd.f32 0.0, %v904
        %v906 = vpop.f32.mrb[0].mxu0
        %v907 = vadd.f32 0.0, %v906
        %908 = vmatprep.mubr.bf16.mxu0 0
        %909 = vmatmul.mubr.bf16.gmra.mrb[0].mxu0 %v728
        %v910 = vpop.f32.mrb[0].mxu0
        %v911 = vadd.f32 0.0, %v910
        %v912 = vpop.f32.mrb[0].mxu0
        %v913 = vadd.f32 0.0, %v912
        %v914 = vpop.f32.mrb[0].mxu0
        %v915 = vadd.f32 0.0, %v914
        %v916 = vpop.f32.mrb[0].mxu0
        %v917 = vadd.f32 0.0, %v916
        %918 = vmatprep.mubr.bf16.mxu0 0
        %919 = vmatmul.mubr.bf16.gmra.mrb[0].mxu0 %v729
        %v920 = vpop.f32.mrb[0].mxu0
        %v921 = vadd.f32 0.0, %v920
        %v922 = vpop.f32.mrb[0].mxu0
        %v923 = vadd.f32 0.0, %v922
        %v924 = vpop.f32.mrb[0].mxu0
        %v925 = vadd.f32 0.0, %v924
        %v926 = vpop.f32.mrb[0].mxu0
        %v927 = vadd.f32 0.0, %v926
        %928 = vmatprep.mubr.bf16.mxu0 0
        %929 = vmatmul.mubr.bf16.gmra.mrb[0].mxu0 %v730
        %v930 = vpop.f32.mrb[0].mxu0
        %v931 = vadd.f32 0.0, %v930
        %v932 = vpop.f32.mrb[0].mxu0
        %v933 = vadd.f32 0.0, %v932
        %v934 = vpop.f32.mrb[0].mxu0
        %v935 = vadd.f32 0.0, %v934
        %v936 = vpop.f32.mrb[0].mxu0
        %v937 = vadd.f32 0.0, %v936
        %938 = vmatprep.mubr.bf16.mxu0 0
        %939 = vmatmul.mubr.bf16.gmra.mrb[0].mxu0 %v731
        %v940 = vpop.f32.mrb[0].mxu0
        %v941 = vadd.f32 0.0, %v940
        %v942 = vpop.f32.mrb[0].mxu0
        %v943 = vadd.f32 0.0, %v942
        %v944 = vpop.f32.mrb[0].mxu0
        %v945 = vadd.f32 0.0, %v944
        %v946 = vpop.f32.mrb[0].mxu0
        %v947 = vadd.f32 0.0, %v946
        %948 = vmatprep.mubr.bf16.mxu0 0
        %949 = vmatmul.mubr.bf16.gmra.mrb[0].mxu0 %v732
        %v950 = vpop.f32.mrb[0].mxu0
        %v951 = vadd.f32 0.0, %v950
        %v952 = vpop.f32.mrb[0].mxu0
        %v953 = vadd.f32 0.0, %v952
        %v954 = vpop.f32.mrb[0].mxu0
        %v955 = vadd.f32 0.0, %v954
        %v956 = vpop.f32.mrb[0].mxu0
        %v957 = vadd.f32 0.0, %v956
        %958 = vmatprep.mubr.bf16.mxu0 0
        %959 = vmatmul.mubr.bf16.gmra.mrb[0].mxu0 %v733
        %v960 = vpop.f32.mrb[0].mxu0
        %v961 = vadd.f32 0.0, %v960
        %v962 = vpop.f32.mrb[0].mxu0
        %v963 = vadd.f32 0.0, %v962
        %v964 = vpop.f32.mrb[0].mxu0
        %v965 = vadd.f32 0.0, %v964
        %v966 = vpop.f32.mrb[0].mxu0
        %v967 = vadd.f32 0.0, %v966
        %968 = vmatprep.mubr.bf16.mxu0 0
        %969 = vmatmul.mubr.bf16.gmra.mrb[0].mxu0 %v734
        %v970 = vpop.f32.mrb[0].mxu0
        %v971 = vadd.f32 0.0, %v970
        %v972 = vpop.f32.mrb[0].mxu0
        %v973 = vadd.f32 0.0, %v972
        %v974 = vpop.f32.mrb[0].mxu0
        %v975 = vadd.f32 0.0, %v974
        %v976 = vpop.f32.mrb[0].mxu0
        %v977 = vadd.f32 0.0, %v976
        %978 = vmatprep.mubr.bf16.mxu0 0
        %979 = vmatmul.mubr.bf16.gmra.mrb[0].mxu0 %v735
        %v980 = vpop.f32.mrb[0].mxu0
        %v981 = vadd.f32 0.0, %v980
        %v982 = vpop.f32.mrb[0].mxu0
        %v983 = vadd.f32 0.0, %v982
        %v984 = vpop.f32.mrb[0].mxu0
        %v985 = vadd.f32 0.0, %v984
        %v986 = vpop.f32.mrb[0].mxu0
        %v987 = vadd.f32 0.0, %v986
        %988 = vmatprep.mubr.bf16.mxu0 0
        %989 = vmatmul.mubr.bf16.gmra.mrb[0].mxu0 %v736
        %v990 = vpop.f32.mrb[0].mxu0
        %v991 = vadd.f32 0.0, %v990
        %v992 = vpop.f32.mrb[0].mxu0
        %v993 = vadd.f32 0.0, %v992
        %v994 = vpop.f32.mrb[0].mxu0
        %v995 = vadd.f32 0.0, %v994
        %v996 = vpop.f32.mrb[0].mxu0
        %v997 = vadd.f32 0.0, %v996
        %998 = vmatprep.mubr.bf16.mxu0 0
        %999 = vmatmul.mubr.bf16.gmra.mrb[0].mxu0 %v737
        %v1000 = vpop.f32.mrb[0].mxu0
        %v1001 = vadd.f32 0.0, %v1000
        %v1002 = vpop.f32.mrb[0].mxu0
        %v1003 = vadd.f32 0.0, %v1002
        %v1004 = vpop.f32.mrb[0].mxu0
        %v1005 = vadd.f32 0.0, %v1004
        %v1006 = vpop.f32.mrb[0].mxu0
        %v1007 = vadd.f32 0.0, %v1006
        %1008 = vmatprep.mubr.bf16.mxu0 0
        %1009 = vmatmul.mubr.bf16.gmra.mrb[0].mxu0 %v738
        %v1010 = vpop.f32.mrb[0].mxu0
        %v1011 = vadd.f32 0.0, %v1010
        %v1012 = vpop.f32.mrb[0].mxu0
        %v1013 = vadd.f32 0.0, %v1012
        %v1014 = vpop.f32.mrb[0].mxu0
        %v1015 = vadd.f32 0.0, %v1014
        %v1016 = vpop.f32.mrb[0].mxu0
        %v1017 = vadd.f32 0.0, %v1016
        %1018 = vmatprep.mubr.bf16.mxu0 0
        %1019 = vmatmul.mubr.bf16.gmra.mrb[0].mxu0 %v739
        %v1020 = vpop.f32.mrb[0].mxu0
        %v1021 = vadd.f32 0.0, %v1020
        %v1022 = vpop.f32.mrb[0].mxu0
        %v1023 = vadd.f32 0.0, %v1022
        %v1024 = vpop.f32.mrb[0].mxu0
        %v1025 = vadd.f32 0.0, %v1024
        %v1026 = vpop.f32.mrb[0].mxu0
        %v1027 = vadd.f32 0.0, %v1026
        %1028 = vdwg.mxu0
        %v1029 = vadd.f32 %v657, %v871
        %v1030 = vadd.f32 %v658, %v873
        %v1031 = vadd.f32 %v659, %v875
        %v1032 = vadd.f32 %v660, %v877
        %v1033 = vadd.f32 %v661, %v881
        %v1034 = vadd.f32 %v662, %v883
        %v1035 = vadd.f32 %v663, %v885
        %v1036 = vadd.f32 %v664, %v887
        %v1037 = vadd.f32 %v665, %v891
        %v1038 = vadd.f32 %v666, %v893
        %v1039 = vadd.f32 %v667, %v895
        %v1040 = vadd.f32 %v668, %v897
        %v1041 = vadd.f32 %v669, %v901
        %v1042 = vadd.f32 %v670, %v903
        %v1043 = vadd.f32 %v671, %v905
        %v1044 = vadd.f32 %v672, %v907
        %v1045 = vadd.f32 %v673, %v911
        %v1046 = vadd.f32 %v674, %v913
        %v1047 = vadd.f32 %v675, %v915
        %v1048 = vadd.f32 %v676, %v917
        %v1049 = vadd.f32 %v677, %v921
        %v1050 = vadd.f32 %v678, %v923
        %v1051 = vadd.f32 %v679, %v925
        %v1052 = vadd.f32 %v680, %v927
        %v1053 = vadd.f32 %v681, %v931
        %v1054 = vadd.f32 %v682, %v933
        %v1055 = vadd.f32 %v683, %v935
        %v1056 = vadd.f32 %v684, %v937
        %v1057 = vadd.f32 %v685, %v941
        %v1058 = vadd.f32 %v686, %v943
        %v1059 = vadd.f32 %v687, %v945
        %v1060 = vadd.f32 %v688, %v947
        %v1061 = vadd.f32 %v689, %v951
        %v1062 = vadd.f32 %v690, %v953
        %v1063 = vadd.f32 %v691, %v955
        %v1064 = vadd.f32 %v692, %v957
        %v1065 = vadd.f32 %v693, %v961
        %v1066 = vadd.f32 %v694, %v963
        %v1067 = vadd.f32 %v695, %v965
        %v1068 = vadd.f32 %v696, %v967
        %v1069 = vadd.f32 %v697, %v971
        %v1070 = vadd.f32 %v698, %v973
        %v1071 = vadd.f32 %v699, %v975
        %v1072 = vadd.f32 %v700, %v977
        %v1073 = vadd.f32 %v701, %v981
        %v1074 = vadd.f32 %v702, %v983
        %v1075 = vadd.f32 %v703, %v985
        %v1076 = vadd.f32 %v704, %v987
        %v1077 = vadd.f32 %v705, %v991
        %v1078 = vadd.f32 %v706, %v993
        %v1079 = vadd.f32 %v707, %v995
        %v1080 = vadd.f32 %v708, %v997
        %v1081 = vadd.f32 %v709, %v1001
        %v1082 = vadd.f32 %v710, %v1003
        %v1083 = vadd.f32 %v711, %v1005
        %v1084 = vadd.f32 %v712, %v1007
        %v1085 = vadd.f32 %v713, %v1011
        %v1086 = vadd.f32 %v714, %v1013
        %v1087 = vadd.f32 %v715, %v1015
        %v1088 = vadd.f32 %v716, %v1017
        %v1089 = vadd.f32 %v717, %v1021
        %v1090 = vadd.f32 %v718, %v1023
        %v1091 = vadd.f32 %v719, %v1025
        %v1092 = vadd.f32 %v720, %v1027
        %1093 = vst [vmem:[#allocation3] sm:$0xff] %v1029
        %1094 = vst [vmem:[#allocation3 + $0x8] sm:$0xff] %v1030
        %1095 = vst [vmem:[#allocation3 + $0x10] sm:$0xff] %v1031
        %1096 = vst [vmem:[#allocation3 + $0x18] sm:$0xff] %v1032
        %1097 = vst [vmem:[#allocation3 + $0x20] sm:$0xff] %v1033
        %1098 = vst [vmem:[#allocation3 + $0x28] sm:$0xff] %v1034
        %1099 = vst [vmem:[#allocation3 + $0x30] sm:$0xff] %v1035
        %1100 = vst [vmem:[#allocation3 + $0x38] sm:$0xff] %v1036
        %1101 = vst [vmem:[#allocation3 + $0x40] sm:$0xff] %v1037
        %1102 = vst [vmem:[#allocation3 + $0x48] sm:$0xff] %v1038
        %1103 = vst [vmem:[#allocation3 + $0x50] sm:$0xff] %v1039
        %1104 = vst [vmem:[#allocation3 + $0x58] sm:$0xff] %v1040
        %1105 = vst [vmem:[#allocation3 + $0x60] sm:$0xff] %v1041
        %1106 = vst [vmem:[#allocation3 + $0x68] sm:$0xff] %v1042
        %1107 = vst [vmem:[#allocation3 + $0x70] sm:$0xff] %v1043
        %1108 = vst [vmem:[#allocation3 + $0x78] sm:$0xff] %v1044
        %1109 = vst [vmem:[#allocation3 + $0x80] sm:$0xff] %v1045
        %1110 = vst [vmem:[#allocation3 + $0x88] sm:$0xff] %v1046
        %1111 = vst [vmem:[#allocation3 + $0x90] sm:$0xff] %v1047
        %1112 = vst [vmem:[#allocation3 + $0x98] sm:$0xff] %v1048
        %1113 = vst [vmem:[#allocation3 + $0xa0] sm:$0xff] %v1049
        %1114 = vst [vmem:[#allocation3 + $0xa8] sm:$0xff] %v1050
        %1115 = vst [vmem:[#allocation3 + $0xb0] sm:$0xff] %v1051
        %1116 = vst [vmem:[#allocation3 + $0xb8] sm:$0xff] %v1052
        %1117 = vst [vmem:[#allocation3 + $0xc0] sm:$0xff] %v1053
        %1118 = vst [vmem:[#allocation3 + $0xc8] sm:$0xff] %v1054
        %1119 = vst [vmem:[#allocation3 + $0xd0] sm:$0xff] %v1055
        %1120 = vst [vmem:[#allocation3 + $0xd8] sm:$0xff] %v1056
        %1121 = vst [vmem:[#allocation3 + $0xe0] sm:$0xff] %v1057
        %1122 = vst [vmem:[#allocation3 + $0xe8] sm:$0xff] %v1058
        %1123 = vst [vmem:[#allocation3 + $0xf0] sm:$0xff] %v1059
        %1124 = vst [vmem:[#allocation3 + $0xf8] sm:$0xff] %v1060
        %1125 = vst [vmem:[#allocation3 + $0x100] sm:$0xff] %v1061
        %1126 = vst [vmem:[#allocation3 + $0x108] sm:$0xff] %v1062
        %1127 = vst [vmem:[#allocation3 + $0x110] sm:$0xff] %v1063
        %1128 = vst [vmem:[#allocation3 + $0x118] sm:$0xff] %v1064
        %1129 = vst [vmem:[#allocation3 + $0x120] sm:$0xff] %v1065
        %1130 = vst [vmem:[#allocation3 + $0x128] sm:$0xff] %v1066
        %1131 = vst [vmem:[#allocation3 + $0x130] sm:$0xff] %v1067
        %1132 = vst [vmem:[#allocation3 + $0x138] sm:$0xff] %v1068
        %1133 = vst [vmem:[#allocation3 + $0x140] sm:$0xff] %v1069
        %1134 = vst [vmem:[#allocation3 + $0x148] sm:$0xff] %v1070
        %1135 = vst [vmem:[#allocation3 + $0x150] sm:$0xff] %v1071
        %1136 = vst [vmem:[#allocation3 + $0x158] sm:$0xff] %v1072
        %1137 = vst [vmem:[#allocation3 + $0x160] sm:$0xff] %v1073
        %1138 = vst [vmem:[#allocation3 + $0x168] sm:$0xff] %v1074
        %1139 = vst [vmem:[#allocation3 + $0x170] sm:$0xff] %v1075
        %1140 = vst [vmem:[#allocation3 + $0x178] sm:$0xff] %v1076
        %1141 = vst [vmem:[#allocation3 + $0x180] sm:$0xff] %v1077
        %1142 = vst [vmem:[#allocation3 + $0x188] sm:$0xff] %v1078
        %1143 = vst [vmem:[#allocation3 + $0x190] sm:$0xff] %v1079
        %1144 = vst [vmem:[#allocation3 + $0x198] sm:$0xff] %v1080
        %1145 = vst [vmem:[#allocation3 + $0x1a0] sm:$0xff] %v1081
        %1146 = vst [vmem:[#allocation3 + $0x1a8] sm:$0xff] %v1082
        %1147 = vst [vmem:[#allocation3 + $0x1b0] sm:$0xff] %v1083
        %1148 = vst [vmem:[#allocation3 + $0x1b8] sm:$0xff] %v1084
        %1149 = vst [vmem:[#allocation3 + $0x1c0] sm:$0xff] %v1085
        %1150 = vst [vmem:[#allocation3 + $0x1c8] sm:$0xff] %v1086
        %1151 = vst [vmem:[#allocation3 + $0x1d0] sm:$0xff] %v1087
        %1152 = vst [vmem:[#allocation3 + $0x1d8] sm:$0xff] %v1088
        %1153 = vst [vmem:[#allocation3 + $0x1e0] sm:$0xff] %v1089
        %1154 = vst [vmem:[#allocation3 + $0x1e8] sm:$0xff] %v1090
        %1155 = vst [vmem:[#allocation3 + $0x1f0] sm:$0xff] %v1091
        %1156 = vst [vmem:[#allocation3 + $0x1f8] sm:$0xff] %v1092
        // Predicated region
        $region53: #{qwen_decoder_layer.5} parent=31 // pred_check
          %p1157 = pneg %p257
        $region54: #{qwen_decoder_layer.5} parent=31 // pred_check_branch
          %1159 = sbr.rel (%p1157) target = $region56
        $region55: #{qwen_decoder_layer.5} parent=31 // pred_region
          %v1160 = vld [vmem:[#allocation3] sm:$0xff]
          %v1161 = vld [vmem:[#allocation3 + $0x8] sm:$0xff]
          %v1162 = vld [vmem:[#allocation3 + $0x10] sm:$0xff]
          %v1163 = vld [vmem:[#allocation3 + $0x18] sm:$0xff]
          %v1164 = vld [vmem:[#allocation3 + $0x20] sm:$0xff]
          %v1165 = vld [vmem:[#allocation3 + $0x28] sm:$0xff]
          %v1166 = vld [vmem:[#allocation3 + $0x30] sm:$0xff]
          %v1167 = vld [vmem:[#allocation3 + $0x38] sm:$0xff]
          %v1168 = vld [vmem:[#allocation3 + $0x40] sm:$0xff]
          %v1169 = vld [vmem:[#allocation3 + $0x48] sm:$0xff]
          %v1170 = vld [vmem:[#allocation3 + $0x50] sm:$0xff]
          %v1171 = vld [vmem:[#allocation3 + $0x58] sm:$0xff]
          %v1172 = vld [vmem:[#allocation3 + $0x60] sm:$0xff]
          %v1173 = vld [vmem:[#allocation3 + $0x68] sm:$0xff]
          %v1174 = vld [vmem:[#allocation3 + $0x70] sm:$0xff]
          %v1175 = vld [vmem:[#allocation3 + $0x78] sm:$0xff]
          %v1176 = vld [vmem:[#allocation3 + $0x80] sm:$0xff]
          %v1177 = vld [vmem:[#allocation3 + $0x88] sm:$0xff]
          %v1178 = vld [vmem:[#allocation3 + $0x90] sm:$0xff]
          %v1179 = vld [vmem:[#allocation3 + $0x98] sm:$0xff]
          %v1180 = vld [vmem:[#allocation3 + $0xa0] sm:$0xff]
          %v1181 = vld [vmem:[#allocation3 + $0xa8] sm:$0xff]
          %v1182 = vld [vmem:[#allocation3 + $0xb0] sm:$0xff]
          %v1183 = vld [vmem:[#allocation3 + $0xb8] sm:$0xff]
          %v1184 = vld [vmem:[#allocation3 + $0xc0] sm:$0xff]
          %v1185 = vld [vmem:[#allocation3 + $0xc8] sm:$0xff]
          %v1186 = vld [vmem:[#allocation3 + $0xd0] sm:$0xff]
          %v1187 = vld [vmem:[#allocation3 + $0xd8] sm:$0xff]
          %v1188 = vld [vmem:[#allocation3 + $0xe0] sm:$0xff]
          %v1189 = vld [vmem:[#allocation3 + $0xe8] sm:$0xff]
          %v1190 = vld [vmem:[#allocation3 + $0xf0] sm:$0xff]
          %v1191 = vld [vmem:[#allocation3 + $0xf8] sm:$0xff]
          %v1192 = vld [vmem:[#allocation3 + $0x100] sm:$0xff]
          %v1193 = vld [vmem:[#allocation3 + $0x108] sm:$0xff]
          %v1194 = vld [vmem:[#allocation3 + $0x110] sm:$0xff]
          %v1195 = vld [vmem:[#allocation3 + $0x118] sm:$0xff]
          %v1196 = vld [vmem:[#allocation3 + $0x120] sm:$0xff]
          %v1197 = vld [vmem:[#allocation3 + $0x128] sm:$0xff]
          %v1198 = vld [vmem:[#allocation3 + $0x130] sm:$0xff]
          %v1199 = vld [vmem:[#allocation3 + $0x138] sm:$0xff]
          %v1200 = vld [vmem:[#allocation3 + $0x140] sm:$0xff]
          %v1201 = vld [vmem:[#allocation3 + $0x148] sm:$0xff]
          %v1202 = vld [vmem:[#allocation3 + $0x150] sm:$0xff]
          %v1203 = vld [vmem:[#allocation3 + $0x158] sm:$0xff]
          %v1204 = vld [vmem:[#allocation3 + $0x160] sm:$0xff]
          %v1205 = vld [vmem:[#allocation3 + $0x168] sm:$0xff]
          %v1206 = vld [vmem:[#allocation3 + $0x170] sm:$0xff]
          %v1207 = vld [vmem:[#allocation3 + $0x178] sm:$0xff]
          %v1208 = vld [vmem:[#allocation3 + $0x180] sm:$0xff]
          %v1209 = vld [vmem:[#allocation3 + $0x188] sm:$0xff]
          %v1210 = vld [vmem:[#allocation3 + $0x190] sm:$0xff]
          %v1211 = vld [vmem:[#allocation3 + $0x198] sm:$0xff]
          %v1212 = vld [vmem:[#allocation3 + $0x1a0] sm:$0xff]
          %v1213 = vld [vmem:[#allocation3 + $0x1a8] sm:$0xff]
          %v1214 = vld [vmem:[#allocation3 + $0x1b0] sm:$0xff]
          %v1215 = vld [vmem:[#allocation3 + $0x1b8] sm:$0xff]
          %v1216 = vld [vmem:[#allocation3 + $0x1c0] sm:$0xff]
          %v1217 = vld [vmem:[#allocation3 + $0x1c8] sm:$0xff]
          %v1218 = vld [vmem:[#allocation3 + $0x1d0] sm:$0xff]
          %v1219 = vld [vmem:[#allocation3 + $0x1d8] sm:$0xff]
          %v1220 = vld [vmem:[#allocation3 + $0x1e0] sm:$0xff]
          %v1221 = vld [vmem:[#allocation3 + $0x1e8] sm:$0xff]
          %v1222 = vld [vmem:[#allocation3 + $0x1f0] sm:$0xff]
          %v1223 = vld [vmem:[#allocation3 + $0x1f8] sm:$0xff]
          %v1224 = vpack.c.bf16 %v1162, %v1160
          %v1225 = vpack.c.bf16 %v1163, %v1161
          %v1226 = vpack.c.bf16 %v1166, %v1164
          %v1227 = vpack.c.bf16 %v1167, %v1165
          %v1228 = vpack.c.bf16 %v1170, %v1168
          %v1229 = vpack.c.bf16 %v1171, %v1169
          %v1230 = vpack.c.bf16 %v1174, %v1172
          %v1231 = vpack.c.bf16 %v1175, %v1173
          %v1232 = vpack.c.bf16 %v1178, %v1176
          %v1233 = vpack.c.bf16 %v1179, %v1177
          %v1234 = vpack.c.bf16 %v1182, %v1180
          %v1235 = vpack.c.bf16 %v1183, %v1181
          %v1236 = vpack.c.bf16 %v1186, %v1184
          %v1237 = vpack.c.bf16 %v1187, %v1185
          %v1238 = vpack.c.bf16 %v1190, %v1188
          %v1239 = vpack.c.bf16 %v1191, %v1189
          %v1240 = vpack.c.bf16 %v1194, %v1192
          %v1241 = vpack.c.bf16 %v1195, %v1193
          %v1242 = vpack.c.bf16 %v1198, %v1196
          %v1243 = vpack.c.bf16 %v1199, %v1197
          %v1244 = vpack.c.bf16 %v1202, %v1200
          %v1245 = vpack.c.bf16 %v1203, %v1201
          %v1246 = vpack.c.bf16 %v1206, %v1204
          %v1247 = vpack.c.bf16 %v1207, %v1205
          %v1248 = vpack.c.bf16 %v1210, %v1208
          %v1249 = vpack.c.bf16 %v1211, %v1209
          %v1250 = vpack.c.bf16 %v1214, %v1212
          %v1251 = vpack.c.bf16 %v1215, %v1213
          %v1252 = vpack.c.bf16 %v1218, %v1216
          %v1253 = vpack.c.bf16 %v1219, %v1217
          %v1254 = vpack.c.bf16 %v1222, %v1220
          %v1255 = vpack.c.bf16 %v1223, %v1221
          %v1288 = vunpack.c.l.b16 %v1224
          %v1289 = vunpack.c.l.b16 %v1225
          %v1290 = vunpack.c.h.b16 %v1224
          %v1291 = vunpack.c.h.b16 %v1225
          %v1292 = vunpack.c.l.b16 %v1226
          %v1293 = vunpack.c.l.b16 %v1227
          %v1294 = vunpack.c.h.b16 %v1226
          %v1295 = vunpack.c.h.b16 %v1227
          %v1296 = vunpack.c.l.b16 %v1228
          %v1297 = vunpack.c.l.b16 %v1229
          %v1298 = vunpack.c.h.b16 %v1228
          %v1299 = vunpack.c.h.b16 %v1229
          %v1300 = vunpack.c.l.b16 %v1230
          %v1301 = vunpack.c.l.b16 %v1231
          %v1302 = vunpack.c.h.b16 %v1230
          %v1303 = vunpack.c.h.b16 %v1231
          %v1304 = vunpack.c.l.b16 %v1232
          %v1305 = vunpack.c.l.b16 %v1233
          %v1306 = vunpack.c.h.b16 %v1232
          %v1307 = vunpack.c.h.b16 %v1233
          %v1308 = vunpack.c.l.b16 %v1234
          %v1309 = vunpack.c.l.b16 %v1235
          %v1310 = vunpack.c.h.b16 %v1234
          %v1311 = vunpack.c.h.b16 %v1235
          %v1312 = vunpack.c.l.b16 %v1236
          %v1313 = vunpack.c.l.b16 %v1237
          %v1314 = vunpack.c.h.b16 %v1236
          %v1315 = vunpack.c.h.b16 %v1237
          %v1316 = vunpack.c.l.b16 %v1238
          %v1317 = vunpack.c.l.b16 %v1239
          %v1318 = vunpack.c.h.b16 %v1238
          %v1319 = vunpack.c.h.b16 %v1239
          %v1320 = vunpack.c.l.b16 %v1240
          %v1321 = vunpack.c.l.b16 %v1241
          %v1322 = vunpack.c.h.b16 %v1240
          %v1323 = vunpack.c.h.b16 %v1241
          %v1324 = vunpack.c.l.b16 %v1242
          %v1325 = vunpack.c.l.b16 %v1243
          %v1326 = vunpack.c.h.b16 %v1242
          %v1327 = vunpack.c.h.b16 %v1243
          %v1328 = vunpack.c.l.b16 %v1244
          %v1329 = vunpack.c.l.b16 %v1245
          %v1330 = vunpack.c.h.b16 %v1244
          %v1331 = vunpack.c.h.b16 %v1245
          %v1332 = vunpack.c.l.b16 %v1246
          %v1333 = vunpack.c.l.b16 %v1247
          %v1334 = vunpack.c.h.b16 %v1246
          %v1335 = vunpack.c.h.b16 %v1247
          %v1336 = vunpack.c.l.b16 %v1248
          %v1337 = vunpack.c.l.b16 %v1249
          %v1338 = vunpack.c.h.b16 %v1248
          %v1339 = vunpack.c.h.b16 %v1249
          %v1340 = vunpack.c.l.b16 %v1250
          %v1341 = vunpack.c.l.b16 %v1251
          %v1342 = vunpack.c.h.b16 %v1250
          %v1343 = vunpack.c.h.b16 %v1251
          %v1344 = vunpack.c.l.b16 %v1252
          %v1345 = vunpack.c.l.b16 %v1253
          %v1346 = vunpack.c.h.b16 %v1252
          %v1347 = vunpack.c.h.b16 %v1253
          %v1348 = vunpack.c.l.b16 %v1254
          %v1349 = vunpack.c.l.b16 %v1255
          %v1350 = vunpack.c.h.b16 %v1254
          %v1351 = vunpack.c.h.b16 %v1255
          %v1352 = vpack.c.b16 %v1289, %v1288
          %v1353 = vpack.c.b16 %v1291, %v1290
          %v1354 = vpack.c.b16 %v1293, %v1292
          %v1355 = vpack.c.b16 %v1295, %v1294
          %v1356 = vpack.c.b16 %v1297, %v1296
          %v1357 = vpack.c.b16 %v1299, %v1298
          %v1358 = vpack.c.b16 %v1301, %v1300
          %v1359 = vpack.c.b16 %v1303, %v1302
          %v1360 = vpack.c.b16 %v1305, %v1304
          %v1361 = vpack.c.b16 %v1307, %v1306
          %v1362 = vpack.c.b16 %v1309, %v1308
          %v1363 = vpack.c.b16 %v1311, %v1310
          %v1364 = vpack.c.b16 %v1313, %v1312
          %v1365 = vpack.c.b16 %v1315, %v1314
          %v1366 = vpack.c.b16 %v1317, %v1316
          %v1367 = vpack.c.b16 %v1319, %v1318
          %v1368 = vpack.c.b16 %v1321, %v1320
          %v1369 = vpack.c.b16 %v1323, %v1322
          %v1370 = vpack.c.b16 %v1325, %v1324
          %v1371 = vpack.c.b16 %v1327, %v1326
          %v1372 = vpack.c.b16 %v1329, %v1328
          %v1373 = vpack.c.b16 %v1331, %v1330
          %v1374 = vpack.c.b16 %v1333, %v1332
          %v1375 = vpack.c.b16 %v1335, %v1334
          %v1376 = vpack.c.b16 %v1337, %v1336
          %v1377 = vpack.c.b16 %v1339, %v1338
          %v1378 = vpack.c.b16 %v1341, %v1340
          %v1379 = vpack.c.b16 %v1343, %v1342
          %v1380 = vpack.c.b16 %v1345, %v1344
          %v1381 = vpack.c.b16 %v1347, %v1346
          %v1382 = vpack.c.b16 %v1349, %v1348
          %v1383 = vpack.c.b16 %v1351, %v1350
          %1416 = vst [vmem:[%s249] sm:$0xff] %v1352
          %1417 = vst [vmem:[%s249 + $0x8] sm:$0xff] %v1353
          %1418 = vst [vmem:[%s249 + $0x10] sm:$0xff] %v1354
          %1419 = vst [vmem:[%s249 + $0x18] sm:$0xff] %v1355
          %1420 = vst [vmem:[%s249 + $0x20] sm:$0xff] %v1356
          %1421 = vst [vmem:[%s249 + $0x28] sm:$0xff] %v1357
          %1422 = vst [vmem:[%s249 + $0x30] sm:$0xff] %v1358
          %1423 = vst [vmem:[%s249 + $0x38] sm:$0xff] %v1359
          %1424 = vst [vmem:[%s249 + $0x40] sm:$0xff] %v1360
          %1425 = vst [vmem:[%s249 + $0x48] sm:$0xff] %v1361
          %1426 = vst [vmem:[%s249 + $0x50] sm:$0xff] %v1362
          %1427 = vst [vmem:[%s249 + $0x58] sm:$0xff] %v1363
          %1428 = vst [vmem:[%s249 + $0x60] sm:$0xff] %v1364
          %1429 = vst [vmem:[%s249 + $0x68] sm:$0xff] %v1365
          %1430 = vst [vmem:[%s249 + $0x70] sm:$0xff] %v1366
          %1431 = vst [vmem:[%s249 + $0x78] sm:$0xff] %v1367
          %1432 = vst [vmem:[%s249 + $0x80] sm:$0xff] %v1368
          %1433 = vst [vmem:[%s249 + $0x88] sm:$0xff] %v1369
          %1434 = vst [vmem:[%s249 + $0x90] sm:$0xff] %v1370
          %1435 = vst [vmem:[%s249 + $0x98] sm:$0xff] %v1371
          %1436 = vst [vmem:[%s249 + $0xa0] sm:$0xff] %v1372
          %1437 = vst [vmem:[%s249 + $0xa8] sm:$0xff] %v1373
          %1438 = vst [vmem:[%s249 + $0xb0] sm:$0xff] %v1374
          %1439 = vst [vmem:[%s249 + $0xb8] sm:$0xff] %v1375
          %1440 = vst [vmem:[%s249 + $0xc0] sm:$0xff] %v1376
          %1441 = vst [vmem:[%s249 + $0xc8] sm:$0xff] %v1377
          %1442 = vst [vmem:[%s249 + $0xd0] sm:$0xff] %v1378
          %1443 = vst [vmem:[%s249 + $0xd8] sm:$0xff] %v1379
          %1444 = vst [vmem:[%s249 + $0xe0] sm:$0xff] %v1380
          %1445 = vst [vmem:[%s249 + $0xe8] sm:$0xff] %v1381
          %1446 = vst [vmem:[%s249 + $0xf0] sm:$0xff] %v1382
          %1447 = vst [vmem:[%s249 + $0xf8] sm:$0xff] %v1383
        $region56: #{qwen_decoder_layer.5} parent=31 // pred_fallthru
          _
        %s1448 = sand.u32 %s125, 1
        %s1449 = scalar_lea.sflag [#allocation6], %s1448
        %s1450 = sand.u32 %s125, 1
        %s1451 = smul.addr %s1450, 256
        %s1452 = scalar_lea.vmem [#allocation10], %s1451
        // Predicated region
        $region57: #{qwen_decoder_layer.5} parent=31 // pred_check
          %p1453 = pneg %p135
        $region58: #{qwen_decoder_layer.5} parent=31 // pred_check_branch
          %1455 = sbr.rel (%p1453) target = $region60
        $region59: #{qwen_decoder_layer.5} parent=31 // pred_region
          %s1456 = smul.u32 32, %s26
          %s1457 = smul.u32 2, %s27
          %s1459 = ssub.s32 4096, 4096
          %1460 = vsyncadd %s1449, %s1459
          %s1461 = smul.addr %s1456, 2
          %s1462 = sadd.s32 %s1457, %s1461
          %s1463 = smul.addr %s1462, 64
          %s1464 = scalar_lea.hbm %s3, %s1463
          %s1465 = sshll.u32 %s1452, 4
          %s1466 = int_to_ptr.vmem [resolvable:$true] %s1465
          %1471 = dma.vmem_to_hbm [thread:$0]  %s1466, 4096, %s1464, %s1449, 128, 128, 8
        $region60: #{qwen_decoder_layer.5} parent=31 // pred_fallthru
          _
      $region32: #{qwen_decoder_layer.5} parent=5 // pred_fallthru
        _
      %p1472 = scmp.le.s32.totalorder 2, %s16
      // Predicated region
      $region61: #{qwen_decoder_layer.5} parent=5 // pred_check
        %p1473 = pneg %p1472
      $region62: #{qwen_decoder_layer.5} parent=5 // pred_check_branch
        %1475 = sbr.rel (%p1473) target = $region64
      $region63: #{qwen_decoder_layer.5} parent=5 // pred_region
        %s1476 = ssub.s32 %s16, 2
        // Predicated region
        $region65: #{qwen_decoder_layer.5} parent=63 // pred_check
          %p1477 = pneg %p141
        $region66: #{qwen_decoder_layer.5} parent=63 // pred_check_branch
          %1479 = sbr.rel (%p1477) target = $region68
        $region67: #{qwen_decoder_layer.5} parent=63 // pred_region
          %s1480 = sand.u32 %s126, 1
          %s1481 = scalar_lea.sflag [#allocation6], %s1480
          %s1482 = sand.u32 %s126, 1
          %s1483 = smul.addr %s1482, 256
          %s1484 = scalar_lea.vmem [#allocation10], %s1483
          %1485 = dma.done %s1481, 4096
        $region68: #{qwen_decoder_layer.5} parent=63 // pred_fallthru
          _
      $region64: #{qwen_decoder_layer.5} parent=5 // pred_fallthru
        _
    $region6: #{qwen_decoder_layer.5} parent=1 // loop_footer
      %s20 = sadd.s32 1, %s16
    $region7: #{qwen_decoder_layer.5} parent=1 // loop_footer_branch
      %15 = sbr.rel target = $region3
    $region8: #{qwen_decoder_layer.5} parent=1 // loop_exit
      _
    %1486 = vsyncpa [#allocation5], 1
    %s1487 = scalar_lea.sflag [#allocation5], 1
    %1488 = vsyncpa %s1487, 1
    %1489 = vsyncpa [#allocation8], 1
    %1490 = vsyncpa [#allocation6], 1
    %s1491 = scalar_lea.sflag [#allocation6], 1
    %1492 = vsyncpa %s1491, 1

// kernel: qwen_decoder_layer.8
$region0: #{qwen_decoder_layer.8}
  #allocation0 [shape = 'u32[]', space=smem, size = 0x4, offset = 0x4, fixed_abs, tag = 'smem constant byte address 0x4 - core index']
  #allocation1 [shape = 'u32[144,128]{1,0:T(1,128)}', space=vmem, size = 0x12000, scoped, tag = 'internal scratch']
  #allocation2 [shape = 'bf16[1,256,128]{2,1,0:T(16,128)(2,1)}', space=vmem, size = 0x10000, scoped, tag = 'scratch operand']
  #allocation3 [shape = 'f32[256,256]{1,0:T(8,128)}', space=vmem, size = 0x40000, scoped, tag = 'scratch operand']
  %s0 = inlined_call_operand.hbm [shape: f32[512,128], index: 0, kind: input, shape index: {}]
  %s1 = inlined_call_operand.hbm [shape: f32[1,128], index: 1, kind: input, shape index: {}]
  %s2 = inlined_call_operand.hbm [shape: bf16[128,512], index: 2, kind: input, shape index: {}]
  %s3 = inlined_call_operand.hbm [shape: bf16[512,512], index: 3, kind: output, shape index: {}]
  %s4 = sld [smem:[#allocation0]]
  $region69: #{qwen_decoder_layer.8} parent=0
    _
  %s6 = ssub.s32 1, %s4
  %s7 = scalar_select 0, %s6, %s4
  $region1: #{qwen_decoder_layer.8} parent=0
    #allocation4 [shape = 'u8[262144]{0}', space=vmem, size = 0x40000, scoped, tag = 'input window, operand 0']
    #allocation5 [shape = 's32[2]{0}', space=sflag, size = 0x8, scoped, tag = 'scoped memory for qwen_decoder_layer.8']
    #allocation6 [shape = 's32[2]{0}', space=sflag, size = 0x8, scoped, tag = 'scoped memory for qwen_decoder_layer.8']
    #allocation7 [shape = 'u8[512]{0}', space=vmem, size = 0x400, scoped, tag = 'input window, operand 1, single buffered']
    #allocation8 [shape = 's32[1]{0}', space=sflag, size = 0x4, scoped, tag = 'scoped memory for qwen_decoder_layer.8']
    #allocation9 [shape = 'u8[131072]{0}', space=vmem, size = 0x20000, scoped, tag = 'input window, operand 2']
    #allocation10 [shape = 'u8[262144]{0}', space=vmem, size = 0x40000, scoped, tag = 'output window, operand 0']
    %8 = vsyncpa [#allocation5], 0
    %s9 = scalar_lea.sflag [#allocation5], 1
    %10 = vsyncpa %s9, 0
    %11 = vsyncpa [#allocation8], 0
    %12 = vsyncpa [#allocation6], 0
    %s13 = scalar_lea.sflag [#allocation6], 1
    %14 = vsyncpa %s13, 0
    loop: start=0, step=1, limit=6
    $region2: #{qwen_decoder_layer.8} parent=1 // loop_pre_header
      _
    $region3: #{qwen_decoder_layer.8} parent=1 // loop_header
      %s16 = sphi 0, %s20
      %p17 = scmp.ge.s32.totalorder %s16, 6
      %s23 = sphi 0, %s42
      %s24 = sphi 0, %s38
      %s25 = sphi 0, %s34
      %s26 = sphi 0, %s23
      %s27 = sphi 0, %s24
      %s28 = sphi 0, %s25
      %s29 = sphi 0, %s26
      %s30 = sphi 0, %s27
      %s31 = sphi 0, %s28
      %s45 = sphi 0, %s47
      %s48 = sphi 0, %s45
      %s49 = sphi 0, %s48
      %s65 = sphi 0, %s49
      %s69 = sphi 0, %s69
      %s71 = sphi 0, %s69
      %s72 = sphi 0, %s71
      %s86 = sphi 0, %s72
      %s94 = sphi 0, %s96
      %s97 = sphi 0, %s94
      %s98 = sphi 0, %s97
      %s114 = sphi 0, %s98
      %s122 = sphi 0, %s124
      %s125 = sphi 0, %s122
      %s126 = sphi 0, %s125
      %s142 = sphi 0, %s126
    $region4: #{qwen_decoder_layer.8} parent=1 // loop_header_branch
      %19 = sbr.rel (%p17) target = $region8
    $region5: #{qwen_decoder_layer.8} parent=1 // loop_body
      %s21 = ssub.s32 %s16, 1
      %s22 = ssub.s32 %s16, 2
      %s32 = sadd.s32 1, %s25
      %p33 = scmp.ge.s32.totalorder %s32, 1
      %s34 = scalar_select %p33, 0, %s32
      %s35 = sadd.s32 1, %s24
      %s36 = scalar_select %p33, %s35, %s24
      %p37 = scmp.ge.s32.totalorder %s36, 2
      %s38 = scalar_select %p37, 0, %s36
      %s39 = sadd.s32 1, %s23
      %s40 = scalar_select %p37, %s39, %s23
      %p41 = scmp.ge.s32.totalorder %s40, 2
      %s42 = scalar_select %p41, 0, %s40
      %s43 = ssub.s32 %s23, %s42
      %p44 = scmp.eq.s32.totalorder %s43, 0
      %s46 = sadd.s32 %s45, 1
      %s47 = scalar_select %p44, %s45, %s46
      %p50 = pneg %p44
      %p51 = scmp.eq.s32.totalorder %s16, 3
      %p52 = por %p50, %p51
      %p53 = scmp.ne.s32.totalorder %s45, %s48
      %p54 = scmp.eq.s32.totalorder %s16, 0
      %p55 = por %p53, %p54
      %p56 = scmp.ne.s32.totalorder %s45, %s48
      %p57 = scmp.eq.s32.totalorder %s21, 3
      %p58 = por %p56, %p57
      %p59 = scmp.ne.s32.totalorder %s48, %s49
      %p60 = scmp.eq.s32.totalorder %s21, 0
      %p61 = por %p59, %p60
      %p62 = scmp.ne.s32.totalorder %s48, %s49
      %p63 = scmp.eq.s32.totalorder %s22, 3
      %p64 = por %p62, %p63
      %p66 = scmp.ne.s32.totalorder %s49, %s65
      %p67 = scmp.eq.s32.totalorder %s22, 0
      %p68 = por %p66, %p67
      %s70 = sadd.s32 %s69, 1
      %p73 = scmp.eq.s32.totalorder %s16, 3
      %p74 = scmp.ne.s32.totalorder %s69, %s71
      %p75 = scmp.eq.s32.totalorder %s16, 0
      %p76 = por %p74, %p75
      %p77 = scmp.ne.s32.totalorder %s69, %s71
      %p78 = scmp.eq.s32.totalorder %s21, 3
      %p79 = por %p77, %p78
      %p80 = scmp.ne.s32.totalorder %s71, %s72
      %p81 = scmp.eq.s32.totalorder %s21, 0
      %p82 = por %p80, %p81
      %p83 = scmp.ne.s32.totalorder %s71, %s72
      %p84 = scmp.eq.s32.totalorder %s22, 3
      %p85 = por %p83, %p84
      %p87 = scmp.ne.s32.totalorder %s72, %s86
      %p88 = scmp.eq.s32.totalorder %s22, 0
      %p89 = por %p87, %p88
      %s90 = ssub.s32 %s25, %s34
      %s91 = ssub.s32 %s24, %s38
      %s92 = sor.u32 %s90, %s91
      %p93 = scmp.eq.s32.totalorder %s92, 0
      %s95 = sadd.s32 %s94, 1
      %s96 = scalar_select %p93, %s94, %s95
      %p99 = pneg %p93
      %p100 = scmp.eq.s32.totalorder %s16, 3
      %p101 = por %p99, %p100
      %p102 = scmp.ne.s32.totalorder %s94, %s97
      %p103 = scmp.eq.s32.totalorder %s16, 0
      %p104 = por %p102, %p103
      %p105 = scmp.ne.s32.totalorder %s94, %s97
      %p106 = scmp.eq.s32.totalorder %s21, 3
      %p107 = por %p105, %p106
      %p108 = scmp.ne.s32.totalorder %s97, %s98
      %p109 = scmp.eq.s32.totalorder %s21, 0
      %p110 = por %p108, %p109
      %p111 = scmp.ne.s32.totalorder %s97, %s98
      %p112 = scmp.eq.s32.totalorder %s22, 3
      %p113 = por %p111, %p112
      %p115 = scmp.ne.s32.totalorder %s98, %s114
      %p116 = scmp.eq.s32.totalorder %s22, 0
      %p117 = por %p115, %p116
      %s118 = ssub.s32 %s23, %s42
      %s119 = ssub.s32 %s24, %s38
      %s120 = sor.u32 %s118, %s119
      %p121 = scmp.eq.s32.totalorder %s120, 0
      %s123 = sadd.s32 %s122, 1
      %s124 = scalar_select %p121, %s122, %s123
      %p127 = pneg %p121
      %p128 = scmp.eq.s32.totalorder %s16, 3
      %p129 = por %p127, %p128
      %p130 = scmp.ne.s32.totalorder %s122, %s125
      %p131 = scmp.eq.s32.totalorder %s16, 0
      %p132 = por %p130, %p131
      %p133 = scmp.ne.s32.totalorder %s122, %s125
      %p134 = scmp.eq.s32.totalorder %s21, 3
      %p135 = por %p133, %p134
      %p136 = scmp.ne.s32.totalorder %s125, %s126
      %p137 = scmp.eq.s32.totalorder %s21, 0
      %p138 = por %p136, %p137
      %p139 = scmp.ne.s32.totalorder %s125, %s126
      %p140 = scmp.eq.s32.totalorder %s22, 3
      %p141 = por %p139, %p140
      %p143 = scmp.ne.s32.totalorder %s126, %s142
      %p144 = scmp.eq.s32.totalorder %s22, 0
      %p145 = por %p143, %p144
      %p146 = scmp.le.s32.totalorder 1, %s16
      %p147 = scmp.lt.s32.totalorder %s16, 5
      %p148 = pnand %p146, %p147
      %p149 = pneg %p148
      // Predicated region
      $region9: #{qwen_decoder_layer.8} parent=5 // pred_check
        _
      $region10: #{qwen_decoder_layer.8} parent=5 // pred_check_branch
        %151 = sbr.rel (%p148) target = $region12
      $region11: #{qwen_decoder_layer.8} parent=5 // pred_region
        %s152 = ssub.s32 %s16, 1
        // Predicated region
        $region13: #{qwen_decoder_layer.8} parent=11 // pred_check
          %p153 = pneg %p82
        $region14: #{qwen_decoder_layer.8} parent=11 // pred_check_branch
          %155 = sbr.rel (%p153) target = $region16
        $region15: #{qwen_decoder_layer.8} parent=11 // pred_region
          %s157 = ssub.s32 16, 16
          %158 = vsyncadd [#allocation8], %s157
          %s160 = sshll.u32 [#allocation7], 4
          %s161 = int_to_ptr.vmem [resolvable:$true] %s160
          %163 = dma.hbm_to_vmem [thread:$0]  %s1, 16, %s161, [#allocation8]
        $region16: #{qwen_decoder_layer.8} parent=11 // pred_fallthru
          _
      $region12: #{qwen_decoder_layer.8} parent=5 // pred_fallthru
        _
      %p164 = scmp.lt.s32.totalorder %s16, 4
      // Predicated region
      $region17: #{qwen_decoder_layer.8} parent=5 // pred_check
        %p165 = pneg %p164
      $region18: #{qwen_decoder_layer.8} parent=5 // pred_check_branch
        %167 = sbr.rel (%p165) target = $region20
      $region19: #{qwen_decoder_layer.8} parent=5 // pred_region
        // Predicated region
        $region21: #{qwen_decoder_layer.8} parent=19 // pred_check
          %p168 = pneg %p55
        $region22: #{qwen_decoder_layer.8} parent=19 // pred_check_branch
          %170 = sbr.rel (%p168) target = $region24
        $region23: #{qwen_decoder_layer.8} parent=19 // pred_region
          %s171 = sand.u32 %s16, 1
          %s172 = scalar_lea.sflag [#allocation5], %s171
          %s173 = sand.u32 %s45, 1
          %s174 = smul.addr %s173, 256
          %s175 = scalar_lea.vmem [#allocation4], %s174
          %s176 = smul.u32 32, %s23
          %s178 = ssub.s32 4096, 4096
          %179 = vsyncadd %s172, %s178
          %s180 = smul.addr %s176, 128
          %s181 = scalar_lea.hbm %s0, %s180
          %s182 = sshll.u32 %s175, 4
          %s183 = int_to_ptr.vmem [resolvable:$true] %s182
          %188 = dma.hbm_to_vmem [thread:$0]  %s181, 4096, %s183, %s172, 128, 128, 8
        $region24: #{qwen_decoder_layer.8} parent=19 // pred_fallthru
          _
        // Predicated region
        $region25: #{qwen_decoder_layer.8} parent=19 // pred_check
          %p189 = pneg %p104
        $region26: #{qwen_decoder_layer.8} parent=19 // pred_check_branch
          %191 = sbr.rel (%p189) target = $region28
        $region27: #{qwen_decoder_layer.8} parent=19 // pred_region
          %s192 = sand.u32 %s16, 1
          %s193 = scalar_lea.sflag [#allocation5], %s192
          %s194 = sand.u32 %s94, 1
          %s195 = smul.addr %s194, 128
          %s196 = scalar_lea.vmem [#allocation9], %s195
          %s197 = smul.u32 16, %s25
          %s198 = smul.u32 2, %s24
          %s200 = ssub.s32 2048, 2048
          %201 = vsyncadd %s193, %s200
          %s202 = smul.addr %s197, 4
          %s203 = sadd.s32 %s198, %s202
          %s204 = smul.addr %s203, 64
          %s205 = scalar_lea.hbm %s2, %s204
          %s206 = sshll.u32 %s196, 4
          %s207 = int_to_ptr.vmem [resolvable:$true] %s206
          %212 = dma.hbm_to_vmem [thread:$0]  %s205, 2048, %s207, %s193, 256, 128, 8
        $region28: #{qwen_decoder_layer.8} parent=19 // pred_fallthru
          _
      $region20: #{qwen_decoder_layer.8} parent=5 // pred_fallthru
        _
      %p213 = scmp.le.s32.totalorder 1, %s16
      %p214 = scmp.lt.s32.totalorder %s16, 5
      %p215 = pnand %p213, %p214
      %p216 = pneg %p215
      // Predicated region
      $region29: #{qwen_decoder_layer.8} parent=5 // pred_check
        _
      $region30: #{qwen_decoder_layer.8} parent=5 // pred_check_branch
        %218 = sbr.rel (%p215) target = $region32
      $region31: #{qwen_decoder_layer.8} parent=5 // pred_region
        %s219 = ssub.s32 %s16, 1
        %s220 = sand.u32 %s21, 1
        %s221 = scalar_lea.sflag [#allocation5], %s220
        %s222 = sand.u32 %s48, 1
        %s223 = smul.addr %s222, 256
        %s224 = scalar_lea.vmem [#allocation4], %s223
        // Predicated region
        $region33: #{qwen_decoder_layer.8} parent=31 // pred_check
          %p225 = pneg %p61
        $region34: #{qwen_decoder_layer.8} parent=31 // pred_check_branch
          %227 = sbr.rel (%p225) target = $region36
        $region35: #{qwen_decoder_layer.8} parent=31 // pred_region
          %228 = dma.done %s221, 4096
        $region36: #{qwen_decoder_layer.8} parent=31 // pred_fallthru
          _
        // Predicated region
        $region37: #{qwen_decoder_layer.8} parent=31 // pred_check
          %p229 = pneg %p82
        $region38: #{qwen_decoder_layer.8} parent=31 // pred_check_branch
          %231 = sbr.rel (%p229) target = $region40
        $region39: #{qwen_decoder_layer.8} parent=31 // pred_region
          %232 = dma.done [#allocation8], 16
        $region40: #{qwen_decoder_layer.8} parent=31 // pred_fallthru
          _
        %s233 = sand.u32 %s21, 1
        %s234 = scalar_lea.sflag [#allocation5], %s233
        %s235 = sand.u32 %s97, 1
        %s236 = smul.addr %s235, 128
        %s237 = scalar_lea.vmem [#allocation9], %s236
        // Predicated region
        $region41: #{qwen_decoder_layer.8} parent=31 // pred_check
          %p238 = pneg %p110
        $region42: #{qwen_decoder_layer.8} parent=31 // pred_check_branch
          %240 = sbr.rel (%p238) target = $region44
        $region43: #{qwen_decoder_layer.8} parent=31 // pred_region
          %241 = dma.done %s234, 2048
        $region44: #{qwen_decoder_layer.8} parent=31 // pred_fallthru
          _
        %s242 = sand.u32 %s21, 1
        %s243 = scalar_lea.sflag [#allocation5], %s242
        %s244 = sand.u32 %s48, 1
        %s245 = smul.addr %s244, 256
        %s246 = scalar_lea.vmem [#allocation4], %s245
        %p247 = pneg %p61
        %p248 = pneg %p58
        %p249 = pneg %p82
        %p250 = pneg %p79
        %s251 = sand.u32 %s21, 1
        %s252 = scalar_lea.sflag [#allocation5], %s251
        %s253 = sand.u32 %s97, 1
        %s254 = smul.addr %s253, 128
        %s255 = scalar_lea.vmem [#allocation9], %s254
        %p256 = pneg %p110
        %p257 = pneg %p107
        %p258 = pneg %p138
        %p259 = pneg %p135
        %s260 = sand.u32 %s125, 1
        %s261 = scalar_lea.sflag [#allocation6], %s260
        %s262 = sand.u32 %s125, 1
        %s263 = smul.addr %s262, 256
        %s264 = scalar_lea.vmem [#allocation10], %s263
        %s265 = smul.u32 32, %s26
        %s266 = smul.u32 16, %s28
        %s267 = smul.u32 2, %s27
        %s268 = smul.u32 32, %s26
        %s269 = smul.u32 2, %s27
        %p271 = scmp.eq.s32.totalorder %s27, 0
        %p272 = scmp.eq.s32.totalorder %s28, 0
        %p273 = pnand %p271, %p272
        %p274 = pneg %p273
        // Predicated region
        $region45: #{qwen_decoder_layer.8} parent=31 // pred_check
          _
        $region46: #{qwen_decoder_layer.8} parent=31 // pred_check_branch
          %276 = sbr.rel (%p273) target = $region48
        $region47: #{qwen_decoder_layer.8} parent=31 // pred_region
          %v277 = vld [vmem:[%s224] sm:$0xff]
          %v278 = vld [vmem:[%s224 + $0x8] sm:$0xff]
          %v279 = vld [vmem:[%s224 + $0x10] sm:$0xff]
          %v280 = vld [vmem:[%s224 + $0x18] sm:$0xff]
          %v281 = vld [vmem:[%s224 + $0x20] sm:$0xff]
          %v282 = vld [vmem:[%s224 + $0x28] sm:$0xff]
          %v283 = vld [vmem:[%s224 + $0x30] sm:$0xff]
          %v284 = vld [vmem:[%s224 + $0x38] sm:$0xff]
          %v285 = vld [vmem:[%s224 + $0x40] sm:$0xff]
          %v286 = vld [vmem:[%s224 + $0x48] sm:$0xff]
          %v287 = vld [vmem:[%s224 + $0x50] sm:$0xff]
          %v288 = vld [vmem:[%s224 + $0x58] sm:$0xff]
          %v289 = vld [vmem:[%s224 + $0x60] sm:$0xff]
          %v290 = vld [vmem:[%s224 + $0x68] sm:$0xff]
          %v291 = vld [vmem:[%s224 + $0x70] sm:$0xff]
          %v292 = vld [vmem:[%s224 + $0x78] sm:$0xff]
          %v293 = vld [vmem:[%s224 + $0x80] sm:$0xff]
          %v294 = vld [vmem:[%s224 + $0x88] sm:$0xff]
          %v295 = vld [vmem:[%s224 + $0x90] sm:$0xff]
          %v296 = vld [vmem:[%s224 + $0x98] sm:$0xff]
          %v297 = vld [vmem:[%s224 + $0xa0] sm:$0xff]
          %v298 = vld [vmem:[%s224 + $0xa8] sm:$0xff]
          %v299 = vld [vmem:[%s224 + $0xb0] sm:$0xff]
          %v300 = vld [vmem:[%s224 + $0xb8] sm:$0xff]
          %v301 = vld [vmem:[%s224 + $0xc0] sm:$0xff]
          %v302 = vld [vmem:[%s224 + $0xc8] sm:$0xff]
          %v303 = vld [vmem:[%s224 + $0xd0] sm:$0xff]
          %v304 = vld [vmem:[%s224 + $0xd8] sm:$0xff]
          %v305 = vld [vmem:[%s224 + $0xe0] sm:$0xff]
          %v306 = vld [vmem:[%s224 + $0xe8] sm:$0xff]
          %v307 = vld [vmem:[%s224 + $0xf0] sm:$0xff]
          %v308 = vld [vmem:[%s224 + $0xf8] sm:$0xff]
          %v309 = vmul.f32 %v277, %v277
          %v310 = vmul.f32 %v278, %v278
          %v311 = vmul.f32 %v279, %v279
          %v312 = vmul.f32 %v280, %v280
          %v313 = vmul.f32 %v281, %v281
          %v314 = vmul.f32 %v282, %v282
          %v315 = vmul.f32 %v283, %v283
          %v316 = vmul.f32 %v284, %v284
          %v317 = vmul.f32 %v285, %v285
          %v318 = vmul.f32 %v286, %v286
          %v319 = vmul.f32 %v287, %v287
          %v320 = vmul.f32 %v288, %v288
          %v321 = vmul.f32 %v289, %v289
          %v322 = vmul.f32 %v290, %v290
          %v323 = vmul.f32 %v291, %v291
          %v324 = vmul.f32 %v292, %v292
          %v325 = vmul.f32 %v293, %v293
          %v326 = vmul.f32 %v294, %v294
          %v327 = vmul.f32 %v295, %v295
          %v328 = vmul.f32 %v296, %v296
          %v329 = vmul.f32 %v297, %v297
          %v330 = vmul.f32 %v298, %v298
          %v331 = vmul.f32 %v299, %v299
          %v332 = vmul.f32 %v300, %v300
          %v333 = vmul.f32 %v301, %v301
          %v334 = vmul.f32 %v302, %v302
          %v335 = vmul.f32 %v303, %v303
          %v336 = vmul.f32 %v304, %v304
          %v337 = vmul.f32 %v305, %v305
          %v338 = vmul.f32 %v306, %v306
          %v339 = vmul.f32 %v307, %v307
          %v340 = vmul.f32 %v308, %v308
          %341 = vadd.xlane.f32.xlu0 %v309
          %v342 = vpop.xlane.xlu0 %341
          %343 = vadd.xlane.f32.xlu0 %v310
          %v344 = vpop.xlane.xlu0 %343
          %345 = vadd.xlane.f32.xlu0 %v311
          %v346 = vpop.xlane.xlu0 %345
          %347 = vadd.xlane.f32.xlu0 %v312
          %v348 = vpop.xlane.xlu0 %347
          %349 = vadd.xlane.f32.xlu0 %v313
          %v350 = vpop.xlane.xlu0 %349
          %351 = vadd.xlane.f32.xlu0 %v314
          %v352 = vpop.xlane.xlu0 %351
          %353 = vadd.xlane.f32.xlu0 %v315
          %v354 = vpop.xlane.xlu0 %353
          %355 = vadd.xlane.f32.xlu0 %v316
          %v356 = vpop.xlane.xlu0 %355
          %357 = vadd.xlane.f32.xlu0 %v317
          %v358 = vpop.xlane.xlu0 %357
          %359 = vadd.xlane.f32.xlu0 %v318
          %v360 = vpop.xlane.xlu0 %359
          %361 = vadd.xlane.f32.xlu0 %v319
          %v362 = vpop.xlane.xlu0 %361
          %363 = vadd.xlane.f32.xlu0 %v320
          %v364 = vpop.xlane.xlu0 %363
          %365 = vadd.xlane.f32.xlu0 %v321
          %v366 = vpop.xlane.xlu0 %365
          %367 = vadd.xlane.f32.xlu0 %v322
          %v368 = vpop.xlane.xlu0 %367
          %369 = vadd.xlane.f32.xlu0 %v323
          %v370 = vpop.xlane.xlu0 %369
          %371 = vadd.xlane.f32.xlu0 %v324
          %v372 = vpop.xlane.xlu0 %371
          %373 = vadd.xlane.f32.xlu0 %v325
          %v374 = vpop.xlane.xlu0 %373
          %375 = vadd.xlane.f32.xlu0 %v326
          %v376 = vpop.xlane.xlu0 %375
          %377 = vadd.xlane.f32.xlu0 %v327
          %v378 = vpop.xlane.xlu0 %377
          %379 = vadd.xlane.f32.xlu0 %v328
          %v380 = vpop.xlane.xlu0 %379
          %381 = vadd.xlane.f32.xlu0 %v329
          %v382 = vpop.xlane.xlu0 %381
          %383 = vadd.xlane.f32.xlu0 %v330
          %v384 = vpop.xlane.xlu0 %383
          %385 = vadd.xlane.f32.xlu0 %v331
          %v386 = vpop.xlane.xlu0 %385
          %387 = vadd.xlane.f32.xlu0 %v332
          %v388 = vpop.xlane.xlu0 %387
          %389 = vadd.xlane.f32.xlu0 %v333
          %v390 = vpop.xlane.xlu0 %389
          %391 = vadd.xlane.f32.xlu0 %v334
          %v392 = vpop.xlane.xlu0 %391
          %393 = vadd.xlane.f32.xlu0 %v335
          %v394 = vpop.xlane.xlu0 %393
          %395 = vadd.xlane.f32.xlu0 %v336
          %v396 = vpop.xlane.xlu0 %395
          %397 = vadd.xlane.f32.xlu0 %v337
          %v398 = vpop.xlane.xlu0 %397
          %399 = vadd.xlane.f32.xlu0 %v338
          %v400 = vpop.xlane.xlu0 %399
          %401 = vadd.xlane.f32.xlu0 %v339
          %v402 = vpop.xlane.xlu0 %401
          %403 = vadd.xlane.f32.xlu0 %v340
          %v404 = vpop.xlane.xlu0 %403
          %v405 = vrcp.pop 128.0
          %v406 = vmul.f32 %v342, %v405
          %v407 = vmul.f32 %v344, %v405
          %v408 = vmul.f32 %v346, %v405
          %v409 = vmul.f32 %v348, %v405
          %v410 = vmul.f32 %v350, %v405
          %v411 = vmul.f32 %v352, %v405
          %v412 = vmul.f32 %v354, %v405
          %v413 = vmul.f32 %v356, %v405
          %v414 = vmul.f32 %v358, %v405
          %v415 = vmul.f32 %v360, %v405
          %v416 = vmul.f32 %v362, %v405
          %v417 = vmul.f32 %v364, %v405
          %v418 = vmul.f32 %v366, %v405
          %v419 = vmul.f32 %v368, %v405
          %v420 = vmul.f32 %v370, %v405
          %v421 = vmul.f32 %v372, %v405
          %v422 = vmul.f32 %v374, %v405
          %v423 = vmul.f32 %v376, %v405
          %v424 = vmul.f32 %v378, %v405
          %v425 = vmul.f32 %v380, %v405
          %v426 = vmul.f32 %v382, %v405
          %v427 = vmul.f32 %v384, %v405
          %v428 = vmul.f32 %v386, %v405
          %v429 = vmul.f32 %v388, %v405
          %v430 = vmul.f32 %v390, %v405
          %v431 = vmul.f32 %v392, %v405
          %v432 = vmul.f32 %v394, %v405
          %v433 = vmul.f32 %v396, %v405
          %v434 = vmul.f32 %v398, %v405
          %v435 = vmul.f32 %v400, %v405
          %v436 = vmul.f32 %v402, %v405
          %v437 = vmul.f32 %v404, %v405
          %v438 = vadd.f32 %v406, 1e-06
          %v439 = vadd.f32 %v407, 1e-06
          %v440 = vadd.f32 %v408, 1e-06
          %v441 = vadd.f32 %v409, 1e-06
          %v442 = vadd.f32 %v410, 1e-06
          %v443 = vadd.f32 %v411, 1e-06
          %v444 = vadd.f32 %v412, 1e-06
          %v445 = vadd.f32 %v413, 1e-06
          %v446 = vadd.f32 %v414, 1e-06
          %v447 = vadd.f32 %v415, 1e-06
          %v448 = vadd.f32 %v416, 1e-06
          %v449 = vadd.f32 %v417, 1e-06
          %v450 = vadd.f32 %v418, 1e-06
          %v451 = vadd.f32 %v419, 1e-06
          %v452 = vadd.f32 %v420, 1e-06
          %v453 = vadd.f32 %v421, 1e-06
          %v454 = vadd.f32 %v422, 1e-06
          %v455 = vadd.f32 %v423, 1e-06
          %v456 = vadd.f32 %v424, 1e-06
          %v457 = vadd.f32 %v425, 1e-06
          %v458 = vadd.f32 %v426, 1e-06
          %v459 = vadd.f32 %v427, 1e-06
          %v460 = vadd.f32 %v428, 1e-06
          %v461 = vadd.f32 %v429, 1e-06
          %v462 = vadd.f32 %v430, 1e-06
          %v463 = vadd.f32 %v431, 1e-06
          %v464 = vadd.f32 %v432, 1e-06
          %v465 = vadd.f32 %v433, 1e-06
          %v466 = vadd.f32 %v434, 1e-06
          %v467 = vadd.f32 %v435, 1e-06
          %v468 = vadd.f32 %v436, 1e-06
          %v469 = vadd.f32 %v437, 1e-06
          %v470 = vrsqrt.pop %v438
          %v471 = vrsqrt.pop %v439
          %v472 = vrsqrt.pop %v440
          %v473 = vrsqrt.pop %v441
          %v474 = vrsqrt.pop %v442
          %v475 = vrsqrt.pop %v443
          %v476 = vrsqrt.pop %v444
          %v477 = vrsqrt.pop %v445
          %v478 = vrsqrt.pop %v446
          %v479 = vrsqrt.pop %v447
          %v480 = vrsqrt.pop %v448
          %v481 = vrsqrt.pop %v449
          %v482 = vrsqrt.pop %v450
          %v483 = vrsqrt.pop %v451
          %v484 = vrsqrt.pop %v452
          %v485 = vrsqrt.pop %v453
          %v486 = vrsqrt.pop %v454
          %v487 = vrsqrt.pop %v455
          %v488 = vrsqrt.pop %v456
          %v489 = vrsqrt.pop %v457
          %v490 = vrsqrt.pop %v458
          %v491 = vrsqrt.pop %v459
          %v492 = vrsqrt.pop %v460
          %v493 = vrsqrt.pop %v461
          %v494 = vrsqrt.pop %v462
          %v495 = vrsqrt.pop %v463
          %v496 = vrsqrt.pop %v464
          %v497 = vrsqrt.pop %v465
          %v498 = vrsqrt.pop %v466
          %v499 = vrsqrt.pop %v467
          %v500 = vrsqrt.pop %v468
          %v501 = vrsqrt.pop %v469
          %v502 = vmul.f32 %v277, %v470
          %v503 = vmul.f32 %v278, %v471
          %v504 = vmul.f32 %v279, %v472
          %v505 = vmul.f32 %v280, %v473
          %v506 = vmul.f32 %v281, %v474
          %v507 = vmul.f32 %v282, %v475
          %v508 = vmul.f32 %v283, %v476
          %v509 = vmul.f32 %v284, %v477
          %v510 = vmul.f32 %v285, %v478
          %v511 = vmul.f32 %v286, %v479
          %v512 = vmul.f32 %v287, %v480
          %v513 = vmul.f32 %v288, %v481
          %v514 = vmul.f32 %v289, %v482
          %v515 = vmul.f32 %v290, %v483
          %v516 = vmul.f32 %v291, %v484
          %v517 = vmul.f32 %v292, %v485
          %v518 = vmul.f32 %v293, %v486
          %v519 = vmul.f32 %v294, %v487
          %v520 = vmul.f32 %v295, %v488
          %v521 = vmul.f32 %v296, %v489
          %v522 = vmul.f32 %v297, %v490
          %v523 = vmul.f32 %v298, %v491
          %v524 = vmul.f32 %v299, %v492
          %v525 = vmul.f32 %v300, %v493
          %v526 = vmul.f32 %v301, %v494
          %v527 = vmul.f32 %v302, %v495
          %v528 = vmul.f32 %v303, %v496
          %v529 = vmul.f32 %v304, %v497
          %v530 = vmul.f32 %v305, %v498
          %v531 = vmul.f32 %v306, %v499
          %v532 = vmul.f32 %v307, %v500
          %v533 = vmul.f32 %v308, %v501
          %v534 = vld [vmem:[#allocation7] sm:$0x1]
          %v536 = vlaneseq
          %v537 = vshrl.u32 %v536, 7
          %v538 = vsub.s32 0, %v537
          %v539 = vrot.slane %v534, %v538
          %v541 = vmul.f32 %v502, %v539
          %v542 = vmul.f32 %v503, %v539
          %v543 = vmul.f32 %v504, %v539
          %v544 = vmul.f32 %v505, %v539
          %v545 = vmul.f32 %v506, %v539
          %v546 = vmul.f32 %v507, %v539
          %v547 = vmul.f32 %v508, %v539
          %v548 = vmul.f32 %v509, %v539
          %v549 = vmul.f32 %v510, %v539
          %v550 = vmul.f32 %v511, %v539
          %v551 = vmul.f32 %v512, %v539
          %v552 = vmul.f32 %v513, %v539
          %v553 = vmul.f32 %v514, %v539
          %v554 = vmul.f32 %v515, %v539
          %v555 = vmul.f32 %v516, %v539
          %v556 = vmul.f32 %v517, %v539
          %v557 = vmul.f32 %v518, %v539
          %v558 = vmul.f32 %v519, %v539
          %v559 = vmul.f32 %v520, %v539
          %v560 = vmul.f32 %v521, %v539
          %v561 = vmul.f32 %v522, %v539
          %v562 = vmul.f32 %v523, %v539
          %v563 = vmul.f32 %v524, %v539
          %v564 = vmul.f32 %v525, %v539
          %v565 = vmul.f32 %v526, %v539
          %v566 = vmul.f32 %v527, %v539
          %v567 = vmul.f32 %v528, %v539
          %v568 = vmul.f32 %v529, %v539
          %v569 = vmul.f32 %v530, %v539
          %v570 = vmul.f32 %v531, %v539
          %v571 = vmul.f32 %v532, %v539
          %v572 = vmul.f32 %v533, %v539
          %v573 = vpack.c.bf16 %v542, %v541
          %v574 = vpack.c.bf16 %v544, %v543
          %v575 = vpack.c.bf16 %v546, %v545
          %v576 = vpack.c.bf16 %v548, %v547
          %v577 = vpack.c.bf16 %v550, %v549
          %v578 = vpack.c.bf16 %v552, %v551
          %v579 = vpack.c.bf16 %v554, %v553
          %v580 = vpack.c.bf16 %v556, %v555
          %v581 = vpack.c.bf16 %v558, %v557
          %v582 = vpack.c.bf16 %v560, %v559
          %v583 = vpack.c.bf16 %v562, %v561
          %v584 = vpack.c.bf16 %v564, %v563
          %v585 = vpack.c.bf16 %v566, %v565
          %v586 = vpack.c.bf16 %v568, %v567
          %v587 = vpack.c.bf16 %v570, %v569
          %v588 = vpack.c.bf16 %v572, %v571
          %589 = vst [vmem:[#allocation2] sm:$0xff] %v573
          %590 = vst [vmem:[#allocation2 + $0x8] sm:$0xff] %v574
          %591 = vst [vmem:[#allocation2 + $0x10] sm:$0xff] %v575
          %592 = vst [vmem:[#allocation2 + $0x18] sm:$0xff] %v576
          %593 = vst [vmem:[#allocation2 + $0x20] sm:$0xff] %v577
          %594 = vst [vmem:[#allocation2 + $0x28] sm:$0xff] %v578
          %595 = vst [vmem:[#allocation2 + $0x30] sm:$0xff] %v579
          %596 = vst [vmem:[#allocation2 + $0x38] sm:$0xff] %v580
          %597 = vst [vmem:[#allocation2 + $0x40] sm:$0xff] %v581
          %598 = vst [vmem:[#allocation2 + $0x48] sm:$0xff] %v582
          %599 = vst [vmem:[#allocation2 + $0x50] sm:$0xff] %v583
          %600 = vst [vmem:[#allocation2 + $0x58] sm:$0xff] %v584
          %601 = vst [vmem:[#allocation2 + $0x60] sm:$0xff] %v585
          %602 = vst [vmem:[#allocation2 + $0x68] sm:$0xff] %v586
          %603 = vst [vmem:[#allocation2 + $0x70] sm:$0xff] %v587
          %604 = vst [vmem:[#allocation2 + $0x78] sm:$0xff] %v588
        $region48: #{qwen_decoder_layer.8} parent=31 // pred_fallthru
          _
        // Predicated region
        $region49: #{qwen_decoder_layer.8} parent=31 // pred_check
          %p605 = pneg %p272
        $region50: #{qwen_decoder_layer.8} parent=31 // pred_check_branch
          %607 = sbr.rel (%p605) target = $region52
        $region51: #{qwen_decoder_layer.8} parent=31 // pred_region
          %608 = vst [vmem:[#allocation3] sm:$0xff] 0.0
          %609 = vst [vmem:[#allocation3 + $0x8] sm:$0xff] 0.0
          %610 = vst [vmem:[#allocation3 + $0x10] sm:$0xff] 0.0
          %611 = vst [vmem:[#allocation3 + $0x18] sm:$0xff] 0.0
          %612 = vst [vmem:[#allocation3 + $0x20] sm:$0xff] 0.0
          %613 = vst [vmem:[#allocation3 + $0x28] sm:$0xff] 0.0
          %614 = vst [vmem:[#allocation3 + $0x30] sm:$0xff] 0.0
          %615 = vst [vmem:[#allocation3 + $0x38] sm:$0xff] 0.0
          %616 = vst [vmem:[#allocation3 + $0x40] sm:$0xff] 0.0
          %617 = vst [vmem:[#allocation3 + $0x48] sm:$0xff] 0.0
          %618 = vst [vmem:[#allocation3 + $0x50] sm:$0xff] 0.0
          %619 = vst [vmem:[#allocation3 + $0x58] sm:$0xff] 0.0
          %620 = vst [vmem:[#allocation3 + $0x60] sm:$0xff] 0.0
          %621 = vst [vmem:[#allocation3 + $0x68] sm:$0xff] 0.0
          %622 = vst [vmem:[#allocation3 + $0x70] sm:$0xff] 0.0
          %623 = vst [vmem:[#allocation3 + $0x78] sm:$0xff] 0.0
          %624 = vst [vmem:[#allocation3 + $0x80] sm:$0xff] 0.0
          %625 = vst [vmem:[#allocation3 + $0x88] sm:$0xff] 0.0
          %626 = vst [vmem:[#allocation3 + $0x90] sm:$0xff] 0.0
          %627 = vst [vmem:[#allocation3 + $0x98] sm:$0xff] 0.0
          %628 = vst [vmem:[#allocation3 + $0xa0] sm:$0xff] 0.0
          %629 = vst [vmem:[#allocation3 + $0xa8] sm:$0xff] 0.0
          %630 = vst [vmem:[#allocation3 + $0xb0] sm:$0xff] 0.0
          %631 = vst [vmem:[#allocation3 + $0xb8] sm:$0xff] 0.0
          %632 = vst [vmem:[#allocation3 + $0xc0] sm:$0xff] 0.0
          %633 = vst [vmem:[#allocation3 + $0xc8] sm:$0xff] 0.0
          %634 = vst [vmem:[#allocation3 + $0xd0] sm:$0xff] 0.0
          %635 = vst [vmem:[#allocation3 + $0xd8] sm:$0xff] 0.0
          %636 = vst [vmem:[#allocation3 + $0xe0] sm:$0xff] 0.0
          %637 = vst [vmem:[#allocation3 + $0xe8] sm:$0xff] 0.0
          %638 = vst [vmem:[#allocation3 + $0xf0] sm:$0xff] 0.0
          %639 = vst [vmem:[#allocation3 + $0xf8] sm:$0xff] 0.0
          %640 = vst [vmem:[#allocation3 + $0x100] sm:$0xff] 0.0
          %641 = vst [vmem:[#allocation3 + $0x108] sm:$0xff] 0.0
          %642 = vst [vmem:[#allocation3 + $0x110] sm:$0xff] 0.0
          %643 = vst [vmem:[#allocation3 + $0x118] sm:$0xff] 0.0
          %644 = vst [vmem:[#allocation3 + $0x120] sm:$0xff] 0.0
          %645 = vst [vmem:[#allocation3 + $0x128] sm:$0xff] 0.0
          %646 = vst [vmem:[#allocation3 + $0x130] sm:$0xff] 0.0
          %647 = vst [vmem:[#allocation3 + $0x138] sm:$0xff] 0.0
          %648 = vst [vmem:[#allocation3 + $0x140] sm:$0xff] 0.0
          %649 = vst [vmem:[#allocation3 + $0x148] sm:$0xff] 0.0
          %650 = vst [vmem:[#allocation3 + $0x150] sm:$0xff] 0.0
          %651 = vst [vmem:[#allocation3 + $0x158] sm:$0xff] 0.0
          %652 = vst [vmem:[#allocation3 + $0x160] sm:$0xff] 0.0
          %653 = vst [vmem:[#allocation3 + $0x168] sm:$0xff] 0.0
          %654 = vst [vmem:[#allocation3 + $0x170] sm:$0xff] 0.0
          %655 = vst [vmem:[#allocation3 + $0x178] sm:$0xff] 0.0
          %656 = vst [vmem:[#allocation3 + $0x180] sm:$0xff] 0.0
          %657 = vst [vmem:[#allocation3 + $0x188] sm:$0xff] 0.0
          %658 = vst [vmem:[#allocation3 + $0x190] sm:$0xff] 0.0
          %659 = vst [vmem:[#allocation3 + $0x198] sm:$0xff] 0.0
          %660 = vst [vmem:[#allocation3 + $0x1a0] sm:$0xff] 0.0
          %661 = vst [vmem:[#allocation3 + $0x1a8] sm:$0xff] 0.0
          %662 = vst [vmem:[#allocation3 + $0x1b0] sm:$0xff] 0.0
          %663 = vst [vmem:[#allocation3 + $0x1b8] sm:$0xff] 0.0
          %664 = vst [vmem:[#allocation3 + $0x1c0] sm:$0xff] 0.0
          %665 = vst [vmem:[#allocation3 + $0x1c8] sm:$0xff] 0.0
          %666 = vst [vmem:[#allocation3 + $0x1d0] sm:$0xff] 0.0
          %667 = vst [vmem:[#allocation3 + $0x1d8] sm:$0xff] 0.0
          %668 = vst [vmem:[#allocation3 + $0x1e0] sm:$0xff] 0.0
          %669 = vst [vmem:[#allocation3 + $0x1e8] sm:$0xff] 0.0
          %670 = vst [vmem:[#allocation3 + $0x1f0] sm:$0xff] 0.0
          %671 = vst [vmem:[#allocation3 + $0x1f8] sm:$0xff] 0.0
        $region52: #{qwen_decoder_layer.8} parent=31 // pred_fallthru
          _
        %v672 = vld [vmem:[#allocation3] sm:$0xff]
        %v673 = vld [vmem:[#allocation3 + $0x8] sm:$0xff]
        %v674 = vld [vmem:[#allocation3 + $0x10] sm:$0xff]
        %v675 = vld [vmem:[#allocation3 + $0x18] sm:$0xff]
        %v676 = vld [vmem:[#allocation3 + $0x20] sm:$0xff]
        %v677 = vld [vmem:[#allocation3 + $0x28] sm:$0xff]
        %v678 = vld [vmem:[#allocation3 + $0x30] sm:$0xff]
        %v679 = vld [vmem:[#allocation3 + $0x38] sm:$0xff]
        %v680 = vld [vmem:[#allocation3 + $0x40] sm:$0xff]
        %v681 = vld [vmem:[#allocation3 + $0x48] sm:$0xff]
        %v682 = vld [vmem:[#allocation3 + $0x50] sm:$0xff]
        %v683 = vld [vmem:[#allocation3 + $0x58] sm:$0xff]
        %v684 = vld [vmem:[#allocation3 + $0x60] sm:$0xff]
        %v685 = vld [vmem:[#allocation3 + $0x68] sm:$0xff]
        %v686 = vld [vmem:[#allocation3 + $0x70] sm:$0xff]
        %v687 = vld [vmem:[#allocation3 + $0x78] sm:$0xff]
        %v688 = vld [vmem:[#allocation3 + $0x80] sm:$0xff]
        %v689 = vld [vmem:[#allocation3 + $0x88] sm:$0xff]
        %v690 = vld [vmem:[#allocation3 + $0x90] sm:$0xff]
        %v691 = vld [vmem:[#allocation3 + $0x98] sm:$0xff]
        %v692 = vld [vmem:[#allocation3 + $0xa0] sm:$0xff]
        %v693 = vld [vmem:[#allocation3 + $0xa8] sm:$0xff]
        %v694 = vld [vmem:[#allocation3 + $0xb0] sm:$0xff]
        %v695 = vld [vmem:[#allocation3 + $0xb8] sm:$0xff]
        %v696 = vld [vmem:[#allocation3 + $0xc0] sm:$0xff]
        %v697 = vld [vmem:[#allocation3 + $0xc8] sm:$0xff]
        %v698 = vld [vmem:[#allocation3 + $0xd0] sm:$0xff]
        %v699 = vld [vmem:[#allocation3 + $0xd8] sm:$0xff]
        %v700 = vld [vmem:[#allocation3 + $0xe0] sm:$0xff]
        %v701 = vld [vmem:[#allocation3 + $0xe8] sm:$0xff]
        %v702 = vld [vmem:[#allocation3 + $0xf0] sm:$0xff]
        %v703 = vld [vmem:[#allocation3 + $0xf8] sm:$0xff]
        %v704 = vld [vmem:[#allocation3 + $0x100] sm:$0xff]
        %v705 = vld [vmem:[#allocation3 + $0x108] sm:$0xff]
        %v706 = vld [vmem:[#allocation3 + $0x110] sm:$0xff]
        %v707 = vld [vmem:[#allocation3 + $0x118] sm:$0xff]
        %v708 = vld [vmem:[#allocation3 + $0x120] sm:$0xff]
        %v709 = vld [vmem:[#allocation3 + $0x128] sm:$0xff]
        %v710 = vld [vmem:[#allocation3 + $0x130] sm:$0xff]
        %v711 = vld [vmem:[#allocation3 + $0x138] sm:$0xff]
        %v712 = vld [vmem:[#allocation3 + $0x140] sm:$0xff]
        %v713 = vld [vmem:[#allocation3 + $0x148] sm:$0xff]
        %v714 = vld [vmem:[#allocation3 + $0x150] sm:$0xff]
        %v715 = vld [vmem:[#allocation3 + $0x158] sm:$0xff]
        %v716 = vld [vmem:[#allocation3 + $0x160] sm:$0xff]
        %v717 = vld [vmem:[#allocation3 + $0x168] sm:$0xff]
        %v718 = vld [vmem:[#allocation3 + $0x170] sm:$0xff]
        %v719 = vld [vmem:[#allocation3 + $0x178] sm:$0xff]
        %v720 = vld [vmem:[#allocation3 + $0x180] sm:$0xff]
        %v721 = vld [vmem:[#allocation3 + $0x188] sm:$0xff]
        %v722 = vld [vmem:[#allocation3 + $0x190] sm:$0xff]
        %v723 = vld [vmem:[#allocation3 + $0x198] sm:$0xff]
        %v724 = vld [vmem:[#allocation3 + $0x1a0] sm:$0xff]
        %v725 = vld [vmem:[#allocation3 + $0x1a8] sm:$0xff]
        %v726 = vld [vmem:[#allocation3 + $0x1b0] sm:$0xff]
        %v727 = vld [vmem:[#allocation3 + $0x1b8] sm:$0xff]
        %v728 = vld [vmem:[#allocation3 + $0x1c0] sm:$0xff]
        %v729 = vld [vmem:[#allocation3 + $0x1c8] sm:$0xff]
        %v730 = vld [vmem:[#allocation3 + $0x1d0] sm:$0xff]
        %v731 = vld [vmem:[#allocation3 + $0x1d8] sm:$0xff]
        %v732 = vld [vmem:[#allocation3 + $0x1e0] sm:$0xff]
        %v733 = vld [vmem:[#allocation3 + $0x1e8] sm:$0xff]
        %v734 = vld [vmem:[#allocation3 + $0x1f0] sm:$0xff]
        %v735 = vld [vmem:[#allocation3 + $0x1f8] sm:$0xff]
        %s736 = smul.u32 %s28, 16
        %s737 = smul.addr %s736, 8
        %s738 = scalar_lea.vmem [#allocation2], %s737
        %v739 = vld [vmem:[%s738] sm:$0xff]
        %v740 = vld [vmem:[%s738 + $0x8] sm:$0xff]
        %v741 = vld [vmem:[%s738 + $0x10] sm:$0xff]
        %v742 = vld [vmem:[%s738 + $0x18] sm:$0xff]
        %v743 = vld [vmem:[%s738 + $0x20] sm:$0xff]
        %v744 = vld [vmem:[%s738 + $0x28] sm:$0xff]
        %v745 = vld [vmem:[%s738 + $0x30] sm:$0xff]
        %v746 = vld [vmem:[%s738 + $0x38] sm:$0xff]
        %v747 = vld [vmem:[%s738 + $0x40] sm:$0xff]
        %v748 = vld [vmem:[%s738 + $0x48] sm:$0xff]
        %v749 = vld [vmem:[%s738 + $0x50] sm:$0xff]
        %v750 = vld [vmem:[%s738 + $0x58] sm:$0xff]
        %v751 = vld [vmem:[%s738 + $0x60] sm:$0xff]
        %v752 = vld [vmem:[%s738 + $0x68] sm:$0xff]
        %v753 = vld [vmem:[%s738 + $0x70] sm:$0xff]
        %v754 = vld [vmem:[%s738 + $0x78] sm:$0xff]
        %v755 = vld [vmem:[%s237] sm:$0xff]
        %v756 = vld [vmem:[%s237 + $0x8] sm:$0xff]
        %v757 = vld [vmem:[%s237 + $0x10] sm:$0xff]
        %v758 = vld [vmem:[%s237 + $0x18] sm:$0xff]
        %v759 = vld [vmem:[%s237 + $0x20] sm:$0xff]
        %v760 = vld [vmem:[%s237 + $0x28] sm:$0xff]
        %v761 = vld [vmem:[%s237 + $0x30] sm:$0xff]
        %v762 = vld [vmem:[%s237 + $0x38] sm:$0xff]
        %v763 = vld [vmem:[%s237 + $0x40] sm:$0xff]
        %v764 = vld [vmem:[%s237 + $0x48] sm:$0xff]
        %v765 = vld [vmem:[%s237 + $0x50] sm:$0xff]
        %v766 = vld [vmem:[%s237 + $0x58] sm:$0xff]
        %v767 = vld [vmem:[%s237 + $0x60] sm:$0xff]
        %v768 = vld [vmem:[%s237 + $0x68] sm:$0xff]
        %v769 = vld [vmem:[%s237 + $0x70] sm:$0xff]
        %v770 = vld [vmem:[%s237 + $0x78] sm:$0xff]
        %v787 = vunpack.c.l.b16 %v755
        %v788 = vunpack.c.h.b16 %v755
        %v789 = vunpack.c.l.b16 %v756
        %v790 = vunpack.c.h.b16 %v756
        %v791 = vunpack.c.l.b16 %v757
        %v792 = vunpack.c.h.b16 %v757
        %v793 = vunpack.c.l.b16 %v758
        %v794 = vunpack.c.h.b16 %v758
        %v795 = vunpack.c.l.b16 %v759
        %v796 = vunpack.c.h.b16 %v759
        %v797 = vunpack.c.l.b16 %v760
        %v798 = vunpack.c.h.b16 %v760
        %v799 = vunpack.c.l.b16 %v761
        %v800 = vunpack.c.h.b16 %v761
        %v801 = vunpack.c.l.b16 %v762
        %v802 = vunpack.c.h.b16 %v762
        %v803 = vunpack.c.l.b16 %v763
        %v804 = vunpack.c.h.b16 %v763
        %v805 = vunpack.c.l.b16 %v764
        %v806 = vunpack.c.h.b16 %v764
        %v807 = vunpack.c.l.b16 %v765
        %v808 = vunpack.c.h.b16 %v765
        %v809 = vunpack.c.l.b16 %v766
        %v810 = vunpack.c.h.b16 %v766
        %v811 = vunpack.c.l.b16 %v767
        %v812 = vunpack.c.h.b16 %v767
        %v813 = vunpack.c.l.b16 %v768
        %v814 = vunpack.c.h.b16 %v768
        %v815 = vunpack.c.l.b16 %v769
        %v816 = vunpack.c.h.b16 %v769
        %v817 = vunpack.c.l.b16 %v770
        %v818 = vunpack.c.h.b16 %v770
        %v819 = vpack.c.b16 %v789, %v787
        %v820 = vpack.c.b16 %v790, %v788
        %v821 = vpack.c.b16 %v793, %v791
        %v822 = vpack.c.b16 %v794, %v792
        %v823 = vpack.c.b16 %v797, %v795
        %v824 = vpack.c.b16 %v798, %v796
        %v825 = vpack.c.b16 %v801, %v799
        %v826 = vpack.c.b16 %v802, %v800
        %v827 = vpack.c.b16 %v805, %v803
        %v828 = vpack.c.b16 %v806, %v804
        %v829 = vpack.c.b16 %v809, %v807
        %v830 = vpack.c.b16 %v810, %v808
        %v831 = vpack.c.b16 %v813, %v811
        %v832 = vpack.c.b16 %v814, %v812
        %v833 = vpack.c.b16 %v817, %v815
        %v834 = vpack.c.b16 %v818, %v816
        %851 = vmatprep.subr.bf16.mxu0 %v820
        %852 = vmatpush1.bf16.msra.mxu0 %v819
        %853 = vmatprep.subr.bf16.mxu0 %v822
        %854 = vmatpush1.bf16.msra.mxu0 %v821
        %855 = vmatprep.subr.bf16.mxu0 %v824
        %856 = vmatpush1.bf16.msra.mxu0 %v823
        %857 = vmatprep.subr.bf16.mxu0 %v826
        %858 = vmatpush1.bf16.msra.mxu0 %v825
        %859 = vmatprep.subr.bf16.mxu0 %v828
        %860 = vmatpush1.bf16.msra.mxu0 %v827
        %861 = vmatprep.subr.bf16.mxu0 %v830
        %862 = vmatpush1.bf16.msra.mxu0 %v829
        %863 = vmatprep.subr.bf16.mxu0 %v832
        %864 = vmatpush1.bf16.msra.mxu0 %v831
        %865 = vmatprep.subr.bf16.mxu0 %v834
        %866 = vmatpush1.bf16.msra.mxu0 %v833
        %867 = vmatprep.subr.bf16.mxu0 0
        %868 = vmatpush1.bf16.msra.mxu0 0
        %869 = vmatprep.subr.bf16.mxu0 0
        %870 = vmatpush1.bf16.msra.mxu0 0
        %871 = vmatprep.subr.bf16.mxu0 0
        %872 = vmatpush1.bf16.msra.mxu0 0
        %873 = vmatprep.subr.bf16.mxu0 0
        %874 = vmatpush1.bf16.msra.mxu0 0
        %875 = vmatprep.subr.bf16.mxu0 0
        %876 = vmatpush1.bf16.msra.mxu0 0
        %877 = vmatprep.subr.bf16.mxu0 0
        %878 = vmatpush1.bf16.msra.mxu0 0
        %879 = vmatprep.subr.bf16.mxu0 0
        %880 = vmatpush1.bf16.msra.mxu0 0
        %881 = vmatprep.subr.bf16.mxu0 0
        %882 = vmatpush1.bf16.msra.mxu0 0
        %883 = vmatprep.mubr.bf16.mxu0 0
        %884 = vmatmul.mubr.bf16.gmra.mrb[0].mxu0 %v739
        %v885 = vpop.f32.mrb[0].mxu0
        %v886 = vadd.f32 0.0, %v885
        %v887 = vpop.f32.mrb[0].mxu0
        %v888 = vadd.f32 0.0, %v887
        %v889 = vpop.f32.mrb[0].mxu0
        %v890 = vadd.f32 0.0, %v889
        %v891 = vpop.f32.mrb[0].mxu0
        %v892 = vadd.f32 0.0, %v891
        %893 = vmatprep.mubr.bf16.mxu0 0
        %894 = vmatmul.mubr.bf16.gmra.mrb[0].mxu0 %v740
        %v895 = vpop.f32.mrb[0].mxu0
        %v896 = vadd.f32 0.0, %v895
        %v897 = vpop.f32.mrb[0].mxu0
        %v898 = vadd.f32 0.0, %v897
        %v899 = vpop.f32.mrb[0].mxu0
        %v900 = vadd.f32 0.0, %v899
        %v901 = vpop.f32.mrb[0].mxu0
        %v902 = vadd.f32 0.0, %v901
        %903 = vmatprep.mubr.bf16.mxu0 0
        %904 = vmatmul.mubr.bf16.gmra.mrb[0].mxu0 %v741
        %v905 = vpop.f32.mrb[0].mxu0
        %v906 = vadd.f32 0.0, %v905
        %v907 = vpop.f32.mrb[0].mxu0
        %v908 = vadd.f32 0.0, %v907
        %v909 = vpop.f32.mrb[0].mxu0
        %v910 = vadd.f32 0.0, %v909
        %v911 = vpop.f32.mrb[0].mxu0
        %v912 = vadd.f32 0.0, %v911
        %913 = vmatprep.mubr.bf16.mxu0 0
        %914 = vmatmul.mubr.bf16.gmra.mrb[0].mxu0 %v742
        %v915 = vpop.f32.mrb[0].mxu0
        %v916 = vadd.f32 0.0, %v915
        %v917 = vpop.f32.mrb[0].mxu0
        %v918 = vadd.f32 0.0, %v917
        %v919 = vpop.f32.mrb[0].mxu0
        %v920 = vadd.f32 0.0, %v919
        %v921 = vpop.f32.mrb[0].mxu0
        %v922 = vadd.f32 0.0, %v921
        %923 = vmatprep.mubr.bf16.mxu0 0
        %924 = vmatmul.mubr.bf16.gmra.mrb[0].mxu0 %v743
        %v925 = vpop.f32.mrb[0].mxu0
        %v926 = vadd.f32 0.0, %v925
        %v927 = vpop.f32.mrb[0].mxu0
        %v928 = vadd.f32 0.0, %v927
        %v929 = vpop.f32.mrb[0].mxu0
        %v930 = vadd.f32 0.0, %v929
        %v931 = vpop.f32.mrb[0].mxu0
        %v932 = vadd.f32 0.0, %v931
        %933 = vmatprep.mubr.bf16.mxu0 0
        %934 = vmatmul.mubr.bf16.gmra.mrb[0].mxu0 %v744
        %v935 = vpop.f32.mrb[0].mxu0
        %v936 = vadd.f32 0.0, %v935
        %v937 = vpop.f32.mrb[0].mxu0
        %v938 = vadd.f32 0.0, %v937
        %v939 = vpop.f32.mrb[0].mxu0
        %v940 = vadd.f32 0.0, %v939
        %v941 = vpop.f32.mrb[0].mxu0
        %v942 = vadd.f32 0.0, %v941
        %943 = vmatprep.mubr.bf16.mxu0 0
        %944 = vmatmul.mubr.bf16.gmra.mrb[0].mxu0 %v745
        %v945 = vpop.f32.mrb[0].mxu0
        %v946 = vadd.f32 0.0, %v945
        %v947 = vpop.f32.mrb[0].mxu0
        %v948 = vadd.f32 0.0, %v947
        %v949 = vpop.f32.mrb[0].mxu0
        %v950 = vadd.f32 0.0, %v949
        %v951 = vpop.f32.mrb[0].mxu0
        %v952 = vadd.f32 0.0, %v951
        %953 = vmatprep.mubr.bf16.mxu0 0
        %954 = vmatmul.mubr.bf16.gmra.mrb[0].mxu0 %v746
        %v955 = vpop.f32.mrb[0].mxu0
        %v956 = vadd.f32 0.0, %v955
        %v957 = vpop.f32.mrb[0].mxu0
        %v958 = vadd.f32 0.0, %v957
        %v959 = vpop.f32.mrb[0].mxu0
        %v960 = vadd.f32 0.0, %v959
        %v961 = vpop.f32.mrb[0].mxu0
        %v962 = vadd.f32 0.0, %v961
        %963 = vmatprep.mubr.bf16.mxu0 0
        %964 = vmatmul.mubr.bf16.gmra.mrb[0].mxu0 %v747
        %v965 = vpop.f32.mrb[0].mxu0
        %v966 = vadd.f32 0.0, %v965
        %v967 = vpop.f32.mrb[0].mxu0
        %v968 = vadd.f32 0.0, %v967
        %v969 = vpop.f32.mrb[0].mxu0
        %v970 = vadd.f32 0.0, %v969
        %v971 = vpop.f32.mrb[0].mxu0
        %v972 = vadd.f32 0.0, %v971
        %973 = vmatprep.mubr.bf16.mxu0 0
        %974 = vmatmul.mubr.bf16.gmra.mrb[0].mxu0 %v748
        %v975 = vpop.f32.mrb[0].mxu0
        %v976 = vadd.f32 0.0, %v975
        %v977 = vpop.f32.mrb[0].mxu0
        %v978 = vadd.f32 0.0, %v977
        %v979 = vpop.f32.mrb[0].mxu0
        %v980 = vadd.f32 0.0, %v979
        %v981 = vpop.f32.mrb[0].mxu0
        %v982 = vadd.f32 0.0, %v981
        %983 = vmatprep.mubr.bf16.mxu0 0
        %984 = vmatmul.mubr.bf16.gmra.mrb[0].mxu0 %v749
        %v985 = vpop.f32.mrb[0].mxu0
        %v986 = vadd.f32 0.0, %v985
        %v987 = vpop.f32.mrb[0].mxu0
        %v988 = vadd.f32 0.0, %v987
        %v989 = vpop.f32.mrb[0].mxu0
        %v990 = vadd.f32 0.0, %v989
        %v991 = vpop.f32.mrb[0].mxu0
        %v992 = vadd.f32 0.0, %v991
        %993 = vmatprep.mubr.bf16.mxu0 0
        %994 = vmatmul.mubr.bf16.gmra.mrb[0].mxu0 %v750
        %v995 = vpop.f32.mrb[0].mxu0
        %v996 = vadd.f32 0.0, %v995
        %v997 = vpop.f32.mrb[0].mxu0
        %v998 = vadd.f32 0.0, %v997
        %v999 = vpop.f32.mrb[0].mxu0
        %v1000 = vadd.f32 0.0, %v999
        %v1001 = vpop.f32.mrb[0].mxu0
        %v1002 = vadd.f32 0.0, %v1001
        %1003 = vmatprep.mubr.bf16.mxu0 0
        %1004 = vmatmul.mubr.bf16.gmra.mrb[0].mxu0 %v751
        %v1005 = vpop.f32.mrb[0].mxu0
        %v1006 = vadd.f32 0.0, %v1005
        %v1007 = vpop.f32.mrb[0].mxu0
        %v1008 = vadd.f32 0.0, %v1007
        %v1009 = vpop.f32.mrb[0].mxu0
        %v1010 = vadd.f32 0.0, %v1009
        %v1011 = vpop.f32.mrb[0].mxu0
        %v1012 = vadd.f32 0.0, %v1011
        %1013 = vmatprep.mubr.bf16.mxu0 0
        %1014 = vmatmul.mubr.bf16.gmra.mrb[0].mxu0 %v752
        %v1015 = vpop.f32.mrb[0].mxu0
        %v1016 = vadd.f32 0.0, %v1015
        %v1017 = vpop.f32.mrb[0].mxu0
        %v1018 = vadd.f32 0.0, %v1017
        %v1019 = vpop.f32.mrb[0].mxu0
        %v1020 = vadd.f32 0.0, %v1019
        %v1021 = vpop.f32.mrb[0].mxu0
        %v1022 = vadd.f32 0.0, %v1021
        %1023 = vmatprep.mubr.bf16.mxu0 0
        %1024 = vmatmul.mubr.bf16.gmra.mrb[0].mxu0 %v753
        %v1025 = vpop.f32.mrb[0].mxu0
        %v1026 = vadd.f32 0.0, %v1025
        %v1027 = vpop.f32.mrb[0].mxu0
        %v1028 = vadd.f32 0.0, %v1027
        %v1029 = vpop.f32.mrb[0].mxu0
        %v1030 = vadd.f32 0.0, %v1029
        %v1031 = vpop.f32.mrb[0].mxu0
        %v1032 = vadd.f32 0.0, %v1031
        %1033 = vmatprep.mubr.bf16.mxu0 0
        %1034 = vmatmul.mubr.bf16.gmra.mrb[0].mxu0 %v754
        %v1035 = vpop.f32.mrb[0].mxu0
        %v1036 = vadd.f32 0.0, %v1035
        %v1037 = vpop.f32.mrb[0].mxu0
        %v1038 = vadd.f32 0.0, %v1037
        %v1039 = vpop.f32.mrb[0].mxu0
        %v1040 = vadd.f32 0.0, %v1039
        %v1041 = vpop.f32.mrb[0].mxu0
        %v1042 = vadd.f32 0.0, %v1041
        %1043 = vdwg.mxu0
        %v1044 = vadd.f32 %v672, %v886
        %v1045 = vadd.f32 %v673, %v888
        %v1046 = vadd.f32 %v674, %v890
        %v1047 = vadd.f32 %v675, %v892
        %v1048 = vadd.f32 %v676, %v896
        %v1049 = vadd.f32 %v677, %v898
        %v1050 = vadd.f32 %v678, %v900
        %v1051 = vadd.f32 %v679, %v902
        %v1052 = vadd.f32 %v680, %v906
        %v1053 = vadd.f32 %v681, %v908
        %v1054 = vadd.f32 %v682, %v910
        %v1055 = vadd.f32 %v683, %v912
        %v1056 = vadd.f32 %v684, %v916
        %v1057 = vadd.f32 %v685, %v918
        %v1058 = vadd.f32 %v686, %v920
        %v1059 = vadd.f32 %v687, %v922
        %v1060 = vadd.f32 %v688, %v926
        %v1061 = vadd.f32 %v689, %v928
        %v1062 = vadd.f32 %v690, %v930
        %v1063 = vadd.f32 %v691, %v932
        %v1064 = vadd.f32 %v692, %v936
        %v1065 = vadd.f32 %v693, %v938
        %v1066 = vadd.f32 %v694, %v940
        %v1067 = vadd.f32 %v695, %v942
        %v1068 = vadd.f32 %v696, %v946
        %v1069 = vadd.f32 %v697, %v948
        %v1070 = vadd.f32 %v698, %v950
        %v1071 = vadd.f32 %v699, %v952
        %v1072 = vadd.f32 %v700, %v956
        %v1073 = vadd.f32 %v701, %v958
        %v1074 = vadd.f32 %v702, %v960
        %v1075 = vadd.f32 %v703, %v962
        %v1076 = vadd.f32 %v704, %v966
        %v1077 = vadd.f32 %v705, %v968
        %v1078 = vadd.f32 %v706, %v970
        %v1079 = vadd.f32 %v707, %v972
        %v1080 = vadd.f32 %v708, %v976
        %v1081 = vadd.f32 %v709, %v978
        %v1082 = vadd.f32 %v710, %v980
        %v1083 = vadd.f32 %v711, %v982
        %v1084 = vadd.f32 %v712, %v986
        %v1085 = vadd.f32 %v713, %v988
        %v1086 = vadd.f32 %v714, %v990
        %v1087 = vadd.f32 %v715, %v992
        %v1088 = vadd.f32 %v716, %v996
        %v1089 = vadd.f32 %v717, %v998
        %v1090 = vadd.f32 %v718, %v1000
        %v1091 = vadd.f32 %v719, %v1002
        %v1092 = vadd.f32 %v720, %v1006
        %v1093 = vadd.f32 %v721, %v1008
        %v1094 = vadd.f32 %v722, %v1010
        %v1095 = vadd.f32 %v723, %v1012
        %v1096 = vadd.f32 %v724, %v1016
        %v1097 = vadd.f32 %v725, %v1018
        %v1098 = vadd.f32 %v726, %v1020
        %v1099 = vadd.f32 %v727, %v1022
        %v1100 = vadd.f32 %v728, %v1026
        %v1101 = vadd.f32 %v729, %v1028
        %v1102 = vadd.f32 %v730, %v1030
        %v1103 = vadd.f32 %v731, %v1032
        %v1104 = vadd.f32 %v732, %v1036
        %v1105 = vadd.f32 %v733, %v1038
        %v1106 = vadd.f32 %v734, %v1040
        %v1107 = vadd.f32 %v735, %v1042
        %1108 = vst [vmem:[#allocation3] sm:$0xff] %v1044
        %1109 = vst [vmem:[#allocation3 + $0x8] sm:$0xff] %v1045
        %1110 = vst [vmem:[#allocation3 + $0x10] sm:$0xff] %v1046
        %1111 = vst [vmem:[#allocation3 + $0x18] sm:$0xff] %v1047
        %1112 = vst [vmem:[#allocation3 + $0x20] sm:$0xff] %v1048
        %1113 = vst [vmem:[#allocation3 + $0x28] sm:$0xff] %v1049
        %1114 = vst [vmem:[#allocation3 + $0x30] sm:$0xff] %v1050
        %1115 = vst [vmem:[#allocation3 + $0x38] sm:$0xff] %v1051
        %1116 = vst [vmem:[#allocation3 + $0x40] sm:$0xff] %v1052
        %1117 = vst [vmem:[#allocation3 + $0x48] sm:$0xff] %v1053
        %1118 = vst [vmem:[#allocation3 + $0x50] sm:$0xff] %v1054
        %1119 = vst [vmem:[#allocation3 + $0x58] sm:$0xff] %v1055
        %1120 = vst [vmem:[#allocation3 + $0x60] sm:$0xff] %v1056
        %1121 = vst [vmem:[#allocation3 + $0x68] sm:$0xff] %v1057
        %1122 = vst [vmem:[#allocation3 + $0x70] sm:$0xff] %v1058
        %1123 = vst [vmem:[#allocation3 + $0x78] sm:$0xff] %v1059
        %1124 = vst [vmem:[#allocation3 + $0x80] sm:$0xff] %v1060
        %1125 = vst [vmem:[#allocation3 + $0x88] sm:$0xff] %v1061
        %1126 = vst [vmem:[#allocation3 + $0x90] sm:$0xff] %v1062
        %1127 = vst [vmem:[#allocation3 + $0x98] sm:$0xff] %v1063
        %1128 = vst [vmem:[#allocation3 + $0xa0] sm:$0xff] %v1064
        %1129 = vst [vmem:[#allocation3 + $0xa8] sm:$0xff] %v1065
        %1130 = vst [vmem:[#allocation3 + $0xb0] sm:$0xff] %v1066
        %1131 = vst [vmem:[#allocation3 + $0xb8] sm:$0xff] %v1067
        %1132 = vst [vmem:[#allocation3 + $0xc0] sm:$0xff] %v1068
        %1133 = vst [vmem:[#allocation3 + $0xc8] sm:$0xff] %v1069
        %1134 = vst [vmem:[#allocation3 + $0xd0] sm:$0xff] %v1070
        %1135 = vst [vmem:[#allocation3 + $0xd8] sm:$0xff] %v1071
        %1136 = vst [vmem:[#allocation3 + $0xe0] sm:$0xff] %v1072
        %1137 = vst [vmem:[#allocation3 + $0xe8] sm:$0xff] %v1073
        %1138 = vst [vmem:[#allocation3 + $0xf0] sm:$0xff] %v1074
        %1139 = vst [vmem:[#allocation3 + $0xf8] sm:$0xff] %v1075
        %1140 = vst [vmem:[#allocation3 + $0x100] sm:$0xff] %v1076
        %1141 = vst [vmem:[#allocation3 + $0x108] sm:$0xff] %v1077
        %1142 = vst [vmem:[#allocation3 + $0x110] sm:$0xff] %v1078
        %1143 = vst [vmem:[#allocation3 + $0x118] sm:$0xff] %v1079
        %1144 = vst [vmem:[#allocation3 + $0x120] sm:$0xff] %v1080
        %1145 = vst [vmem:[#allocation3 + $0x128] sm:$0xff] %v1081
        %1146 = vst [vmem:[#allocation3 + $0x130] sm:$0xff] %v1082
        %1147 = vst [vmem:[#allocation3 + $0x138] sm:$0xff] %v1083
        %1148 = vst [vmem:[#allocation3 + $0x140] sm:$0xff] %v1084
        %1149 = vst [vmem:[#allocation3 + $0x148] sm:$0xff] %v1085
        %1150 = vst [vmem:[#allocation3 + $0x150] sm:$0xff] %v1086
        %1151 = vst [vmem:[#allocation3 + $0x158] sm:$0xff] %v1087
        %1152 = vst [vmem:[#allocation3 + $0x160] sm:$0xff] %v1088
        %1153 = vst [vmem:[#allocation3 + $0x168] sm:$0xff] %v1089
        %1154 = vst [vmem:[#allocation3 + $0x170] sm:$0xff] %v1090
        %1155 = vst [vmem:[#allocation3 + $0x178] sm:$0xff] %v1091
        %1156 = vst [vmem:[#allocation3 + $0x180] sm:$0xff] %v1092
        %1157 = vst [vmem:[#allocation3 + $0x188] sm:$0xff] %v1093
        %1158 = vst [vmem:[#allocation3 + $0x190] sm:$0xff] %v1094
        %1159 = vst [vmem:[#allocation3 + $0x198] sm:$0xff] %v1095
        %1160 = vst [vmem:[#allocation3 + $0x1a0] sm:$0xff] %v1096
        %1161 = vst [vmem:[#allocation3 + $0x1a8] sm:$0xff] %v1097
        %1162 = vst [vmem:[#allocation3 + $0x1b0] sm:$0xff] %v1098
        %1163 = vst [vmem:[#allocation3 + $0x1b8] sm:$0xff] %v1099
        %1164 = vst [vmem:[#allocation3 + $0x1c0] sm:$0xff] %v1100
        %1165 = vst [vmem:[#allocation3 + $0x1c8] sm:$0xff] %v1101
        %1166 = vst [vmem:[#allocation3 + $0x1d0] sm:$0xff] %v1102
        %1167 = vst [vmem:[#allocation3 + $0x1d8] sm:$0xff] %v1103
        %1168 = vst [vmem:[#allocation3 + $0x1e0] sm:$0xff] %v1104
        %1169 = vst [vmem:[#allocation3 + $0x1e8] sm:$0xff] %v1105
        %1170 = vst [vmem:[#allocation3 + $0x1f0] sm:$0xff] %v1106
        %1171 = vst [vmem:[#allocation3 + $0x1f8] sm:$0xff] %v1107
        // Predicated region
        $region53: #{qwen_decoder_layer.8} parent=31 // pred_check
          %p1172 = pneg %p272
        $region54: #{qwen_decoder_layer.8} parent=31 // pred_check_branch
          %1174 = sbr.rel (%p1172) target = $region56
        $region55: #{qwen_decoder_layer.8} parent=31 // pred_region
          %v1175 = vld [vmem:[#allocation3] sm:$0xff]
          %v1176 = vld [vmem:[#allocation3 + $0x8] sm:$0xff]
          %v1177 = vld [vmem:[#allocation3 + $0x10] sm:$0xff]
          %v1178 = vld [vmem:[#allocation3 + $0x18] sm:$0xff]
          %v1179 = vld [vmem:[#allocation3 + $0x20] sm:$0xff]
          %v1180 = vld [vmem:[#allocation3 + $0x28] sm:$0xff]
          %v1181 = vld [vmem:[#allocation3 + $0x30] sm:$0xff]
          %v1182 = vld [vmem:[#allocation3 + $0x38] sm:$0xff]
          %v1183 = vld [vmem:[#allocation3 + $0x40] sm:$0xff]
          %v1184 = vld [vmem:[#allocation3 + $0x48] sm:$0xff]
          %v1185 = vld [vmem:[#allocation3 + $0x50] sm:$0xff]
          %v1186 = vld [vmem:[#allocation3 + $0x58] sm:$0xff]
          %v1187 = vld [vmem:[#allocation3 + $0x60] sm:$0xff]
          %v1188 = vld [vmem:[#allocation3 + $0x68] sm:$0xff]
          %v1189 = vld [vmem:[#allocation3 + $0x70] sm:$0xff]
          %v1190 = vld [vmem:[#allocation3 + $0x78] sm:$0xff]
          %v1191 = vld [vmem:[#allocation3 + $0x80] sm:$0xff]
          %v1192 = vld [vmem:[#allocation3 + $0x88] sm:$0xff]
          %v1193 = vld [vmem:[#allocation3 + $0x90] sm:$0xff]
          %v1194 = vld [vmem:[#allocation3 + $0x98] sm:$0xff]
          %v1195 = vld [vmem:[#allocation3 + $0xa0] sm:$0xff]
          %v1196 = vld [vmem:[#allocation3 + $0xa8] sm:$0xff]
          %v1197 = vld [vmem:[#allocation3 + $0xb0] sm:$0xff]
          %v1198 = vld [vmem:[#allocation3 + $0xb8] sm:$0xff]
          %v1199 = vld [vmem:[#allocation3 + $0xc0] sm:$0xff]
          %v1200 = vld [vmem:[#allocation3 + $0xc8] sm:$0xff]
          %v1201 = vld [vmem:[#allocation3 + $0xd0] sm:$0xff]
          %v1202 = vld [vmem:[#allocation3 + $0xd8] sm:$0xff]
          %v1203 = vld [vmem:[#allocation3 + $0xe0] sm:$0xff]
          %v1204 = vld [vmem:[#allocation3 + $0xe8] sm:$0xff]
          %v1205 = vld [vmem:[#allocation3 + $0xf0] sm:$0xff]
          %v1206 = vld [vmem:[#allocation3 + $0xf8] sm:$0xff]
          %v1207 = vld [vmem:[#allocation3 + $0x100] sm:$0xff]
          %v1208 = vld [vmem:[#allocation3 + $0x108] sm:$0xff]
          %v1209 = vld [vmem:[#allocation3 + $0x110] sm:$0xff]
          %v1210 = vld [vmem:[#allocation3 + $0x118] sm:$0xff]
          %v1211 = vld [vmem:[#allocation3 + $0x120] sm:$0xff]
          %v1212 = vld [vmem:[#allocation3 + $0x128] sm:$0xff]
          %v1213 = vld [vmem:[#allocation3 + $0x130] sm:$0xff]
          %v1214 = vld [vmem:[#allocation3 + $0x138] sm:$0xff]
          %v1215 = vld [vmem:[#allocation3 + $0x140] sm:$0xff]
          %v1216 = vld [vmem:[#allocation3 + $0x148] sm:$0xff]
          %v1217 = vld [vmem:[#allocation3 + $0x150] sm:$0xff]
          %v1218 = vld [vmem:[#allocation3 + $0x158] sm:$0xff]
          %v1219 = vld [vmem:[#allocation3 + $0x160] sm:$0xff]
          %v1220 = vld [vmem:[#allocation3 + $0x168] sm:$0xff]
          %v1221 = vld [vmem:[#allocation3 + $0x170] sm:$0xff]
          %v1222 = vld [vmem:[#allocation3 + $0x178] sm:$0xff]
          %v1223 = vld [vmem:[#allocation3 + $0x180] sm:$0xff]
          %v1224 = vld [vmem:[#allocation3 + $0x188] sm:$0xff]
          %v1225 = vld [vmem:[#allocation3 + $0x190] sm:$0xff]
          %v1226 = vld [vmem:[#allocation3 + $0x198] sm:$0xff]
          %v1227 = vld [vmem:[#allocation3 + $0x1a0] sm:$0xff]
          %v1228 = vld [vmem:[#allocation3 + $0x1a8] sm:$0xff]
          %v1229 = vld [vmem:[#allocation3 + $0x1b0] sm:$0xff]
          %v1230 = vld [vmem:[#allocation3 + $0x1b8] sm:$0xff]
          %v1231 = vld [vmem:[#allocation3 + $0x1c0] sm:$0xff]
          %v1232 = vld [vmem:[#allocation3 + $0x1c8] sm:$0xff]
          %v1233 = vld [vmem:[#allocation3 + $0x1d0] sm:$0xff]
          %v1234 = vld [vmem:[#allocation3 + $0x1d8] sm:$0xff]
          %v1235 = vld [vmem:[#allocation3 + $0x1e0] sm:$0xff]
          %v1236 = vld [vmem:[#allocation3 + $0x1e8] sm:$0xff]
          %v1237 = vld [vmem:[#allocation3 + $0x1f0] sm:$0xff]
          %v1238 = vld [vmem:[#allocation3 + $0x1f8] sm:$0xff]
          %v1239 = vpack.c.bf16 %v1177, %v1175
          %v1240 = vpack.c.bf16 %v1178, %v1176
          %v1241 = vpack.c.bf16 %v1181, %v1179
          %v1242 = vpack.c.bf16 %v1182, %v1180
          %v1243 = vpack.c.bf16 %v1185, %v1183
          %v1244 = vpack.c.bf16 %v1186, %v1184
          %v1245 = vpack.c.bf16 %v1189, %v1187
          %v1246 = vpack.c.bf16 %v1190, %v1188
          %v1247 = vpack.c.bf16 %v1193, %v1191
          %v1248 = vpack.c.bf16 %v1194, %v1192
          %v1249 = vpack.c.bf16 %v1197, %v1195
          %v1250 = vpack.c.bf16 %v1198, %v1196
          %v1251 = vpack.c.bf16 %v1201, %v1199
          %v1252 = vpack.c.bf16 %v1202, %v1200
          %v1253 = vpack.c.bf16 %v1205, %v1203
          %v1254 = vpack.c.bf16 %v1206, %v1204
          %v1255 = vpack.c.bf16 %v1209, %v1207
          %v1256 = vpack.c.bf16 %v1210, %v1208
          %v1257 = vpack.c.bf16 %v1213, %v1211
          %v1258 = vpack.c.bf16 %v1214, %v1212
          %v1259 = vpack.c.bf16 %v1217, %v1215
          %v1260 = vpack.c.bf16 %v1218, %v1216
          %v1261 = vpack.c.bf16 %v1221, %v1219
          %v1262 = vpack.c.bf16 %v1222, %v1220
          %v1263 = vpack.c.bf16 %v1225, %v1223
          %v1264 = vpack.c.bf16 %v1226, %v1224
          %v1265 = vpack.c.bf16 %v1229, %v1227
          %v1266 = vpack.c.bf16 %v1230, %v1228
          %v1267 = vpack.c.bf16 %v1233, %v1231
          %v1268 = vpack.c.bf16 %v1234, %v1232
          %v1269 = vpack.c.bf16 %v1237, %v1235
          %v1270 = vpack.c.bf16 %v1238, %v1236
          %v1303 = vunpack.c.l.b16 %v1239
          %v1304 = vunpack.c.l.b16 %v1240
          %v1305 = vunpack.c.h.b16 %v1239
          %v1306 = vunpack.c.h.b16 %v1240
          %v1307 = vunpack.c.l.b16 %v1241
          %v1308 = vunpack.c.l.b16 %v1242
          %v1309 = vunpack.c.h.b16 %v1241
          %v1310 = vunpack.c.h.b16 %v1242
          %v1311 = vunpack.c.l.b16 %v1243
          %v1312 = vunpack.c.l.b16 %v1244
          %v1313 = vunpack.c.h.b16 %v1243
          %v1314 = vunpack.c.h.b16 %v1244
          %v1315 = vunpack.c.l.b16 %v1245
          %v1316 = vunpack.c.l.b16 %v1246
          %v1317 = vunpack.c.h.b16 %v1245
          %v1318 = vunpack.c.h.b16 %v1246
          %v1319 = vunpack.c.l.b16 %v1247
          %v1320 = vunpack.c.l.b16 %v1248
          %v1321 = vunpack.c.h.b16 %v1247
          %v1322 = vunpack.c.h.b16 %v1248
          %v1323 = vunpack.c.l.b16 %v1249
          %v1324 = vunpack.c.l.b16 %v1250
          %v1325 = vunpack.c.h.b16 %v1249
          %v1326 = vunpack.c.h.b16 %v1250
          %v1327 = vunpack.c.l.b16 %v1251
          %v1328 = vunpack.c.l.b16 %v1252
          %v1329 = vunpack.c.h.b16 %v1251
          %v1330 = vunpack.c.h.b16 %v1252
          %v1331 = vunpack.c.l.b16 %v1253
          %v1332 = vunpack.c.l.b16 %v1254
          %v1333 = vunpack.c.h.b16 %v1253
          %v1334 = vunpack.c.h.b16 %v1254
          %v1335 = vunpack.c.l.b16 %v1255
          %v1336 = vunpack.c.l.b16 %v1256
          %v1337 = vunpack.c.h.b16 %v1255
          %v1338 = vunpack.c.h.b16 %v1256
          %v1339 = vunpack.c.l.b16 %v1257
          %v1340 = vunpack.c.l.b16 %v1258
          %v1341 = vunpack.c.h.b16 %v1257
          %v1342 = vunpack.c.h.b16 %v1258
          %v1343 = vunpack.c.l.b16 %v1259
          %v1344 = vunpack.c.l.b16 %v1260
          %v1345 = vunpack.c.h.b16 %v1259
          %v1346 = vunpack.c.h.b16 %v1260
          %v1347 = vunpack.c.l.b16 %v1261
          %v1348 = vunpack.c.l.b16 %v1262
          %v1349 = vunpack.c.h.b16 %v1261
          %v1350 = vunpack.c.h.b16 %v1262
          %v1351 = vunpack.c.l.b16 %v1263
          %v1352 = vunpack.c.l.b16 %v1264
          %v1353 = vunpack.c.h.b16 %v1263
          %v1354 = vunpack.c.h.b16 %v1264
          %v1355 = vunpack.c.l.b16 %v1265
          %v1356 = vunpack.c.l.b16 %v1266
          %v1357 = vunpack.c.h.b16 %v1265
          %v1358 = vunpack.c.h.b16 %v1266
          %v1359 = vunpack.c.l.b16 %v1267
          %v1360 = vunpack.c.l.b16 %v1268
          %v1361 = vunpack.c.h.b16 %v1267
          %v1362 = vunpack.c.h.b16 %v1268
          %v1363 = vunpack.c.l.b16 %v1269
          %v1364 = vunpack.c.l.b16 %v1270
          %v1365 = vunpack.c.h.b16 %v1269
          %v1366 = vunpack.c.h.b16 %v1270
          %v1367 = vpack.c.b16 %v1304, %v1303
          %v1368 = vpack.c.b16 %v1306, %v1305
          %v1369 = vpack.c.b16 %v1308, %v1307
          %v1370 = vpack.c.b16 %v1310, %v1309
          %v1371 = vpack.c.b16 %v1312, %v1311
          %v1372 = vpack.c.b16 %v1314, %v1313
          %v1373 = vpack.c.b16 %v1316, %v1315
          %v1374 = vpack.c.b16 %v1318, %v1317
          %v1375 = vpack.c.b16 %v1320, %v1319
          %v1376 = vpack.c.b16 %v1322, %v1321
          %v1377 = vpack.c.b16 %v1324, %v1323
          %v1378 = vpack.c.b16 %v1326, %v1325
          %v1379 = vpack.c.b16 %v1328, %v1327
          %v1380 = vpack.c.b16 %v1330, %v1329
          %v1381 = vpack.c.b16 %v1332, %v1331
          %v1382 = vpack.c.b16 %v1334, %v1333
          %v1383 = vpack.c.b16 %v1336, %v1335
          %v1384 = vpack.c.b16 %v1338, %v1337
          %v1385 = vpack.c.b16 %v1340, %v1339
          %v1386 = vpack.c.b16 %v1342, %v1341
          %v1387 = vpack.c.b16 %v1344, %v1343
          %v1388 = vpack.c.b16 %v1346, %v1345
          %v1389 = vpack.c.b16 %v1348, %v1347
          %v1390 = vpack.c.b16 %v1350, %v1349
          %v1391 = vpack.c.b16 %v1352, %v1351
          %v1392 = vpack.c.b16 %v1354, %v1353
          %v1393 = vpack.c.b16 %v1356, %v1355
          %v1394 = vpack.c.b16 %v1358, %v1357
          %v1395 = vpack.c.b16 %v1360, %v1359
          %v1396 = vpack.c.b16 %v1362, %v1361
          %v1397 = vpack.c.b16 %v1364, %v1363
          %v1398 = vpack.c.b16 %v1366, %v1365
          %1431 = vst [vmem:[%s264] sm:$0xff] %v1367
          %1432 = vst [vmem:[%s264 + $0x8] sm:$0xff] %v1368
          %1433 = vst [vmem:[%s264 + $0x10] sm:$0xff] %v1369
          %1434 = vst [vmem:[%s264 + $0x18] sm:$0xff] %v1370
          %1435 = vst [vmem:[%s264 + $0x20] sm:$0xff] %v1371
          %1436 = vst [vmem:[%s264 + $0x28] sm:$0xff] %v1372
          %1437 = vst [vmem:[%s264 + $0x30] sm:$0xff] %v1373
          %1438 = vst [vmem:[%s264 + $0x38] sm:$0xff] %v1374
          %1439 = vst [vmem:[%s264 + $0x40] sm:$0xff] %v1375
          %1440 = vst [vmem:[%s264 + $0x48] sm:$0xff] %v1376
          %1441 = vst [vmem:[%s264 + $0x50] sm:$0xff] %v1377
          %1442 = vst [vmem:[%s264 + $0x58] sm:$0xff] %v1378
          %1443 = vst [vmem:[%s264 + $0x60] sm:$0xff] %v1379
          %1444 = vst [vmem:[%s264 + $0x68] sm:$0xff] %v1380
          %1445 = vst [vmem:[%s264 + $0x70] sm:$0xff] %v1381
          %1446 = vst [vmem:[%s264 + $0x78] sm:$0xff] %v1382
          %1447 = vst [vmem:[%s264 + $0x80] sm:$0xff] %v1383
          %1448 = vst [vmem:[%s264 + $0x88] sm:$0xff] %v1384
          %1449 = vst [vmem:[%s264 + $0x90] sm:$0xff] %v1385
          %1450 = vst [vmem:[%s264 + $0x98] sm:$0xff] %v1386
          %1451 = vst [vmem:[%s264 + $0xa0] sm:$0xff] %v1387
          %1452 = vst [vmem:[%s264 + $0xa8] sm:$0xff] %v1388
          %1453 = vst [vmem:[%s264 + $0xb0] sm:$0xff] %v1389
          %1454 = vst [vmem:[%s264 + $0xb8] sm:$0xff] %v1390
          %1455 = vst [vmem:[%s264 + $0xc0] sm:$0xff] %v1391
          %1456 = vst [vmem:[%s264 + $0xc8] sm:$0xff] %v1392
          %1457 = vst [vmem:[%s264 + $0xd0] sm:$0xff] %v1393
          %1458 = vst [vmem:[%s264 + $0xd8] sm:$0xff] %v1394
          %1459 = vst [vmem:[%s264 + $0xe0] sm:$0xff] %v1395
          %1460 = vst [vmem:[%s264 + $0xe8] sm:$0xff] %v1396
          %1461 = vst [vmem:[%s264 + $0xf0] sm:$0xff] %v1397
          %1462 = vst [vmem:[%s264 + $0xf8] sm:$0xff] %v1398
        $region56: #{qwen_decoder_layer.8} parent=31 // pred_fallthru
          _
        %s1463 = sand.u32 %s125, 1
        %s1464 = scalar_lea.sflag [#allocation6], %s1463
        %s1465 = sand.u32 %s125, 1
        %s1466 = smul.addr %s1465, 256
        %s1467 = scalar_lea.vmem [#allocation10], %s1466
        // Predicated region
        $region57: #{qwen_decoder_layer.8} parent=31 // pred_check
          %p1468 = pneg %p135
        $region58: #{qwen_decoder_layer.8} parent=31 // pred_check_branch
          %1470 = sbr.rel (%p1468) target = $region60
        $region59: #{qwen_decoder_layer.8} parent=31 // pred_region
          %s1471 = smul.u32 32, %s26
          %s1472 = smul.u32 2, %s27
          %s1474 = ssub.s32 4096, 4096
          %1475 = vsyncadd %s1464, %s1474
          %s1476 = smul.addr %s1471, 4
          %s1477 = sadd.s32 %s1472, %s1476
          %s1478 = smul.addr %s1477, 64
          %s1479 = scalar_lea.hbm %s3, %s1478
          %s1480 = sshll.u32 %s1467, 4
          %s1481 = int_to_ptr.vmem [resolvable:$true] %s1480
          %1486 = dma.vmem_to_hbm [thread:$0]  %s1481, 4096, %s1479, %s1464, 128, 256, 8
        $region60: #{qwen_decoder_layer.8} parent=31 // pred_fallthru
          _
      $region32: #{qwen_decoder_layer.8} parent=5 // pred_fallthru
        _
      %p1487 = scmp.le.s32.totalorder 2, %s16
      // Predicated region
      $region61: #{qwen_decoder_layer.8} parent=5 // pred_check
        %p1488 = pneg %p1487
      $region62: #{qwen_decoder_layer.8} parent=5 // pred_check_branch
        %1490 = sbr.rel (%p1488) target = $region64
      $region63: #{qwen_decoder_layer.8} parent=5 // pred_region
        %s1491 = ssub.s32 %s16, 2
        // Predicated region
        $region65: #{qwen_decoder_layer.8} parent=63 // pred_check
          %p1492 = pneg %p141
        $region66: #{qwen_decoder_layer.8} parent=63 // pred_check_branch
          %1494 = sbr.rel (%p1492) target = $region68
        $region67: #{qwen_decoder_layer.8} parent=63 // pred_region
          %s1495 = sand.u32 %s126, 1
          %s1496 = scalar_lea.sflag [#allocation6], %s1495
          %s1497 = sand.u32 %s126, 1
          %s1498 = smul.addr %s1497, 256
          %s1499 = scalar_lea.vmem [#allocation10], %s1498
          %1500 = dma.done %s1496, 4096
        $region68: #{qwen_decoder_layer.8} parent=63 // pred_fallthru
          _
      $region64: #{qwen_decoder_layer.8} parent=5 // pred_fallthru
        _
    $region6: #{qwen_decoder_layer.8} parent=1 // loop_footer
      %s20 = sadd.s32 1, %s16
    $region7: #{qwen_decoder_layer.8} parent=1 // loop_footer_branch
      %15 = sbr.rel target = $region3
    $region8: #{qwen_decoder_layer.8} parent=1 // loop_exit
      _
    %1501 = vsyncpa [#allocation5], 1
    %s1502 = scalar_lea.sflag [#allocation5], 1
    %1503 = vsyncpa %s1502, 1
    %1504 = vsyncpa [#allocation8], 1
    %1505 = vsyncpa [#allocation6], 1
    %s1506 = scalar_lea.sflag [#allocation6], 1
    %1507 = vsyncpa %s1506, 1

// kernel: qwen_decoder_layer.6
$region0: #{qwen_decoder_layer.6}
  #allocation0 [shape = 'u32[]', space=smem, size = 0x4, offset = 0x4, fixed_abs, tag = 'smem constant byte address 0x4 - core index']
  #allocation1 [shape = 'u32[144,128]{1,0:T(1,128)}', space=vmem, size = 0x12000, scoped, tag = 'internal scratch']
  #allocation2 [shape = 'bf16[256,64]{1,0:T(16,128)(2,1)}', space=vmem, size = 0x10000, scoped, tag = 'scratch operand']
  #allocation3 [shape = 'f32[256,1]{1,0:T(8,128)}', space=vmem, size = 0x20000, scoped, tag = 'scratch operand']
  #allocation4 [shape = 'f32[256,1]{1,0:T(8,128)}', space=vmem, size = 0x20000, scoped, tag = 'scratch operand']
  #allocation5 [shape = 'f32[256,64]{1,0:T(8,128)}', space=vmem, size = 0x20000, scoped, tag = 'scratch operand']
  %s0 = inlined_call_operand.hbm [shape: bf16[2,256,256], index: 0, kind: input, shape index: {}, may-alias: {0,1}]
  %s1 = inlined_call_operand.hbm [shape: bf16[2,256,256], index: 1, kind: input, shape index: {}, may-alias: {0,1}]
  %s2 = inlined_call_operand.hbm [shape: bf16[2,256,128], index: 2, kind: output, shape index: {}]
  %s3 = sld [smem:[#allocation0]]
  $region61: #{qwen_decoder_layer.6} parent=0
    _
  %s5 = ssub.s32 1, %s3
  %s6 = scalar_select 0, %s5, %s3
  $region1: #{qwen_decoder_layer.6} parent=0
    #allocation6 [shape = 'u8[65536]{0}', space=vmem, size = 0x10000, scoped, tag = 'input window, operand 0']
    #allocation7 [shape = 's32[2]{0}', space=sflag, size = 0x8, scoped, tag = 'scoped memory for qwen_decoder_layer.6']
    #allocation8 [shape = 's32[2]{0}', space=sflag, size = 0x8, scoped, tag = 'scoped memory for qwen_decoder_layer.6']
    #allocation9 [shape = 'u8[65536]{0}', space=vmem, size = 0x10000, scoped, tag = 'input window, operand 1']
    #allocation10 [shape = 's32[2]{0}', space=sflag, size = 0x8, scoped, tag = 'scoped memory for qwen_decoder_layer.6']
    #allocation11 [shape = 'u8[65536]{0}', space=vmem, size = 0x10000, scoped, tag = 'output window, operand 0']
    %7 = vsyncpa [#allocation7], 0
    %s8 = scalar_lea.sflag [#allocation7], 1
    %9 = vsyncpa %s8, 0
    %10 = vsyncpa [#allocation10], 0
    %s11 = scalar_lea.sflag [#allocation10], 1
    %12 = vsyncpa %s11, 0
    %13 = vsyncpa [#allocation8], 0
    %s14 = scalar_lea.sflag [#allocation8], 1
    %15 = vsyncpa %s14, 0
    loop: start=0, step=1, limit=10
    $region2: #{qwen_decoder_layer.6} parent=1 // loop_pre_header
      _
    $region3: #{qwen_decoder_layer.6} parent=1 // loop_header
      %s17 = sphi 0, %s21
      %p18 = scmp.ge.s32.totalorder %s17, 10
      %s24 = sphi 0, %s50
      %s25 = sphi 0, %s46
      %s26 = sphi 0, %s42
      %s27 = sphi 0, %s38
      %s28 = sphi 0, %s24
      %s29 = sphi 0, %s25
      %s30 = sphi 0, %s26
      %s31 = sphi 0, %s27
      %s32 = sphi 0, %s28
      %s33 = sphi 0, %s29
      %s34 = sphi 0, %s30
      %s35 = sphi 0, %s31
      %s57 = sphi 0, %s59
      %s60 = sphi 0, %s57
      %s61 = sphi 0, %s60
      %s77 = sphi 0, %s61
      %s89 = sphi 0, %s91
      %s92 = sphi 0, %s89
      %s93 = sphi 0, %s92
      %s109 = sphi 0, %s93
      %s119 = sphi 0, %s121
      %s122 = sphi 0, %s119
      %s123 = sphi 0, %s122
      %s139 = sphi 0, %s123
    $region4: #{qwen_decoder_layer.6} parent=1 // loop_header_branch
      %20 = sbr.rel (%p18) target = $region8
    $region5: #{qwen_decoder_layer.6} parent=1 // loop_body
      %s22 = ssub.s32 %s17, 1
      %s23 = ssub.s32 %s17, 2
      %s36 = sadd.s32 1, %s27
      %p37 = scmp.ge.s32.totalorder %s36, 2
      %s38 = scalar_select %p37, 0, %s36
      %s39 = sadd.s32 1, %s26
      %s40 = scalar_select %p37, %s39, %s26
      %p41 = scmp.ge.s32.totalorder %s40, 2
      %s42 = scalar_select %p41, 0, %s40
      %s43 = sadd.s32 1, %s25
      %s44 = scalar_select %p41, %s43, %s25
      %p45 = scmp.ge.s32.totalorder %s44, 1
      %s46 = scalar_select %p45, 0, %s44
      %s47 = sadd.s32 1, %s24
      %s48 = scalar_select %p45, %s47, %s24
      %p49 = scmp.ge.s32.totalorder %s48, 2
      %s50 = scalar_select %p49, 0, %s48
      %s51 = ssub.s32 %s24, %s50
      %s52 = ssub.s32 %s26, %s42
      %s53 = sor.u32 %s51, %s52
      %s54 = ssub.s32 %s25, %s46
      %s55 = sor.u32 %s53, %s54
      %p56 = scmp.eq.s32.totalorder %s55, 0
      %s58 = sadd.s32 %s57, 1
      %s59 = scalar_select %p56, %s57, %s58
      %p62 = pneg %p56
      %p63 = scmp.eq.s32.totalorder %s17, 7
      %p64 = por %p62, %p63
      %p65 = scmp.ne.s32.totalorder %s57, %s60
      %p66 = scmp.eq.s32.totalorder %s17, 0
      %p67 = por %p65, %p66
      %p68 = scmp.ne.s32.totalorder %s57, %s60
      %p69 = scmp.eq.s32.totalorder %s22, 7
      %p70 = por %p68, %p69
      %p71 = scmp.ne.s32.totalorder %s60, %s61
      %p72 = scmp.eq.s32.totalorder %s22, 0
      %p73 = por %p71, %p72
      %p74 = scmp.ne.s32.totalorder %s60, %s61
      %p75 = scmp.eq.s32.totalorder %s23, 7
      %p76 = por %p74, %p75
      %p78 = scmp.ne.s32.totalorder %s61, %s77
      %p79 = scmp.eq.s32.totalorder %s23, 0
      %p80 = por %p78, %p79
      %s81 = sadd.s32 %s25, 1
      %s82 = sadd.s32 %s46, 1
      %s83 = ssub.s32 %s24, %s50
      %s84 = ssub.s32 %s27, %s38
      %s85 = sor.u32 %s83, %s84
      %s86 = ssub.s32 %s81, %s82
      %s87 = sor.u32 %s85, %s86
      %p88 = scmp.eq.s32.totalorder %s87, 0
      %s90 = sadd.s32 %s89, 1
      %s91 = scalar_select %p88, %s89, %s90
      %p94 = pneg %p88
      %p95 = scmp.eq.s32.totalorder %s17, 7
      %p96 = por %p94, %p95
      %p97 = scmp.ne.s32.totalorder %s89, %s92
      %p98 = scmp.eq.s32.totalorder %s17, 0
      %p99 = por %p97, %p98
      %p100 = scmp.ne.s32.totalorder %s89, %s92
      %p101 = scmp.eq.s32.totalorder %s22, 7
      %p102 = por %p100, %p101
      %p103 = scmp.ne.s32.totalorder %s92, %s93
      %p104 = scmp.eq.s32.totalorder %s22, 0
      %p105 = por %p103, %p104
      %p106 = scmp.ne.s32.totalorder %s92, %s93
      %p107 = scmp.eq.s32.totalorder %s23, 7
      %p108 = por %p106, %p107
      %p110 = scmp.ne.s32.totalorder %s93, %s109
      %p111 = scmp.eq.s32.totalorder %s23, 0
      %p112 = por %p110, %p111
      %s113 = ssub.s32 %s24, %s50
      %s114 = ssub.s32 %s26, %s42
      %s115 = sor.u32 %s113, %s114
      %s116 = ssub.s32 %s25, %s46
      %s117 = sor.u32 %s115, %s116
      %p118 = scmp.eq.s32.totalorder %s117, 0
      %s120 = sadd.s32 %s119, 1
      %s121 = scalar_select %p118, %s119, %s120
      %p124 = pneg %p118
      %p125 = scmp.eq.s32.totalorder %s17, 7
      %p126 = por %p124, %p125
      %p127 = scmp.ne.s32.totalorder %s119, %s122
      %p128 = scmp.eq.s32.totalorder %s17, 0
      %p129 = por %p127, %p128
      %p130 = scmp.ne.s32.totalorder %s119, %s122
      %p131 = scmp.eq.s32.totalorder %s22, 7
      %p132 = por %p130, %p131
      %p133 = scmp.ne.s32.totalorder %s122, %s123
      %p134 = scmp.eq.s32.totalorder %s22, 0
      %p135 = por %p133, %p134
      %p136 = scmp.ne.s32.totalorder %s122, %s123
      %p137 = scmp.eq.s32.totalorder %s23, 7
      %p138 = por %p136, %p137
      %p140 = scmp.ne.s32.totalorder %s123, %s139
      %p141 = scmp.eq.s32.totalorder %s23, 0
      %p142 = por %p140, %p141
      %p143 = scmp.le.s32.totalorder 1, %s17
      %p144 = scmp.lt.s32.totalorder %s17, 9
      %p145 = pnand %p143, %p144
      %p146 = pneg %p145
      // Predicated region
      $region9: #{qwen_decoder_layer.6} parent=5 // pred_check
        _
      $region10: #{qwen_decoder_layer.6} parent=5 // pred_check_branch
        %148 = sbr.rel (%p145) target = $region12
      $region11: #{qwen_decoder_layer.6} parent=5 // pred_region
        %s149 = ssub.s32 %s17, 1
      $region12: #{qwen_decoder_layer.6} parent=5 // pred_fallthru
        _
      %p150 = scmp.lt.s32.totalorder %s17, 8
      // Predicated region
      $region13: #{qwen_decoder_layer.6} parent=5 // pred_check
        %p151 = pneg %p150
      $region14: #{qwen_decoder_layer.6} parent=5 // pred_check_branch
        %153 = sbr.rel (%p151) target = $region16
      $region15: #{qwen_decoder_layer.6} parent=5 // pred_region
        // Predicated region
        $region17: #{qwen_decoder_layer.6} parent=15 // pred_check
          %p154 = pneg %p67
        $region18: #{qwen_decoder_layer.6} parent=15 // pred_check_branch
          %156 = sbr.rel (%p154) target = $region20
        $region19: #{qwen_decoder_layer.6} parent=15 // pred_region
          %s157 = sand.u32 %s57, 1
          %s158 = scalar_lea.sflag [#allocation7], %s157
          %s159 = sand.u32 %s57, 1
          %s160 = smul.addr %s159, 64
          %s161 = scalar_lea.vmem [#allocation6], %s160
          %s162 = smul.u32 16, %s26
          %s164 = ssub.s32 1024, 1024
          %165 = vsyncadd %s158, %s164
          %s166 = smul.addr %s162, 2
          %s167 = sadd.s32 %s25, %s166
          %s168 = smul.addr %s24, 64
          %s169 = sadd.s32 %s167, %s168
          %s170 = smul.addr %s169, 64
          %s171 = scalar_lea.hbm %s0, %s170
          %s172 = sshll.u32 %s161, 4
          %s173 = int_to_ptr.vmem [resolvable:$true] %s172
          %178 = dma.hbm_to_vmem [thread:$0]  %s171, 1024, %s173, %s158, 128, 64, 4
        $region20: #{qwen_decoder_layer.6} parent=15 // pred_fallthru
          _
        // Predicated region
        $region21: #{qwen_decoder_layer.6} parent=15 // pred_check
          %p179 = pneg %p99
        $region22: #{qwen_decoder_layer.6} parent=15 // pred_check_branch
          %181 = sbr.rel (%p179) target = $region24
        $region23: #{qwen_decoder_layer.6} parent=15 // pred_region
          %s182 = sand.u32 %s89, 1
          %s183 = scalar_lea.sflag [#allocation10], %s182
          %s184 = sand.u32 %s89, 1
          %s185 = smul.addr %s184, 64
          %s186 = scalar_lea.vmem [#allocation9], %s185
          %s187 = sadd.s32 %s25, 1
          %s188 = smul.u32 16, %s27
          %s190 = ssub.s32 1024, 1024
          %191 = vsyncadd %s183, %s190
          %s192 = smul.addr %s188, 2
          %s193 = sadd.s32 %s187, %s192
          %s194 = smul.addr %s24, 64
          %s195 = sadd.s32 %s193, %s194
          %s196 = smul.addr %s195, 64
          %s197 = scalar_lea.hbm %s1, %s196
          %s198 = sshll.u32 %s186, 4
          %s199 = int_to_ptr.vmem [resolvable:$true] %s198
          %204 = dma.hbm_to_vmem [thread:$0]  %s197, 1024, %s199, %s183, 128, 64, 4
        $region24: #{qwen_decoder_layer.6} parent=15 // pred_fallthru
          _
      $region16: #{qwen_decoder_layer.6} parent=5 // pred_fallthru
        _
      %p205 = scmp.le.s32.totalorder 1, %s17
      %p206 = scmp.lt.s32.totalorder %s17, 9
      %p207 = pnand %p205, %p206
      %p208 = pneg %p207
      // Predicated region
      $region25: #{qwen_decoder_layer.6} parent=5 // pred_check
        _
      $region26: #{qwen_decoder_layer.6} parent=5 // pred_check_branch
        %210 = sbr.rel (%p207) target = $region28
      $region27: #{qwen_decoder_layer.6} parent=5 // pred_region
        %s211 = ssub.s32 %s17, 1
        %s212 = sand.u32 %s60, 1
        %s213 = scalar_lea.sflag [#allocation7], %s212
        %s214 = sand.u32 %s60, 1
        %s215 = smul.addr %s214, 64
        %s216 = scalar_lea.vmem [#allocation6], %s215
        // Predicated region
        $region29: #{qwen_decoder_layer.6} parent=27 // pred_check
          %p217 = pneg %p73
        $region30: #{qwen_decoder_layer.6} parent=27 // pred_check_branch
          %219 = sbr.rel (%p217) target = $region32
        $region31: #{qwen_decoder_layer.6} parent=27 // pred_region
          %220 = dma.done %s213, 1024
        $region32: #{qwen_decoder_layer.6} parent=27 // pred_fallthru
          _
        %s221 = sand.u32 %s92, 1
        %s222 = scalar_lea.sflag [#allocation10], %s221
        %s223 = sand.u32 %s92, 1
        %s224 = smul.addr %s223, 64
        %s225 = scalar_lea.vmem [#allocation9], %s224
        // Predicated region
        $region33: #{qwen_decoder_layer.6} parent=27 // pred_check
          %p226 = pneg %p105
        $region34: #{qwen_decoder_layer.6} parent=27 // pred_check_branch
          %228 = sbr.rel (%p226) target = $region36
        $region35: #{qwen_decoder_layer.6} parent=27 // pred_region
          %229 = dma.done %s222, 1024
        $region36: #{qwen_decoder_layer.6} parent=27 // pred_fallthru
          _
        %s230 = sand.u32 %s60, 1
        %s231 = scalar_lea.sflag [#allocation7], %s230
        %s232 = sand.u32 %s60, 1
        %s233 = smul.addr %s232, 64
        %s234 = scalar_lea.vmem [#allocation6], %s233
        %p235 = pneg %p73
        %p236 = pneg %p70
        %s237 = sand.u32 %s92, 1
        %s238 = scalar_lea.sflag [#allocation10], %s237
        %s239 = sand.u32 %s92, 1
        %s240 = smul.addr %s239, 64
        %s241 = scalar_lea.vmem [#allocation9], %s240
        %p242 = pneg %p105
        %p243 = pneg %p102
        %p244 = pneg %p135
        %p245 = pneg %p132
        %s246 = sand.u32 %s122, 1
        %s247 = scalar_lea.sflag [#allocation8], %s246
        %s248 = sand.u32 %s122, 1
        %s249 = smul.addr %s248, 64
        %s250 = scalar_lea.vmem [#allocation11], %s249
        %s251 = smul.u32 16, %s30
        %s252 = sadd.s32 %s29, 1
        %s253 = smul.u32 16, %s31
        %s254 = smul.u32 16, %s30
        %p256 = scmp.eq.s32.totalorder %s31, 0
        // Predicated region
        $region37: #{qwen_decoder_layer.6} parent=27 // pred_check
          %p257 = pneg %p256
        $region38: #{qwen_decoder_layer.6} parent=27 // pred_check_branch
          %259 = sbr.rel (%p257) target = $region40
        $region39: #{qwen_decoder_layer.6} parent=27 // pred_region
          %v260 = vld [vmem:[%s216] sm:$0xf]
          %v261 = vld [vmem:[%s216 + $0x4] sm:$0xf]
          %v262 = vld [vmem:[%s216 + $0x8] sm:$0xf]
          %v263 = vld [vmem:[%s216 + $0xc] sm:$0xf]
          %v264 = vld [vmem:[%s216 + $0x10] sm:$0xf]
          %v265 = vld [vmem:[%s216 + $0x14] sm:$0xf]
          %v266 = vld [vmem:[%s216 + $0x18] sm:$0xf]
          %v267 = vld [vmem:[%s216 + $0x1c] sm:$0xf]
          %v268 = vld [vmem:[%s216 + $0x20] sm:$0xf]
          %v269 = vld [vmem:[%s216 + $0x24] sm:$0xf]
          %v270 = vld [vmem:[%s216 + $0x28] sm:$0xf]
          %v271 = vld [vmem:[%s216 + $0x2c] sm:$0xf]
          %v272 = vld [vmem:[%s216 + $0x30] sm:$0xf]
          %v273 = vld [vmem:[%s216 + $0x34] sm:$0xf]
          %v274 = vld [vmem:[%s216 + $0x38] sm:$0xf]
          %v275 = vld [vmem:[%s216 + $0x3c] sm:$0xf]
          %v292 = vunpack.c.l.b16 %v260
          %v293 = vunpack.c.l.b16 %v261
          %v294 = vunpack.c.l.b16 %v262
          %v295 = vunpack.c.l.b16 %v263
          %v296 = vunpack.c.l.b16 %v264
          %v297 = vunpack.c.l.b16 %v265
          %v298 = vunpack.c.l.b16 %v266
          %v299 = vunpack.c.l.b16 %v267
          %v300 = vunpack.c.l.b16 %v268
          %v301 = vunpack.c.l.b16 %v269
          %v302 = vunpack.c.l.b16 %v270
          %v303 = vunpack.c.l.b16 %v271
          %v304 = vunpack.c.l.b16 %v272
          %v305 = vunpack.c.l.b16 %v273
          %v306 = vunpack.c.l.b16 %v274
          %v307 = vunpack.c.l.b16 %v275
          %v308 = vpack.c.b16 %v293, %v292
          %v309 = vpack.c.b16 %v295, %v294
          %v310 = vpack.c.b16 %v297, %v296
          %v311 = vpack.c.b16 %v299, %v298
          %v312 = vpack.c.b16 %v301, %v300
          %v313 = vpack.c.b16 %v303, %v302
          %v314 = vpack.c.b16 %v305, %v304
          %v315 = vpack.c.b16 %v307, %v306
          %vm324 = vcmask 523264
          %325 = vst.msk [vmem:[#allocation2] sm:$0xff] %vm324, %v308
          %326 = vst.msk [vmem:[#allocation2 + $0x8] sm:$0xff] %vm324, %v309
          %327 = vst.msk [vmem:[#allocation2 + $0x10] sm:$0xff] %vm324, %v310
          %328 = vst.msk [vmem:[#allocation2 + $0x18] sm:$0xff] %vm324, %v311
          %329 = vst.msk [vmem:[#allocation2 + $0x20] sm:$0xff] %vm324, %v312
          %330 = vst.msk [vmem:[#allocation2 + $0x28] sm:$0xff] %vm324, %v313
          %331 = vst.msk [vmem:[#allocation2 + $0x30] sm:$0xff] %vm324, %v314
          %332 = vst.msk [vmem:[#allocation2 + $0x38] sm:$0xff] %vm324, %v315
          %v333 = vld [vmem:[%s216] sm:$0xf]
          %v334 = vld [vmem:[%s216 + $0x4] sm:$0xf]
          %v335 = vld [vmem:[%s216 + $0x8] sm:$0xf]
          %v336 = vld [vmem:[%s216 + $0xc] sm:$0xf]
          %v337 = vld [vmem:[%s216 + $0x10] sm:$0xf]
          %v338 = vld [vmem:[%s216 + $0x14] sm:$0xf]
          %v339 = vld [vmem:[%s216 + $0x18] sm:$0xf]
          %v340 = vld [vmem:[%s216 + $0x1c] sm:$0xf]
          %v341 = vld [vmem:[%s216 + $0x20] sm:$0xf]
          %v342 = vld [vmem:[%s216 + $0x24] sm:$0xf]
          %v343 = vld [vmem:[%s216 + $0x28] sm:$0xf]
          %v344 = vld [vmem:[%s216 + $0x2c] sm:$0xf]
          %v345 = vld [vmem:[%s216 + $0x30] sm:$0xf]
          %v346 = vld [vmem:[%s216 + $0x34] sm:$0xf]
          %v347 = vld [vmem:[%s216 + $0x38] sm:$0xf]
          %v348 = vld [vmem:[%s216 + $0x3c] sm:$0xf]
          %v365 = vunpack.c.l.b16 %v333
          %v366 = vunpack.c.l.b16 %v334
          %v367 = vunpack.c.l.b16 %v335
          %v368 = vunpack.c.l.b16 %v336
          %v369 = vunpack.c.l.b16 %v337
          %v370 = vunpack.c.l.b16 %v338
          %v371 = vunpack.c.l.b16 %v339
          %v372 = vunpack.c.l.b16 %v340
          %v373 = vunpack.c.l.b16 %v341
          %v374 = vunpack.c.l.b16 %v342
          %v375 = vunpack.c.l.b16 %v343
          %v376 = vunpack.c.l.b16 %v344
          %v377 = vunpack.c.l.b16 %v345
          %v378 = vunpack.c.l.b16 %v346
          %v379 = vunpack.c.l.b16 %v347
          %v380 = vunpack.c.l.b16 %v348
          %v381 = vpack.c.b16 %v366, %v365
          %v382 = vpack.c.b16 %v368, %v367
          %v383 = vpack.c.b16 %v370, %v369
          %v384 = vpack.c.b16 %v372, %v371
          %v385 = vpack.c.b16 %v374, %v373
          %v386 = vpack.c.b16 %v376, %v375
          %v387 = vpack.c.b16 %v378, %v377
          %v388 = vpack.c.b16 %v380, %v379
          %389 = vrot.lane.b32.xlu0 %v381, 64
          %v390 = vpop.permute.xlu0 %389
          %391 = vrot.lane.b32.xlu0 %v382, 64
          %v392 = vpop.permute.xlu0 %391
          %393 = vrot.lane.b32.xlu0 %v383, 64
          %v394 = vpop.permute.xlu0 %393
          %395 = vrot.lane.b32.xlu0 %v384, 64
          %v396 = vpop.permute.xlu0 %395
          %397 = vrot.lane.b32.xlu0 %v385, 64
          %v398 = vpop.permute.xlu0 %397
          %399 = vrot.lane.b32.xlu0 %v386, 64
          %v400 = vpop.permute.xlu0 %399
          %401 = vrot.lane.b32.xlu0 %v387, 64
          %v402 = vpop.permute.xlu0 %401
          %403 = vrot.lane.b32.xlu0 %v388, 64
          %v404 = vpop.permute.xlu0 %403
          %413 = vst.msk [vmem:[#allocation2 + $0x40] sm:$0xff] %vm324, %v390
          %414 = vst.msk [vmem:[#allocation2 + $0x48] sm:$0xff] %vm324, %v392
          %415 = vst.msk [vmem:[#allocation2 + $0x50] sm:$0xff] %vm324, %v394
          %416 = vst.msk [vmem:[#allocation2 + $0x58] sm:$0xff] %vm324, %v396
          %417 = vst.msk [vmem:[#allocation2 + $0x60] sm:$0xff] %vm324, %v398
          %418 = vst.msk [vmem:[#allocation2 + $0x68] sm:$0xff] %vm324, %v400
          %419 = vst.msk [vmem:[#allocation2 + $0x70] sm:$0xff] %vm324, %v402
          %420 = vst.msk [vmem:[#allocation2 + $0x78] sm:$0xff] %vm324, %v404
          %vm421 = vcmask 7168
          %422 = vst.msk [vmem:[#allocation3] sm:$0xff] %vm421, -inf
          %423 = vst.msk [vmem:[#allocation3 + $0x8] sm:$0xff] %vm421, -inf
          %424 = vst.msk [vmem:[#allocation3 + $0x10] sm:$0xff] %vm421, -inf
          %425 = vst.msk [vmem:[#allocation3 + $0x18] sm:$0xff] %vm421, -inf
          %426 = vst.msk [vmem:[#allocation3 + $0x20] sm:$0xff] %vm421, -inf
          %427 = vst.msk [vmem:[#allocation3 + $0x28] sm:$0xff] %vm421, -inf
          %428 = vst.msk [vmem:[#allocation3 + $0x30] sm:$0xff] %vm421, -inf
          %429 = vst.msk [vmem:[#allocation3 + $0x38] sm:$0xff] %vm421, -inf
          %430 = vst.msk [vmem:[#allocation3 + $0x40] sm:$0xff] %vm421, -inf
          %431 = vst.msk [vmem:[#allocation3 + $0x48] sm:$0xff] %vm421, -inf
          %432 = vst.msk [vmem:[#allocation3 + $0x50] sm:$0xff] %vm421, -inf
          %433 = vst.msk [vmem:[#allocation3 + $0x58] sm:$0xff] %vm421, -inf
          %434 = vst.msk [vmem:[#allocation3 + $0x60] sm:$0xff] %vm421, -inf
          %435 = vst.msk [vmem:[#allocation3 + $0x68] sm:$0xff] %vm421, -inf
          %436 = vst.msk [vmem:[#allocation3 + $0x70] sm:$0xff] %vm421, -inf
          %437 = vst.msk [vmem:[#allocation3 + $0x78] sm:$0xff] %vm421, -inf
          %438 = vst.msk [vmem:[#allocation3 + $0x80] sm:$0xff] %vm421, -inf
          %439 = vst.msk [vmem:[#allocation3 + $0x88] sm:$0xff] %vm421, -inf
          %440 = vst.msk [vmem:[#allocation3 + $0x90] sm:$0xff] %vm421, -inf
          %441 = vst.msk [vmem:[#allocation3 + $0x98] sm:$0xff] %vm421, -inf
          %442 = vst.msk [vmem:[#allocation3 + $0xa0] sm:$0xff] %vm421, -inf
          %443 = vst.msk [vmem:[#allocation3 + $0xa8] sm:$0xff] %vm421, -inf
          %444 = vst.msk [vmem:[#allocation3 + $0xb0] sm:$0xff] %vm421, -inf
          %445 = vst.msk [vmem:[#allocation3 + $0xb8] sm:$0xff] %vm421, -inf
          %446 = vst.msk [vmem:[#allocation3 + $0xc0] sm:$0xff] %vm421, -inf
          %447 = vst.msk [vmem:[#allocation3 + $0xc8] sm:$0xff] %vm421, -inf
          %448 = vst.msk [vmem:[#allocation3 + $0xd0] sm:$0xff] %vm421, -inf
          %449 = vst.msk [vmem:[#allocation3 + $0xd8] sm:$0xff] %vm421, -inf
          %450 = vst.msk [vmem:[#allocation3 + $0xe0] sm:$0xff] %vm421, -inf
          %451 = vst.msk [vmem:[#allocation3 + $0xe8] sm:$0xff] %vm421, -inf
          %452 = vst.msk [vmem:[#allocation3 + $0xf0] sm:$0xff] %vm421, -inf
          %453 = vst.msk [vmem:[#allocation3 + $0xf8] sm:$0xff] %vm421, -inf
          %454 = vst.msk [vmem:[#allocation4] sm:$0xff] %vm421, 0.0
          %455 = vst.msk [vmem:[#allocation4 + $0x8] sm:$0xff] %vm421, 0.0
          %456 = vst.msk [vmem:[#allocation4 + $0x10] sm:$0xff] %vm421, 0.0
          %457 = vst.msk [vmem:[#allocation4 + $0x18] sm:$0xff] %vm421, 0.0
          %458 = vst.msk [vmem:[#allocation4 + $0x20] sm:$0xff] %vm421, 0.0
          %459 = vst.msk [vmem:[#allocation4 + $0x28] sm:$0xff] %vm421, 0.0
          %460 = vst.msk [vmem:[#allocation4 + $0x30] sm:$0xff] %vm421, 0.0
          %461 = vst.msk [vmem:[#allocation4 + $0x38] sm:$0xff] %vm421, 0.0
          %462 = vst.msk [vmem:[#allocation4 + $0x40] sm:$0xff] %vm421, 0.0
          %463 = vst.msk [vmem:[#allocation4 + $0x48] sm:$0xff] %vm421, 0.0
          %464 = vst.msk [vmem:[#allocation4 + $0x50] sm:$0xff] %vm421, 0.0
          %465 = vst.msk [vmem:[#allocation4 + $0x58] sm:$0xff] %vm421, 0.0
          %466 = vst.msk [vmem:[#allocation4 + $0x60] sm:$0xff] %vm421, 0.0
          %467 = vst.msk [vmem:[#allocation4 + $0x68] sm:$0xff] %vm421, 0.0
          %468 = vst.msk [vmem:[#allocation4 + $0x70] sm:$0xff] %vm421, 0.0
          %469 = vst.msk [vmem:[#allocation4 + $0x78] sm:$0xff] %vm421, 0.0
          %470 = vst.msk [vmem:[#allocation4 + $0x80] sm:$0xff] %vm421, 0.0
          %471 = vst.msk [vmem:[#allocation4 + $0x88] sm:$0xff] %vm421, 0.0
          %472 = vst.msk [vmem:[#allocation4 + $0x90] sm:$0xff] %vm421, 0.0
          %473 = vst.msk [vmem:[#allocation4 + $0x98] sm:$0xff] %vm421, 0.0
          %474 = vst.msk [vmem:[#allocation4 + $0xa0] sm:$0xff] %vm421, 0.0
          %475 = vst.msk [vmem:[#allocation4 + $0xa8] sm:$0xff] %vm421, 0.0
          %476 = vst.msk [vmem:[#allocation4 + $0xb0] sm:$0xff] %vm421, 0.0
          %477 = vst.msk [vmem:[#allocation4 + $0xb8] sm:$0xff] %vm421, 0.0
          %478 = vst.msk [vmem:[#allocation4 + $0xc0] sm:$0xff] %vm421, 0.0
          %479 = vst.msk [vmem:[#allocation4 + $0xc8] sm:$0xff] %vm421, 0.0
          %480 = vst.msk [vmem:[#allocation4 + $0xd0] sm:$0xff] %vm421, 0.0
          %481 = vst.msk [vmem:[#allocation4 + $0xd8] sm:$0xff] %vm421, 0.0
          %482 = vst.msk [vmem:[#allocation4 + $0xe0] sm:$0xff] %vm421, 0.0
          %483 = vst.msk [vmem:[#allocation4 + $0xe8] sm:$0xff] %vm421, 0.0
          %484 = vst.msk [vmem:[#allocation4 + $0xf0] sm:$0xff] %vm421, 0.0
          %485 = vst.msk [vmem:[#allocation4 + $0xf8] sm:$0xff] %vm421, 0.0
          %486 = vst.msk [vmem:[#allocation5] sm:$0xff] %vm324, 0.0
          %487 = vst.msk [vmem:[#allocation5 + $0x8] sm:$0xff] %vm324, 0.0
          %488 = vst.msk [vmem:[#allocation5 + $0x10] sm:$0xff] %vm324, 0.0
          %489 = vst.msk [vmem:[#allocation5 + $0x18] sm:$0xff] %vm324, 0.0
          %490 = vst.msk [vmem:[#allocation5 + $0x20] sm:$0xff] %vm324, 0.0
          %491 = vst.msk [vmem:[#allocation5 + $0x28] sm:$0xff] %vm324, 0.0
          %492 = vst.msk [vmem:[#allocation5 + $0x30] sm:$0xff] %vm324, 0.0
          %493 = vst.msk [vmem:[#allocation5 + $0x38] sm:$0xff] %vm324, 0.0
          %494 = vst.msk [vmem:[#allocation5 + $0x40] sm:$0xff] %vm324, 0.0
          %495 = vst.msk [vmem:[#allocation5 + $0x48] sm:$0xff] %vm324, 0.0
          %496 = vst.msk [vmem:[#allocation5 + $0x50] sm:$0xff] %vm324, 0.0
          %497 = vst.msk [vmem:[#allocation5 + $0x58] sm:$0xff] %vm324, 0.0
          %498 = vst.msk [vmem:[#allocation5 + $0x60] sm:$0xff] %vm324, 0.0
          %499 = vst.msk [vmem:[#allocation5 + $0x68] sm:$0xff] %vm324, 0.0
          %500 = vst.msk [vmem:[#allocation5 + $0x70] sm:$0xff] %vm324, 0.0
          %501 = vst.msk [vmem:[#allocation5 + $0x78] sm:$0xff] %vm324, 0.0
          %502 = vst.msk [vmem:[#allocation5 + $0x80] sm:$0xff] %vm324, 0.0
          %503 = vst.msk [vmem:[#allocation5 + $0x88] sm:$0xff] %vm324, 0.0
          %504 = vst.msk [vmem:[#allocation5 + $0x90] sm:$0xff] %vm324, 0.0
          %505 = vst.msk [vmem:[#allocation5 + $0x98] sm:$0xff] %vm324, 0.0
          %506 = vst.msk [vmem:[#allocation5 + $0xa0] sm:$0xff] %vm324, 0.0
          %507 = vst.msk [vmem:[#allocation5 + $0xa8] sm:$0xff] %vm324, 0.0
          %508 = vst.msk [vmem:[#allocation5 + $0xb0] sm:$0xff] %vm324, 0.0
          %509 = vst.msk [vmem:[#allocation5 + $0xb8] sm:$0xff] %vm324, 0.0
          %510 = vst.msk [vmem:[#allocation5 + $0xc0] sm:$0xff] %vm324, 0.0
          %511 = vst.msk [vmem:[#allocation5 + $0xc8] sm:$0xff] %vm324, 0.0
          %512 = vst.msk [vmem:[#allocation5 + $0xd0] sm:$0xff] %vm324, 0.0
          %513 = vst.msk [vmem:[#allocation5 + $0xd8] sm:$0xff] %vm324, 0.0
          %514 = vst.msk [vmem:[#allocation5 + $0xe0] sm:$0xff] %vm324, 0.0
          %515 = vst.msk [vmem:[#allocation5 + $0xe8] sm:$0xff] %vm324, 0.0
          %516 = vst.msk [vmem:[#allocation5 + $0xf0] sm:$0xff] %vm324, 0.0
          %517 = vst.msk [vmem:[#allocation5 + $0xf8] sm:$0xff] %vm324, 0.0
        $region40: #{qwen_decoder_layer.6} parent=27 // pred_fallthru
          _
        %s518 = smul.u32 %s31, 128
        %s519 = sadd.s32 %s30, 1
        %s520 = smul.u32 %s519, 128
        %p521 = scmp.lt.s32.totalorder %s518, %s520
        // Predicated region
        $region41: #{qwen_decoder_layer.6} parent=27 // pred_check
          %p522 = pneg %p521
        $region42: #{qwen_decoder_layer.6} parent=27 // pred_check_branch
          %524 = sbr.rel (%p522) target = $region44
        $region43: #{qwen_decoder_layer.6} parent=27 // pred_region
          %v525 = vld [vmem:[%s225] sm:$0xf]
          %v526 = vld [vmem:[%s225 + $0x4] sm:$0xf]
          %v527 = vld [vmem:[%s225 + $0x8] sm:$0xf]
          %v528 = vld [vmem:[%s225 + $0xc] sm:$0xf]
          %v529 = vld [vmem:[%s225 + $0x10] sm:$0xf]
          %v530 = vld [vmem:[%s225 + $0x14] sm:$0xf]
          %v531 = vld [vmem:[%s225 + $0x18] sm:$0xf]
          %v532 = vld [vmem:[%s225 + $0x1c] sm:$0xf]
          %v533 = vld [vmem:[%s225 + $0x20] sm:$0xf]
          %v534 = vld [vmem:[%s225 + $0x24] sm:$0xf]
          %v535 = vld [vmem:[%s225 + $0x28] sm:$0xf]
          %v536 = vld [vmem:[%s225 + $0x2c] sm:$0xf]
          %v537 = vld [vmem:[%s225 + $0x30] sm:$0xf]
          %v538 = vld [vmem:[%s225 + $0x34] sm:$0xf]
          %v539 = vld [vmem:[%s225 + $0x38] sm:$0xf]
          %v540 = vld [vmem:[%s225 + $0x3c] sm:$0xf]
          %v541 = vld [vmem:[#allocation2] sm:$0xff]
          %v542 = vld [vmem:[#allocation2 + $0x8] sm:$0xff]
          %v543 = vld [vmem:[#allocation2 + $0x10] sm:$0xff]
          %v544 = vld [vmem:[#allocation2 + $0x18] sm:$0xff]
          %v545 = vld [vmem:[#allocation2 + $0x20] sm:$0xff]
          %v546 = vld [vmem:[#allocation2 + $0x28] sm:$0xff]
          %v547 = vld [vmem:[#allocation2 + $0x30] sm:$0xff]
          %v548 = vld [vmem:[#allocation2 + $0x38] sm:$0xff]
          %v549 = vld [vmem:[#allocation2 + $0x40] sm:$0xff]
          %v550 = vld [vmem:[#allocation2 + $0x48] sm:$0xff]
          %v551 = vld [vmem:[#allocation2 + $0x50] sm:$0xff]
          %v552 = vld [vmem:[#allocation2 + $0x58] sm:$0xff]
          %v553 = vld [vmem:[#allocation2 + $0x60] sm:$0xff]
          %v554 = vld [vmem:[#allocation2 + $0x68] sm:$0xff]
          %v555 = vld [vmem:[#allocation2 + $0x70] sm:$0xff]
          %v556 = vld [vmem:[#allocation2 + $0x78] sm:$0xff]
          %v573 = vunpack.c.l.b16 %v525
          %v574 = vunpack.c.l.b16 %v526
          %v575 = vunpack.c.l.b16 %v527
          %v576 = vunpack.c.l.b16 %v528
          %v577 = vunpack.c.l.b16 %v529
          %v578 = vunpack.c.l.b16 %v530
          %v579 = vunpack.c.l.b16 %v531
          %v580 = vunpack.c.l.b16 %v532
          %v581 = vunpack.c.l.b16 %v533
          %v582 = vunpack.c.l.b16 %v534
          %v583 = vunpack.c.l.b16 %v535
          %v584 = vunpack.c.l.b16 %v536
          %v585 = vunpack.c.l.b16 %v537
          %v586 = vunpack.c.l.b16 %v538
          %v587 = vunpack.c.l.b16 %v539
          %v588 = vunpack.c.l.b16 %v540
          %v589 = vpack.c.b16 %v574, %v573
          %v590 = vpack.c.b16 %v576, %v575
          %v591 = vpack.c.b16 %v578, %v577
          %v592 = vpack.c.b16 %v580, %v579
          %v593 = vpack.c.b16 %v582, %v581
          %v594 = vpack.c.b16 %v584, %v583
          %v595 = vpack.c.b16 %v586, %v585
          %v596 = vpack.c.b16 %v588, %v587
          %vm597 = vcmask 523264
          %v599 = vsel %vm597, %v541, 0
          %v602 = vsel %vm597, %v542, 0
          %v605 = vsel %vm597, %v543, 0
          %v608 = vsel %vm597, %v544, 0
          %v611 = vsel %vm597, %v545, 0
          %v614 = vsel %vm597, %v546, 0
          %v617 = vsel %vm597, %v547, 0
          %v620 = vsel %vm597, %v548, 0
          %v623 = vsel %vm597, %v549, 0
          %v626 = vsel %vm597, %v550, 0
          %v629 = vsel %vm597, %v551, 0
          %v632 = vsel %vm597, %v552, 0
          %v635 = vsel %vm597, %v553, 0
          %v638 = vsel %vm597, %v554, 0
          %v641 = vsel %vm597, %v555, 0
          %v644 = vsel %vm597, %v556, 0
          %v647 = vsel %vm597, %v589, 0
          %v650 = vsel %vm597, %v590, 0
          %v653 = vsel %vm597, %v591, 0
          %v656 = vsel %vm597, %v592, 0
          %v659 = vsel %vm597, %v593, 0
          %v662 = vsel %vm597, %v594, 0
          %v665 = vsel %vm597, %v595, 0
          %v668 = vsel %vm597, %v596, 0
          %670 = vmatprep.subr.bf16.mxu0 0
          %671 = vmatpush1.bf16.xpose.msra.mxu0 %v647
          %672 = vmatprep.subr.bf16.mxu0 0
          %673 = vmatpush1.bf16.xpose.msra.mxu0 %v650
          %674 = vmatprep.subr.bf16.mxu0 0
          %675 = vmatpush1.bf16.xpose.msra.mxu0 %v653
          %676 = vmatprep.subr.bf16.mxu0 0
          %677 = vmatpush1.bf16.xpose.msra.mxu0 %v656
          %678 = vmatprep.subr.bf16.mxu0 0
          %679 = vmatpush1.bf16.xpose.msra.mxu0 %v659
          %680 = vmatprep.subr.bf16.mxu0 0
          %681 = vmatpush1.bf16.xpose.msra.mxu0 %v662
          %682 = vmatprep.subr.bf16.mxu0 0
          %683 = vmatpush1.bf16.xpose.msra.mxu0 %v665
          %684 = vmatprep.subr.bf16.mxu0 0
          %685 = vmatpush1.bf16.xpose.msra.mxu0 %v668
          %686 = vmatprep.subr.bf16.mxu0 0
          %687 = vmatpush1.bf16.xpose.msra.mxu0 0
          %688 = vmatprep.subr.bf16.mxu0 0
          %689 = vmatpush1.bf16.xpose.msra.mxu0 0
          %690 = vmatprep.subr.bf16.mxu0 0
          %691 = vmatpush1.bf16.xpose.msra.mxu0 0
          %692 = vmatprep.subr.bf16.mxu0 0
          %693 = vmatpush1.bf16.xpose.msra.mxu0 0
          %694 = vmatprep.subr.bf16.mxu0 0
          %695 = vmatpush1.bf16.xpose.msra.mxu0 0
          %696 = vmatprep.subr.bf16.mxu0 0
          %697 = vmatpush1.bf16.xpose.msra.mxu0 0
          %698 = vmatprep.subr.bf16.mxu0 0
          %699 = vmatpush1.bf16.xpose.msra.mxu0 0
          %700 = vmatprep.subr.bf16.mxu0 0
          %701 = vmatpush1.bf16.xpose.msra.mxu0 0
          %702 = vmatprep.mubr.bf16.mxu0 0
          %703 = vmatmul.mubr.bf16.gmra.mrb[0].mxu0 %v599
          %v704 = vpop.f32.mrb[0].mxu0
          %v705 = vadd.f32 0.0, %v704
          %v706 = vpop.f32.mrb[0].mxu0
          %v707 = vpop.f32.mrb[0].mxu0
          %v708 = vadd.f32 0.0, %v707
          %v709 = vpop.f32.mrb[0].mxu0
          %710 = vmatprep.mubr.bf16.mxu0 0
          %711 = vmatmul.mubr.bf16.gmra.mrb[0].mxu0 %v602
          %v712 = vpop.f32.mrb[0].mxu0
          %v713 = vadd.f32 0.0, %v712
          %v714 = vpop.f32.mrb[0].mxu0
          %v715 = vpop.f32.mrb[0].mxu0
          %v716 = vadd.f32 0.0, %v715
          %v717 = vpop.f32.mrb[0].mxu0
          %718 = vmatprep.mubr.bf16.mxu0 0
          %719 = vmatmul.mubr.bf16.gmra.mrb[0].mxu0 %v605
          %v720 = vpop.f32.mrb[0].mxu0
          %v721 = vadd.f32 0.0, %v720
          %v722 = vpop.f32.mrb[0].mxu0
          %v723 = vpop.f32.mrb[0].mxu0
          %v724 = vadd.f32 0.0, %v723
          %v725 = vpop.f32.mrb[0].mxu0
          %726 = vmatprep.mubr.bf16.mxu0 0
          %727 = vmatmul.mubr.bf16.gmra.mrb[0].mxu0 %v608
          %v728 = vpop.f32.mrb[0].mxu0
          %v729 = vadd.f32 0.0, %v728
          %v730 = vpop.f32.mrb[0].mxu0
          %v731 = vpop.f32.mrb[0].mxu0
          %v732 = vadd.f32 0.0, %v731
          %v733 = vpop.f32.mrb[0].mxu0
          %734 = vmatprep.mubr.bf16.mxu0 0
          %735 = vmatmul.mubr.bf16.gmra.mrb[0].mxu0 %v611
          %v736 = vpop.f32.mrb[0].mxu0
          %v737 = vadd.f32 0.0, %v736
          %v738 = vpop.f32.mrb[0].mxu0
          %v739 = vpop.f32.mrb[0].mxu0
          %v740 = vadd.f32 0.0, %v739
          %v741 = vpop.f32.mrb[0].mxu0
          %742 = vmatprep.mubr.bf16.mxu0 0
          %743 = vmatmul.mubr.bf16.gmra.mrb[0].mxu0 %v614
          %v744 = vpop.f32.mrb[0].mxu0
          %v745 = vadd.f32 0.0, %v744
          %v746 = vpop.f32.mrb[0].mxu0
          %v747 = vpop.f32.mrb[0].mxu0
          %v748 = vadd.f32 0.0, %v747
          %v749 = vpop.f32.mrb[0].mxu0
          %750 = vmatprep.mubr.bf16.mxu0 0
          %751 = vmatmul.mubr.bf16.gmra.mrb[0].mxu0 %v617
          %v752 = vpop.f32.mrb[0].mxu0
          %v753 = vadd.f32 0.0, %v752
          %v754 = vpop.f32.mrb[0].mxu0
          %v755 = vpop.f32.mrb[0].mxu0
          %v756 = vadd.f32 0.0, %v755
          %v757 = vpop.f32.mrb[0].mxu0
          %758 = vmatprep.mubr.bf16.mxu0 0
          %759 = vmatmul.mubr.bf16.gmra.mrb[0].mxu0 %v620
          %v760 = vpop.f32.mrb[0].mxu0
          %v761 = vadd.f32 0.0, %v760
          %v762 = vpop.f32.mrb[0].mxu0
          %v763 = vpop.f32.mrb[0].mxu0
          %v764 = vadd.f32 0.0, %v763
          %v765 = vpop.f32.mrb[0].mxu0
          %766 = vmatprep.mubr.bf16.mxu0 0
          %767 = vmatmul.mubr.bf16.gmra.mrb[0].mxu0 %v623
          %v768 = vpop.f32.mrb[0].mxu0
          %v769 = vadd.f32 0.0, %v768
          %v770 = vpop.f32.mrb[0].mxu0
          %v771 = vpop.f32.mrb[0].mxu0
          %v772 = vadd.f32 0.0, %v771
          %v773 = vpop.f32.mrb[0].mxu0
          %774 = vmatprep.mubr.bf16.mxu0 0
          %775 = vmatmul.mubr.bf16.gmra.mrb[0].mxu0 %v626
          %v776 = vpop.f32.mrb[0].mxu0
          %v777 = vadd.f32 0.0, %v776
          %v778 = vpop.f32.mrb[0].mxu0
          %v779 = vpop.f32.mrb[0].mxu0
          %v780 = vadd.f32 0.0, %v779
          %v781 = vpop.f32.mrb[0].mxu0
          %782 = vmatprep.mubr.bf16.mxu0 0
          %783 = vmatmul.mubr.bf16.gmra.mrb[0].mxu0 %v629
          %v784 = vpop.f32.mrb[0].mxu0
          %v785 = vadd.f32 0.0, %v784
          %v786 = vpop.f32.mrb[0].mxu0
          %v787 = vpop.f32.mrb[0].mxu0
          %v788 = vadd.f32 0.0, %v787
          %v789 = vpop.f32.mrb[0].mxu0
          %790 = vmatprep.mubr.bf16.mxu0 0
          %791 = vmatmul.mubr.bf16.gmra.mrb[0].mxu0 %v632
          %v792 = vpop.f32.mrb[0].mxu0
          %v793 = vadd.f32 0.0, %v792
          %v794 = vpop.f32.mrb[0].mxu0
          %v795 = vpop.f32.mrb[0].mxu0
          %v796 = vadd.f32 0.0, %v795
          %v797 = vpop.f32.mrb[0].mxu0
          %798 = vmatprep.mubr.bf16.mxu0 0
          %799 = vmatmul.mubr.bf16.gmra.mrb[0].mxu0 %v635
          %v800 = vpop.f32.mrb[0].mxu0
          %v801 = vadd.f32 0.0, %v800
          %v802 = vpop.f32.mrb[0].mxu0
          %v803 = vpop.f32.mrb[0].mxu0
          %v804 = vadd.f32 0.0, %v803
          %v805 = vpop.f32.mrb[0].mxu0
          %806 = vmatprep.mubr.bf16.mxu0 0
          %807 = vmatmul.mubr.bf16.gmra.mrb[0].mxu0 %v638
          %v808 = vpop.f32.mrb[0].mxu0
          %v809 = vadd.f32 0.0, %v808
          %v810 = vpop.f32.mrb[0].mxu0
          %v811 = vpop.f32.mrb[0].mxu0
          %v812 = vadd.f32 0.0, %v811
          %v813 = vpop.f32.mrb[0].mxu0
          %814 = vmatprep.mubr.bf16.mxu0 0
          %815 = vmatmul.mubr.bf16.gmra.mrb[0].mxu0 %v641
          %v816 = vpop.f32.mrb[0].mxu0
          %v817 = vadd.f32 0.0, %v816
          %v818 = vpop.f32.mrb[0].mxu0
          %v819 = vpop.f32.mrb[0].mxu0
          %v820 = vadd.f32 0.0, %v819
          %v821 = vpop.f32.mrb[0].mxu0
          %822 = vmatprep.mubr.bf16.mxu0 0
          %823 = vmatmul.mubr.bf16.gmra.mrb[0].mxu0 %v644
          %v824 = vpop.f32.mrb[0].mxu0
          %v825 = vadd.f32 0.0, %v824
          %v826 = vpop.f32.mrb[0].mxu0
          %v827 = vpop.f32.mrb[0].mxu0
          %v828 = vadd.f32 0.0, %v827
          %v829 = vpop.f32.mrb[0].mxu0
          %830 = vdwg.mxu0
          %v831 = vmul.f32 %v705, 0.125
          %v832 = vmul.f32 %v708, 0.125
          %v833 = vmul.f32 %v713, 0.125
          %v834 = vmul.f32 %v716, 0.125
          %v835 = vmul.f32 %v721, 0.125
          %v836 = vmul.f32 %v724, 0.125
          %v837 = vmul.f32 %v729, 0.125
          %v838 = vmul.f32 %v732, 0.125
          %v839 = vmul.f32 %v737, 0.125
          %v840 = vmul.f32 %v740, 0.125
          %v841 = vmul.f32 %v745, 0.125
          %v842 = vmul.f32 %v748, 0.125
          %v843 = vmul.f32 %v753, 0.125
          %v844 = vmul.f32 %v756, 0.125
          %v845 = vmul.f32 %v761, 0.125
          %v846 = vmul.f32 %v764, 0.125
          %v847 = vmul.f32 %v769, 0.125
          %v848 = vmul.f32 %v772, 0.125
          %v849 = vmul.f32 %v777, 0.125
          %v850 = vmul.f32 %v780, 0.125
          %v851 = vmul.f32 %v785, 0.125
          %v852 = vmul.f32 %v788, 0.125
          %v853 = vmul.f32 %v793, 0.125
          %v854 = vmul.f32 %v796, 0.125
          %v855 = vmul.f32 %v801, 0.125
          %v856 = vmul.f32 %v804, 0.125
          %v857 = vmul.f32 %v809, 0.125
          %v858 = vmul.f32 %v812, 0.125
          %v859 = vmul.f32 %v817, 0.125
          %v860 = vmul.f32 %v820, 0.125
          %v861 = vmul.f32 %v825, 0.125
          %v862 = vmul.f32 %v828, 0.125
          %v863 = vlaneseq
          %v864 = vshrl.u32 %v863, 7
          %v865 = vadd.s32 %v864, 8
          %v866 = vadd.s32 %v864, 16
          %v867 = vadd.s32 %v864, 24
          %v868 = vadd.s32 %v864, 32
          %v869 = vadd.s32 %v864, 40
          %v870 = vadd.s32 %v864, 48
          %v871 = vadd.s32 %v864, 56
          %v872 = vadd.s32 %v864, 64
          %v873 = vadd.s32 %v864, 72
          %v874 = vadd.s32 %v864, 80
          %v875 = vadd.s32 %v864, 88
          %v876 = vadd.s32 %v864, 96
          %v877 = vadd.s32 %v864, 104
          %v878 = vadd.s32 %v864, 112
          %v879 = vadd.s32 %v864, 120
          %v880 = vadd.s32 %v864, 128
          %v881 = vadd.s32 %v864, 136
          %v882 = vadd.s32 %v864, 144
          %v883 = vadd.s32 %v864, 152
          %v884 = vadd.s32 %v864, 160
          %v885 = vadd.s32 %v864, 168
          %v886 = vadd.s32 %v864, 176
          %v887 = vadd.s32 %v864, 184
          %v888 = vadd.s32 %v864, 192
          %v889 = vadd.s32 %v864, 200
          %v890 = vadd.s32 %v864, 208
          %v891 = vadd.s32 %v864, 216
          %v892 = vadd.s32 %v864, 224
          %v893 = vadd.s32 %v864, 232
          %v894 = vadd.s32 %v864, 240
          %v895 = vadd.s32 %v864, 248
          %v896 = vlaneseq
          %v897 = vand.u32 %v896, 127
          %s898 = smul.u32 %s30, 128
          %vm899 = vcmp.lt.s32.totalorder %v864, 0
          %v900 = vsub.s32 0, %v864
          %v901 = vsel %vm899, %v900, %v864
          %v902 = vshrl.u32 %v901, 7
          %v903 = vand.u32 %v901, 127
          %v904 = vsub.s32 0, %v903
          %v905 = vsel %vm899, %v904, %v903
          %vm906 = vcmp.lt.s32.totalorder %v865, 0
          %v907 = vsub.s32 0, %v865
          %v908 = vsel %vm906, %v907, %v865
          %v909 = vshrl.u32 %v908, 7
          %v910 = vand.u32 %v908, 127
          %v911 = vsub.s32 0, %v910
          %v912 = vsel %vm906, %v911, %v910
          %vm913 = vcmp.lt.s32.totalorder %v866, 0
          %v914 = vsub.s32 0, %v866
          %v915 = vsel %vm913, %v914, %v866
          %v916 = vshrl.u32 %v915, 7
          %v917 = vand.u32 %v915, 127
          %v918 = vsub.s32 0, %v917
          %v919 = vsel %vm913, %v918, %v917
          %vm920 = vcmp.lt.s32.totalorder %v867, 0
          %v921 = vsub.s32 0, %v867
          %v922 = vsel %vm920, %v921, %v867
          %v923 = vshrl.u32 %v922, 7
          %v924 = vand.u32 %v922, 127
          %v925 = vsub.s32 0, %v924
          %v926 = vsel %vm920, %v925, %v924
          %vm927 = vcmp.lt.s32.totalorder %v868, 0
          %v928 = vsub.s32 0, %v868
          %v929 = vsel %vm927, %v928, %v868
          %v930 = vshrl.u32 %v929, 7
          %v931 = vand.u32 %v929, 127
          %v932 = vsub.s32 0, %v931
          %v933 = vsel %vm927, %v932, %v931
          %vm934 = vcmp.lt.s32.totalorder %v869, 0
          %v935 = vsub.s32 0, %v869
          %v936 = vsel %vm934, %v935, %v869
          %v937 = vshrl.u32 %v936, 7
          %v938 = vand.u32 %v936, 127
          %v939 = vsub.s32 0, %v938
          %v940 = vsel %vm934, %v939, %v938
          %vm941 = vcmp.lt.s32.totalorder %v870, 0
          %v942 = vsub.s32 0, %v870
          %v943 = vsel %vm941, %v942, %v870
          %v944 = vshrl.u32 %v943, 7
          %v945 = vand.u32 %v943, 127
          %v946 = vsub.s32 0, %v945
          %v947 = vsel %vm941, %v946, %v945
          %vm948 = vcmp.lt.s32.totalorder %v871, 0
          %v949 = vsub.s32 0, %v871
          %v950 = vsel %vm948, %v949, %v871
          %v951 = vshrl.u32 %v950, 7
          %v952 = vand.u32 %v950, 127
          %v953 = vsub.s32 0, %v952
          %v954 = vsel %vm948, %v953, %v952
          %vm955 = vcmp.lt.s32.totalorder %v872, 0
          %v956 = vsub.s32 0, %v872
          %v957 = vsel %vm955, %v956, %v872
          %v958 = vshrl.u32 %v957, 7
          %v959 = vand.u32 %v957, 127
          %v960 = vsub.s32 0, %v959
          %v961 = vsel %vm955, %v960, %v959
          %vm962 = vcmp.lt.s32.totalorder %v873, 0
          %v963 = vsub.s32 0, %v873
          %v964 = vsel %vm962, %v963, %v873
          %v965 = vshrl.u32 %v964, 7
          %v966 = vand.u32 %v964, 127
          %v967 = vsub.s32 0, %v966
          %v968 = vsel %vm962, %v967, %v966
          %vm969 = vcmp.lt.s32.totalorder %v874, 0
          %v970 = vsub.s32 0, %v874
          %v971 = vsel %vm969, %v970, %v874
          %v972 = vshrl.u32 %v971, 7
          %v973 = vand.u32 %v971, 127
          %v974 = vsub.s32 0, %v973
          %v975 = vsel %vm969, %v974, %v973
          %vm976 = vcmp.lt.s32.totalorder %v875, 0
          %v977 = vsub.s32 0, %v875
          %v978 = vsel %vm976, %v977, %v875
          %v979 = vshrl.u32 %v978, 7
          %v980 = vand.u32 %v978, 127
          %v981 = vsub.s32 0, %v980
          %v982 = vsel %vm976, %v981, %v980
          %vm983 = vcmp.lt.s32.totalorder %v876, 0
          %v984 = vsub.s32 0, %v876
          %v985 = vsel %vm983, %v984, %v876
          %v986 = vshrl.u32 %v985, 7
          %v987 = vand.u32 %v985, 127
          %v988 = vsub.s32 0, %v987
          %v989 = vsel %vm983, %v988, %v987
          %vm990 = vcmp.lt.s32.totalorder %v877, 0
          %v991 = vsub.s32 0, %v877
          %v992 = vsel %vm990, %v991, %v877
          %v993 = vshrl.u32 %v992, 7
          %v994 = vand.u32 %v992, 127
          %v995 = vsub.s32 0, %v994
          %v996 = vsel %vm990, %v995, %v994
          %vm997 = vcmp.lt.s32.totalorder %v878, 0
          %v998 = vsub.s32 0, %v878
          %v999 = vsel %vm997, %v998, %v878
          %v1000 = vshrl.u32 %v999, 7
          %v1001 = vand.u32 %v999, 127
          %v1002 = vsub.s32 0, %v1001
          %v1003 = vsel %vm997, %v1002, %v1001
          %vm1004 = vcmp.lt.s32.totalorder %v879, 0
          %v1005 = vsub.s32 0, %v879
          %v1006 = vsel %vm1004, %v1005, %v879
          %v1007 = vshrl.u32 %v1006, 7
          %v1008 = vand.u32 %v1006, 127
          %v1009 = vsub.s32 0, %v1008
          %v1010 = vsel %vm1004, %v1009, %v1008
          %vm1011 = vcmp.lt.s32.totalorder %v880, 0
          %v1012 = vsub.s32 0, %v880
          %v1013 = vsel %vm1011, %v1012, %v880
          %v1014 = vshrl.u32 %v1013, 7
          %v1015 = vand.u32 %v1013, 127
          %v1016 = vsub.s32 0, %v1015
          %v1017 = vsel %vm1011, %v1016, %v1015
          %vm1018 = vcmp.lt.s32.totalorder %v881, 0
          %v1019 = vsub.s32 0, %v881
          %v1020 = vsel %vm1018, %v1019, %v881
          %v1021 = vshrl.u32 %v1020, 7
          %v1022 = vand.u32 %v1020, 127
          %v1023 = vsub.s32 0, %v1022
          %v1024 = vsel %vm1018, %v1023, %v1022
          %vm1025 = vcmp.lt.s32.totalorder %v882, 0
          %v1026 = vsub.s32 0, %v882
          %v1027 = vsel %vm1025, %v1026, %v882
          %v1028 = vshrl.u32 %v1027, 7
          %v1029 = vand.u32 %v1027, 127
          %v1030 = vsub.s32 0, %v1029
          %v1031 = vsel %vm1025, %v1030, %v1029
          %vm1032 = vcmp.lt.s32.totalorder %v883, 0
          %v1033 = vsub.s32 0, %v883
          %v1034 = vsel %vm1032, %v1033, %v883
          %v1035 = vshrl.u32 %v1034, 7
          %v1036 = vand.u32 %v1034, 127
          %v1037 = vsub.s32 0, %v1036
          %v1038 = vsel %vm1032, %v1037, %v1036
          %vm1039 = vcmp.lt.s32.totalorder %v884, 0
          %v1040 = vsub.s32 0, %v884
          %v1041 = vsel %vm1039, %v1040, %v884
          %v1042 = vshrl.u32 %v1041, 7
          %v1043 = vand.u32 %v1041, 127
          %v1044 = vsub.s32 0, %v1043
          %v1045 = vsel %vm1039, %v1044, %v1043
          %vm1046 = vcmp.lt.s32.totalorder %v885, 0
          %v1047 = vsub.s32 0, %v885
          %v1048 = vsel %vm1046, %v1047, %v885
          %v1049 = vshrl.u32 %v1048, 7
          %v1050 = vand.u32 %v1048, 127
          %v1051 = vsub.s32 0, %v1050
          %v1052 = vsel %vm1046, %v1051, %v1050
          %vm1053 = vcmp.lt.s32.totalorder %v886, 0
          %v1054 = vsub.s32 0, %v886
          %v1055 = vsel %vm1053, %v1054, %v886
          %v1056 = vshrl.u32 %v1055, 7
          %v1057 = vand.u32 %v1055, 127
          %v1058 = vsub.s32 0, %v1057
          %v1059 = vsel %vm1053, %v1058, %v1057
          %vm1060 = vcmp.lt.s32.totalorder %v887, 0
          %v1061 = vsub.s32 0, %v887
          %v1062 = vsel %vm1060, %v1061, %v887
          %v1063 = vshrl.u32 %v1062, 7
          %v1064 = vand.u32 %v1062, 127
          %v1065 = vsub.s32 0, %v1064
          %v1066 = vsel %vm1060, %v1065, %v1064
          %vm1067 = vcmp.lt.s32.totalorder %v888, 0
          %v1068 = vsub.s32 0, %v888
          %v1069 = vsel %vm1067, %v1068, %v888
          %v1070 = vshrl.u32 %v1069, 7
          %v1071 = vand.u32 %v1069, 127
          %v1072 = vsub.s32 0, %v1071
          %v1073 = vsel %vm1067, %v1072, %v1071
          %vm1074 = vcmp.lt.s32.totalorder %v889, 0
          %v1075 = vsub.s32 0, %v889
          %v1076 = vsel %vm1074, %v1075, %v889
          %v1077 = vshrl.u32 %v1076, 7
          %v1078 = vand.u32 %v1076, 127
          %v1079 = vsub.s32 0, %v1078
          %v1080 = vsel %vm1074, %v1079, %v1078
          %vm1081 = vcmp.lt.s32.totalorder %v890, 0
          %v1082 = vsub.s32 0, %v890
          %v1083 = vsel %vm1081, %v1082, %v890
          %v1084 = vshrl.u32 %v1083, 7
          %v1085 = vand.u32 %v1083, 127
          %v1086 = vsub.s32 0, %v1085
          %v1087 = vsel %vm1081, %v1086, %v1085
          %vm1088 = vcmp.lt.s32.totalorder %v891, 0
          %v1089 = vsub.s32 0, %v891
          %v1090 = vsel %vm1088, %v1089, %v891
          %v1091 = vshrl.u32 %v1090, 7
          %v1092 = vand.u32 %v1090, 127
          %v1093 = vsub.s32 0, %v1092
          %v1094 = vsel %vm1088, %v1093, %v1092
          %vm1095 = vcmp.lt.s32.totalorder %v892, 0
          %v1096 = vsub.s32 0, %v892
          %v1097 = vsel %vm1095, %v1096, %v892
          %v1098 = vshrl.u32 %v1097, 7
          %v1099 = vand.u32 %v1097, 127
          %v1100 = vsub.s32 0, %v1099
          %v1101 = vsel %vm1095, %v1100, %v1099
          %vm1102 = vcmp.lt.s32.totalorder %v893, 0
          %v1103 = vsub.s32 0, %v893
          %v1104 = vsel %vm1102, %v1103, %v893
          %v1105 = vshrl.u32 %v1104, 7
          %v1106 = vand.u32 %v1104, 127
          %v1107 = vsub.s32 0, %v1106
          %v1108 = vsel %vm1102, %v1107, %v1106
          %vm1109 = vcmp.lt.s32.totalorder %v894, 0
          %v1110 = vsub.s32 0, %v894
          %v1111 = vsel %vm1109, %v1110, %v894
          %v1112 = vshrl.u32 %v1111, 7
          %v1113 = vand.u32 %v1111, 127
          %v1114 = vsub.s32 0, %v1113
          %v1115 = vsel %vm1109, %v1114, %v1113
          %vm1116 = vcmp.lt.s32.totalorder %v895, 0
          %v1117 = vsub.s32 0, %v895
          %v1118 = vsel %vm1116, %v1117, %v895
          %v1119 = vshrl.u32 %v1118, 7
          %v1120 = vand.u32 %v1118, 127
          %v1121 = vsub.s32 0, %v1120
          %v1122 = vsel %vm1116, %v1121, %v1120
          %vm1123 = vcmp.ne.s32.totalorder %v905, 0
          %vm1124 = vcmp.ne.s32.totalorder %v912, 0
          %vm1125 = vcmp.ne.s32.totalorder %v919, 0
          %vm1126 = vcmp.ne.s32.totalorder %v926, 0
          %vm1127 = vcmp.ne.s32.totalorder %v933, 0
          %vm1128 = vcmp.ne.s32.totalorder %v940, 0
          %vm1129 = vcmp.ne.s32.totalorder %v947, 0
          %vm1130 = vcmp.ne.s32.totalorder %v954, 0
          %vm1131 = vcmp.ne.s32.totalorder %v961, 0
          %vm1132 = vcmp.ne.s32.totalorder %v968, 0
          %vm1133 = vcmp.ne.s32.totalorder %v975, 0
          %vm1134 = vcmp.ne.s32.totalorder %v982, 0
          %vm1135 = vcmp.ne.s32.totalorder %v989, 0
          %vm1136 = vcmp.ne.s32.totalorder %v996, 0
          %vm1137 = vcmp.ne.s32.totalorder %v1003, 0
          %vm1138 = vcmp.ne.s32.totalorder %v1010, 0
          %vm1139 = vcmp.ne.s32.totalorder %v1017, 0
          %vm1140 = vcmp.ne.s32.totalorder %v1024, 0
          %vm1141 = vcmp.ne.s32.totalorder %v1031, 0
          %vm1142 = vcmp.ne.s32.totalorder %v1038, 0
          %vm1143 = vcmp.ne.s32.totalorder %v1045, 0
          %vm1144 = vcmp.ne.s32.totalorder %v1052, 0
          %vm1145 = vcmp.ne.s32.totalorder %v1059, 0
          %vm1146 = vcmp.ne.s32.totalorder %v1066, 0
          %vm1147 = vcmp.ne.s32.totalorder %v1073, 0
          %vm1148 = vcmp.ne.s32.totalorder %v1080, 0
          %vm1149 = vcmp.ne.s32.totalorder %v1087, 0
          %vm1150 = vcmp.ne.s32.totalorder %v1094, 0
          %vm1151 = vcmp.ne.s32.totalorder %v1101, 0
          %vm1152 = vcmp.ne.s32.totalorder %v1108, 0
          %vm1153 = vcmp.ne.s32.totalorder %v1115, 0
          %vm1154 = vcmp.ne.s32.totalorder %v1122, 0
          %vm1155 = vcmp.lt.s32.totalorder %v905, 0
          %vm1156 = vcmp.lt.s32.totalorder %v912, 0
          %vm1157 = vcmp.lt.s32.totalorder %v919, 0
          %vm1158 = vcmp.lt.s32.totalorder %v926, 0
          %vm1159 = vcmp.lt.s32.totalorder %v933, 0
          %vm1160 = vcmp.lt.s32.totalorder %v940, 0
          %vm1161 = vcmp.lt.s32.totalorder %v947, 0
          %vm1162 = vcmp.lt.s32.totalorder %v954, 0
          %vm1163 = vcmp.lt.s32.totalorder %v961, 0
          %vm1164 = vcmp.lt.s32.totalorder %v968, 0
          %vm1165 = vcmp.lt.s32.totalorder %v975, 0
          %vm1166 = vcmp.lt.s32.totalorder %v982, 0
          %vm1167 = vcmp.lt.s32.totalorder %v989, 0
          %vm1168 = vcmp.lt.s32.totalorder %v996, 0
          %vm1169 = vcmp.lt.s32.totalorder %v1003, 0
          %vm1170 = vcmp.lt.s32.totalorder %v1010, 0
          %vm1171 = vcmp.lt.s32.totalorder %v1017, 0
          %vm1172 = vcmp.lt.s32.totalorder %v1024, 0
          %vm1173 = vcmp.lt.s32.totalorder %v1031, 0
          %vm1174 = vcmp.lt.s32.totalorder %v1038, 0
          %vm1175 = vcmp.lt.s32.totalorder %v1045, 0
          %vm1176 = vcmp.lt.s32.totalorder %v1052, 0
          %vm1177 = vcmp.lt.s32.totalorder %v1059, 0
          %vm1178 = vcmp.lt.s32.totalorder %v1066, 0
          %vm1179 = vcmp.lt.s32.totalorder %v1073, 0
          %vm1180 = vcmp.lt.s32.totalorder %v1080, 0
          %vm1181 = vcmp.lt.s32.totalorder %v1087, 0
          %vm1182 = vcmp.lt.s32.totalorder %v1094, 0
          %vm1183 = vcmp.lt.s32.totalorder %v1101, 0
          %vm1184 = vcmp.lt.s32.totalorder %v1108, 0
          %vm1185 = vcmp.lt.s32.totalorder %v1115, 0
          %vm1186 = vcmp.lt.s32.totalorder %v1122, 0
          %vm1187 = vmand %vm1155, %vm1123
          %vm1188 = vmand %vm1156, %vm1124
          %vm1189 = vmand %vm1157, %vm1125
          %vm1190 = vmand %vm1158, %vm1126
          %vm1191 = vmand %vm1159, %vm1127
          %vm1192 = vmand %vm1160, %vm1128
          %vm1193 = vmand %vm1161, %vm1129
          %vm1194 = vmand %vm1162, %vm1130
          %vm1195 = vmand %vm1163, %vm1131
          %vm1196 = vmand %vm1164, %vm1132
          %vm1197 = vmand %vm1165, %vm1133
          %vm1198 = vmand %vm1166, %vm1134
          %vm1199 = vmand %vm1167, %vm1135
          %vm1200 = vmand %vm1168, %vm1136
          %vm1201 = vmand %vm1169, %vm1137
          %vm1202 = vmand %vm1170, %vm1138
          %vm1203 = vmand %vm1171, %vm1139
          %vm1204 = vmand %vm1172, %vm1140
          %vm1205 = vmand %vm1173, %vm1141
          %vm1206 = vmand %vm1174, %vm1142
          %vm1207 = vmand %vm1175, %vm1143
          %vm1208 = vmand %vm1176, %vm1144
          %vm1209 = vmand %vm1177, %vm1145
          %vm1210 = vmand %vm1178, %vm1146
          %vm1211 = vmand %vm1179, %vm1147
          %vm1212 = vmand %vm1180, %vm1148
          %vm1213 = vmand %vm1181, %vm1149
          %vm1214 = vmand %vm1182, %vm1150
          %vm1215 = vmand %vm1183, %vm1151
          %vm1216 = vmand %vm1184, %vm1152
          %vm1217 = vmand %vm1185, %vm1153
          %vm1218 = vmand %vm1186, %vm1154
          %v1219 = vadd.s32 %v905, 128
          %v1220 = vadd.s32 %v912, 128
          %v1221 = vadd.s32 %v919, 128
          %v1222 = vadd.s32 %v926, 128
          %v1223 = vadd.s32 %v933, 128
          %v1224 = vadd.s32 %v940, 128
          %v1225 = vadd.s32 %v947, 128
          %v1226 = vadd.s32 %v954, 128
          %v1227 = vadd.s32 %v961, 128
          %v1228 = vadd.s32 %v968, 128
          %v1229 = vadd.s32 %v975, 128
          %v1230 = vadd.s32 %v982, 128
          %v1231 = vadd.s32 %v989, 128
          %v1232 = vadd.s32 %v996, 128
          %v1233 = vadd.s32 %v1003, 128
          %v1234 = vadd.s32 %v1010, 128
          %v1235 = vadd.s32 %v1017, 128
          %v1236 = vadd.s32 %v1024, 128
          %v1237 = vadd.s32 %v1031, 128
          %v1238 = vadd.s32 %v1038, 128
          %v1239 = vadd.s32 %v1045, 128
          %v1240 = vadd.s32 %v1052, 128
          %v1241 = vadd.s32 %v1059, 128
          %v1242 = vadd.s32 %v1066, 128
          %v1243 = vadd.s32 %v1073, 128
          %v1244 = vadd.s32 %v1080, 128
          %v1245 = vadd.s32 %v1087, 128
          %v1246 = vadd.s32 %v1094, 128
          %v1247 = vadd.s32 %v1101, 128
          %v1248 = vadd.s32 %v1108, 128
          %v1249 = vadd.s32 %v1115, 128
          %v1250 = vadd.s32 %v1122, 128
          %v1251 = vsel %vm1187, %v1219, %v905
          %v1252 = vsel %vm1188, %v1220, %v912
          %v1253 = vsel %vm1189, %v1221, %v919
          %v1254 = vsel %vm1190, %v1222, %v926
          %v1255 = vsel %vm1191, %v1223, %v933
          %v1256 = vsel %vm1192, %v1224, %v940
          %v1257 = vsel %vm1193, %v1225, %v947
          %v1258 = vsel %vm1194, %v1226, %v954
          %v1259 = vsel %vm1195, %v1227, %v961
          %v1260 = vsel %vm1196, %v1228, %v968
          %v1261 = vsel %vm1197, %v1229, %v975
          %v1262 = vsel %vm1198, %v1230, %v982
          %v1263 = vsel %vm1199, %v1231, %v989
          %v1264 = vsel %vm1200, %v1232, %v996
          %v1265 = vsel %vm1201, %v1233, %v1003
          %v1266 = vsel %vm1202, %v1234, %v1010
          %v1267 = vsel %vm1203, %v1235, %v1017
          %v1268 = vsel %vm1204, %v1236, %v1024
          %v1269 = vsel %vm1205, %v1237, %v1031
          %v1270 = vsel %vm1206, %v1238, %v1038
          %v1271 = vsel %vm1207, %v1239, %v1045
          %v1272 = vsel %vm1208, %v1240, %v1052
          %v1273 = vsel %vm1209, %v1241, %v1059
          %v1274 = vsel %vm1210, %v1242, %v1066
          %v1275 = vsel %vm1211, %v1243, %v1073
          %v1276 = vsel %vm1212, %v1244, %v1080
          %v1277 = vsel %vm1213, %v1245, %v1087
          %v1278 = vsel %vm1214, %v1246, %v1094
          %v1279 = vsel %vm1215, %v1247, %v1101
          %v1280 = vsel %vm1216, %v1248, %v1108
          %v1281 = vsel %vm1217, %v1249, %v1115
          %v1282 = vsel %vm1218, %v1250, %v1122
          %v1283 = vstv %s898
          %v1284 = vadd.s32 %v1283, %v1251
          %v1285 = vadd.s32 %v1283, %v1252
          %v1286 = vadd.s32 %v1283, %v1253
          %v1287 = vadd.s32 %v1283, %v1254
          %v1288 = vadd.s32 %v1283, %v1255
          %v1289 = vadd.s32 %v1283, %v1256
          %v1290 = vadd.s32 %v1283, %v1257
          %v1291 = vadd.s32 %v1283, %v1258
          %v1292 = vadd.s32 %v1283, %v1259
          %v1293 = vadd.s32 %v1283, %v1260
          %v1294 = vadd.s32 %v1283, %v1261
          %v1295 = vadd.s32 %v1283, %v1262
          %v1296 = vadd.s32 %v1283, %v1263
          %v1297 = vadd.s32 %v1283, %v1264
          %v1298 = vadd.s32 %v1283, %v1265
          %v1299 = vadd.s32 %v1283, %v1266
          %v1300 = vadd.s32 %v1283, %v1267
          %v1301 = vadd.s32 %v1283, %v1268
          %v1302 = vadd.s32 %v1283, %v1269
          %v1303 = vadd.s32 %v1283, %v1270
          %v1304 = vadd.s32 %v1283, %v1271
          %v1305 = vadd.s32 %v1283, %v1272
          %v1306 = vadd.s32 %v1283, %v1273
          %v1307 = vadd.s32 %v1283, %v1274
          %v1308 = vadd.s32 %v1283, %v1275
          %v1309 = vadd.s32 %v1283, %v1276
          %v1310 = vadd.s32 %v1283, %v1277
          %v1311 = vadd.s32 %v1283, %v1278
          %v1312 = vadd.s32 %v1283, %v1279
          %v1313 = vadd.s32 %v1283, %v1280
          %v1314 = vadd.s32 %v1283, %v1281
          %v1315 = vadd.s32 %v1283, %v1282
          %v1316 = vstv %s518
          %v1317 = vadd.s32 %v1316, %v897
          %vm1318 = vcmp.le.s32.totalorder %v1317, %v1284
          %vm1319 = vcmp.le.s32.totalorder %v1317, %v1285
          %vm1320 = vcmp.le.s32.totalorder %v1317, %v1286
          %vm1321 = vcmp.le.s32.totalorder %v1317, %v1287
          %vm1322 = vcmp.le.s32.totalorder %v1317, %v1288
          %vm1323 = vcmp.le.s32.totalorder %v1317, %v1289
          %vm1324 = vcmp.le.s32.totalorder %v1317, %v1290
          %vm1325 = vcmp.le.s32.totalorder %v1317, %v1291
          %vm1326 = vcmp.le.s32.totalorder %v1317, %v1292
          %vm1327 = vcmp.le.s32.totalorder %v1317, %v1293
          %vm1328 = vcmp.le.s32.totalorder %v1317, %v1294
          %vm1329 = vcmp.le.s32.totalorder %v1317, %v1295
          %vm1330 = vcmp.le.s32.totalorder %v1317, %v1296
          %vm1331 = vcmp.le.s32.totalorder %v1317, %v1297
          %vm1332 = vcmp.le.s32.totalorder %v1317, %v1298
          %vm1333 = vcmp.le.s32.totalorder %v1317, %v1299
          %vm1334 = vcmp.le.s32.totalorder %v1317, %v1300
          %vm1335 = vcmp.le.s32.totalorder %v1317, %v1301
          %vm1336 = vcmp.le.s32.totalorder %v1317, %v1302
          %vm1337 = vcmp.le.s32.totalorder %v1317, %v1303
          %vm1338 = vcmp.le.s32.totalorder %v1317, %v1304
          %vm1339 = vcmp.le.s32.totalorder %v1317, %v1305
          %vm1340 = vcmp.le.s32.totalorder %v1317, %v1306
          %vm1341 = vcmp.le.s32.totalorder %v1317, %v1307
          %vm1342 = vcmp.le.s32.totalorder %v1317, %v1308
          %vm1343 = vcmp.le.s32.totalorder %v1317, %v1309
          %vm1344 = vcmp.le.s32.totalorder %v1317, %v1310
          %vm1345 = vcmp.le.s32.totalorder %v1317, %v1311
          %vm1346 = vcmp.le.s32.totalorder %v1317, %v1312
          %vm1347 = vcmp.le.s32.totalorder %v1317, %v1313
          %vm1348 = vcmp.le.s32.totalorder %v1317, %v1314
          %vm1349 = vcmp.le.s32.totalorder %v1317, %v1315
          %v1350 = vsel %vm1318, %v831, -1e+30
          %v1351 = vsel %vm1319, %v832, -1e+30
          %v1352 = vsel %vm1320, %v833, -1e+30
          %v1353 = vsel %vm1321, %v834, -1e+30
          %v1354 = vsel %vm1322, %v835, -1e+30
          %v1355 = vsel %vm1323, %v836, -1e+30
          %v1356 = vsel %vm1324, %v837, -1e+30
          %v1357 = vsel %vm1325, %v838, -1e+30
          %v1358 = vsel %vm1326, %v839, -1e+30
          %v1359 = vsel %vm1327, %v840, -1e+30
          %v1360 = vsel %vm1328, %v841, -1e+30
          %v1361 = vsel %vm1329, %v842, -1e+30
          %v1362 = vsel %vm1330, %v843, -1e+30
          %v1363 = vsel %vm1331, %v844, -1e+30
          %v1364 = vsel %vm1332, %v845, -1e+30
          %v1365 = vsel %vm1333, %v846, -1e+30
          %v1366 = vsel %vm1334, %v847, -1e+30
          %v1367 = vsel %vm1335, %v848, -1e+30
          %v1368 = vsel %vm1336, %v849, -1e+30
          %v1369 = vsel %vm1337, %v850, -1e+30
          %v1370 = vsel %vm1338, %v851, -1e+30
          %v1371 = vsel %vm1339, %v852, -1e+30
          %v1372 = vsel %vm1340, %v853, -1e+30
          %v1373 = vsel %vm1341, %v854, -1e+30
          %v1374 = vsel %vm1342, %v855, -1e+30
          %v1375 = vsel %vm1343, %v856, -1e+30
          %v1376 = vsel %vm1344, %v857, -1e+30
          %v1377 = vsel %vm1345, %v858, -1e+30
          %v1378 = vsel %vm1346, %v859, -1e+30
          %v1379 = vsel %vm1347, %v860, -1e+30
          %v1380 = vsel %vm1348, %v861, -1e+30
          %v1381 = vsel %vm1349, %v862, -1e+30
          %v1382 = vld [vmem:[#allocation3] sm:$0xff]
          %v1383 = vld [vmem:[#allocation3 + $0x8] sm:$0xff]
          %v1384 = vld [vmem:[#allocation3 + $0x10] sm:$0xff]
          %v1385 = vld [vmem:[#allocation3 + $0x18] sm:$0xff]
          %v1386 = vld [vmem:[#allocation3 + $0x20] sm:$0xff]
          %v1387 = vld [vmem:[#allocation3 + $0x28] sm:$0xff]
          %v1388 = vld [vmem:[#allocation3 + $0x30] sm:$0xff]
          %v1389 = vld [vmem:[#allocation3 + $0x38] sm:$0xff]
          %v1390 = vld [vmem:[#allocation3 + $0x40] sm:$0xff]
          %v1391 = vld [vmem:[#allocation3 + $0x48] sm:$0xff]
          %v1392 = vld [vmem:[#allocation3 + $0x50] sm:$0xff]
          %v1393 = vld [vmem:[#allocation3 + $0x58] sm:$0xff]
          %v1394 = vld [vmem:[#allocation3 + $0x60] sm:$0xff]
          %v1395 = vld [vmem:[#allocation3 + $0x68] sm:$0xff]
          %v1396 = vld [vmem:[#allocation3 + $0x70] sm:$0xff]
          %v1397 = vld [vmem:[#allocation3 + $0x78] sm:$0xff]
          %v1398 = vld [vmem:[#allocation3 + $0x80] sm:$0xff]
          %v1399 = vld [vmem:[#allocation3 + $0x88] sm:$0xff]
          %v1400 = vld [vmem:[#allocation3 + $0x90] sm:$0xff]
          %v1401 = vld [vmem:[#allocation3 + $0x98] sm:$0xff]
          %v1402 = vld [vmem:[#allocation3 + $0xa0] sm:$0xff]
          %v1403 = vld [vmem:[#allocation3 + $0xa8] sm:$0xff]
          %v1404 = vld [vmem:[#allocation3 + $0xb0] sm:$0xff]
          %v1405 = vld [vmem:[#allocation3 + $0xb8] sm:$0xff]
          %v1406 = vld [vmem:[#allocation3 + $0xc0] sm:$0xff]
          %v1407 = vld [vmem:[#allocation3 + $0xc8] sm:$0xff]
          %v1408 = vld [vmem:[#allocation3 + $0xd0] sm:$0xff]
          %v1409 = vld [vmem:[#allocation3 + $0xd8] sm:$0xff]
          %v1410 = vld [vmem:[#allocation3 + $0xe0] sm:$0xff]
          %v1411 = vld [vmem:[#allocation3 + $0xe8] sm:$0xff]
          %v1412 = vld [vmem:[#allocation3 + $0xf0] sm:$0xff]
          %v1413 = vld [vmem:[#allocation3 + $0xf8] sm:$0xff]
          %1414 = vmax.xlane.f32.xlu0 %v1350
          %v1415 = vpop.xlane.xlu0 %1414
          %1416 = vmax.xlane.f32.xlu0 %v1351
          %v1417 = vpop.xlane.xlu0 %1416
          %1418 = vmax.xlane.f32.xlu0 %v1352
          %v1419 = vpop.xlane.xlu0 %1418
          %1420 = vmax.xlane.f32.xlu0 %v1353
          %v1421 = vpop.xlane.xlu0 %1420
          %1422 = vmax.xlane.f32.xlu0 %v1354
          %v1423 = vpop.xlane.xlu0 %1422
          %1424 = vmax.xlane.f32.xlu0 %v1355
          %v1425 = vpop.xlane.xlu0 %1424
          %1426 = vmax.xlane.f32.xlu0 %v1356
          %v1427 = vpop.xlane.xlu0 %1426
          %1428 = vmax.xlane.f32.xlu0 %v1357
          %v1429 = vpop.xlane.xlu0 %1428
          %1430 = vmax.xlane.f32.xlu0 %v1358
          %v1431 = vpop.xlane.xlu0 %1430
          %1432 = vmax.xlane.f32.xlu0 %v1359
          %v1433 = vpop.xlane.xlu0 %1432
          %1434 = vmax.xlane.f32.xlu0 %v1360
          %v1435 = vpop.xlane.xlu0 %1434
          %1436 = vmax.xlane.f32.xlu0 %v1361
          %v1437 = vpop.xlane.xlu0 %1436
          %1438 = vmax.xlane.f32.xlu0 %v1362
          %v1439 = vpop.xlane.xlu0 %1438
          %1440 = vmax.xlane.f32.xlu0 %v1363
          %v1441 = vpop.xlane.xlu0 %1440
          %1442 = vmax.xlane.f32.xlu0 %v1364
          %v1443 = vpop.xlane.xlu0 %1442
          %1444 = vmax.xlane.f32.xlu0 %v1365
          %v1445 = vpop.xlane.xlu0 %1444
          %1446 = vmax.xlane.f32.xlu0 %v1366
          %v1447 = vpop.xlane.xlu0 %1446
          %1448 = vmax.xlane.f32.xlu0 %v1367
          %v1449 = vpop.xlane.xlu0 %1448
          %1450 = vmax.xlane.f32.xlu0 %v1368
          %v1451 = vpop.xlane.xlu0 %1450
          %1452 = vmax.xlane.f32.xlu0 %v1369
          %v1453 = vpop.xlane.xlu0 %1452
          %1454 = vmax.xlane.f32.xlu0 %v1370
          %v1455 = vpop.xlane.xlu0 %1454
          %1456 = vmax.xlane.f32.xlu0 %v1371
          %v1457 = vpop.xlane.xlu0 %1456
          %1458 = vmax.xlane.f32.xlu0 %v1372
          %v1459 = vpop.xlane.xlu0 %1458
          %1460 = vmax.xlane.f32.xlu0 %v1373
          %v1461 = vpop.xlane.xlu0 %1460
          %1462 = vmax.xlane.f32.xlu0 %v1374
          %v1463 = vpop.xlane.xlu0 %1462
          %1464 = vmax.xlane.f32.xlu0 %v1375
          %v1465 = vpop.xlane.xlu0 %1464
          %1466 = vmax.xlane.f32.xlu0 %v1376
          %v1467 = vpop.xlane.xlu0 %1466
          %1468 = vmax.xlane.f32.xlu0 %v1377
          %v1469 = vpop.xlane.xlu0 %1468
          %1470 = vmax.xlane.f32.xlu0 %v1378
          %v1471 = vpop.xlane.xlu0 %1470
          %1472 = vmax.xlane.f32.xlu0 %v1379
          %v1473 = vpop.xlane.xlu0 %1472
          %1474 = vmax.xlane.f32.xlu0 %v1380
          %v1475 = vpop.xlane.xlu0 %1474
          %1476 = vmax.xlane.f32.xlu0 %v1381
          %v1477 = vpop.xlane.xlu0 %1476
          %v1478 = vmax.f32 %v1382, %v1415
          %v1479 = vmax.f32 %v1383, %v1417
          %v1480 = vmax.f32 %v1384, %v1419
          %v1481 = vmax.f32 %v1385, %v1421
          %v1482 = vmax.f32 %v1386, %v1423
          %v1483 = vmax.f32 %v1387, %v1425
          %v1484 = vmax.f32 %v1388, %v1427
          %v1485 = vmax.f32 %v1389, %v1429
          %v1486 = vmax.f32 %v1390, %v1431
          %v1487 = vmax.f32 %v1391, %v1433
          %v1488 = vmax.f32 %v1392, %v1435
          %v1489 = vmax.f32 %v1393, %v1437
          %v1490 = vmax.f32 %v1394, %v1439
          %v1491 = vmax.f32 %v1395, %v1441
          %v1492 = vmax.f32 %v1396, %v1443
          %v1493 = vmax.f32 %v1397, %v1445
          %v1494 = vmax.f32 %v1398, %v1447
          %v1495 = vmax.f32 %v1399, %v1449
          %v1496 = vmax.f32 %v1400, %v1451
          %v1497 = vmax.f32 %v1401, %v1453
          %v1498 = vmax.f32 %v1402, %v1455
          %v1499 = vmax.f32 %v1403, %v1457
          %v1500 = vmax.f32 %v1404, %v1459
          %v1501 = vmax.f32 %v1405, %v1461
          %v1502 = vmax.f32 %v1406, %v1463
          %v1503 = vmax.f32 %v1407, %v1465
          %v1504 = vmax.f32 %v1408, %v1467
          %v1505 = vmax.f32 %v1409, %v1469
          %v1506 = vmax.f32 %v1410, %v1471
          %v1507 = vmax.f32 %v1411, %v1473
          %v1508 = vmax.f32 %v1412, %v1475
          %v1509 = vmax.f32 %v1413, %v1477
          %v1510 = vsub.f32 %v1382, %v1478
          %v1511 = vsub.f32 %v1383, %v1479
          %v1512 = vsub.f32 %v1384, %v1480
          %v1513 = vsub.f32 %v1385, %v1481
          %v1514 = vsub.f32 %v1386, %v1482
          %v1515 = vsub.f32 %v1387, %v1483
          %v1516 = vsub.f32 %v1388, %v1484
          %v1517 = vsub.f32 %v1389, %v1485
          %v1518 = vsub.f32 %v1390, %v1486
          %v1519 = vsub.f32 %v1391, %v1487
          %v1520 = vsub.f32 %v1392, %v1488
          %v1521 = vsub.f32 %v1393, %v1489
          %v1522 = vsub.f32 %v1394, %v1490
          %v1523 = vsub.f32 %v1395, %v1491
          %v1524 = vsub.f32 %v1396, %v1492
          %v1525 = vsub.f32 %v1397, %v1493
          %v1526 = vsub.f32 %v1398, %v1494
          %v1527 = vsub.f32 %v1399, %v1495
          %v1528 = vsub.f32 %v1400, %v1496
          %v1529 = vsub.f32 %v1401, %v1497
          %v1530 = vsub.f32 %v1402, %v1498
          %v1531 = vsub.f32 %v1403, %v1499
          %v1532 = vsub.f32 %v1404, %v1500
          %v1533 = vsub.f32 %v1405, %v1501
          %v1534 = vsub.f32 %v1406, %v1502
          %v1535 = vsub.f32 %v1407, %v1503
          %v1536 = vsub.f32 %v1408, %v1504
          %v1537 = vsub.f32 %v1409, %v1505
          %v1538 = vsub.f32 %v1410, %v1506
          %v1539 = vsub.f32 %v1411, %v1507
          %v1540 = vsub.f32 %v1412, %v1508
          %v1541 = vsub.f32 %v1413, %v1509
          %v1542 = vmul.f32 %v1510, 1.442695
          %v1543 = vpow.pop %v1542
          %v1544 = vmul.f32 %v1511, 1.442695
          %v1545 = vpow.pop %v1544
          %v1546 = vmul.f32 %v1512, 1.442695
          %v1547 = vpow.pop %v1546
          %v1548 = vmul.f32 %v1513, 1.442695
          %v1549 = vpow.pop %v1548
          %v1550 = vmul.f32 %v1514, 1.442695
          %v1551 = vpow.pop %v1550
          %v1552 = vmul.f32 %v1515, 1.442695
          %v1553 = vpow.pop %v1552
          %v1554 = vmul.f32 %v1516, 1.442695
          %v1555 = vpow.pop %v1554
          %v1556 = vmul.f32 %v1517, 1.442695
          %v1557 = vpow.pop %v1556
          %v1558 = vmul.f32 %v1518, 1.442695
          %v1559 = vpow.pop %v1558
          %v1560 = vmul.f32 %v1519, 1.442695
          %v1561 = vpow.pop %v1560
          %v1562 = vmul.f32 %v1520, 1.442695
          %v1563 = vpow.pop %v1562
          %v1564 = vmul.f32 %v1521, 1.442695
          %v1565 = vpow.pop %v1564
          %v1566 = vmul.f32 %v1522, 1.442695
          %v1567 = vpow.pop %v1566
          %v1568 = vmul.f32 %v1523, 1.442695
          %v1569 = vpow.pop %v1568
          %v1570 = vmul.f32 %v1524, 1.442695
          %v1571 = vpow.pop %v1570
          %v1572 = vmul.f32 %v1525, 1.442695
          %v1573 = vpow.pop %v1572
          %v1574 = vmul.f32 %v1526, 1.442695
          %v1575 = vpow.pop %v1574
          %v1576 = vmul.f32 %v1527, 1.442695
          %v1577 = vpow.pop %v1576
          %v1578 = vmul.f32 %v1528, 1.442695
          %v1579 = vpow.pop %v1578
          %v1580 = vmul.f32 %v1529, 1.442695
          %v1581 = vpow.pop %v1580
          %v1582 = vmul.f32 %v1530, 1.442695
          %v1583 = vpow.pop %v1582
          %v1584 = vmul.f32 %v1531, 1.442695
          %v1585 = vpow.pop %v1584
          %v1586 = vmul.f32 %v1532, 1.442695
          %v1587 = vpow.pop %v1586
          %v1588 = vmul.f32 %v1533, 1.442695
          %v1589 = vpow.pop %v1588
          %v1590 = vmul.f32 %v1534, 1.442695
          %v1591 = vpow.pop %v1590
          %v1592 = vmul.f32 %v1535, 1.442695
          %v1593 = vpow.pop %v1592
          %v1594 = vmul.f32 %v1536, 1.442695
          %v1595 = vpow.pop %v1594
          %v1596 = vmul.f32 %v1537, 1.442695
          %v1597 = vpow.pop %v1596
          %v1598 = vmul.f32 %v1538, 1.442695
          %v1599 = vpow.pop %v1598
          %v1600 = vmul.f32 %v1539, 1.442695
          %v1601 = vpow.pop %v1600
          %v1602 = vmul.f32 %v1540, 1.442695
          %v1603 = vpow.pop %v1602
          %v1604 = vmul.f32 %v1541, 1.442695
          %v1605 = vpow.pop %v1604
          %1607 = vset.pattern.permute.xlu0 0
          %1608 = vperm.xlu0 %1607, %v1478
          %v1609 = vpop.permute.xlu0 %1608
          %1612 = vset.pattern.permute.xlu0 0
          %1613 = vperm.xlu0 %1612, %v1479
          %v1614 = vpop.permute.xlu0 %1613
          %1617 = vset.pattern.permute.xlu0 0
          %1618 = vperm.xlu0 %1617, %v1480
          %v1619 = vpop.permute.xlu0 %1618
          %1622 = vset.pattern.permute.xlu0 0
          %1623 = vperm.xlu0 %1622, %v1481
          %v1624 = vpop.permute.xlu0 %1623
          %1627 = vset.pattern.permute.xlu0 0
          %1628 = vperm.xlu0 %1627, %v1482
          %v1629 = vpop.permute.xlu0 %1628
          %1632 = vset.pattern.permute.xlu0 0
          %1633 = vperm.xlu0 %1632, %v1483
          %v1634 = vpop.permute.xlu0 %1633
          %1637 = vset.pattern.permute.xlu0 0
          %1638 = vperm.xlu0 %1637, %v1484
          %v1639 = vpop.permute.xlu0 %1638
          %1642 = vset.pattern.permute.xlu0 0
          %1643 = vperm.xlu0 %1642, %v1485
          %v1644 = vpop.permute.xlu0 %1643
          %1647 = vset.pattern.permute.xlu0 0
          %1648 = vperm.xlu0 %1647, %v1486
          %v1649 = vpop.permute.xlu0 %1648
          %1652 = vset.pattern.permute.xlu0 0
          %1653 = vperm.xlu0 %1652, %v1487
          %v1654 = vpop.permute.xlu0 %1653
          %1657 = vset.pattern.permute.xlu0 0
          %1658 = vperm.xlu0 %1657, %v1488
          %v1659 = vpop.permute.xlu0 %1658
          %1662 = vset.pattern.permute.xlu0 0
          %1663 = vperm.xlu0 %1662, %v1489
          %v1664 = vpop.permute.xlu0 %1663
          %1667 = vset.pattern.permute.xlu0 0
          %1668 = vperm.xlu0 %1667, %v1490
          %v1669 = vpop.permute.xlu0 %1668
          %1672 = vset.pattern.permute.xlu0 0
          %1673 = vperm.xlu0 %1672, %v1491
          %v1674 = vpop.permute.xlu0 %1673
          %1677 = vset.pattern.permute.xlu0 0
          %1678 = vperm.xlu0 %1677, %v1492
          %v1679 = vpop.permute.xlu0 %1678
          %1682 = vset.pattern.permute.xlu0 0
          %1683 = vperm.xlu0 %1682, %v1493
          %v1684 = vpop.permute.xlu0 %1683
          %1687 = vset.pattern.permute.xlu0 0
          %1688 = vperm.xlu0 %1687, %v1494
          %v1689 = vpop.permute.xlu0 %1688
          %1692 = vset.pattern.permute.xlu0 0
          %1693 = vperm.xlu0 %1692, %v1495
          %v1694 = vpop.permute.xlu0 %1693
          %1697 = vset.pattern.permute.xlu0 0
          %1698 = vperm.xlu0 %1697, %v1496
          %v1699 = vpop.permute.xlu0 %1698
          %1702 = vset.pattern.permute.xlu0 0
          %1703 = vperm.xlu0 %1702, %v1497
          %v1704 = vpop.permute.xlu0 %1703
          %1707 = vset.pattern.permute.xlu0 0
          %1708 = vperm.xlu0 %1707, %v1498
          %v1709 = vpop.permute.xlu0 %1708
          %1712 = vset.pattern.permute.xlu0 0
          %1713 = vperm.xlu0 %1712, %v1499
          %v1714 = vpop.permute.xlu0 %1713
          %1717 = vset.pattern.permute.xlu0 0
          %1718 = vperm.xlu0 %1717, %v1500
          %v1719 = vpop.permute.xlu0 %1718
          %1722 = vset.pattern.permute.xlu0 0
          %1723 = vperm.xlu0 %1722, %v1501
          %v1724 = vpop.permute.xlu0 %1723
          %1727 = vset.pattern.permute.xlu0 0
          %1728 = vperm.xlu0 %1727, %v1502
          %v1729 = vpop.permute.xlu0 %1728
          %1732 = vset.pattern.permute.xlu0 0
          %1733 = vperm.xlu0 %1732, %v1503
          %v1734 = vpop.permute.xlu0 %1733
          %1737 = vset.pattern.permute.xlu0 0
          %1738 = vperm.xlu0 %1737, %v1504
          %v1739 = vpop.permute.xlu0 %1738
          %1742 = vset.pattern.permute.xlu0 0
          %1743 = vperm.xlu0 %1742, %v1505
          %v1744 = vpop.permute.xlu0 %1743
          %1747 = vset.pattern.permute.xlu0 0
          %1748 = vperm.xlu0 %1747, %v1506
          %v1749 = vpop.permute.xlu0 %1748
          %1752 = vset.pattern.permute.xlu0 0
          %1753 = vperm.xlu0 %1752, %v1507
          %v1754 = vpop.permute.xlu0 %1753
          %1757 = vset.pattern.permute.xlu0 0
          %1758 = vperm.xlu0 %1757, %v1508
          %v1759 = vpop.permute.xlu0 %1758
          %1762 = vset.pattern.permute.xlu0 0
          %1763 = vperm.xlu0 %1762, %v1509
          %v1764 = vpop.permute.xlu0 %1763
          %v1766 = vsub.f32 %v1350, %v1609
          %v1767 = vsub.f32 %v1351, %v1614
          %v1768 = vsub.f32 %v1352, %v1619
          %v1769 = vsub.f32 %v1353, %v1624
          %v1770 = vsub.f32 %v1354, %v1629
          %v1771 = vsub.f32 %v1355, %v1634
          %v1772 = vsub.f32 %v1356, %v1639
          %v1773 = vsub.f32 %v1357, %v1644
          %v1774 = vsub.f32 %v1358, %v1649
          %v1775 = vsub.f32 %v1359, %v1654
          %v1776 = vsub.f32 %v1360, %v1659
          %v1777 = vsub.f32 %v1361, %v1664
          %v1778 = vsub.f32 %v1362, %v1669
          %v1779 = vsub.f32 %v1363, %v1674
          %v1780 = vsub.f32 %v1364, %v1679
          %v1781 = vsub.f32 %v1365, %v1684
          %v1782 = vsub.f32 %v1366, %v1689
          %v1783 = vsub.f32 %v1367, %v1694
          %v1784 = vsub.f32 %v1368, %v1699
          %v1785 = vsub.f32 %v1369, %v1704
          %v1786 = vsub.f32 %v1370, %v1709
          %v1787 = vsub.f32 %v1371, %v1714
          %v1788 = vsub.f32 %v1372, %v1719
          %v1789 = vsub.f32 %v1373, %v1724
          %v1790 = vsub.f32 %v1374, %v1729
          %v1791 = vsub.f32 %v1375, %v1734
          %v1792 = vsub.f32 %v1376, %v1739
          %v1793 = vsub.f32 %v1377, %v1744
          %v1794 = vsub.f32 %v1378, %v1749
          %v1795 = vsub.f32 %v1379, %v1754
          %v1796 = vsub.f32 %v1380, %v1759
          %v1797 = vsub.f32 %v1381, %v1764
          %v1798 = vmul.f32 %v1766, 1.442695
          %v1799 = vpow.pop %v1798
          %v1800 = vmul.f32 %v1767, 1.442695
          %v1801 = vpow.pop %v1800
          %v1802 = vmul.f32 %v1768, 1.442695
          %v1803 = vpow.pop %v1802
          %v1804 = vmul.f32 %v1769, 1.442695
          %v1805 = vpow.pop %v1804
          %v1806 = vmul.f32 %v1770, 1.442695
          %v1807 = vpow.pop %v1806
          %v1808 = vmul.f32 %v1771, 1.442695
          %v1809 = vpow.pop %v1808
          %v1810 = vmul.f32 %v1772, 1.442695
          %v1811 = vpow.pop %v1810
          %v1812 = vmul.f32 %v1773, 1.442695
          %v1813 = vpow.pop %v1812
          %v1814 = vmul.f32 %v1774, 1.442695
          %v1815 = vpow.pop %v1814
          %v1816 = vmul.f32 %v1775, 1.442695
          %v1817 = vpow.pop %v1816
          %v1818 = vmul.f32 %v1776, 1.442695
          %v1819 = vpow.pop %v1818
          %v1820 = vmul.f32 %v1777, 1.442695
          %v1821 = vpow.pop %v1820
          %v1822 = vmul.f32 %v1778, 1.442695
          %v1823 = vpow.pop %v1822
          %v1824 = vmul.f32 %v1779, 1.442695
          %v1825 = vpow.pop %v1824
          %v1826 = vmul.f32 %v1780, 1.442695
          %v1827 = vpow.pop %v1826
          %v1828 = vmul.f32 %v1781, 1.442695
          %v1829 = vpow.pop %v1828
          %v1830 = vmul.f32 %v1782, 1.442695
          %v1831 = vpow.pop %v1830
          %v1832 = vmul.f32 %v1783, 1.442695
          %v1833 = vpow.pop %v1832
          %v1834 = vmul.f32 %v1784, 1.442695
          %v1835 = vpow.pop %v1834
          %v1836 = vmul.f32 %v1785, 1.442695
          %v1837 = vpow.pop %v1836
          %v1838 = vmul.f32 %v1786, 1.442695
          %v1839 = vpow.pop %v1838
          %v1840 = vmul.f32 %v1787, 1.442695
          %v1841 = vpow.pop %v1840
          %v1842 = vmul.f32 %v1788, 1.442695
          %v1843 = vpow.pop %v1842
          %v1844 = vmul.f32 %v1789, 1.442695
          %v1845 = vpow.pop %v1844
          %v1846 = vmul.f32 %v1790, 1.442695
          %v1847 = vpow.pop %v1846
          %v1848 = vmul.f32 %v1791, 1.442695
          %v1849 = vpow.pop %v1848
          %v1850 = vmul.f32 %v1792, 1.442695
          %v1851 = vpow.pop %v1850
          %v1852 = vmul.f32 %v1793, 1.442695
          %v1853 = vpow.pop %v1852
          %v1854 = vmul.f32 %v1794, 1.442695
          %v1855 = vpow.pop %v1854
          %v1856 = vmul.f32 %v1795, 1.442695
          %v1857 = vpow.pop %v1856
          %v1858 = vmul.f32 %v1796, 1.442695
          %v1859 = vpow.pop %v1858
          %v1860 = vmul.f32 %v1797, 1.442695
          %v1861 = vpow.pop %v1860
          %v1862 = vld [vmem:[#allocation4] sm:$0xff]
          %v1863 = vld [vmem:[#allocation4 + $0x8] sm:$0xff]
          %v1864 = vld [vmem:[#allocation4 + $0x10] sm:$0xff]
          %v1865 = vld [vmem:[#allocation4 + $0x18] sm:$0xff]
          %v1866 = vld [vmem:[#allocation4 + $0x20] sm:$0xff]
          %v1867 = vld [vmem:[#allocation4 + $0x28] sm:$0xff]
          %v1868 = vld [vmem:[#allocation4 + $0x30] sm:$0xff]
          %v1869 = vld [vmem:[#allocation4 + $0x38] sm:$0xff]
          %v1870 = vld [vmem:[#allocation4 + $0x40] sm:$0xff]
          %v1871 = vld [vmem:[#allocation4 + $0x48] sm:$0xff]
          %v1872 = vld [vmem:[#allocation4 + $0x50] sm:$0xff]
          %v1873 = vld [vmem:[#allocation4 + $0x58] sm:$0xff]
          %v1874 = vld [vmem:[#allocation4 + $0x60] sm:$0xff]
          %v1875 = vld [vmem:[#allocation4 + $0x68] sm:$0xff]
          %v1876 = vld [vmem:[#allocation4 + $0x70] sm:$0xff]
          %v1877 = vld [vmem:[#allocation4 + $0x78] sm:$0xff]
          %v1878 = vld [vmem:[#allocation4 + $0x80] sm:$0xff]
          %v1879 = vld [vmem:[#allocation4 + $0x88] sm:$0xff]
          %v1880 = vld [vmem:[#allocation4 + $0x90] sm:$0xff]
          %v1881 = vld [vmem:[#allocation4 + $0x98] sm:$0xff]
          %v1882 = vld [vmem:[#allocation4 + $0xa0] sm:$0xff]
          %v1883 = vld [vmem:[#allocation4 + $0xa8] sm:$0xff]
          %v1884 = vld [vmem:[#allocation4 + $0xb0] sm:$0xff]
          %v1885 = vld [vmem:[#allocation4 + $0xb8] sm:$0xff]
          %v1886 = vld [vmem:[#allocation4 + $0xc0] sm:$0xff]
          %v1887 = vld [vmem:[#allocation4 + $0xc8] sm:$0xff]
          %v1888 = vld [vmem:[#allocation4 + $0xd0] sm:$0xff]
          %v1889 = vld [vmem:[#allocation4 + $0xd8] sm:$0xff]
          %v1890 = vld [vmem:[#allocation4 + $0xe0] sm:$0xff]
          %v1891 = vld [vmem:[#allocation4 + $0xe8] sm:$0xff]
          %v1892 = vld [vmem:[#allocation4 + $0xf0] sm:$0xff]
          %v1893 = vld [vmem:[#allocation4 + $0xf8] sm:$0xff]
          %v1894 = vmul.f32 %v1543, %v1862
          %v1895 = vmul.f32 %v1545, %v1863
          %v1896 = vmul.f32 %v1547, %v1864
          %v1897 = vmul.f32 %v1549, %v1865
          %v1898 = vmul.f32 %v1551, %v1866
          %v1899 = vmul.f32 %v1553, %v1867
          %v1900 = vmul.f32 %v1555, %v1868
          %v1901 = vmul.f32 %v1557, %v1869
          %v1902 = vmul.f32 %v1559, %v1870
          %v1903 = vmul.f32 %v1561, %v1871
          %v1904 = vmul.f32 %v1563, %v1872
          %v1905 = vmul.f32 %v1565, %v1873
          %v1906 = vmul.f32 %v1567, %v1874
          %v1907 = vmul.f32 %v1569, %v1875
          %v1908 = vmul.f32 %v1571, %v1876
          %v1909 = vmul.f32 %v1573, %v1877
          %v1910 = vmul.f32 %v1575, %v1878
          %v1911 = vmul.f32 %v1577, %v1879
          %v1912 = vmul.f32 %v1579, %v1880
          %v1913 = vmul.f32 %v1581, %v1881
          %v1914 = vmul.f32 %v1583, %v1882
          %v1915 = vmul.f32 %v1585, %v1883
          %v1916 = vmul.f32 %v1587, %v1884
          %v1917 = vmul.f32 %v1589, %v1885
          %v1918 = vmul.f32 %v1591, %v1886
          %v1919 = vmul.f32 %v1593, %v1887
          %v1920 = vmul.f32 %v1595, %v1888
          %v1921 = vmul.f32 %v1597, %v1889
          %v1922 = vmul.f32 %v1599, %v1890
          %v1923 = vmul.f32 %v1601, %v1891
          %v1924 = vmul.f32 %v1603, %v1892
          %v1925 = vmul.f32 %v1605, %v1893
          %1926 = vadd.xlane.f32.xlu0 %v1799
          %v1927 = vpop.xlane.xlu0 %1926
          %1928 = vadd.xlane.f32.xlu0 %v1801
          %v1929 = vpop.xlane.xlu0 %1928
          %1930 = vadd.xlane.f32.xlu0 %v1803
          %v1931 = vpop.xlane.xlu0 %1930
          %1932 = vadd.xlane.f32.xlu0 %v1805
          %v1933 = vpop.xlane.xlu0 %1932
          %1934 = vadd.xlane.f32.xlu0 %v1807
          %v1935 = vpop.xlane.xlu0 %1934
          %1936 = vadd.xlane.f32.xlu0 %v1809
          %v1937 = vpop.xlane.xlu0 %1936
          %1938 = vadd.xlane.f32.xlu0 %v1811
          %v1939 = vpop.xlane.xlu0 %1938
          %1940 = vadd.xlane.f32.xlu0 %v1813
          %v1941 = vpop.xlane.xlu0 %1940
          %1942 = vadd.xlane.f32.xlu0 %v1815
          %v1943 = vpop.xlane.xlu0 %1942
          %1944 = vadd.xlane.f32.xlu0 %v1817
          %v1945 = vpop.xlane.xlu0 %1944
          %1946 = vadd.xlane.f32.xlu0 %v1819
          %v1947 = vpop.xlane.xlu0 %1946
          %1948 = vadd.xlane.f32.xlu0 %v1821
          %v1949 = vpop.xlane.xlu0 %1948
          %1950 = vadd.xlane.f32.xlu0 %v1823
          %v1951 = vpop.xlane.xlu0 %1950
          %1952 = vadd.xlane.f32.xlu0 %v1825
          %v1953 = vpop.xlane.xlu0 %1952
          %1954 = vadd.xlane.f32.xlu0 %v1827
          %v1955 = vpop.xlane.xlu0 %1954
          %1956 = vadd.xlane.f32.xlu0 %v1829
          %v1957 = vpop.xlane.xlu0 %1956
          %1958 = vadd.xlane.f32.xlu0 %v1831
          %v1959 = vpop.xlane.xlu0 %1958
          %1960 = vadd.xlane.f32.xlu0 %v1833
          %v1961 = vpop.xlane.xlu0 %1960
          %1962 = vadd.xlane.f32.xlu0 %v1835
          %v1963 = vpop.xlane.xlu0 %1962
          %1964 = vadd.xlane.f32.xlu0 %v1837
          %v1965 = vpop.xlane.xlu0 %1964
          %1966 = vadd.xlane.f32.xlu0 %v1839
          %v1967 = vpop.xlane.xlu0 %1966
          %1968 = vadd.xlane.f32.xlu0 %v1841
          %v1969 = vpop.xlane.xlu0 %1968
          %1970 = vadd.xlane.f32.xlu0 %v1843
          %v1971 = vpop.xlane.xlu0 %1970
          %1972 = vadd.xlane.f32.xlu0 %v1845
          %v1973 = vpop.xlane.xlu0 %1972
          %1974 = vadd.xlane.f32.xlu0 %v1847
          %v1975 = vpop.xlane.xlu0 %1974
          %1976 = vadd.xlane.f32.xlu0 %v1849
          %v1977 = vpop.xlane.xlu0 %1976
          %1978 = vadd.xlane.f32.xlu0 %v1851
          %v1979 = vpop.xlane.xlu0 %1978
          %1980 = vadd.xlane.f32.xlu0 %v1853
          %v1981 = vpop.xlane.xlu0 %1980
          %1982 = vadd.xlane.f32.xlu0 %v1855
          %v1983 = vpop.xlane.xlu0 %1982
          %1984 = vadd.xlane.f32.xlu0 %v1857
          %v1985 = vpop.xlane.xlu0 %1984
          %1986 = vadd.xlane.f32.xlu0 %v1859
          %v1987 = vpop.xlane.xlu0 %1986
          %1988 = vadd.xlane.f32.xlu0 %v1861
          %v1989 = vpop.xlane.xlu0 %1988
          %v1990 = vadd.f32 %v1894, %v1927
          %v1991 = vadd.f32 %v1895, %v1929
          %v1992 = vadd.f32 %v1896, %v1931
          %v1993 = vadd.f32 %v1897, %v1933
          %v1994 = vadd.f32 %v1898, %v1935
          %v1995 = vadd.f32 %v1899, %v1937
          %v1996 = vadd.f32 %v1900, %v1939
          %v1997 = vadd.f32 %v1901, %v1941
          %v1998 = vadd.f32 %v1902, %v1943
          %v1999 = vadd.f32 %v1903, %v1945
          %v2000 = vadd.f32 %v1904, %v1947
          %v2001 = vadd.f32 %v1905, %v1949
          %v2002 = vadd.f32 %v1906, %v1951
          %v2003 = vadd.f32 %v1907, %v1953
          %v2004 = vadd.f32 %v1908, %v1955
          %v2005 = vadd.f32 %v1909, %v1957
          %v2006 = vadd.f32 %v1910, %v1959
          %v2007 = vadd.f32 %v1911, %v1961
          %v2008 = vadd.f32 %v1912, %v1963
          %v2009 = vadd.f32 %v1913, %v1965
          %v2010 = vadd.f32 %v1914, %v1967
          %v2011 = vadd.f32 %v1915, %v1969
          %v2012 = vadd.f32 %v1916, %v1971
          %v2013 = vadd.f32 %v1917, %v1973
          %v2014 = vadd.f32 %v1918, %v1975
          %v2015 = vadd.f32 %v1919, %v1977
          %v2016 = vadd.f32 %v1920, %v1979
          %v2017 = vadd.f32 %v1921, %v1981
          %v2018 = vadd.f32 %v1922, %v1983
          %v2019 = vadd.f32 %v1923, %v1985
          %v2020 = vadd.f32 %v1924, %v1987
          %v2021 = vadd.f32 %v1925, %v1989
          %vm2022 = vcmask 7168
          %2023 = vst.msk [vmem:[#allocation4] sm:$0xff] %vm2022, %v1990
          %2024 = vst.msk [vmem:[#allocation4 + $0x8] sm:$0xff] %vm2022, %v1991
          %2025 = vst.msk [vmem:[#allocation4 + $0x10] sm:$0xff] %vm2022, %v1992
          %2026 = vst.msk [vmem:[#allocation4 + $0x18] sm:$0xff] %vm2022, %v1993
          %2027 = vst.msk [vmem:[#allocation4 + $0x20] sm:$0xff] %vm2022, %v1994
          %2028 = vst.msk [vmem:[#allocation4 + $0x28] sm:$0xff] %vm2022, %v1995
          %2029 = vst.msk [vmem:[#allocation4 + $0x30] sm:$0xff] %vm2022, %v1996
          %2030 = vst.msk [vmem:[#allocation4 + $0x38] sm:$0xff] %vm2022, %v1997
          %2031 = vst.msk [vmem:[#allocation4 + $0x40] sm:$0xff] %vm2022, %v1998
          %2032 = vst.msk [vmem:[#allocation4 + $0x48] sm:$0xff] %vm2022, %v1999
          %2033 = vst.msk [vmem:[#allocation4 + $0x50] sm:$0xff] %vm2022, %v2000
          %2034 = vst.msk [vmem:[#allocation4 + $0x58] sm:$0xff] %vm2022, %v2001
          %2035 = vst.msk [vmem:[#allocation4 + $0x60] sm:$0xff] %vm2022, %v2002
          %2036 = vst.msk [vmem:[#allocation4 + $0x68] sm:$0xff] %vm2022, %v2003
          %2037 = vst.msk [vmem:[#allocation4 + $0x70] sm:$0xff] %vm2022, %v2004
          %2038 = vst.msk [vmem:[#allocation4 + $0x78] sm:$0xff] %vm2022, %v2005
          %2039 = vst.msk [vmem:[#allocation4 + $0x80] sm:$0xff] %vm2022, %v2006
          %2040 = vst.msk [vmem:[#allocation4 + $0x88] sm:$0xff] %vm2022, %v2007
          %2041 = vst.msk [vmem:[#allocation4 + $0x90] sm:$0xff] %vm2022, %v2008
          %2042 = vst.msk [vmem:[#allocation4 + $0x98] sm:$0xff] %vm2022, %v2009
          %2043 = vst.msk [vmem:[#allocation4 + $0xa0] sm:$0xff] %vm2022, %v2010
          %2044 = vst.msk [vmem:[#allocation4 + $0xa8] sm:$0xff] %vm2022, %v2011
          %2045 = vst.msk [vmem:[#allocation4 + $0xb0] sm:$0xff] %vm2022, %v2012
          %2046 = vst.msk [vmem:[#allocation4 + $0xb8] sm:$0xff] %vm2022, %v2013
          %2047 = vst.msk [vmem:[#allocation4 + $0xc0] sm:$0xff] %vm2022, %v2014
          %2048 = vst.msk [vmem:[#allocation4 + $0xc8] sm:$0xff] %vm2022, %v2015
          %2049 = vst.msk [vmem:[#allocation4 + $0xd0] sm:$0xff] %vm2022, %v2016
          %2050 = vst.msk [vmem:[#allocation4 + $0xd8] sm:$0xff] %vm2022, %v2017
          %2051 = vst.msk [vmem:[#allocation4 + $0xe0] sm:$0xff] %vm2022, %v2018
          %2052 = vst.msk [vmem:[#allocation4 + $0xe8] sm:$0xff] %vm2022, %v2019
          %2053 = vst.msk [vmem:[#allocation4 + $0xf0] sm:$0xff] %vm2022, %v2020
          %2054 = vst.msk [vmem:[#allocation4 + $0xf8] sm:$0xff] %vm2022, %v2021
          %v2055 = vld [vmem:[#allocation5] sm:$0xff]
          %v2056 = vld [vmem:[#allocation5 + $0x8] sm:$0xff]
          %v2057 = vld [vmem:[#allocation5 + $0x10] sm:$0xff]
          %v2058 = vld [vmem:[#allocation5 + $0x18] sm:$0xff]
          %v2059 = vld [vmem:[#allocation5 + $0x20] sm:$0xff]
          %v2060 = vld [vmem:[#allocation5 + $0x28] sm:$0xff]
          %v2061 = vld [vmem:[#allocation5 + $0x30] sm:$0xff]
          %v2062 = vld [vmem:[#allocation5 + $0x38] sm:$0xff]
          %v2063 = vld [vmem:[#allocation5 + $0x40] sm:$0xff]
          %v2064 = vld [vmem:[#allocation5 + $0x48] sm:$0xff]
          %v2065 = vld [vmem:[#allocation5 + $0x50] sm:$0xff]
          %v2066 = vld [vmem:[#allocation5 + $0x58] sm:$0xff]
          %v2067 = vld [vmem:[#allocation5 + $0x60] sm:$0xff]
          %v2068 = vld [vmem:[#allocation5 + $0x68] sm:$0xff]
          %v2069 = vld [vmem:[#allocation5 + $0x70] sm:$0xff]
          %v2070 = vld [vmem:[#allocation5 + $0x78] sm:$0xff]
          %v2071 = vld [vmem:[#allocation5 + $0x80] sm:$0xff]
          %v2072 = vld [vmem:[#allocation5 + $0x88] sm:$0xff]
          %v2073 = vld [vmem:[#allocation5 + $0x90] sm:$0xff]
          %v2074 = vld [vmem:[#allocation5 + $0x98] sm:$0xff]
          %v2075 = vld [vmem:[#allocation5 + $0xa0] sm:$0xff]
          %v2076 = vld [vmem:[#allocation5 + $0xa8] sm:$0xff]
          %v2077 = vld [vmem:[#allocation5 + $0xb0] sm:$0xff]
          %v2078 = vld [vmem:[#allocation5 + $0xb8] sm:$0xff]
          %v2079 = vld [vmem:[#allocation5 + $0xc0] sm:$0xff]
          %v2080 = vld [vmem:[#allocation5 + $0xc8] sm:$0xff]
          %v2081 = vld [vmem:[#allocation5 + $0xd0] sm:$0xff]
          %v2082 = vld [vmem:[#allocation5 + $0xd8] sm:$0xff]
          %v2083 = vld [vmem:[#allocation5 + $0xe0] sm:$0xff]
          %v2084 = vld [vmem:[#allocation5 + $0xe8] sm:$0xff]
          %v2085 = vld [vmem:[#allocation5 + $0xf0] sm:$0xff]
          %v2086 = vld [vmem:[#allocation5 + $0xf8] sm:$0xff]
          %2088 = vset.pattern.permute.xlu0 0
          %2089 = vperm.xlu0 %2088, %v1543
          %v2090 = vpop.permute.xlu0 %2089
          %2093 = vset.pattern.permute.xlu0 0
          %2094 = vperm.xlu0 %2093, %v1545
          %v2095 = vpop.permute.xlu0 %2094
          %2098 = vset.pattern.permute.xlu0 0
          %2099 = vperm.xlu0 %2098, %v1547
          %v2100 = vpop.permute.xlu0 %2099
          %2103 = vset.pattern.permute.xlu0 0
          %2104 = vperm.xlu0 %2103, %v1549
          %v2105 = vpop.permute.xlu0 %2104
          %2108 = vset.pattern.permute.xlu0 0
          %2109 = vperm.xlu0 %2108, %v1551
          %v2110 = vpop.permute.xlu0 %2109
          %2113 = vset.pattern.permute.xlu0 0
          %2114 = vperm.xlu0 %2113, %v1553
          %v2115 = vpop.permute.xlu0 %2114
          %2118 = vset.pattern.permute.xlu0 0
          %2119 = vperm.xlu0 %2118, %v1555
          %v2120 = vpop.permute.xlu0 %2119
          %2123 = vset.pattern.permute.xlu0 0
          %2124 = vperm.xlu0 %2123, %v1557
          %v2125 = vpop.permute.xlu0 %2124
          %2128 = vset.pattern.permute.xlu0 0
          %2129 = vperm.xlu0 %2128, %v1559
          %v2130 = vpop.permute.xlu0 %2129
          %2133 = vset.pattern.permute.xlu0 0
          %2134 = vperm.xlu0 %2133, %v1561
          %v2135 = vpop.permute.xlu0 %2134
          %2138 = vset.pattern.permute.xlu0 0
          %2139 = vperm.xlu0 %2138, %v1563
          %v2140 = vpop.permute.xlu0 %2139
          %2143 = vset.pattern.permute.xlu0 0
          %2144 = vperm.xlu0 %2143, %v1565
          %v2145 = vpop.permute.xlu0 %2144
          %2148 = vset.pattern.permute.xlu0 0
          %2149 = vperm.xlu0 %2148, %v1567
          %v2150 = vpop.permute.xlu0 %2149
          %2153 = vset.pattern.permute.xlu0 0
          %2154 = vperm.xlu0 %2153, %v1569
          %v2155 = vpop.permute.xlu0 %2154
          %2158 = vset.pattern.permute.xlu0 0
          %2159 = vperm.xlu0 %2158, %v1571
          %v2160 = vpop.permute.xlu0 %2159
          %2163 = vset.pattern.permute.xlu0 0
          %2164 = vperm.xlu0 %2163, %v1573
          %v2165 = vpop.permute.xlu0 %2164
          %2168 = vset.pattern.permute.xlu0 0
          %2169 = vperm.xlu0 %2168, %v1575
          %v2170 = vpop.permute.xlu0 %2169
          %2173 = vset.pattern.permute.xlu0 0
          %2174 = vperm.xlu0 %2173, %v1577
          %v2175 = vpop.permute.xlu0 %2174
          %2178 = vset.pattern.permute.xlu0 0
          %2179 = vperm.xlu0 %2178, %v1579
          %v2180 = vpop.permute.xlu0 %2179
          %2183 = vset.pattern.permute.xlu0 0
          %2184 = vperm.xlu0 %2183, %v1581
          %v2185 = vpop.permute.xlu0 %2184
          %2188 = vset.pattern.permute.xlu0 0
          %2189 = vperm.xlu0 %2188, %v1583
          %v2190 = vpop.permute.xlu0 %2189
          %2193 = vset.pattern.permute.xlu0 0
          %2194 = vperm.xlu0 %2193, %v1585
          %v2195 = vpop.permute.xlu0 %2194
          %2198 = vset.pattern.permute.xlu0 0
          %2199 = vperm.xlu0 %2198, %v1587
          %v2200 = vpop.permute.xlu0 %2199
          %2203 = vset.pattern.permute.xlu0 0
          %2204 = vperm.xlu0 %2203, %v1589
          %v2205 = vpop.permute.xlu0 %2204
          %2208 = vset.pattern.permute.xlu0 0
          %2209 = vperm.xlu0 %2208, %v1591
          %v2210 = vpop.permute.xlu0 %2209
          %2213 = vset.pattern.permute.xlu0 0
          %2214 = vperm.xlu0 %2213, %v1593
          %v2215 = vpop.permute.xlu0 %2214
          %2218 = vset.pattern.permute.xlu0 0
          %2219 = vperm.xlu0 %2218, %v1595
          %v2220 = vpop.permute.xlu0 %2219
          %2223 = vset.pattern.permute.xlu0 0
          %2224 = vperm.xlu0 %2223, %v1597
          %v2225 = vpop.permute.xlu0 %2224
          %2228 = vset.pattern.permute.xlu0 0
          %2229 = vperm.xlu0 %2228, %v1599
          %v2230 = vpop.permute.xlu0 %2229
          %2233 = vset.pattern.permute.xlu0 0
          %2234 = vperm.xlu0 %2233, %v1601
          %v2235 = vpop.permute.xlu0 %2234
          %2238 = vset.pattern.permute.xlu0 0
          %2239 = vperm.xlu0 %2238, %v1603
          %v2240 = vpop.permute.xlu0 %2239
          %2243 = vset.pattern.permute.xlu0 0
          %2244 = vperm.xlu0 %2243, %v1605
          %v2245 = vpop.permute.xlu0 %2244
          %v2247 = vmul.f32 %v2090, %v2055
          %v2248 = vmul.f32 %v2095, %v2056
          %v2249 = vmul.f32 %v2100, %v2057
          %v2250 = vmul.f32 %v2105, %v2058
          %v2251 = vmul.f32 %v2110, %v2059
          %v2252 = vmul.f32 %v2115, %v2060
          %v2253 = vmul.f32 %v2120, %v2061
          %v2254 = vmul.f32 %v2125, %v2062
          %v2255 = vmul.f32 %v2130, %v2063
          %v2256 = vmul.f32 %v2135, %v2064
          %v2257 = vmul.f32 %v2140, %v2065
          %v2258 = vmul.f32 %v2145, %v2066
          %v2259 = vmul.f32 %v2150, %v2067
          %v2260 = vmul.f32 %v2155, %v2068
          %v2261 = vmul.f32 %v2160, %v2069
          %v2262 = vmul.f32 %v2165, %v2070
          %v2263 = vmul.f32 %v2170, %v2071
          %v2264 = vmul.f32 %v2175, %v2072
          %v2265 = vmul.f32 %v2180, %v2073
          %v2266 = vmul.f32 %v2185, %v2074
          %v2267 = vmul.f32 %v2190, %v2075
          %v2268 = vmul.f32 %v2195, %v2076
          %v2269 = vmul.f32 %v2200, %v2077
          %v2270 = vmul.f32 %v2205, %v2078
          %v2271 = vmul.f32 %v2210, %v2079
          %v2272 = vmul.f32 %v2215, %v2080
          %v2273 = vmul.f32 %v2220, %v2081
          %v2274 = vmul.f32 %v2225, %v2082
          %v2275 = vmul.f32 %v2230, %v2083
          %v2276 = vmul.f32 %v2235, %v2084
          %v2277 = vmul.f32 %v2240, %v2085
          %v2278 = vmul.f32 %v2245, %v2086
          %v2279 = vpack.c.bf16 %v1801, %v1799
          %v2280 = vpack.c.bf16 %v1805, %v1803
          %v2281 = vpack.c.bf16 %v1809, %v1807
          %v2282 = vpack.c.bf16 %v1813, %v1811
          %v2283 = vpack.c.bf16 %v1817, %v1815
          %v2284 = vpack.c.bf16 %v1821, %v1819
          %v2285 = vpack.c.bf16 %v1825, %v1823
          %v2286 = vpack.c.bf16 %v1829, %v1827
          %v2287 = vpack.c.bf16 %v1833, %v1831
          %v2288 = vpack.c.bf16 %v1837, %v1835
          %v2289 = vpack.c.bf16 %v1841, %v1839
          %v2290 = vpack.c.bf16 %v1845, %v1843
          %v2291 = vpack.c.bf16 %v1849, %v1847
          %v2292 = vpack.c.bf16 %v1853, %v1851
          %v2293 = vpack.c.bf16 %v1857, %v1855
          %v2294 = vpack.c.bf16 %v1861, %v1859
          %2295 = vrot.lane.b32.xlu0 %v589, 64
          %v2296 = vpop.permute.xlu0 %2295
          %2297 = vrot.lane.b32.xlu0 %v590, 64
          %v2298 = vpop.permute.xlu0 %2297
          %2299 = vrot.lane.b32.xlu0 %v591, 64
          %v2300 = vpop.permute.xlu0 %2299
          %2301 = vrot.lane.b32.xlu0 %v592, 64
          %v2302 = vpop.permute.xlu0 %2301
          %2303 = vrot.lane.b32.xlu0 %v593, 64
          %v2304 = vpop.permute.xlu0 %2303
          %2305 = vrot.lane.b32.xlu0 %v594, 64
          %v2306 = vpop.permute.xlu0 %2305
          %2307 = vrot.lane.b32.xlu0 %v595, 64
          %v2308 = vpop.permute.xlu0 %2307
          %2309 = vrot.lane.b32.xlu0 %v596, 64
          %v2310 = vpop.permute.xlu0 %2309
          %2319 = vmatprep.subr.bf16.mxu0 0
          %2320 = vmatpush1.bf16.msra.mxu0 %v2296
          %2321 = vmatprep.subr.bf16.mxu0 0
          %2322 = vmatpush1.bf16.msra.mxu0 %v2298
          %2323 = vmatprep.subr.bf16.mxu0 0
          %2324 = vmatpush1.bf16.msra.mxu0 %v2300
          %2325 = vmatprep.subr.bf16.mxu0 0
          %2326 = vmatpush1.bf16.msra.mxu0 %v2302
          %2327 = vmatprep.subr.bf16.mxu0 0
          %2328 = vmatpush1.bf16.msra.mxu0 %v2304
          %2329 = vmatprep.subr.bf16.mxu0 0
          %2330 = vmatpush1.bf16.msra.mxu0 %v2306
          %2331 = vmatprep.subr.bf16.mxu0 0
          %2332 = vmatpush1.bf16.msra.mxu0 %v2308
          %2333 = vmatprep.subr.bf16.mxu0 0
          %2334 = vmatpush1.bf16.msra.mxu0 %v2310
          %2335 = vmatprep.subr.bf16.mxu0 0
          %2336 = vmatpush1.bf16.msra.mxu0 0
          %2337 = vmatprep.subr.bf16.mxu0 0
          %2338 = vmatpush1.bf16.msra.mxu0 0
          %2339 = vmatprep.subr.bf16.mxu0 0
          %2340 = vmatpush1.bf16.msra.mxu0 0
          %2341 = vmatprep.subr.bf16.mxu0 0
          %2342 = vmatpush1.bf16.msra.mxu0 0
          %2343 = vmatprep.subr.bf16.mxu0 0
          %2344 = vmatpush1.bf16.msra.mxu0 0
          %2345 = vmatprep.subr.bf16.mxu0 0
          %2346 = vmatpush1.bf16.msra.mxu0 0
          %2347 = vmatprep.subr.bf16.mxu0 0
          %2348 = vmatpush1.bf16.msra.mxu0 0
          %2349 = vmatprep.subr.bf16.mxu0 0
          %2350 = vmatpush1.bf16.msra.mxu0 0
          %2351 = vmatprep.mubr.bf16.mxu0 0
          %2352 = vmatmul.mubr.bf16.gmra.mrb[0].mxu0 %v2279
          %v2353 = vpop.f32.mrb[0].mxu0
          %v2354 = vadd.f32 0.0, %v2353
          %v2355 = vpop.f32.mrb[0].mxu0
          %v2356 = vpop.f32.mrb[0].mxu0
          %v2357 = vadd.f32 0.0, %v2356
          %v2358 = vpop.f32.mrb[0].mxu0
          %2359 = vmatprep.mubr.bf16.mxu0 0
          %2360 = vmatmul.mubr.bf16.gmra.mrb[0].mxu0 %v2280
          %v2361 = vpop.f32.mrb[0].mxu0
          %v2362 = vadd.f32 0.0, %v2361
          %v2363 = vpop.f32.mrb[0].mxu0
          %v2364 = vpop.f32.mrb[0].mxu0
          %v2365 = vadd.f32 0.0, %v2364
          %v2366 = vpop.f32.mrb[0].mxu0
          %2367 = vmatprep.mubr.bf16.mxu0 0
          %2368 = vmatmul.mubr.bf16.gmra.mrb[0].mxu0 %v2281
          %v2369 = vpop.f32.mrb[0].mxu0
          %v2370 = vadd.f32 0.0, %v2369
          %v2371 = vpop.f32.mrb[0].mxu0
          %v2372 = vpop.f32.mrb[0].mxu0
          %v2373 = vadd.f32 0.0, %v2372
          %v2374 = vpop.f32.mrb[0].mxu0
          %2375 = vmatprep.mubr.bf16.mxu0 0
          %2376 = vmatmul.mubr.bf16.gmra.mrb[0].mxu0 %v2282
          %v2377 = vpop.f32.mrb[0].mxu0
          %v2378 = vadd.f32 0.0, %v2377
          %v2379 = vpop.f32.mrb[0].mxu0
          %v2380 = vpop.f32.mrb[0].mxu0
          %v2381 = vadd.f32 0.0, %v2380
          %v2382 = vpop.f32.mrb[0].mxu0
          %2383 = vmatprep.mubr.bf16.mxu0 0
          %2384 = vmatmul.mubr.bf16.gmra.mrb[0].mxu0 %v2283
          %v2385 = vpop.f32.mrb[0].mxu0
          %v2386 = vadd.f32 0.0, %v2385
          %v2387 = vpop.f32.mrb[0].mxu0
          %v2388 = vpop.f32.mrb[0].mxu0
          %v2389 = vadd.f32 0.0, %v2388
          %v2390 = vpop.f32.mrb[0].mxu0
          %2391 = vmatprep.mubr.bf16.mxu0 0
          %2392 = vmatmul.mubr.bf16.gmra.mrb[0].mxu0 %v2284
          %v2393 = vpop.f32.mrb[0].mxu0
          %v2394 = vadd.f32 0.0, %v2393
          %v2395 = vpop.f32.mrb[0].mxu0
          %v2396 = vpop.f32.mrb[0].mxu0
          %v2397 = vadd.f32 0.0, %v2396
          %v2398 = vpop.f32.mrb[0].mxu0
          %2399 = vmatprep.mubr.bf16.mxu0 0
          %2400 = vmatmul.mubr.bf16.gmra.mrb[0].mxu0 %v2285
          %v2401 = vpop.f32.mrb[0].mxu0
          %v2402 = vadd.f32 0.0, %v2401
          %v2403 = vpop.f32.mrb[0].mxu0
          %v2404 = vpop.f32.mrb[0].mxu0
          %v2405 = vadd.f32 0.0, %v2404
          %v2406 = vpop.f32.mrb[0].mxu0
          %2407 = vmatprep.mubr.bf16.mxu0 0
          %2408 = vmatmul.mubr.bf16.gmra.mrb[0].mxu0 %v2286
          %v2409 = vpop.f32.mrb[0].mxu0
          %v2410 = vadd.f32 0.0, %v2409
          %v2411 = vpop.f32.mrb[0].mxu0
          %v2412 = vpop.f32.mrb[0].mxu0
          %v2413 = vadd.f32 0.0, %v2412
          %v2414 = vpop.f32.mrb[0].mxu0
          %2415 = vmatprep.mubr.bf16.mxu0 0
          %2416 = vmatmul.mubr.bf16.gmra.mrb[0].mxu0 %v2287
          %v2417 = vpop.f32.mrb[0].mxu0
          %v2418 = vadd.f32 0.0, %v2417
          %v2419 = vpop.f32.mrb[0].mxu0
          %v2420 = vpop.f32.mrb[0].mxu0
          %v2421 = vadd.f32 0.0, %v2420
          %v2422 = vpop.f32.mrb[0].mxu0
          %2423 = vmatprep.mubr.bf16.mxu0 0
          %2424 = vmatmul.mubr.bf16.gmra.mrb[0].mxu0 %v2288
          %v2425 = vpop.f32.mrb[0].mxu0
          %v2426 = vadd.f32 0.0, %v2425
          %v2427 = vpop.f32.mrb[0].mxu0
          %v2428 = vpop.f32.mrb[0].mxu0
          %v2429 = vadd.f32 0.0, %v2428
          %v2430 = vpop.f32.mrb[0].mxu0
          %2431 = vmatprep.mubr.bf16.mxu0 0
          %2432 = vmatmul.mubr.bf16.gmra.mrb[0].mxu0 %v2289
          %v2433 = vpop.f32.mrb[0].mxu0
          %v2434 = vadd.f32 0.0, %v2433
          %v2435 = vpop.f32.mrb[0].mxu0
          %v2436 = vpop.f32.mrb[0].mxu0
          %v2437 = vadd.f32 0.0, %v2436
          %v2438 = vpop.f32.mrb[0].mxu0
          %2439 = vmatprep.mubr.bf16.mxu0 0
          %2440 = vmatmul.mubr.bf16.gmra.mrb[0].mxu0 %v2290
          %v2441 = vpop.f32.mrb[0].mxu0
          %v2442 = vadd.f32 0.0, %v2441
          %v2443 = vpop.f32.mrb[0].mxu0
          %v2444 = vpop.f32.mrb[0].mxu0
          %v2445 = vadd.f32 0.0, %v2444
          %v2446 = vpop.f32.mrb[0].mxu0
          %2447 = vmatprep.mubr.bf16.mxu0 0
          %2448 = vmatmul.mubr.bf16.gmra.mrb[0].mxu0 %v2291
          %v2449 = vpop.f32.mrb[0].mxu0
          %v2450 = vadd.f32 0.0, %v2449
          %v2451 = vpop.f32.mrb[0].mxu0
          %v2452 = vpop.f32.mrb[0].mxu0
          %v2453 = vadd.f32 0.0, %v2452
          %v2454 = vpop.f32.mrb[0].mxu0
          %2455 = vmatprep.mubr.bf16.mxu0 0
          %2456 = vmatmul.mubr.bf16.gmra.mrb[0].mxu0 %v2292
          %v2457 = vpop.f32.mrb[0].mxu0
          %v2458 = vadd.f32 0.0, %v2457
          %v2459 = vpop.f32.mrb[0].mxu0
          %v2460 = vpop.f32.mrb[0].mxu0
          %v2461 = vadd.f32 0.0, %v2460
          %v2462 = vpop.f32.mrb[0].mxu0
          %2463 = vmatprep.mubr.bf16.mxu0 0
          %2464 = vmatmul.mubr.bf16.gmra.mrb[0].mxu0 %v2293
          %v2465 = vpop.f32.mrb[0].mxu0
          %v2466 = vadd.f32 0.0, %v2465
          %v2467 = vpop.f32.mrb[0].mxu0
          %v2468 = vpop.f32.mrb[0].mxu0
          %v2469 = vadd.f32 0.0, %v2468
          %v2470 = vpop.f32.mrb[0].mxu0
          %2471 = vmatprep.mubr.bf16.mxu0 0
          %2472 = vmatmul.mubr.bf16.gmra.mrb[0].mxu0 %v2294
          %v2473 = vpop.f32.mrb[0].mxu0
          %v2474 = vadd.f32 0.0, %v2473
          %v2475 = vpop.f32.mrb[0].mxu0
          %v2476 = vpop.f32.mrb[0].mxu0
          %v2477 = vadd.f32 0.0, %v2476
          %v2478 = vpop.f32.mrb[0].mxu0
          %2479 = vdwg.mxu0
          %v2480 = vadd.f32 %v2247, %v2354
          %v2481 = vadd.f32 %v2248, %v2357
          %v2482 = vadd.f32 %v2249, %v2362
          %v2483 = vadd.f32 %v2250, %v2365
          %v2484 = vadd.f32 %v2251, %v2370
          %v2485 = vadd.f32 %v2252, %v2373
          %v2486 = vadd.f32 %v2253, %v2378
          %v2487 = vadd.f32 %v2254, %v2381
          %v2488 = vadd.f32 %v2255, %v2386
          %v2489 = vadd.f32 %v2256, %v2389
          %v2490 = vadd.f32 %v2257, %v2394
          %v2491 = vadd.f32 %v2258, %v2397
          %v2492 = vadd.f32 %v2259, %v2402
          %v2493 = vadd.f32 %v2260, %v2405
          %v2494 = vadd.f32 %v2261, %v2410
          %v2495 = vadd.f32 %v2262, %v2413
          %v2496 = vadd.f32 %v2263, %v2418
          %v2497 = vadd.f32 %v2264, %v2421
          %v2498 = vadd.f32 %v2265, %v2426
          %v2499 = vadd.f32 %v2266, %v2429
          %v2500 = vadd.f32 %v2267, %v2434
          %v2501 = vadd.f32 %v2268, %v2437
          %v2502 = vadd.f32 %v2269, %v2442
          %v2503 = vadd.f32 %v2270, %v2445
          %v2504 = vadd.f32 %v2271, %v2450
          %v2505 = vadd.f32 %v2272, %v2453
          %v2506 = vadd.f32 %v2273, %v2458
          %v2507 = vadd.f32 %v2274, %v2461
          %v2508 = vadd.f32 %v2275, %v2466
          %v2509 = vadd.f32 %v2276, %v2469
          %v2510 = vadd.f32 %v2277, %v2474
          %v2511 = vadd.f32 %v2278, %v2477
          %2512 = vst.msk [vmem:[#allocation5] sm:$0xff] %vm597, %v2480
          %2513 = vst.msk [vmem:[#allocation5 + $0x8] sm:$0xff] %vm597, %v2481
          %2514 = vst.msk [vmem:[#allocation5 + $0x10] sm:$0xff] %vm597, %v2482
          %2515 = vst.msk [vmem:[#allocation5 + $0x18] sm:$0xff] %vm597, %v2483
          %2516 = vst.msk [vmem:[#allocation5 + $0x20] sm:$0xff] %vm597, %v2484
          %2517 = vst.msk [vmem:[#allocation5 + $0x28] sm:$0xff] %vm597, %v2485
          %2518 = vst.msk [vmem:[#allocation5 + $0x30] sm:$0xff] %vm597, %v2486
          %2519 = vst.msk [vmem:[#allocation5 + $0x38] sm:$0xff] %vm597, %v2487
          %2520 = vst.msk [vmem:[#allocation5 + $0x40] sm:$0xff] %vm597, %v2488
          %2521 = vst.msk [vmem:[#allocation5 + $0x48] sm:$0xff] %vm597, %v2489
          %2522 = vst.msk [vmem:[#allocation5 + $0x50] sm:$0xff] %vm597, %v2490
          %2523 = vst.msk [vmem:[#allocation5 + $0x58] sm:$0xff] %vm597, %v2491
          %2524 = vst.msk [vmem:[#allocation5 + $0x60] sm:$0xff] %vm597, %v2492
          %2525 = vst.msk [vmem:[#allocation5 + $0x68] sm:$0xff] %vm597, %v2493
          %2526 = vst.msk [vmem:[#allocation5 + $0x70] sm:$0xff] %vm597, %v2494
          %2527 = vst.msk [vmem:[#allocation5 + $0x78] sm:$0xff] %vm597, %v2495
          %2528 = vst.msk [vmem:[#allocation5 + $0x80] sm:$0xff] %vm597, %v2496
          %2529 = vst.msk [vmem:[#allocation5 + $0x88] sm:$0xff] %vm597, %v2497
          %2530 = vst.msk [vmem:[#allocation5 + $0x90] sm:$0xff] %vm597, %v2498
          %2531 = vst.msk [vmem:[#allocation5 + $0x98] sm:$0xff] %vm597, %v2499
          %2532 = vst.msk [vmem:[#allocation5 + $0xa0] sm:$0xff] %vm597, %v2500
          %2533 = vst.msk [vmem:[#allocation5 + $0xa8] sm:$0xff] %vm597, %v2501
          %2534 = vst.msk [vmem:[#allocation5 + $0xb0] sm:$0xff] %vm597, %v2502
          %2535 = vst.msk [vmem:[#allocation5 + $0xb8] sm:$0xff] %vm597, %v2503
          %2536 = vst.msk [vmem:[#allocation5 + $0xc0] sm:$0xff] %vm597, %v2504
          %2537 = vst.msk [vmem:[#allocation5 + $0xc8] sm:$0xff] %vm597, %v2505
          %2538 = vst.msk [vmem:[#allocation5 + $0xd0] sm:$0xff] %vm597, %v2506
          %2539 = vst.msk [vmem:[#allocation5 + $0xd8] sm:$0xff] %vm597, %v2507
          %2540 = vst.msk [vmem:[#allocation5 + $0xe0] sm:$0xff] %vm597, %v2508
          %2541 = vst.msk [vmem:[#allocation5 + $0xe8] sm:$0xff] %vm597, %v2509
          %2542 = vst.msk [vmem:[#allocation5 + $0xf0] sm:$0xff] %vm597, %v2510
          %2543 = vst.msk [vmem:[#allocation5 + $0xf8] sm:$0xff] %vm597, %v2511
          %2544 = vst.msk [vmem:[#allocation3] sm:$0xff] %vm2022, %v1478
          %2545 = vst.msk [vmem:[#allocation3 + $0x8] sm:$0xff] %vm2022, %v1479
          %2546 = vst.msk [vmem:[#allocation3 + $0x10] sm:$0xff] %vm2022, %v1480
          %2547 = vst.msk [vmem:[#allocation3 + $0x18] sm:$0xff] %vm2022, %v1481
          %2548 = vst.msk [vmem:[#allocation3 + $0x20] sm:$0xff] %vm2022, %v1482
          %2549 = vst.msk [vmem:[#allocation3 + $0x28] sm:$0xff] %vm2022, %v1483
          %2550 = vst.msk [vmem:[#allocation3 + $0x30] sm:$0xff] %vm2022, %v1484
          %2551 = vst.msk [vmem:[#allocation3 + $0x38] sm:$0xff] %vm2022, %v1485
          %2552 = vst.msk [vmem:[#allocation3 + $0x40] sm:$0xff] %vm2022, %v1486
          %2553 = vst.msk [vmem:[#allocation3 + $0x48] sm:$0xff] %vm2022, %v1487
          %2554 = vst.msk [vmem:[#allocation3 + $0x50] sm:$0xff] %vm2022, %v1488
          %2555 = vst.msk [vmem:[#allocation3 + $0x58] sm:$0xff] %vm2022, %v1489
          %2556 = vst.msk [vmem:[#allocation3 + $0x60] sm:$0xff] %vm2022, %v1490
          %2557 = vst.msk [vmem:[#allocation3 + $0x68] sm:$0xff] %vm2022, %v1491
          %2558 = vst.msk [vmem:[#allocation3 + $0x70] sm:$0xff] %vm2022, %v1492
          %2559 = vst.msk [vmem:[#allocation3 + $0x78] sm:$0xff] %vm2022, %v1493
          %2560 = vst.msk [vmem:[#allocation3 + $0x80] sm:$0xff] %vm2022, %v1494
          %2561 = vst.msk [vmem:[#allocation3 + $0x88] sm:$0xff] %vm2022, %v1495
          %2562 = vst.msk [vmem:[#allocation3 + $0x90] sm:$0xff] %vm2022, %v1496
          %2563 = vst.msk [vmem:[#allocation3 + $0x98] sm:$0xff] %vm2022, %v1497
          %2564 = vst.msk [vmem:[#allocation3 + $0xa0] sm:$0xff] %vm2022, %v1498
          %2565 = vst.msk [vmem:[#allocation3 + $0xa8] sm:$0xff] %vm2022, %v1499
          %2566 = vst.msk [vmem:[#allocation3 + $0xb0] sm:$0xff] %vm2022, %v1500
          %2567 = vst.msk [vmem:[#allocation3 + $0xb8] sm:$0xff] %vm2022, %v1501
          %2568 = vst.msk [vmem:[#allocation3 + $0xc0] sm:$0xff] %vm2022, %v1502
          %2569 = vst.msk [vmem:[#allocation3 + $0xc8] sm:$0xff] %vm2022, %v1503
          %2570 = vst.msk [vmem:[#allocation3 + $0xd0] sm:$0xff] %vm2022, %v1504
          %2571 = vst.msk [vmem:[#allocation3 + $0xd8] sm:$0xff] %vm2022, %v1505
          %2572 = vst.msk [vmem:[#allocation3 + $0xe0] sm:$0xff] %vm2022, %v1506
          %2573 = vst.msk [vmem:[#allocation3 + $0xe8] sm:$0xff] %vm2022, %v1507
          %2574 = vst.msk [vmem:[#allocation3 + $0xf0] sm:$0xff] %vm2022, %v1508
          %2575 = vst.msk [vmem:[#allocation3 + $0xf8] sm:$0xff] %vm2022, %v1509
        $region44: #{qwen_decoder_layer.6} parent=27 // pred_fallthru
          _
        %p2576 = scmp.eq.s32.totalorder %s31, 1
        // Predicated region
        $region45: #{qwen_decoder_layer.6} parent=27 // pred_check
          %p2577 = pneg %p2576
        $region46: #{qwen_decoder_layer.6} parent=27 // pred_check_branch
          %2579 = sbr.rel (%p2577) target = $region48
        $region47: #{qwen_decoder_layer.6} parent=27 // pred_region
          %v2580 = vld [vmem:[#allocation5] sm:$0xff]
          %v2581 = vld [vmem:[#allocation5 + $0x8] sm:$0xff]
          %v2582 = vld [vmem:[#allocation5 + $0x10] sm:$0xff]
          %v2583 = vld [vmem:[#allocation5 + $0x18] sm:$0xff]
          %v2584 = vld [vmem:[#allocation5 + $0x20] sm:$0xff]
          %v2585 = vld [vmem:[#allocation5 + $0x28] sm:$0xff]
          %v2586 = vld [vmem:[#allocation5 + $0x30] sm:$0xff]
          %v2587 = vld [vmem:[#allocation5 + $0x38] sm:$0xff]
          %v2588 = vld [vmem:[#allocation5 + $0x40] sm:$0xff]
          %v2589 = vld [vmem:[#allocation5 + $0x48] sm:$0xff]
          %v2590 = vld [vmem:[#allocation5 + $0x50] sm:$0xff]
          %v2591 = vld [vmem:[#allocation5 + $0x58] sm:$0xff]
          %v2592 = vld [vmem:[#allocation5 + $0x60] sm:$0xff]
          %v2593 = vld [vmem:[#allocation5 + $0x68] sm:$0xff]
          %v2594 = vld [vmem:[#allocation5 + $0x70] sm:$0xff]
          %v2595 = vld [vmem:[#allocation5 + $0x78] sm:$0xff]
          %v2596 = vld [vmem:[#allocation5 + $0x80] sm:$0xff]
          %v2597 = vld [vmem:[#allocation5 + $0x88] sm:$0xff]
          %v2598 = vld [vmem:[#allocation5 + $0x90] sm:$0xff]
          %v2599 = vld [vmem:[#allocation5 + $0x98] sm:$0xff]
          %v2600 = vld [vmem:[#allocation5 + $0xa0] sm:$0xff]
          %v2601 = vld [vmem:[#allocation5 + $0xa8] sm:$0xff]
          %v2602 = vld [vmem:[#allocation5 + $0xb0] sm:$0xff]
          %v2603 = vld [vmem:[#allocation5 + $0xb8] sm:$0xff]
          %v2604 = vld [vmem:[#allocation5 + $0xc0] sm:$0xff]
          %v2605 = vld [vmem:[#allocation5 + $0xc8] sm:$0xff]
          %v2606 = vld [vmem:[#allocation5 + $0xd0] sm:$0xff]
          %v2607 = vld [vmem:[#allocation5 + $0xd8] sm:$0xff]
          %v2608 = vld [vmem:[#allocation5 + $0xe0] sm:$0xff]
          %v2609 = vld [vmem:[#allocation5 + $0xe8] sm:$0xff]
          %v2610 = vld [vmem:[#allocation5 + $0xf0] sm:$0xff]
          %v2611 = vld [vmem:[#allocation5 + $0xf8] sm:$0xff]
          %v2612 = vld [vmem:[#allocation4] sm:$0xff]
          %v2613 = vld [vmem:[#allocation4 + $0x8] sm:$0xff]
          %v2614 = vld [vmem:[#allocation4 + $0x10] sm:$0xff]
          %v2615 = vld [vmem:[#allocation4 + $0x18] sm:$0xff]
          %v2616 = vld [vmem:[#allocation4 + $0x20] sm:$0xff]
          %v2617 = vld [vmem:[#allocation4 + $0x28] sm:$0xff]
          %v2618 = vld [vmem:[#allocation4 + $0x30] sm:$0xff]
          %v2619 = vld [vmem:[#allocation4 + $0x38] sm:$0xff]
          %v2620 = vld [vmem:[#allocation4 + $0x40] sm:$0xff]
          %v2621 = vld [vmem:[#allocation4 + $0x48] sm:$0xff]
          %v2622 = vld [vmem:[#allocation4 + $0x50] sm:$0xff]
          %v2623 = vld [vmem:[#allocation4 + $0x58] sm:$0xff]
          %v2624 = vld [vmem:[#allocation4 + $0x60] sm:$0xff]
          %v2625 = vld [vmem:[#allocation4 + $0x68] sm:$0xff]
          %v2626 = vld [vmem:[#allocation4 + $0x70] sm:$0xff]
          %v2627 = vld [vmem:[#allocation4 + $0x78] sm:$0xff]
          %v2628 = vld [vmem:[#allocation4 + $0x80] sm:$0xff]
          %v2629 = vld [vmem:[#allocation4 + $0x88] sm:$0xff]
          %v2630 = vld [vmem:[#allocation4 + $0x90] sm:$0xff]
          %v2631 = vld [vmem:[#allocation4 + $0x98] sm:$0xff]
          %v2632 = vld [vmem:[#allocation4 + $0xa0] sm:$0xff]
          %v2633 = vld [vmem:[#allocation4 + $0xa8] sm:$0xff]
          %v2634 = vld [vmem:[#allocation4 + $0xb0] sm:$0xff]
          %v2635 = vld [vmem:[#allocation4 + $0xb8] sm:$0xff]
          %v2636 = vld [vmem:[#allocation4 + $0xc0] sm:$0xff]
          %v2637 = vld [vmem:[#allocation4 + $0xc8] sm:$0xff]
          %v2638 = vld [vmem:[#allocation4 + $0xd0] sm:$0xff]
          %v2639 = vld [vmem:[#allocation4 + $0xd8] sm:$0xff]
          %v2640 = vld [vmem:[#allocation4 + $0xe0] sm:$0xff]
          %v2641 = vld [vmem:[#allocation4 + $0xe8] sm:$0xff]
          %v2642 = vld [vmem:[#allocation4 + $0xf0] sm:$0xff]
          %v2643 = vld [vmem:[#allocation4 + $0xf8] sm:$0xff]
          %2645 = vset.pattern.permute.xlu0 0
          %2646 = vperm.xlu0 %2645, %v2612
          %v2647 = vpop.permute.xlu0 %2646
          %2650 = vset.pattern.permute.xlu0 0
          %2651 = vperm.xlu0 %2650, %v2613
          %v2652 = vpop.permute.xlu0 %2651
          %2655 = vset.pattern.permute.xlu0 0
          %2656 = vperm.xlu0 %2655, %v2614
          %v2657 = vpop.permute.xlu0 %2656
          %2660 = vset.pattern.permute.xlu0 0
          %2661 = vperm.xlu0 %2660, %v2615
          %v2662 = vpop.permute.xlu0 %2661
          %2665 = vset.pattern.permute.xlu0 0
          %2666 = vperm.xlu0 %2665, %v2616
          %v2667 = vpop.permute.xlu0 %2666
          %2670 = vset.pattern.permute.xlu0 0
          %2671 = vperm.xlu0 %2670, %v2617
          %v2672 = vpop.permute.xlu0 %2671
          %2675 = vset.pattern.permute.xlu0 0
          %2676 = vperm.xlu0 %2675, %v2618
          %v2677 = vpop.permute.xlu0 %2676
          %2680 = vset.pattern.permute.xlu0 0
          %2681 = vperm.xlu0 %2680, %v2619
          %v2682 = vpop.permute.xlu0 %2681
          %2685 = vset.pattern.permute.xlu0 0
          %2686 = vperm.xlu0 %2685, %v2620
          %v2687 = vpop.permute.xlu0 %2686
          %2690 = vset.pattern.permute.xlu0 0
          %2691 = vperm.xlu0 %2690, %v2621
          %v2692 = vpop.permute.xlu0 %2691
          %2695 = vset.pattern.permute.xlu0 0
          %2696 = vperm.xlu0 %2695, %v2622
          %v2697 = vpop.permute.xlu0 %2696
          %2700 = vset.pattern.permute.xlu0 0
          %2701 = vperm.xlu0 %2700, %v2623
          %v2702 = vpop.permute.xlu0 %2701
          %2705 = vset.pattern.permute.xlu0 0
          %2706 = vperm.xlu0 %2705, %v2624
          %v2707 = vpop.permute.xlu0 %2706
          %2710 = vset.pattern.permute.xlu0 0
          %2711 = vperm.xlu0 %2710, %v2625
          %v2712 = vpop.permute.xlu0 %2711
          %2715 = vset.pattern.permute.xlu0 0
          %2716 = vperm.xlu0 %2715, %v2626
          %v2717 = vpop.permute.xlu0 %2716
          %2720 = vset.pattern.permute.xlu0 0
          %2721 = vperm.xlu0 %2720, %v2627
          %v2722 = vpop.permute.xlu0 %2721
          %2725 = vset.pattern.permute.xlu0 0
          %2726 = vperm.xlu0 %2725, %v2628
          %v2727 = vpop.permute.xlu0 %2726
          %2730 = vset.pattern.permute.xlu0 0
          %2731 = vperm.xlu0 %2730, %v2629
          %v2732 = vpop.permute.xlu0 %2731
          %2735 = vset.pattern.permute.xlu0 0
          %2736 = vperm.xlu0 %2735, %v2630
          %v2737 = vpop.permute.xlu0 %2736
          %2740 = vset.pattern.permute.xlu0 0
          %2741 = vperm.xlu0 %2740, %v2631
          %v2742 = vpop.permute.xlu0 %2741
          %2745 = vset.pattern.permute.xlu0 0
          %2746 = vperm.xlu0 %2745, %v2632
          %v2747 = vpop.permute.xlu0 %2746
          %2750 = vset.pattern.permute.xlu0 0
          %2751 = vperm.xlu0 %2750, %v2633
          %v2752 = vpop.permute.xlu0 %2751
          %2755 = vset.pattern.permute.xlu0 0
          %2756 = vperm.xlu0 %2755, %v2634
          %v2757 = vpop.permute.xlu0 %2756
          %2760 = vset.pattern.permute.xlu0 0
          %2761 = vperm.xlu0 %2760, %v2635
          %v2762 = vpop.permute.xlu0 %2761
          %2765 = vset.pattern.permute.xlu0 0
          %2766 = vperm.xlu0 %2765, %v2636
          %v2767 = vpop.permute.xlu0 %2766
          %2770 = vset.pattern.permute.xlu0 0
          %2771 = vperm.xlu0 %2770, %v2637
          %v2772 = vpop.permute.xlu0 %2771
          %2775 = vset.pattern.permute.xlu0 0
          %2776 = vperm.xlu0 %2775, %v2638
          %v2777 = vpop.permute.xlu0 %2776
          %2780 = vset.pattern.permute.xlu0 0
          %2781 = vperm.xlu0 %2780, %v2639
          %v2782 = vpop.permute.xlu0 %2781
          %2785 = vset.pattern.permute.xlu0 0
          %2786 = vperm.xlu0 %2785, %v2640
          %v2787 = vpop.permute.xlu0 %2786
          %2790 = vset.pattern.permute.xlu0 0
          %2791 = vperm.xlu0 %2790, %v2641
          %v2792 = vpop.permute.xlu0 %2791
          %2795 = vset.pattern.permute.xlu0 0
          %2796 = vperm.xlu0 %2795, %v2642
          %v2797 = vpop.permute.xlu0 %2796
          %2800 = vset.pattern.permute.xlu0 0
          %2801 = vperm.xlu0 %2800, %v2643
          %v2802 = vpop.permute.xlu0 %2801
          %v2804 = vrcp.pop %v2647
          %v2805 = vmul.f32 %v2580, %v2804
          %v2806 = vrcp.pop %v2652
          %v2807 = vmul.f32 %v2581, %v2806
          %v2808 = vrcp.pop %v2657
          %v2809 = vmul.f32 %v2582, %v2808
          %v2810 = vrcp.pop %v2662
          %v2811 = vmul.f32 %v2583, %v2810
          %v2812 = vrcp.pop %v2667
          %v2813 = vmul.f32 %v2584, %v2812
          %v2814 = vrcp.pop %v2672
          %v2815 = vmul.f32 %v2585, %v2814
          %v2816 = vrcp.pop %v2677
          %v2817 = vmul.f32 %v2586, %v2816
          %v2818 = vrcp.pop %v2682
          %v2819 = vmul.f32 %v2587, %v2818
          %v2820 = vrcp.pop %v2687
          %v2821 = vmul.f32 %v2588, %v2820
          %v2822 = vrcp.pop %v2692
          %v2823 = vmul.f32 %v2589, %v2822
          %v2824 = vrcp.pop %v2697
          %v2825 = vmul.f32 %v2590, %v2824
          %v2826 = vrcp.pop %v2702
          %v2827 = vmul.f32 %v2591, %v2826
          %v2828 = vrcp.pop %v2707
          %v2829 = vmul.f32 %v2592, %v2828
          %v2830 = vrcp.pop %v2712
          %v2831 = vmul.f32 %v2593, %v2830
          %v2832 = vrcp.pop %v2717
          %v2833 = vmul.f32 %v2594, %v2832
          %v2834 = vrcp.pop %v2722
          %v2835 = vmul.f32 %v2595, %v2834
          %v2836 = vrcp.pop %v2727
          %v2837 = vmul.f32 %v2596, %v2836
          %v2838 = vrcp.pop %v2732
          %v2839 = vmul.f32 %v2597, %v2838
          %v2840 = vrcp.pop %v2737
          %v2841 = vmul.f32 %v2598, %v2840
          %v2842 = vrcp.pop %v2742
          %v2843 = vmul.f32 %v2599, %v2842
          %v2844 = vrcp.pop %v2747
          %v2845 = vmul.f32 %v2600, %v2844
          %v2846 = vrcp.pop %v2752
          %v2847 = vmul.f32 %v2601, %v2846
          %v2848 = vrcp.pop %v2757
          %v2849 = vmul.f32 %v2602, %v2848
          %v2850 = vrcp.pop %v2762
          %v2851 = vmul.f32 %v2603, %v2850
          %v2852 = vrcp.pop %v2767
          %v2853 = vmul.f32 %v2604, %v2852
          %v2854 = vrcp.pop %v2772
          %v2855 = vmul.f32 %v2605, %v2854
          %v2856 = vrcp.pop %v2777
          %v2857 = vmul.f32 %v2606, %v2856
          %v2858 = vrcp.pop %v2782
          %v2859 = vmul.f32 %v2607, %v2858
          %v2860 = vrcp.pop %v2787
          %v2861 = vmul.f32 %v2608, %v2860
          %v2862 = vrcp.pop %v2792
          %v2863 = vmul.f32 %v2609, %v2862
          %v2864 = vrcp.pop %v2797
          %v2865 = vmul.f32 %v2610, %v2864
          %v2866 = vrcp.pop %v2802
          %v2867 = vmul.f32 %v2611, %v2866
          %v2868 = vpack.c.bf16 %v2807, %v2805
          %v2869 = vpack.c.bf16 %v2811, %v2809
          %v2870 = vpack.c.bf16 %v2815, %v2813
          %v2871 = vpack.c.bf16 %v2819, %v2817
          %v2872 = vpack.c.bf16 %v2823, %v2821
          %v2873 = vpack.c.bf16 %v2827, %v2825
          %v2874 = vpack.c.bf16 %v2831, %v2829
          %v2875 = vpack.c.bf16 %v2835, %v2833
          %v2884 = vunpack.c.l.b16 %v2868
          %v2885 = vunpack.c.h.b16 %v2868
          %v2886 = vunpack.c.l.b16 %v2869
          %v2887 = vunpack.c.h.b16 %v2869
          %v2888 = vunpack.c.l.b16 %v2870
          %v2889 = vunpack.c.h.b16 %v2870
          %v2890 = vunpack.c.l.b16 %v2871
          %v2891 = vunpack.c.h.b16 %v2871
          %v2892 = vunpack.c.l.b16 %v2872
          %v2893 = vunpack.c.h.b16 %v2872
          %v2894 = vunpack.c.l.b16 %v2873
          %v2895 = vunpack.c.h.b16 %v2873
          %v2896 = vunpack.c.l.b16 %v2874
          %v2897 = vunpack.c.h.b16 %v2874
          %v2898 = vunpack.c.l.b16 %v2875
          %v2899 = vunpack.c.h.b16 %v2875
          %v2900 = vpack.c.b16 %v2884, %v2884
          %v2901 = vpack.c.b16 %v2885, %v2885
          %v2902 = vpack.c.b16 %v2886, %v2886
          %v2903 = vpack.c.b16 %v2887, %v2887
          %v2904 = vpack.c.b16 %v2888, %v2888
          %v2905 = vpack.c.b16 %v2889, %v2889
          %v2906 = vpack.c.b16 %v2890, %v2890
          %v2907 = vpack.c.b16 %v2891, %v2891
          %v2908 = vpack.c.b16 %v2892, %v2892
          %v2909 = vpack.c.b16 %v2893, %v2893
          %v2910 = vpack.c.b16 %v2894, %v2894
          %v2911 = vpack.c.b16 %v2895, %v2895
          %v2912 = vpack.c.b16 %v2896, %v2896
          %v2913 = vpack.c.b16 %v2897, %v2897
          %v2914 = vpack.c.b16 %v2898, %v2898
          %v2915 = vpack.c.b16 %v2899, %v2899
          %vm2932 = vcmask 519168
          %2933 = vst.msk [vmem:[%s250] sm:$0xf] %vm2932, %v2900
          %2934 = vst.msk [vmem:[%s250 + $0x4] sm:$0xf] %vm2932, %v2901
          %2935 = vst.msk [vmem:[%s250 + $0x8] sm:$0xf] %vm2932, %v2902
          %2936 = vst.msk [vmem:[%s250 + $0xc] sm:$0xf] %vm2932, %v2903
          %2937 = vst.msk [vmem:[%s250 + $0x10] sm:$0xf] %vm2932, %v2904
          %2938 = vst.msk [vmem:[%s250 + $0x14] sm:$0xf] %vm2932, %v2905
          %2939 = vst.msk [vmem:[%s250 + $0x18] sm:$0xf] %vm2932, %v2906
          %2940 = vst.msk [vmem:[%s250 + $0x1c] sm:$0xf] %vm2932, %v2907
          %2941 = vst.msk [vmem:[%s250 + $0x20] sm:$0xf] %vm2932, %v2908
          %2942 = vst.msk [vmem:[%s250 + $0x24] sm:$0xf] %vm2932, %v2909
          %2943 = vst.msk [vmem:[%s250 + $0x28] sm:$0xf] %vm2932, %v2910
          %2944 = vst.msk [vmem:[%s250 + $0x2c] sm:$0xf] %vm2932, %v2911
          %2945 = vst.msk [vmem:[%s250 + $0x30] sm:$0xf] %vm2932, %v2912
          %2946 = vst.msk [vmem:[%s250 + $0x34] sm:$0xf] %vm2932, %v2913
          %2947 = vst.msk [vmem:[%s250 + $0x38] sm:$0xf] %vm2932, %v2914
          %2948 = vst.msk [vmem:[%s250 + $0x3c] sm:$0xf] %vm2932, %v2915
          %v2949 = vpack.c.bf16 %v2839, %v2837
          %v2950 = vpack.c.bf16 %v2843, %v2841
          %v2951 = vpack.c.bf16 %v2847, %v2845
          %v2952 = vpack.c.bf16 %v2851, %v2849
          %v2953 = vpack.c.bf16 %v2855, %v2853
          %v2954 = vpack.c.bf16 %v2859, %v2857
          %v2955 = vpack.c.bf16 %v2863, %v2861
          %v2956 = vpack.c.bf16 %v2867, %v2865
          %v2965 = vunpack.c.l.b16 %v2949
          %v2966 = vunpack.c.h.b16 %v2949
          %v2967 = vunpack.c.l.b16 %v2950
          %v2968 = vunpack.c.h.b16 %v2950
          %v2969 = vunpack.c.l.b16 %v2951
          %v2970 = vunpack.c.h.b16 %v2951
          %v2971 = vunpack.c.l.b16 %v2952
          %v2972 = vunpack.c.h.b16 %v2952
          %v2973 = vunpack.c.l.b16 %v2953
          %v2974 = vunpack.c.h.b16 %v2953
          %v2975 = vunpack.c.l.b16 %v2954
          %v2976 = vunpack.c.h.b16 %v2954
          %v2977 = vunpack.c.l.b16 %v2955
          %v2978 = vunpack.c.h.b16 %v2955
          %v2979 = vunpack.c.l.b16 %v2956
          %v2980 = vunpack.c.h.b16 %v2956
          %v2981 = vpack.c.b16 %v2965, %v2965
          %v2982 = vpack.c.b16 %v2966, %v2966
          %v2983 = vpack.c.b16 %v2967, %v2967
          %v2984 = vpack.c.b16 %v2968, %v2968
          %v2985 = vpack.c.b16 %v2969, %v2969
          %v2986 = vpack.c.b16 %v2970, %v2970
          %v2987 = vpack.c.b16 %v2971, %v2971
          %v2988 = vpack.c.b16 %v2972, %v2972
          %v2989 = vpack.c.b16 %v2973, %v2973
          %v2990 = vpack.c.b16 %v2974, %v2974
          %v2991 = vpack.c.b16 %v2975, %v2975
          %v2992 = vpack.c.b16 %v2976, %v2976
          %v2993 = vpack.c.b16 %v2977, %v2977
          %v2994 = vpack.c.b16 %v2978, %v2978
          %v2995 = vpack.c.b16 %v2979, %v2979
          %v2996 = vpack.c.b16 %v2980, %v2980
          %2997 = vrot.lane.b32.xlu0 %v2981, 64
          %v2998 = vpop.permute.xlu0 %2997
          %2999 = vrot.lane.b32.xlu0 %v2982, 64
          %v3000 = vpop.permute.xlu0 %2999
          %3001 = vrot.lane.b32.xlu0 %v2983, 64
          %v3002 = vpop.permute.xlu0 %3001
          %3003 = vrot.lane.b32.xlu0 %v2984, 64
          %v3004 = vpop.permute.xlu0 %3003
          %3005 = vrot.lane.b32.xlu0 %v2985, 64
          %v3006 = vpop.permute.xlu0 %3005
          %3007 = vrot.lane.b32.xlu0 %v2986, 64
          %v3008 = vpop.permute.xlu0 %3007
          %3009 = vrot.lane.b32.xlu0 %v2987, 64
          %v3010 = vpop.permute.xlu0 %3009
          %3011 = vrot.lane.b32.xlu0 %v2988, 64
          %v3012 = vpop.permute.xlu0 %3011
          %3013 = vrot.lane.b32.xlu0 %v2989, 64
          %v3014 = vpop.permute.xlu0 %3013
          %3015 = vrot.lane.b32.xlu0 %v2990, 64
          %v3016 = vpop.permute.xlu0 %3015
          %3017 = vrot.lane.b32.xlu0 %v2991, 64
          %v3018 = vpop.permute.xlu0 %3017
          %3019 = vrot.lane.b32.xlu0 %v2992, 64
          %v3020 = vpop.permute.xlu0 %3019
          %3021 = vrot.lane.b32.xlu0 %v2993, 64
          %v3022 = vpop.permute.xlu0 %3021
          %3023 = vrot.lane.b32.xlu0 %v2994, 64
          %v3024 = vpop.permute.xlu0 %3023
          %3025 = vrot.lane.b32.xlu0 %v2995, 64
          %v3026 = vpop.permute.xlu0 %3025
          %3027 = vrot.lane.b32.xlu0 %v2996, 64
          %v3028 = vpop.permute.xlu0 %3027
          %vm3045 = vcmask 1043968
          %3046 = vst.msk [vmem:[%s250] sm:$0xf] %vm3045, %v2998
          %3047 = vst.msk [vmem:[%s250 + $0x4] sm:$0xf] %vm3045, %v3000
          %3048 = vst.msk [vmem:[%s250 + $0x8] sm:$0xf] %vm3045, %v3002
          %3049 = vst.msk [vmem:[%s250 + $0xc] sm:$0xf] %vm3045, %v3004
          %3050 = vst.msk [vmem:[%s250 + $0x10] sm:$0xf] %vm3045, %v3006
          %3051 = vst.msk [vmem:[%s250 + $0x14] sm:$0xf] %vm3045, %v3008
          %3052 = vst.msk [vmem:[%s250 + $0x18] sm:$0xf] %vm3045, %v3010
          %3053 = vst.msk [vmem:[%s250 + $0x1c] sm:$0xf] %vm3045, %v3012
          %3054 = vst.msk [vmem:[%s250 + $0x20] sm:$0xf] %vm3045, %v3014
          %3055 = vst.msk [vmem:[%s250 + $0x24] sm:$0xf] %vm3045, %v3016
          %3056 = vst.msk [vmem:[%s250 + $0x28] sm:$0xf] %vm3045, %v3018
          %3057 = vst.msk [vmem:[%s250 + $0x2c] sm:$0xf] %vm3045, %v3020
          %3058 = vst.msk [vmem:[%s250 + $0x30] sm:$0xf] %vm3045, %v3022
          %3059 = vst.msk [vmem:[%s250 + $0x34] sm:$0xf] %vm3045, %v3024
          %3060 = vst.msk [vmem:[%s250 + $0x38] sm:$0xf] %vm3045, %v3026
          %3061 = vst.msk [vmem:[%s250 + $0x3c] sm:$0xf] %vm3045, %v3028
        $region48: #{qwen_decoder_layer.6} parent=27 // pred_fallthru
          _
        %s3062 = sand.u32 %s122, 1
        %s3063 = scalar_lea.sflag [#allocation8], %s3062
        %s3064 = sand.u32 %s122, 1
        %s3065 = smul.addr %s3064, 64
        %s3066 = scalar_lea.vmem [#allocation11], %s3065
        // Predicated region
        $region49: #{qwen_decoder_layer.6} parent=27 // pred_check
          %p3067 = pneg %p132
        $region50: #{qwen_decoder_layer.6} parent=27 // pred_check_branch
          %3069 = sbr.rel (%p3067) target = $region52
        $region51: #{qwen_decoder_layer.6} parent=27 // pred_region
          %s3070 = smul.u32 16, %s30
          %s3072 = ssub.s32 1024, 1024
          %3073 = vsyncadd %s3063, %s3072
          %s3074 = sadd.s32 %s29, %s3070
          %s3075 = smul.addr %s28, 32
          %s3076 = sadd.s32 %s3074, %s3075
          %s3077 = smul.addr %s3076, 64
          %s3078 = scalar_lea.hbm %s2, %s3077
          %s3079 = sshll.u32 %s3066, 4
          %s3080 = int_to_ptr.vmem [resolvable:$true] %s3079
          %3085 = dma.vmem_to_hbm [thread:$0]  %s3080, 1024, %s3078, %s3063, 64, 64, 4
        $region52: #{qwen_decoder_layer.6} parent=27 // pred_fallthru
          _
      $region28: #{qwen_decoder_layer.6} parent=5 // pred_fallthru
        _
      %p3086 = scmp.le.s32.totalorder 2, %s17
      // Predicated region
      $region53: #{qwen_decoder_layer.6} parent=5 // pred_check
        %p3087 = pneg %p3086
      $region54: #{qwen_decoder_layer.6} parent=5 // pred_check_branch
        %3089 = sbr.rel (%p3087) target = $region56
      $region55: #{qwen_decoder_layer.6} parent=5 // pred_region
        %s3090 = ssub.s32 %s17, 2
        // Predicated region
        $region57: #{qwen_decoder_layer.6} parent=55 // pred_check
          %p3091 = pneg %p138
        $region58: #{qwen_decoder_layer.6} parent=55 // pred_check_branch
          %3093 = sbr.rel (%p3091) target = $region60
        $region59: #{qwen_decoder_layer.6} parent=55 // pred_region
          %s3094 = sand.u32 %s123, 1
          %s3095 = scalar_lea.sflag [#allocation8], %s3094
          %s3096 = sand.u32 %s123, 1
          %s3097 = smul.addr %s3096, 64
          %s3098 = scalar_lea.vmem [#allocation11], %s3097
          %3099 = dma.done %s3095, 1024
        $region60: #{qwen_decoder_layer.6} parent=55 // pred_fallthru
          _
      $region56: #{qwen_decoder_layer.6} parent=5 // pred_fallthru
        _
    $region6: #{qwen_decoder_layer.6} parent=1 // loop_footer
      %s21 = sadd.s32 1, %s17
    $region7: #{qwen_decoder_layer.6} parent=1 // loop_footer_branch
      %16 = sbr.rel target = $region3
    $region8: #{qwen_decoder_layer.6} parent=1 // loop_exit
      _
    %3100 = vsyncpa [#allocation7], 1
    %s3101 = scalar_lea.sflag [#allocation7], 1
    %3102 = vsyncpa %s3101, 1
    %3103 = vsyncpa [#allocation10], 1
    %s3104 = scalar_lea.sflag [#allocation10], 1
    %3105 = vsyncpa %s3104, 1
    %3106 = vsyncpa [#allocation8], 1
    %s3107 = scalar_lea.sflag [#allocation8], 1
    %3108 = vsyncpa %s3107, 1

// kernel: qwen_decoder_layer.9
$region0: #{qwen_decoder_layer.9}
  #allocation0 [shape = 'u32[]', space=smem, size = 0x4, offset = 0x4, fixed_abs, tag = 'smem constant byte address 0x4 - core index']
  #allocation1 [shape = 'u32[144,128]{1,0:T(1,128)}', space=vmem, size = 0x12000, scoped, tag = 'internal scratch']
  #allocation2 [shape = 'f32[256,128]{1,0:T(8,128)}', space=vmem, size = 0x20000, scoped, tag = 'scratch operand']
  %s0 = inlined_call_operand.hbm [shape: bf16[512,512], index: 0, kind: input, shape index: {}, may-alias: {0,1}]
  %s1 = inlined_call_operand.hbm [shape: bf16[512,512], index: 1, kind: input, shape index: {}, may-alias: {0,1}]
  %s2 = inlined_call_operand.hbm [shape: bf16[256,128], index: 2, kind: input, shape index: {}]
  %s3 = inlined_call_operand.hbm [shape: f32[512,128], index: 3, kind: input, shape index: {}, may-alias: {3,4}]
  %s4 = inlined_call_operand.hbm [shape: f32[512,128], index: 4, kind: output, shape index: {}, may-alias: {3,4}]
  %s5 = sld [smem:[#allocation0]]
  $region73: #{qwen_decoder_layer.9} parent=0
    _
  %s7 = ssub.s32 1, %s5
  %s8 = scalar_select 0, %s7, %s5
  $region1: #{qwen_decoder_layer.9} parent=0
    #allocation3 [shape = 'u8[131072]{0}', space=vmem, size = 0x20000, scoped, tag = 'input window, operand 0']
    #allocation4 [shape = 's32[2]{0}', space=sflag, size = 0x8, scoped, tag = 'scoped memory for qwen_decoder_layer.9']
    #allocation5 [shape = 's32[2]{0}', space=sflag, size = 0x8, scoped, tag = 'scoped memory for qwen_decoder_layer.9']
    #allocation6 [shape = 'u8[131072]{0}', space=vmem, size = 0x20000, scoped, tag = 'input window, operand 1']
    #allocation7 [shape = 's32[2]{0}', space=sflag, size = 0x8, scoped, tag = 'scoped memory for qwen_decoder_layer.9']
    #allocation8 [shape = 'u8[65536]{0}', space=vmem, size = 0x10000, scoped, tag = 'input window, operand 2']
    #allocation9 [shape = 'u8[262144]{0}', space=vmem, size = 0x40000, scoped, tag = 'input window, operand 3']
    #allocation10 [shape = 's32[2]{0}', space=sflag, size = 0x8, scoped, tag = 'scoped memory for qwen_decoder_layer.9']
    #allocation11 [shape = 'u8[262144]{0}', space=vmem, size = 0x40000, scoped, tag = 'output window, operand 0']
    %9 = vsyncpa [#allocation4], 0
    %s10 = scalar_lea.sflag [#allocation4], 1
    %11 = vsyncpa %s10, 0
    %12 = vsyncpa [#allocation7], 0
    %s13 = scalar_lea.sflag [#allocation7], 1
    %14 = vsyncpa %s13, 0
    %15 = vsyncpa [#allocation10], 0
    %s16 = scalar_lea.sflag [#allocation10], 1
    %17 = vsyncpa %s16, 0
    %18 = vsyncpa [#allocation5], 0
    %s19 = scalar_lea.sflag [#allocation5], 1
    %20 = vsyncpa %s19, 0
    loop: start=0, step=1, limit=6
    $region2: #{qwen_decoder_layer.9} parent=1 // loop_pre_header
      _
    $region3: #{qwen_decoder_layer.9} parent=1 // loop_header
      %s22 = sphi 0, %s26
      %p23 = scmp.ge.s32.totalorder %s22, 6
      %s29 = sphi 0, %s48
      %s30 = sphi 0, %s44
      %s31 = sphi 0, %s40
      %s32 = sphi 0, %s29
      %s33 = sphi 0, %s30
      %s34 = sphi 0, %s31
      %s35 = sphi 0, %s32
      %s36 = sphi 0, %s33
      %s37 = sphi 0, %s34
      %s53 = sphi 0, %s55
      %s56 = sphi 0, %s53
      %s57 = sphi 0, %s56
      %s73 = sphi 0, %s57
      %s83 = sphi 0, %s85
      %s86 = sphi 0, %s83
      %s87 = sphi 0, %s86
      %s103 = sphi 0, %s87
      %s111 = sphi 0, %s113
      %s114 = sphi 0, %s111
      %s115 = sphi 0, %s114
      %s131 = sphi 0, %s115
      %s139 = sphi 0, %s141
      %s142 = sphi 0, %s139
      %s143 = sphi 0, %s142
      %s159 = sphi 0, %s143
      %s167 = sphi 0, %s169
      %s170 = sphi 0, %s167
      %s171 = sphi 0, %s170
      %s187 = sphi 0, %s171
    $region4: #{qwen_decoder_layer.9} parent=1 // loop_header_branch
      %25 = sbr.rel (%p23) target = $region8
    $region5: #{qwen_decoder_layer.9} parent=1 // loop_body
      %s27 = ssub.s32 %s22, 1
      %s28 = ssub.s32 %s22, 2
      %s38 = sadd.s32 1, %s31
      %p39 = scmp.ge.s32.totalorder %s38, 2
      %s40 = scalar_select %p39, 0, %s38
      %s41 = sadd.s32 1, %s30
      %s42 = scalar_select %p39, %s41, %s30
      %p43 = scmp.ge.s32.totalorder %s42, 1
      %s44 = scalar_select %p43, 0, %s42
      %s45 = sadd.s32 1, %s29
      %s46 = scalar_select %p43, %s45, %s29
      %p47 = scmp.ge.s32.totalorder %s46, 2
      %s48 = scalar_select %p47, 0, %s46
      %s49 = ssub.s32 %s29, %s48
      %s50 = ssub.s32 %s31, %s40
      %s51 = sor.u32 %s49, %s50
      %p52 = scmp.eq.s32.totalorder %s51, 0
      %s54 = sadd.s32 %s53, 1
      %s55 = scalar_select %p52, %s53, %s54
      %p58 = pneg %p52
      %p59 = scmp.eq.s32.totalorder %s22, 3
      %p60 = por %p58, %p59
      %p61 = scmp.ne.s32.totalorder %s53, %s56
      %p62 = scmp.eq.s32.totalorder %s22, 0
      %p63 = por %p61, %p62
      %p64 = scmp.ne.s32.totalorder %s53, %s56
      %p65 = scmp.eq.s32.totalorder %s27, 3
      %p66 = por %p64, %p65
      %p67 = scmp.ne.s32.totalorder %s56, %s57
      %p68 = scmp.eq.s32.totalorder %s27, 0
      %p69 = por %p67, %p68
      %p70 = scmp.ne.s32.totalorder %s56, %s57
      %p71 = scmp.eq.s32.totalorder %s28, 3
      %p72 = por %p70, %p71
      %p74 = scmp.ne.s32.totalorder %s57, %s73
      %p75 = scmp.eq.s32.totalorder %s28, 0
      %p76 = por %p74, %p75
      %s77 = sadd.s32 %s31, 2
      %s78 = sadd.s32 %s40, 2
      %s79 = ssub.s32 %s29, %s48
      %s80 = ssub.s32 %s77, %s78
      %s81 = sor.u32 %s79, %s80
      %p82 = scmp.eq.s32.totalorder %s81, 0
      %s84 = sadd.s32 %s83, 1
      %s85 = scalar_select %p82, %s83, %s84
      %p88 = pneg %p82
      %p89 = scmp.eq.s32.totalorder %s22, 3
      %p90 = por %p88, %p89
      %p91 = scmp.ne.s32.totalorder %s83, %s86
      %p92 = scmp.eq.s32.totalorder %s22, 0
      %p93 = por %p91, %p92
      %p94 = scmp.ne.s32.totalorder %s83, %s86
      %p95 = scmp.eq.s32.totalorder %s27, 3
      %p96 = por %p94, %p95
      %p97 = scmp.ne.s32.totalorder %s86, %s87
      %p98 = scmp.eq.s32.totalorder %s27, 0
      %p99 = por %p97, %p98
      %p100 = scmp.ne.s32.totalorder %s86, %s87
      %p101 = scmp.eq.s32.totalorder %s28, 3
      %p102 = por %p100, %p101
      %p104 = scmp.ne.s32.totalorder %s87, %s103
      %p105 = scmp.eq.s32.totalorder %s28, 0
      %p106 = por %p104, %p105
      %s107 = ssub.s32 %s31, %s40
      %s108 = ssub.s32 %s30, %s44
      %s109 = sor.u32 %s107, %s108
      %p110 = scmp.eq.s32.totalorder %s109, 0
      %s112 = sadd.s32 %s111, 1
      %s113 = scalar_select %p110, %s111, %s112
      %p116 = pneg %p110
      %p117 = scmp.eq.s32.totalorder %s22, 3
      %p118 = por %p116, %p117
      %p119 = scmp.ne.s32.totalorder %s111, %s114
      %p120 = scmp.eq.s32.totalorder %s22, 0
      %p121 = por %p119, %p120
      %p122 = scmp.ne.s32.totalorder %s111, %s114
      %p123 = scmp.eq.s32.totalorder %s27, 3
      %p124 = por %p122, %p123
      %p125 = scmp.ne.s32.totalorder %s114, %s115
      %p126 = scmp.eq.s32.totalorder %s27, 0
      %p127 = por %p125, %p126
      %p128 = scmp.ne.s32.totalorder %s114, %s115
      %p129 = scmp.eq.s32.totalorder %s28, 3
      %p130 = por %p128, %p129
      %p132 = scmp.ne.s32.totalorder %s115, %s131
      %p133 = scmp.eq.s32.totalorder %s28, 0
      %p134 = por %p132, %p133
      %s135 = ssub.s32 %s29, %s48
      %s136 = ssub.s32 %s30, %s44
      %s137 = sor.u32 %s135, %s136
      %p138 = scmp.eq.s32.totalorder %s137, 0
      %s140 = sadd.s32 %s139, 1
      %s141 = scalar_select %p138, %s139, %s140
      %p144 = pneg %p138
      %p145 = scmp.eq.s32.totalorder %s22, 3
      %p146 = por %p144, %p145
      %p147 = scmp.ne.s32.totalorder %s139, %s142
      %p148 = scmp.eq.s32.totalorder %s22, 0
      %p149 = por %p147, %p148
      %p150 = scmp.ne.s32.totalorder %s139, %s142
      %p151 = scmp.eq.s32.totalorder %s27, 3
      %p152 = por %p150, %p151
      %p153 = scmp.ne.s32.totalorder %s142, %s143
      %p154 = scmp.eq.s32.totalorder %s27, 0
      %p155 = por %p153, %p154
      %p156 = scmp.ne.s32.totalorder %s142, %s143
      %p157 = scmp.eq.s32.totalorder %s28, 3
      %p158 = por %p156, %p157
      %p160 = scmp.ne.s32.totalorder %s143, %s159
      %p161 = scmp.eq.s32.totalorder %s28, 0
      %p162 = por %p160, %p161
      %s163 = ssub.s32 %s29, %s48
      %s164 = ssub.s32 %s30, %s44
      %s165 = sor.u32 %s163, %s164
      %p166 = scmp.eq.s32.totalorder %s165, 0
      %s168 = sadd.s32 %s167, 1
      %s169 = scalar_select %p166, %s167, %s168
      %p172 = pneg %p166
      %p173 = scmp.eq.s32.totalorder %s22, 3
      %p174 = por %p172, %p173
      %p175 = scmp.ne.s32.totalorder %s167, %s170
      %p176 = scmp.eq.s32.totalorder %s22, 0
      %p177 = por %p175, %p176
      %p178 = scmp.ne.s32.totalorder %s167, %s170
      %p179 = scmp.eq.s32.totalorder %s27, 3
      %p180 = por %p178, %p179
      %p181 = scmp.ne.s32.totalorder %s170, %s171
      %p182 = scmp.eq.s32.totalorder %s27, 0
      %p183 = por %p181, %p182
      %p184 = scmp.ne.s32.totalorder %s170, %s171
      %p185 = scmp.eq.s32.totalorder %s28, 3
      %p186 = por %p184, %p185
      %p188 = scmp.ne.s32.totalorder %s171, %s187
      %p189 = scmp.eq.s32.totalorder %s28, 0
      %p190 = por %p188, %p189
      %p191 = scmp.le.s32.totalorder 1, %s22
      %p192 = scmp.lt.s32.totalorder %s22, 5
      %p193 = pnand %p191, %p192
      %p194 = pneg %p193
      // Predicated region
      $region9: #{qwen_decoder_layer.9} parent=5 // pred_check
        _
      $region10: #{qwen_decoder_layer.9} parent=5 // pred_check_branch
        %196 = sbr.rel (%p193) target = $region12
      $region11: #{qwen_decoder_layer.9} parent=5 // pred_region
        %s197 = ssub.s32 %s22, 1
      $region12: #{qwen_decoder_layer.9} parent=5 // pred_fallthru
        _
      %p198 = scmp.lt.s32.totalorder %s22, 4
      // Predicated region
      $region13: #{qwen_decoder_layer.9} parent=5 // pred_check
        %p199 = pneg %p198
      $region14: #{qwen_decoder_layer.9} parent=5 // pred_check_branch
        %201 = sbr.rel (%p199) target = $region16
      $region15: #{qwen_decoder_layer.9} parent=5 // pred_region
        // Predicated region
        $region17: #{qwen_decoder_layer.9} parent=15 // pred_check
          %p202 = pneg %p63
        $region18: #{qwen_decoder_layer.9} parent=15 // pred_check_branch
          %204 = sbr.rel (%p202) target = $region20
        $region19: #{qwen_decoder_layer.9} parent=15 // pred_region
          %s205 = sand.u32 %s53, 1
          %s206 = scalar_lea.sflag [#allocation4], %s205
          %s207 = sand.u32 %s53, 1
          %s208 = smul.addr %s207, 128
          %s209 = scalar_lea.vmem [#allocation3], %s208
          %s210 = smul.u32 32, %s29
          %s212 = ssub.s32 2048, 2048
          %213 = vsyncadd %s206, %s212
          %s214 = smul.addr %s210, 4
          %s215 = sadd.s32 %s31, %s214
          %s216 = smul.addr %s215, 64
          %s217 = scalar_lea.hbm %s0, %s216
          %s218 = sshll.u32 %s209, 4
          %s219 = int_to_ptr.vmem [resolvable:$true] %s218
          %224 = dma.hbm_to_vmem [thread:$0]  %s217, 2048, %s219, %s206, 256, 64, 4
        $region20: #{qwen_decoder_layer.9} parent=15 // pred_fallthru
          _
        // Predicated region
        $region21: #{qwen_decoder_layer.9} parent=15 // pred_check
          %p225 = pneg %p93
        $region22: #{qwen_decoder_layer.9} parent=15 // pred_check_branch
          %227 = sbr.rel (%p225) target = $region24
        $region23: #{qwen_decoder_layer.9} parent=15 // pred_region
          %s228 = sand.u32 %s22, 1
          %s229 = scalar_lea.sflag [#allocation7], %s228
          %s230 = sand.u32 %s83, 1
          %s231 = smul.addr %s230, 128
          %s232 = scalar_lea.vmem [#allocation6], %s231
          %s233 = sadd.s32 %s31, 2
          %s234 = smul.u32 32, %s29
          %s236 = ssub.s32 2048, 2048
          %237 = vsyncadd %s229, %s236
          %s238 = smul.addr %s234, 4
          %s239 = sadd.s32 %s233, %s238
          %s240 = smul.addr %s239, 64
          %s241 = scalar_lea.hbm %s1, %s240
          %s242 = sshll.u32 %s232, 4
          %s243 = int_to_ptr.vmem [resolvable:$true] %s242
          %248 = dma.hbm_to_vmem [thread:$0]  %s241, 2048, %s243, %s229, 256, 64, 4
        $region24: #{qwen_decoder_layer.9} parent=15 // pred_fallthru
          _
        // Predicated region
        $region25: #{qwen_decoder_layer.9} parent=15 // pred_check
          %p249 = pneg %p121
        $region26: #{qwen_decoder_layer.9} parent=15 // pred_check_branch
          %251 = sbr.rel (%p249) target = $region28
        $region27: #{qwen_decoder_layer.9} parent=15 // pred_region
          %s252 = sand.u32 %s22, 1
          %s253 = scalar_lea.sflag [#allocation7], %s252
          %s254 = sand.u32 %s111, 1
          %s255 = smul.addr %s254, 64
          %s256 = scalar_lea.vmem [#allocation8], %s255
          %s257 = smul.u32 16, %s31
          %s259 = ssub.s32 1024, 1024
          %260 = vsyncadd %s253, %s259
          %s261 = sadd.s32 %s30, %s257
          %s262 = smul.addr %s261, 64
          %s263 = scalar_lea.hbm %s2, %s262
          %s264 = sshll.u32 %s256, 4
          %s265 = int_to_ptr.vmem [resolvable:$true] %s264
          %270 = dma.hbm_to_vmem [thread:$0]  %s263, 1024, %s265, %s253, 64, 64, 4
        $region28: #{qwen_decoder_layer.9} parent=15 // pred_fallthru
          _
        // Predicated region
        $region29: #{qwen_decoder_layer.9} parent=15 // pred_check
          %p271 = pneg %p149
        $region30: #{qwen_decoder_layer.9} parent=15 // pred_check_branch
          %273 = sbr.rel (%p271) target = $region32
        $region31: #{qwen_decoder_layer.9} parent=15 // pred_region
          %s274 = sand.u32 %s139, 1
          %s275 = scalar_lea.sflag [#allocation10], %s274
          %s276 = sand.u32 %s139, 1
          %s277 = smul.addr %s276, 256
          %s278 = scalar_lea.vmem [#allocation9], %s277
          %s279 = smul.u32 32, %s29
          %s281 = ssub.s32 4096, 4096
          %282 = vsyncadd %s275, %s281
          %s283 = sadd.s32 %s30, %s279
          %s284 = smul.addr %s283, 128
          %s285 = scalar_lea.hbm %s3, %s284
          %s286 = sshll.u32 %s278, 4
          %s287 = int_to_ptr.vmem [resolvable:$true] %s286
          %292 = dma.hbm_to_vmem [thread:$0]  %s285, 4096, %s287, %s275, 128, 128, 8
        $region32: #{qwen_decoder_layer.9} parent=15 // pred_fallthru
          _
      $region16: #{qwen_decoder_layer.9} parent=5 // pred_fallthru
        _
      %p293 = scmp.le.s32.totalorder 1, %s22
      %p294 = scmp.lt.s32.totalorder %s22, 5
      %p295 = pnand %p293, %p294
      %p296 = pneg %p295
      // Predicated region
      $region33: #{qwen_decoder_layer.9} parent=5 // pred_check
        _
      $region34: #{qwen_decoder_layer.9} parent=5 // pred_check_branch
        %298 = sbr.rel (%p295) target = $region36
      $region35: #{qwen_decoder_layer.9} parent=5 // pred_region
        %s299 = ssub.s32 %s22, 1
        %s300 = sand.u32 %s56, 1
        %s301 = scalar_lea.sflag [#allocation4], %s300
        %s302 = sand.u32 %s56, 1
        %s303 = smul.addr %s302, 128
        %s304 = scalar_lea.vmem [#allocation3], %s303
        // Predicated region
        $region37: #{qwen_decoder_layer.9} parent=35 // pred_check
          %p305 = pneg %p69
        $region38: #{qwen_decoder_layer.9} parent=35 // pred_check_branch
          %307 = sbr.rel (%p305) target = $region40
        $region39: #{qwen_decoder_layer.9} parent=35 // pred_region
          %308 = dma.done %s301, 2048
        $region40: #{qwen_decoder_layer.9} parent=35 // pred_fallthru
          _
        %s309 = sand.u32 %s27, 1
        %s310 = scalar_lea.sflag [#allocation7], %s309
        %s311 = sand.u32 %s86, 1
        %s312 = smul.addr %s311, 128
        %s313 = scalar_lea.vmem [#allocation6], %s312
        // Predicated region
        $region41: #{qwen_decoder_layer.9} parent=35 // pred_check
          %p314 = pneg %p99
        $region42: #{qwen_decoder_layer.9} parent=35 // pred_check_branch
          %316 = sbr.rel (%p314) target = $region44
        $region43: #{qwen_decoder_layer.9} parent=35 // pred_region
          %317 = dma.done %s310, 2048
        $region44: #{qwen_decoder_layer.9} parent=35 // pred_fallthru
          _
        %s318 = sand.u32 %s27, 1
        %s319 = scalar_lea.sflag [#allocation7], %s318
        %s320 = sand.u32 %s114, 1
        %s321 = smul.addr %s320, 64
        %s322 = scalar_lea.vmem [#allocation8], %s321
        // Predicated region
        $region45: #{qwen_decoder_layer.9} parent=35 // pred_check
          %p323 = pneg %p127
        $region46: #{qwen_decoder_layer.9} parent=35 // pred_check_branch
          %325 = sbr.rel (%p323) target = $region48
        $region47: #{qwen_decoder_layer.9} parent=35 // pred_region
          %326 = dma.done %s319, 1024
        $region48: #{qwen_decoder_layer.9} parent=35 // pred_fallthru
          _
        %s327 = sand.u32 %s142, 1
        %s328 = scalar_lea.sflag [#allocation10], %s327
        %s329 = sand.u32 %s142, 1
        %s330 = smul.addr %s329, 256
        %s331 = scalar_lea.vmem [#allocation9], %s330
        // Predicated region
        $region49: #{qwen_decoder_layer.9} parent=35 // pred_check
          %p332 = pneg %p155
        $region50: #{qwen_decoder_layer.9} parent=35 // pred_check_branch
          %334 = sbr.rel (%p332) target = $region52
        $region51: #{qwen_decoder_layer.9} parent=35 // pred_region
          %335 = dma.done %s328, 4096
        $region52: #{qwen_decoder_layer.9} parent=35 // pred_fallthru
          _
        %s336 = sand.u32 %s56, 1
        %s337 = scalar_lea.sflag [#allocation4], %s336
        %s338 = sand.u32 %s56, 1
        %s339 = smul.addr %s338, 128
        %s340 = scalar_lea.vmem [#allocation3], %s339
        %p341 = pneg %p69
        %p342 = pneg %p66
        %s343 = sand.u32 %s27, 1
        %s344 = scalar_lea.sflag [#allocation7], %s343
        %s345 = sand.u32 %s86, 1
        %s346 = smul.addr %s345, 128
        %s347 = scalar_lea.vmem [#allocation6], %s346
        %p348 = pneg %p99
        %p349 = pneg %p96
        %s350 = sand.u32 %s27, 1
        %s351 = scalar_lea.sflag [#allocation7], %s350
        %s352 = sand.u32 %s114, 1
        %s353 = smul.addr %s352, 64
        %s354 = scalar_lea.vmem [#allocation8], %s353
        %p355 = pneg %p127
        %p356 = pneg %p124
        %s357 = sand.u32 %s142, 1
        %s358 = scalar_lea.sflag [#allocation10], %s357
        %s359 = sand.u32 %s142, 1
        %s360 = smul.addr %s359, 256
        %s361 = scalar_lea.vmem [#allocation9], %s360
        %p362 = pneg %p155
        %p363 = pneg %p152
        %p364 = pneg %p183
        %p365 = pneg %p180
        %s366 = sand.u32 %s170, 1
        %s367 = scalar_lea.sflag [#allocation5], %s366
        %s368 = sand.u32 %s170, 1
        %s369 = smul.addr %s368, 256
        %s370 = scalar_lea.vmem [#allocation11], %s369
        %s371 = smul.u32 32, %s32
        %s372 = sadd.s32 %s34, 2
        %s373 = smul.u32 32, %s32
        %s374 = smul.u32 16, %s34
        %s375 = smul.u32 32, %s32
        %s376 = smul.u32 32, %s32
        %p378 = scmp.eq.s32.totalorder %s34, 0
        // Predicated region
        $region53: #{qwen_decoder_layer.9} parent=35 // pred_check
          %p379 = pneg %p378
        $region54: #{qwen_decoder_layer.9} parent=35 // pred_check_branch
          %381 = sbr.rel (%p379) target = $region56
        $region55: #{qwen_decoder_layer.9} parent=35 // pred_region
          %v382 = vld [vmem:[%s331] sm:$0xff]
          %v383 = vld [vmem:[%s331 + $0x8] sm:$0xff]
          %v384 = vld [vmem:[%s331 + $0x10] sm:$0xff]
          %v385 = vld [vmem:[%s331 + $0x18] sm:$0xff]
          %v386 = vld [vmem:[%s331 + $0x20] sm:$0xff]
          %v387 = vld [vmem:[%s331 + $0x28] sm:$0xff]
          %v388 = vld [vmem:[%s331 + $0x30] sm:$0xff]
          %v389 = vld [vmem:[%s331 + $0x38] sm:$0xff]
          %v390 = vld [vmem:[%s331 + $0x40] sm:$0xff]
          %v391 = vld [vmem:[%s331 + $0x48] sm:$0xff]
          %v392 = vld [vmem:[%s331 + $0x50] sm:$0xff]
          %v393 = vld [vmem:[%s331 + $0x58] sm:$0xff]
          %v394 = vld [vmem:[%s331 + $0x60] sm:$0xff]
          %v395 = vld [vmem:[%s331 + $0x68] sm:$0xff]
          %v396 = vld [vmem:[%s331 + $0x70] sm:$0xff]
          %v397 = vld [vmem:[%s331 + $0x78] sm:$0xff]
          %v398 = vld [vmem:[%s331 + $0x80] sm:$0xff]
          %v399 = vld [vmem:[%s331 + $0x88] sm:$0xff]
          %v400 = vld [vmem:[%s331 + $0x90] sm:$0xff]
          %v401 = vld [vmem:[%s331 + $0x98] sm:$0xff]
          %v402 = vld [vmem:[%s331 + $0xa0] sm:$0xff]
          %v403 = vld [vmem:[%s331 + $0xa8] sm:$0xff]
          %v404 = vld [vmem:[%s331 + $0xb0] sm:$0xff]
          %v405 = vld [vmem:[%s331 + $0xb8] sm:$0xff]
          %v406 = vld [vmem:[%s331 + $0xc0] sm:$0xff]
          %v407 = vld [vmem:[%s331 + $0xc8] sm:$0xff]
          %v408 = vld [vmem:[%s331 + $0xd0] sm:$0xff]
          %v409 = vld [vmem:[%s331 + $0xd8] sm:$0xff]
          %v410 = vld [vmem:[%s331 + $0xe0] sm:$0xff]
          %v411 = vld [vmem:[%s331 + $0xe8] sm:$0xff]
          %v412 = vld [vmem:[%s331 + $0xf0] sm:$0xff]
          %v413 = vld [vmem:[%s331 + $0xf8] sm:$0xff]
          %414 = vst [vmem:[#allocation2] sm:$0xff] %v382
          %415 = vst [vmem:[#allocation2 + $0x8] sm:$0xff] %v383
          %416 = vst [vmem:[#allocation2 + $0x10] sm:$0xff] %v384
          %417 = vst [vmem:[#allocation2 + $0x18] sm:$0xff] %v385
          %418 = vst [vmem:[#allocation2 + $0x20] sm:$0xff] %v386
          %419 = vst [vmem:[#allocation2 + $0x28] sm:$0xff] %v387
          %420 = vst [vmem:[#allocation2 + $0x30] sm:$0xff] %v388
          %421 = vst [vmem:[#allocation2 + $0x38] sm:$0xff] %v389
          %422 = vst [vmem:[#allocation2 + $0x40] sm:$0xff] %v390
          %423 = vst [vmem:[#allocation2 + $0x48] sm:$0xff] %v391
          %424 = vst [vmem:[#allocation2 + $0x50] sm:$0xff] %v392
          %425 = vst [vmem:[#allocation2 + $0x58] sm:$0xff] %v393
          %426 = vst [vmem:[#allocation2 + $0x60] sm:$0xff] %v394
          %427 = vst [vmem:[#allocation2 + $0x68] sm:$0xff] %v395
          %428 = vst [vmem:[#allocation2 + $0x70] sm:$0xff] %v396
          %429 = vst [vmem:[#allocation2 + $0x78] sm:$0xff] %v397
          %430 = vst [vmem:[#allocation2 + $0x80] sm:$0xff] %v398
          %431 = vst [vmem:[#allocation2 + $0x88] sm:$0xff] %v399
          %432 = vst [vmem:[#allocation2 + $0x90] sm:$0xff] %v400
          %433 = vst [vmem:[#allocation2 + $0x98] sm:$0xff] %v401
          %434 = vst [vmem:[#allocation2 + $0xa0] sm:$0xff] %v402
          %435 = vst [vmem:[#allocation2 + $0xa8] sm:$0xff] %v403
          %436 = vst [vmem:[#allocation2 + $0xb0] sm:$0xff] %v404
          %437 = vst [vmem:[#allocation2 + $0xb8] sm:$0xff] %v405
          %438 = vst [vmem:[#allocation2 + $0xc0] sm:$0xff] %v406
          %439 = vst [vmem:[#allocation2 + $0xc8] sm:$0xff] %v407
          %440 = vst [vmem:[#allocation2 + $0xd0] sm:$0xff] %v408
          %441 = vst [vmem:[#allocation2 + $0xd8] sm:$0xff] %v409
          %442 = vst [vmem:[#allocation2 + $0xe0] sm:$0xff] %v410
          %443 = vst [vmem:[#allocation2 + $0xe8] sm:$0xff] %v411
          %444 = vst [vmem:[#allocation2 + $0xf0] sm:$0xff] %v412
          %445 = vst [vmem:[#allocation2 + $0xf8] sm:$0xff] %v413
        $region56: #{qwen_decoder_layer.9} parent=35 // pred_fallthru
          _
        %v446 = vld [vmem:[%s304] sm:$0xf]
        %v447 = vld [vmem:[%s304 + $0x4] sm:$0xf]
        %v448 = vld [vmem:[%s304 + $0x8] sm:$0xf]
        %v449 = vld [vmem:[%s304 + $0xc] sm:$0xf]
        %v450 = vld [vmem:[%s304 + $0x10] sm:$0xf]
        %v451 = vld [vmem:[%s304 + $0x14] sm:$0xf]
        %v452 = vld [vmem:[%s304 + $0x18] sm:$0xf]
        %v453 = vld [vmem:[%s304 + $0x1c] sm:$0xf]
        %v454 = vld [vmem:[%s304 + $0x20] sm:$0xf]
        %v455 = vld [vmem:[%s304 + $0x24] sm:$0xf]
        %v456 = vld [vmem:[%s304 + $0x28] sm:$0xf]
        %v457 = vld [vmem:[%s304 + $0x2c] sm:$0xf]
        %v458 = vld [vmem:[%s304 + $0x30] sm:$0xf]
        %v459 = vld [vmem:[%s304 + $0x34] sm:$0xf]
        %v460 = vld [vmem:[%s304 + $0x38] sm:$0xf]
        %v461 = vld [vmem:[%s304 + $0x3c] sm:$0xf]
        %v462 = vld [vmem:[%s304 + $0x40] sm:$0xf]
        %v463 = vld [vmem:[%s304 + $0x44] sm:$0xf]
        %v464 = vld [vmem:[%s304 + $0x48] sm:$0xf]
        %v465 = vld [vmem:[%s304 + $0x4c] sm:$0xf]
        %v466 = vld [vmem:[%s304 + $0x50] sm:$0xf]
        %v467 = vld [vmem:[%s304 + $0x54] sm:$0xf]
        %v468 = vld [vmem:[%s304 + $0x58] sm:$0xf]
        %v469 = vld [vmem:[%s304 + $0x5c] sm:$0xf]
        %v470 = vld [vmem:[%s304 + $0x60] sm:$0xf]
        %v471 = vld [vmem:[%s304 + $0x64] sm:$0xf]
        %v472 = vld [vmem:[%s304 + $0x68] sm:$0xf]
        %v473 = vld [vmem:[%s304 + $0x6c] sm:$0xf]
        %v474 = vld [vmem:[%s304 + $0x70] sm:$0xf]
        %v475 = vld [vmem:[%s304 + $0x74] sm:$0xf]
        %v476 = vld [vmem:[%s304 + $0x78] sm:$0xf]
        %v477 = vld [vmem:[%s304 + $0x7c] sm:$0xf]
        %v478 = vunpack.c.l.bf16 %v446
        %v479 = vunpack.c.l.bf16 %v447
        %v480 = vunpack.c.l.bf16 %v448
        %v481 = vunpack.c.l.bf16 %v449
        %v482 = vunpack.c.l.bf16 %v450
        %v483 = vunpack.c.l.bf16 %v451
        %v484 = vunpack.c.l.bf16 %v452
        %v485 = vunpack.c.l.bf16 %v453
        %v486 = vunpack.c.l.bf16 %v454
        %v487 = vunpack.c.l.bf16 %v455
        %v488 = vunpack.c.l.bf16 %v456
        %v489 = vunpack.c.l.bf16 %v457
        %v490 = vunpack.c.l.bf16 %v458
        %v491 = vunpack.c.l.bf16 %v459
        %v492 = vunpack.c.l.bf16 %v460
        %v493 = vunpack.c.l.bf16 %v461
        %v494 = vunpack.c.l.bf16 %v462
        %v495 = vunpack.c.l.bf16 %v463
        %v496 = vunpack.c.l.bf16 %v464
        %v497 = vunpack.c.l.bf16 %v465
        %v498 = vunpack.c.l.bf16 %v466
        %v499 = vunpack.c.l.bf16 %v467
        %v500 = vunpack.c.l.bf16 %v468
        %v501 = vunpack.c.l.bf16 %v469
        %v502 = vunpack.c.l.bf16 %v470
        %v503 = vunpack.c.l.bf16 %v471
        %v504 = vunpack.c.l.bf16 %v472
        %v505 = vunpack.c.l.bf16 %v473
        %v506 = vunpack.c.l.bf16 %v474
        %v507 = vunpack.c.l.bf16 %v475
        %v508 = vunpack.c.l.bf16 %v476
        %v509 = vunpack.c.l.bf16 %v477
        %v510 = vld [vmem:[%s313] sm:$0xf]
        %v511 = vld [vmem:[%s313 + $0x4] sm:$0xf]
        %v512 = vld [vmem:[%s313 + $0x8] sm:$0xf]
        %v513 = vld [vmem:[%s313 + $0xc] sm:$0xf]
        %v514 = vld [vmem:[%s313 + $0x10] sm:$0xf]
        %v515 = vld [vmem:[%s313 + $0x14] sm:$0xf]
        %v516 = vld [vmem:[%s313 + $0x18] sm:$0xf]
        %v517 = vld [vmem:[%s313 + $0x1c] sm:$0xf]
        %v518 = vld [vmem:[%s313 + $0x20] sm:$0xf]
        %v519 = vld [vmem:[%s313 + $0x24] sm:$0xf]
        %v520 = vld [vmem:[%s313 + $0x28] sm:$0xf]
        %v521 = vld [vmem:[%s313 + $0x2c] sm:$0xf]
        %v522 = vld [vmem:[%s313 + $0x30] sm:$0xf]
        %v523 = vld [vmem:[%s313 + $0x34] sm:$0xf]
        %v524 = vld [vmem:[%s313 + $0x38] sm:$0xf]
        %v525 = vld [vmem:[%s313 + $0x3c] sm:$0xf]
        %v526 = vld [vmem:[%s313 + $0x40] sm:$0xf]
        %v527 = vld [vmem:[%s313 + $0x44] sm:$0xf]
        %v528 = vld [vmem:[%s313 + $0x48] sm:$0xf]
        %v529 = vld [vmem:[%s313 + $0x4c] sm:$0xf]
        %v530 = vld [vmem:[%s313 + $0x50] sm:$0xf]
        %v531 = vld [vmem:[%s313 + $0x54] sm:$0xf]
        %v532 = vld [vmem:[%s313 + $0x58] sm:$0xf]
        %v533 = vld [vmem:[%s313 + $0x5c] sm:$0xf]
        %v534 = vld [vmem:[%s313 + $0x60] sm:$0xf]
        %v535 = vld [vmem:[%s313 + $0x64] sm:$0xf]
        %v536 = vld [vmem:[%s313 + $0x68] sm:$0xf]
        %v537 = vld [vmem:[%s313 + $0x6c] sm:$0xf]
        %v538 = vld [vmem:[%s313 + $0x70] sm:$0xf]
        %v539 = vld [vmem:[%s313 + $0x74] sm:$0xf]
        %v540 = vld [vmem:[%s313 + $0x78] sm:$0xf]
        %v541 = vld [vmem:[%s313 + $0x7c] sm:$0xf]
        %v542 = vunpack.c.l.bf16 %v510
        %v543 = vunpack.c.l.bf16 %v511
        %v544 = vunpack.c.l.bf16 %v512
        %v545 = vunpack.c.l.bf16 %v513
        %v546 = vunpack.c.l.bf16 %v514
        %v547 = vunpack.c.l.bf16 %v515
        %v548 = vunpack.c.l.bf16 %v516
        %v549 = vunpack.c.l.bf16 %v517
        %v550 = vunpack.c.l.bf16 %v518
        %v551 = vunpack.c.l.bf16 %v519
        %v552 = vunpack.c.l.bf16 %v520
        %v553 = vunpack.c.l.bf16 %v521
        %v554 = vunpack.c.l.bf16 %v522
        %v555 = vunpack.c.l.bf16 %v523
        %v556 = vunpack.c.l.bf16 %v524
        %v557 = vunpack.c.l.bf16 %v525
        %v558 = vunpack.c.l.bf16 %v526
        %v559 = vunpack.c.l.bf16 %v527
        %v560 = vunpack.c.l.bf16 %v528
        %v561 = vunpack.c.l.bf16 %v529
        %v562 = vunpack.c.l.bf16 %v530
        %v563 = vunpack.c.l.bf16 %v531
        %v564 = vunpack.c.l.bf16 %v532
        %v565 = vunpack.c.l.bf16 %v533
        %v566 = vunpack.c.l.bf16 %v534
        %v567 = vunpack.c.l.bf16 %v535
        %v568 = vunpack.c.l.bf16 %v536
        %v569 = vunpack.c.l.bf16 %v537
        %v570 = vunpack.c.l.bf16 %v538
        %v571 = vunpack.c.l.bf16 %v539
        %v572 = vunpack.c.l.bf16 %v540
        %v573 = vunpack.c.l.bf16 %v541
        %v574 = vxor.u32 %v478, 2147483648
        %v575 = vxor.u32 %v479, 2147483648
        %v576 = vxor.u32 %v480, 2147483648
        %v577 = vxor.u32 %v481, 2147483648
        %v578 = vxor.u32 %v482, 2147483648
        %v579 = vxor.u32 %v483, 2147483648
        %v580 = vxor.u32 %v484, 2147483648
        %v581 = vxor.u32 %v485, 2147483648
        %v582 = vxor.u32 %v486, 2147483648
        %v583 = vxor.u32 %v487, 2147483648
        %v584 = vxor.u32 %v488, 2147483648
        %v585 = vxor.u32 %v489, 2147483648
        %v586 = vxor.u32 %v490, 2147483648
        %v587 = vxor.u32 %v491, 2147483648
        %v588 = vxor.u32 %v492, 2147483648
        %v589 = vxor.u32 %v493, 2147483648
        %v590 = vxor.u32 %v494, 2147483648
        %v591 = vxor.u32 %v495, 2147483648
        %v592 = vxor.u32 %v496, 2147483648
        %v593 = vxor.u32 %v497, 2147483648
        %v594 = vxor.u32 %v498, 2147483648
        %v595 = vxor.u32 %v499, 2147483648
        %v596 = vxor.u32 %v500, 2147483648
        %v597 = vxor.u32 %v501, 2147483648
        %v598 = vxor.u32 %v502, 2147483648
        %v599 = vxor.u32 %v503, 2147483648
        %v600 = vxor.u32 %v504, 2147483648
        %v601 = vxor.u32 %v505, 2147483648
        %v602 = vxor.u32 %v506, 2147483648
        %v603 = vxor.u32 %v507, 2147483648
        %v604 = vxor.u32 %v508, 2147483648
        %v605 = vxor.u32 %v509, 2147483648
        %v606 = vmul.f32 %v574, 1.442695
        %v607 = vpow.pop %v606
        %v608 = vmul.f32 %v575, 1.442695
        %v609 = vpow.pop %v608
        %v610 = vmul.f32 %v576, 1.442695
        %v611 = vpow.pop %v610
        %v612 = vmul.f32 %v577, 1.442695
        %v613 = vpow.pop %v612
        %v614 = vmul.f32 %v578, 1.442695
        %v615 = vpow.pop %v614
        %v616 = vmul.f32 %v579, 1.442695
        %v617 = vpow.pop %v616
        %v618 = vmul.f32 %v580, 1.442695
        %v619 = vpow.pop %v618
        %v620 = vmul.f32 %v581, 1.442695
        %v621 = vpow.pop %v620
        %v622 = vmul.f32 %v582, 1.442695
        %v623 = vpow.pop %v622
        %v624 = vmul.f32 %v583, 1.442695
        %v625 = vpow.pop %v624
        %v626 = vmul.f32 %v584, 1.442695
        %v627 = vpow.pop %v626
        %v628 = vmul.f32 %v585, 1.442695
        %v629 = vpow.pop %v628
        %v630 = vmul.f32 %v586, 1.442695
        %v631 = vpow.pop %v630
        %v632 = vmul.f32 %v587, 1.442695
        %v633 = vpow.pop %v632
        %v634 = vmul.f32 %v588, 1.442695
        %v635 = vpow.pop %v634
        %v636 = vmul.f32 %v589, 1.442695
        %v637 = vpow.pop %v636
        %v638 = vmul.f32 %v590, 1.442695
        %v639 = vpow.pop %v638
        %v640 = vmul.f32 %v591, 1.442695
        %v641 = vpow.pop %v640
        %v642 = vmul.f32 %v592, 1.442695
        %v643 = vpow.pop %v642
        %v644 = vmul.f32 %v593, 1.442695
        %v645 = vpow.pop %v644
        %v646 = vmul.f32 %v594, 1.442695
        %v647 = vpow.pop %v646
        %v648 = vmul.f32 %v595, 1.442695
        %v649 = vpow.pop %v648
        %v650 = vmul.f32 %v596, 1.442695
        %v651 = vpow.pop %v650
        %v652 = vmul.f32 %v597, 1.442695
        %v653 = vpow.pop %v652
        %v654 = vmul.f32 %v598, 1.442695
        %v655 = vpow.pop %v654
        %v656 = vmul.f32 %v599, 1.442695
        %v657 = vpow.pop %v656
        %v658 = vmul.f32 %v600, 1.442695
        %v659 = vpow.pop %v658
        %v660 = vmul.f32 %v601, 1.442695
        %v661 = vpow.pop %v660
        %v662 = vmul.f32 %v602, 1.442695
        %v663 = vpow.pop %v662
        %v664 = vmul.f32 %v603, 1.442695
        %v665 = vpow.pop %v664
        %v666 = vmul.f32 %v604, 1.442695
        %v667 = vpow.pop %v666
        %v668 = vmul.f32 %v605, 1.442695
        %v669 = vpow.pop %v668
        %v670 = vadd.f32 %v607, 1.0
        %v671 = vadd.f32 %v609, 1.0
        %v672 = vadd.f32 %v611, 1.0
        %v673 = vadd.f32 %v613, 1.0
        %v674 = vadd.f32 %v615, 1.0
        %v675 = vadd.f32 %v617, 1.0
        %v676 = vadd.f32 %v619, 1.0
        %v677 = vadd.f32 %v621, 1.0
        %v678 = vadd.f32 %v623, 1.0
        %v679 = vadd.f32 %v625, 1.0
        %v680 = vadd.f32 %v627, 1.0
        %v681 = vadd.f32 %v629, 1.0
        %v682 = vadd.f32 %v631, 1.0
        %v683 = vadd.f32 %v633, 1.0
        %v684 = vadd.f32 %v635, 1.0
        %v685 = vadd.f32 %v637, 1.0
        %v686 = vadd.f32 %v639, 1.0
        %v687 = vadd.f32 %v641, 1.0
        %v688 = vadd.f32 %v643, 1.0
        %v689 = vadd.f32 %v645, 1.0
        %v690 = vadd.f32 %v647, 1.0
        %v691 = vadd.f32 %v649, 1.0
        %v692 = vadd.f32 %v651, 1.0
        %v693 = vadd.f32 %v653, 1.0
        %v694 = vadd.f32 %v655, 1.0
        %v695 = vadd.f32 %v657, 1.0
        %v696 = vadd.f32 %v659, 1.0
        %v697 = vadd.f32 %v661, 1.0
        %v698 = vadd.f32 %v663, 1.0
        %v699 = vadd.f32 %v665, 1.0
        %v700 = vadd.f32 %v667, 1.0
        %v701 = vadd.f32 %v669, 1.0
        %v702 = vrcp.pop %v670
        %v703 = vmul.f32 1.0, %v702
        %v704 = vrcp.pop %v671
        %v705 = vmul.f32 1.0, %v704
        %v706 = vrcp.pop %v672
        %v707 = vmul.f32 1.0, %v706
        %v708 = vrcp.pop %v673
        %v709 = vmul.f32 1.0, %v708
        %v710 = vrcp.pop %v674
        %v711 = vmul.f32 1.0, %v710
        %v712 = vrcp.pop %v675
        %v713 = vmul.f32 1.0, %v712
        %v714 = vrcp.pop %v676
        %v715 = vmul.f32 1.0, %v714
        %v716 = vrcp.pop %v677
        %v717 = vmul.f32 1.0, %v716
        %v718 = vrcp.pop %v678
        %v719 = vmul.f32 1.0, %v718
        %v720 = vrcp.pop %v679
        %v721 = vmul.f32 1.0, %v720
        %v722 = vrcp.pop %v680
        %v723 = vmul.f32 1.0, %v722
        %v724 = vrcp.pop %v681
        %v725 = vmul.f32 1.0, %v724
        %v726 = vrcp.pop %v682
        %v727 = vmul.f32 1.0, %v726
        %v728 = vrcp.pop %v683
        %v729 = vmul.f32 1.0, %v728
        %v730 = vrcp.pop %v684
        %v731 = vmul.f32 1.0, %v730
        %v732 = vrcp.pop %v685
        %v733 = vmul.f32 1.0, %v732
        %v734 = vrcp.pop %v686
        %v735 = vmul.f32 1.0, %v734
        %v736 = vrcp.pop %v687
        %v737 = vmul.f32 1.0, %v736
        %v738 = vrcp.pop %v688
        %v739 = vmul.f32 1.0, %v738
        %v740 = vrcp.pop %v689
        %v741 = vmul.f32 1.0, %v740
        %v742 = vrcp.pop %v690
        %v743 = vmul.f32 1.0, %v742
        %v744 = vrcp.pop %v691
        %v745 = vmul.f32 1.0, %v744
        %v746 = vrcp.pop %v692
        %v747 = vmul.f32 1.0, %v746
        %v748 = vrcp.pop %v693
        %v749 = vmul.f32 1.0, %v748
        %v750 = vrcp.pop %v694
        %v751 = vmul.f32 1.0, %v750
        %v752 = vrcp.pop %v695
        %v753 = vmul.f32 1.0, %v752
        %v754 = vrcp.pop %v696
        %v755 = vmul.f32 1.0, %v754
        %v756 = vrcp.pop %v697
        %v757 = vmul.f32 1.0, %v756
        %v758 = vrcp.pop %v698
        %v759 = vmul.f32 1.0, %v758
        %v760 = vrcp.pop %v699
        %v761 = vmul.f32 1.0, %v760
        %v762 = vrcp.pop %v700
        %v763 = vmul.f32 1.0, %v762
        %v764 = vrcp.pop %v701
        %v765 = vmul.f32 1.0, %v764
        %v766 = vmul.f32 %v478, %v703
        %v767 = vmul.f32 %v479, %v705
        %v768 = vmul.f32 %v480, %v707
        %v769 = vmul.f32 %v481, %v709
        %v770 = vmul.f32 %v482, %v711
        %v771 = vmul.f32 %v483, %v713
        %v772 = vmul.f32 %v484, %v715
        %v773 = vmul.f32 %v485, %v717
        %v774 = vmul.f32 %v486, %v719
        %v775 = vmul.f32 %v487, %v721
        %v776 = vmul.f32 %v488, %v723
        %v777 = vmul.f32 %v489, %v725
        %v778 = vmul.f32 %v490, %v727
        %v779 = vmul.f32 %v491, %v729
        %v780 = vmul.f32 %v492, %v731
        %v781 = vmul.f32 %v493, %v733
        %v782 = vmul.f32 %v494, %v735
        %v783 = vmul.f32 %v495, %v737
        %v784 = vmul.f32 %v496, %v739
        %v785 = vmul.f32 %v497, %v741
        %v786 = vmul.f32 %v498, %v743
        %v787 = vmul.f32 %v499, %v745
        %v788 = vmul.f32 %v500, %v747
        %v789 = vmul.f32 %v501, %v749
        %v790 = vmul.f32 %v502, %v751
        %v791 = vmul.f32 %v503, %v753
        %v792 = vmul.f32 %v504, %v755
        %v793 = vmul.f32 %v505, %v757
        %v794 = vmul.f32 %v506, %v759
        %v795 = vmul.f32 %v507, %v761
        %v796 = vmul.f32 %v508, %v763
        %v797 = vmul.f32 %v509, %v765
        %v798 = vmul.f32 %v766, %v542
        %v799 = vmul.f32 %v767, %v543
        %v800 = vmul.f32 %v768, %v544
        %v801 = vmul.f32 %v769, %v545
        %v802 = vmul.f32 %v770, %v546
        %v803 = vmul.f32 %v771, %v547
        %v804 = vmul.f32 %v772, %v548
        %v805 = vmul.f32 %v773, %v549
        %v806 = vmul.f32 %v774, %v550
        %v807 = vmul.f32 %v775, %v551
        %v808 = vmul.f32 %v776, %v552
        %v809 = vmul.f32 %v777, %v553
        %v810 = vmul.f32 %v778, %v554
        %v811 = vmul.f32 %v779, %v555
        %v812 = vmul.f32 %v780, %v556
        %v813 = vmul.f32 %v781, %v557
        %v814 = vmul.f32 %v782, %v558
        %v815 = vmul.f32 %v783, %v559
        %v816 = vmul.f32 %v784, %v560
        %v817 = vmul.f32 %v785, %v561
        %v818 = vmul.f32 %v786, %v562
        %v819 = vmul.f32 %v787, %v563
        %v820 = vmul.f32 %v788, %v564
        %v821 = vmul.f32 %v789, %v565
        %v822 = vmul.f32 %v790, %v566
        %v823 = vmul.f32 %v791, %v567
        %v824 = vmul.f32 %v792, %v568
        %v825 = vmul.f32 %v793, %v569
        %v826 = vmul.f32 %v794, %v570
        %v827 = vmul.f32 %v795, %v571
        %v828 = vmul.f32 %v796, %v572
        %v829 = vmul.f32 %v797, %v573
        %v830 = vpack.c.bf16 %v799, %v798
        %v831 = vpack.c.bf16 %v801, %v800
        %v832 = vpack.c.bf16 %v803, %v802
        %v833 = vpack.c.bf16 %v805, %v804
        %v834 = vpack.c.bf16 %v807, %v806
        %v835 = vpack.c.bf16 %v809, %v808
        %v836 = vpack.c.bf16 %v811, %v810
        %v837 = vpack.c.bf16 %v813, %v812
        %v838 = vpack.c.bf16 %v815, %v814
        %v839 = vpack.c.bf16 %v817, %v816
        %v840 = vpack.c.bf16 %v819, %v818
        %v841 = vpack.c.bf16 %v821, %v820
        %v842 = vpack.c.bf16 %v823, %v822
        %v843 = vpack.c.bf16 %v825, %v824
        %v844 = vpack.c.bf16 %v827, %v826
        %v845 = vpack.c.bf16 %v829, %v828
        %v846 = vld [vmem:[#allocation2] sm:$0xff]
        %v847 = vld [vmem:[#allocation2 + $0x8] sm:$0xff]
        %v848 = vld [vmem:[#allocation2 + $0x10] sm:$0xff]
        %v849 = vld [vmem:[#allocation2 + $0x18] sm:$0xff]
        %v850 = vld [vmem:[#allocation2 + $0x20] sm:$0xff]
        %v851 = vld [vmem:[#allocation2 + $0x28] sm:$0xff]
        %v852 = vld [vmem:[#allocation2 + $0x30] sm:$0xff]
        %v853 = vld [vmem:[#allocation2 + $0x38] sm:$0xff]
        %v854 = vld [vmem:[#allocation2 + $0x40] sm:$0xff]
        %v855 = vld [vmem:[#allocation2 + $0x48] sm:$0xff]
        %v856 = vld [vmem:[#allocation2 + $0x50] sm:$0xff]
        %v857 = vld [vmem:[#allocation2 + $0x58] sm:$0xff]
        %v858 = vld [vmem:[#allocation2 + $0x60] sm:$0xff]
        %v859 = vld [vmem:[#allocation2 + $0x68] sm:$0xff]
        %v860 = vld [vmem:[#allocation2 + $0x70] sm:$0xff]
        %v861 = vld [vmem:[#allocation2 + $0x78] sm:$0xff]
        %v862 = vld [vmem:[#allocation2 + $0x80] sm:$0xff]
        %v863 = vld [vmem:[#allocation2 + $0x88] sm:$0xff]
        %v864 = vld [vmem:[#allocation2 + $0x90] sm:$0xff]
        %v865 = vld [vmem:[#allocation2 + $0x98] sm:$0xff]
        %v866 = vld [vmem:[#allocation2 + $0xa0] sm:$0xff]
        %v867 = vld [vmem:[#allocation2 + $0xa8] sm:$0xff]
        %v868 = vld [vmem:[#allocation2 + $0xb0] sm:$0xff]
        %v869 = vld [vmem:[#allocation2 + $0xb8] sm:$0xff]
        %v870 = vld [vmem:[#allocation2 + $0xc0] sm:$0xff]
        %v871 = vld [vmem:[#allocation2 + $0xc8] sm:$0xff]
        %v872 = vld [vmem:[#allocation2 + $0xd0] sm:$0xff]
        %v873 = vld [vmem:[#allocation2 + $0xd8] sm:$0xff]
        %v874 = vld [vmem:[#allocation2 + $0xe0] sm:$0xff]
        %v875 = vld [vmem:[#allocation2 + $0xe8] sm:$0xff]
        %v876 = vld [vmem:[#allocation2 + $0xf0] sm:$0xff]
        %v877 = vld [vmem:[#allocation2 + $0xf8] sm:$0xff]
        %v878 = vld [vmem:[%s322] sm:$0xf]
        %v879 = vld [vmem:[%s322 + $0x4] sm:$0xf]
        %v880 = vld [vmem:[%s322 + $0x8] sm:$0xf]
        %v881 = vld [vmem:[%s322 + $0xc] sm:$0xf]
        %v882 = vld [vmem:[%s322 + $0x10] sm:$0xf]
        %v883 = vld [vmem:[%s322 + $0x14] sm:$0xf]
        %v884 = vld [vmem:[%s322 + $0x18] sm:$0xf]
        %v885 = vld [vmem:[%s322 + $0x1c] sm:$0xf]
        %v886 = vld [vmem:[%s322 + $0x20] sm:$0xf]
        %v887 = vld [vmem:[%s322 + $0x24] sm:$0xf]
        %v888 = vld [vmem:[%s322 + $0x28] sm:$0xf]
        %v889 = vld [vmem:[%s322 + $0x2c] sm:$0xf]
        %v890 = vld [vmem:[%s322 + $0x30] sm:$0xf]
        %v891 = vld [vmem:[%s322 + $0x34] sm:$0xf]
        %v892 = vld [vmem:[%s322 + $0x38] sm:$0xf]
        %v893 = vld [vmem:[%s322 + $0x3c] sm:$0xf]
        %v910 = vunpack.c.l.b16 %v878
        %v911 = vunpack.c.l.b16 %v879
        %v912 = vunpack.c.l.b16 %v880
        %v913 = vunpack.c.l.b16 %v881
        %v914 = vunpack.c.l.b16 %v882
        %v915 = vunpack.c.l.b16 %v883
        %v916 = vunpack.c.l.b16 %v884
        %v917 = vunpack.c.l.b16 %v885
        %v918 = vunpack.c.l.b16 %v886
        %v919 = vunpack.c.l.b16 %v887
        %v920 = vunpack.c.l.b16 %v888
        %v921 = vunpack.c.l.b16 %v889
        %v922 = vunpack.c.l.b16 %v890
        %v923 = vunpack.c.l.b16 %v891
        %v924 = vunpack.c.l.b16 %v892
        %v925 = vunpack.c.l.b16 %v893
        %v926 = vpack.c.b16 %v911, %v910
        %v927 = vpack.c.b16 %v913, %v912
        %v928 = vpack.c.b16 %v915, %v914
        %v929 = vpack.c.b16 %v917, %v916
        %v930 = vpack.c.b16 %v919, %v918
        %v931 = vpack.c.b16 %v921, %v920
        %v932 = vpack.c.b16 %v923, %v922
        %v933 = vpack.c.b16 %v925, %v924
        %942 = vmatprep.subr.bf16.mxu0 0
        %943 = vmatpush1.bf16.msra.mxu0 %v926
        %944 = vmatprep.subr.bf16.mxu0 0
        %945 = vmatpush1.bf16.msra.mxu0 %v927
        %946 = vmatprep.subr.bf16.mxu0 0
        %947 = vmatpush1.bf16.msra.mxu0 %v928
        %948 = vmatprep.subr.bf16.mxu0 0
        %949 = vmatpush1.bf16.msra.mxu0 %v929
        %950 = vmatprep.subr.bf16.mxu0 0
        %951 = vmatpush1.bf16.msra.mxu0 %v930
        %952 = vmatprep.subr.bf16.mxu0 0
        %953 = vmatpush1.bf16.msra.mxu0 %v931
        %954 = vmatprep.subr.bf16.mxu0 0
        %955 = vmatpush1.bf16.msra.mxu0 %v932
        %956 = vmatprep.subr.bf16.mxu0 0
        %957 = vmatpush1.bf16.msra.mxu0 %v933
        %958 = vmatprep.subr.bf16.mxu0 0
        %959 = vmatpush1.bf16.msra.mxu0 0
        %960 = vmatprep.subr.bf16.mxu0 0
        %961 = vmatpush1.bf16.msra.mxu0 0
        %962 = vmatprep.subr.bf16.mxu0 0
        %963 = vmatpush1.bf16.msra.mxu0 0
        %964 = vmatprep.subr.bf16.mxu0 0
        %965 = vmatpush1.bf16.msra.mxu0 0
        %966 = vmatprep.subr.bf16.mxu0 0
        %967 = vmatpush1.bf16.msra.mxu0 0
        %968 = vmatprep.subr.bf16.mxu0 0
        %969 = vmatpush1.bf16.msra.mxu0 0
        %970 = vmatprep.subr.bf16.mxu0 0
        %971 = vmatpush1.bf16.msra.mxu0 0
        %972 = vmatprep.subr.bf16.mxu0 0
        %973 = vmatpush1.bf16.msra.mxu0 0
        %974 = vmatprep.mubr.bf16.mxu0 0
        %975 = vmatmul.mubr.bf16.gmra.mrb[0].mxu0 %v830
        %v976 = vpop.f32.mrb[0].mxu0
        %v977 = vadd.f32 0.0, %v976
        %v978 = vpop.f32.mrb[0].mxu0
        %v979 = vpop.f32.mrb[0].mxu0
        %v980 = vadd.f32 0.0, %v979
        %v981 = vpop.f32.mrb[0].mxu0
        %982 = vmatprep.mubr.bf16.mxu0 0
        %983 = vmatmul.mubr.bf16.gmra.mrb[0].mxu0 %v831
        %v984 = vpop.f32.mrb[0].mxu0
        %v985 = vadd.f32 0.0, %v984
        %v986 = vpop.f32.mrb[0].mxu0
        %v987 = vpop.f32.mrb[0].mxu0
        %v988 = vadd.f32 0.0, %v987
        %v989 = vpop.f32.mrb[0].mxu0
        %990 = vmatprep.mubr.bf16.mxu0 0
        %991 = vmatmul.mubr.bf16.gmra.mrb[0].mxu0 %v832
        %v992 = vpop.f32.mrb[0].mxu0
        %v993 = vadd.f32 0.0, %v992
        %v994 = vpop.f32.mrb[0].mxu0
        %v995 = vpop.f32.mrb[0].mxu0
        %v996 = vadd.f32 0.0, %v995
        %v997 = vpop.f32.mrb[0].mxu0
        %998 = vmatprep.mubr.bf16.mxu0 0
        %999 = vmatmul.mubr.bf16.gmra.mrb[0].mxu0 %v833
        %v1000 = vpop.f32.mrb[0].mxu0
        %v1001 = vadd.f32 0.0, %v1000
        %v1002 = vpop.f32.mrb[0].mxu0
        %v1003 = vpop.f32.mrb[0].mxu0
        %v1004 = vadd.f32 0.0, %v1003
        %v1005 = vpop.f32.mrb[0].mxu0
        %1006 = vmatprep.mubr.bf16.mxu0 0
        %1007 = vmatmul.mubr.bf16.gmra.mrb[0].mxu0 %v834
        %v1008 = vpop.f32.mrb[0].mxu0
        %v1009 = vadd.f32 0.0, %v1008
        %v1010 = vpop.f32.mrb[0].mxu0
        %v1011 = vpop.f32.mrb[0].mxu0
        %v1012 = vadd.f32 0.0, %v1011
        %v1013 = vpop.f32.mrb[0].mxu0
        %1014 = vmatprep.mubr.bf16.mxu0 0
        %1015 = vmatmul.mubr.bf16.gmra.mrb[0].mxu0 %v835
        %v1016 = vpop.f32.mrb[0].mxu0
        %v1017 = vadd.f32 0.0, %v1016
        %v1018 = vpop.f32.mrb[0].mxu0
        %v1019 = vpop.f32.mrb[0].mxu0
        %v1020 = vadd.f32 0.0, %v1019
        %v1021 = vpop.f32.mrb[0].mxu0
        %1022 = vmatprep.mubr.bf16.mxu0 0
        %1023 = vmatmul.mubr.bf16.gmra.mrb[0].mxu0 %v836
        %v1024 = vpop.f32.mrb[0].mxu0
        %v1025 = vadd.f32 0.0, %v1024
        %v1026 = vpop.f32.mrb[0].mxu0
        %v1027 = vpop.f32.mrb[0].mxu0
        %v1028 = vadd.f32 0.0, %v1027
        %v1029 = vpop.f32.mrb[0].mxu0
        %1030 = vmatprep.mubr.bf16.mxu0 0
        %1031 = vmatmul.mubr.bf16.gmra.mrb[0].mxu0 %v837
        %v1032 = vpop.f32.mrb[0].mxu0
        %v1033 = vadd.f32 0.0, %v1032
        %v1034 = vpop.f32.mrb[0].mxu0
        %v1035 = vpop.f32.mrb[0].mxu0
        %v1036 = vadd.f32 0.0, %v1035
        %v1037 = vpop.f32.mrb[0].mxu0
        %1038 = vmatprep.mubr.bf16.mxu0 0
        %1039 = vmatmul.mubr.bf16.gmra.mrb[0].mxu0 %v838
        %v1040 = vpop.f32.mrb[0].mxu0
        %v1041 = vadd.f32 0.0, %v1040
        %v1042 = vpop.f32.mrb[0].mxu0
        %v1043 = vpop.f32.mrb[0].mxu0
        %v1044 = vadd.f32 0.0, %v1043
        %v1045 = vpop.f32.mrb[0].mxu0
        %1046 = vmatprep.mubr.bf16.mxu0 0
        %1047 = vmatmul.mubr.bf16.gmra.mrb[0].mxu0 %v839
        %v1048 = vpop.f32.mrb[0].mxu0
        %v1049 = vadd.f32 0.0, %v1048
        %v1050 = vpop.f32.mrb[0].mxu0
        %v1051 = vpop.f32.mrb[0].mxu0
        %v1052 = vadd.f32 0.0, %v1051
        %v1053 = vpop.f32.mrb[0].mxu0
        %1054 = vmatprep.mubr.bf16.mxu0 0
        %1055 = vmatmul.mubr.bf16.gmra.mrb[0].mxu0 %v840
        %v1056 = vpop.f32.mrb[0].mxu0
        %v1057 = vadd.f32 0.0, %v1056
        %v1058 = vpop.f32.mrb[0].mxu0
        %v1059 = vpop.f32.mrb[0].mxu0
        %v1060 = vadd.f32 0.0, %v1059
        %v1061 = vpop.f32.mrb[0].mxu0
        %1062 = vmatprep.mubr.bf16.mxu0 0
        %1063 = vmatmul.mubr.bf16.gmra.mrb[0].mxu0 %v841
        %v1064 = vpop.f32.mrb[0].mxu0
        %v1065 = vadd.f32 0.0, %v1064
        %v1066 = vpop.f32.mrb[0].mxu0
        %v1067 = vpop.f32.mrb[0].mxu0
        %v1068 = vadd.f32 0.0, %v1067
        %v1069 = vpop.f32.mrb[0].mxu0
        %1070 = vmatprep.mubr.bf16.mxu0 0
        %1071 = vmatmul.mubr.bf16.gmra.mrb[0].mxu0 %v842
        %v1072 = vpop.f32.mrb[0].mxu0
        %v1073 = vadd.f32 0.0, %v1072
        %v1074 = vpop.f32.mrb[0].mxu0
        %v1075 = vpop.f32.mrb[0].mxu0
        %v1076 = vadd.f32 0.0, %v1075
        %v1077 = vpop.f32.mrb[0].mxu0
        %1078 = vmatprep.mubr.bf16.mxu0 0
        %1079 = vmatmul.mubr.bf16.gmra.mrb[0].mxu0 %v843
        %v1080 = vpop.f32.mrb[0].mxu0
        %v1081 = vadd.f32 0.0, %v1080
        %v1082 = vpop.f32.mrb[0].mxu0
        %v1083 = vpop.f32.mrb[0].mxu0
        %v1084 = vadd.f32 0.0, %v1083
        %v1085 = vpop.f32.mrb[0].mxu0
        %1086 = vmatprep.mubr.bf16.mxu0 0
        %1087 = vmatmul.mubr.bf16.gmra.mrb[0].mxu0 %v844
        %v1088 = vpop.f32.mrb[0].mxu0
        %v1089 = vadd.f32 0.0, %v1088
        %v1090 = vpop.f32.mrb[0].mxu0
        %v1091 = vpop.f32.mrb[0].mxu0
        %v1092 = vadd.f32 0.0, %v1091
        %v1093 = vpop.f32.mrb[0].mxu0
        %1094 = vmatprep.mubr.bf16.mxu0 0
        %1095 = vmatmul.mubr.bf16.gmra.mrb[0].mxu0 %v845
        %v1096 = vpop.f32.mrb[0].mxu0
        %v1097 = vadd.f32 0.0, %v1096
        %v1098 = vpop.f32.mrb[0].mxu0
        %v1099 = vpop.f32.mrb[0].mxu0
        %v1100 = vadd.f32 0.0, %v1099
        %v1101 = vpop.f32.mrb[0].mxu0
        %1102 = vdwg.mxu0
        %v1103 = vadd.f32 %v846, %v977
        %v1104 = vadd.f32 %v847, %v980
        %v1105 = vadd.f32 %v848, %v985
        %v1106 = vadd.f32 %v849, %v988
        %v1107 = vadd.f32 %v850, %v993
        %v1108 = vadd.f32 %v851, %v996
        %v1109 = vadd.f32 %v852, %v1001
        %v1110 = vadd.f32 %v853, %v1004
        %v1111 = vadd.f32 %v854, %v1009
        %v1112 = vadd.f32 %v855, %v1012
        %v1113 = vadd.f32 %v856, %v1017
        %v1114 = vadd.f32 %v857, %v1020
        %v1115 = vadd.f32 %v858, %v1025
        %v1116 = vadd.f32 %v859, %v1028
        %v1117 = vadd.f32 %v860, %v1033
        %v1118 = vadd.f32 %v861, %v1036
        %v1119 = vadd.f32 %v862, %v1041
        %v1120 = vadd.f32 %v863, %v1044
        %v1121 = vadd.f32 %v864, %v1049
        %v1122 = vadd.f32 %v865, %v1052
        %v1123 = vadd.f32 %v866, %v1057
        %v1124 = vadd.f32 %v867, %v1060
        %v1125 = vadd.f32 %v868, %v1065
        %v1126 = vadd.f32 %v869, %v1068
        %v1127 = vadd.f32 %v870, %v1073
        %v1128 = vadd.f32 %v871, %v1076
        %v1129 = vadd.f32 %v872, %v1081
        %v1130 = vadd.f32 %v873, %v1084
        %v1131 = vadd.f32 %v874, %v1089
        %v1132 = vadd.f32 %v875, %v1092
        %v1133 = vadd.f32 %v876, %v1097
        %v1134 = vadd.f32 %v877, %v1100
        %1135 = vst [vmem:[#allocation2] sm:$0xff] %v1103
        %1136 = vst [vmem:[#allocation2 + $0x8] sm:$0xff] %v1104
        %1137 = vst [vmem:[#allocation2 + $0x10] sm:$0xff] %v1105
        %1138 = vst [vmem:[#allocation2 + $0x18] sm:$0xff] %v1106
        %1139 = vst [vmem:[#allocation2 + $0x20] sm:$0xff] %v1107
        %1140 = vst [vmem:[#allocation2 + $0x28] sm:$0xff] %v1108
        %1141 = vst [vmem:[#allocation2 + $0x30] sm:$0xff] %v1109
        %1142 = vst [vmem:[#allocation2 + $0x38] sm:$0xff] %v1110
        %1143 = vst [vmem:[#allocation2 + $0x40] sm:$0xff] %v1111
        %1144 = vst [vmem:[#allocation2 + $0x48] sm:$0xff] %v1112
        %1145 = vst [vmem:[#allocation2 + $0x50] sm:$0xff] %v1113
        %1146 = vst [vmem:[#allocation2 + $0x58] sm:$0xff] %v1114
        %1147 = vst [vmem:[#allocation2 + $0x60] sm:$0xff] %v1115
        %1148 = vst [vmem:[#allocation2 + $0x68] sm:$0xff] %v1116
        %1149 = vst [vmem:[#allocation2 + $0x70] sm:$0xff] %v1117
        %1150 = vst [vmem:[#allocation2 + $0x78] sm:$0xff] %v1118
        %1151 = vst [vmem:[#allocation2 + $0x80] sm:$0xff] %v1119
        %1152 = vst [vmem:[#allocation2 + $0x88] sm:$0xff] %v1120
        %1153 = vst [vmem:[#allocation2 + $0x90] sm:$0xff] %v1121
        %1154 = vst [vmem:[#allocation2 + $0x98] sm:$0xff] %v1122
        %1155 = vst [vmem:[#allocation2 + $0xa0] sm:$0xff] %v1123
        %1156 = vst [vmem:[#allocation2 + $0xa8] sm:$0xff] %v1124
        %1157 = vst [vmem:[#allocation2 + $0xb0] sm:$0xff] %v1125
        %1158 = vst [vmem:[#allocation2 + $0xb8] sm:$0xff] %v1126
        %1159 = vst [vmem:[#allocation2 + $0xc0] sm:$0xff] %v1127
        %1160 = vst [vmem:[#allocation2 + $0xc8] sm:$0xff] %v1128
        %1161 = vst [vmem:[#allocation2 + $0xd0] sm:$0xff] %v1129
        %1162 = vst [vmem:[#allocation2 + $0xd8] sm:$0xff] %v1130
        %1163 = vst [vmem:[#allocation2 + $0xe0] sm:$0xff] %v1131
        %1164 = vst [vmem:[#allocation2 + $0xe8] sm:$0xff] %v1132
        %1165 = vst [vmem:[#allocation2 + $0xf0] sm:$0xff] %v1133
        %1166 = vst [vmem:[#allocation2 + $0xf8] sm:$0xff] %v1134
        %p1167 = scmp.eq.s32.totalorder %s34, 1
        // Predicated region
        $region57: #{qwen_decoder_layer.9} parent=35 // pred_check
          %p1168 = pneg %p1167
        $region58: #{qwen_decoder_layer.9} parent=35 // pred_check_branch
          %1170 = sbr.rel (%p1168) target = $region60
        $region59: #{qwen_decoder_layer.9} parent=35 // pred_region
          %v1171 = vld [vmem:[#allocation2] sm:$0xff]
          %v1172 = vld [vmem:[#allocation2 + $0x8] sm:$0xff]
          %v1173 = vld [vmem:[#allocation2 + $0x10] sm:$0xff]
          %v1174 = vld [vmem:[#allocation2 + $0x18] sm:$0xff]
          %v1175 = vld [vmem:[#allocation2 + $0x20] sm:$0xff]
          %v1176 = vld [vmem:[#allocation2 + $0x28] sm:$0xff]
          %v1177 = vld [vmem:[#allocation2 + $0x30] sm:$0xff]
          %v1178 = vld [vmem:[#allocation2 + $0x38] sm:$0xff]
          %v1179 = vld [vmem:[#allocation2 + $0x40] sm:$0xff]
          %v1180 = vld [vmem:[#allocation2 + $0x48] sm:$0xff]
          %v1181 = vld [vmem:[#allocation2 + $0x50] sm:$0xff]
          %v1182 = vld [vmem:[#allocation2 + $0x58] sm:$0xff]
          %v1183 = vld [vmem:[#allocation2 + $0x60] sm:$0xff]
          %v1184 = vld [vmem:[#allocation2 + $0x68] sm:$0xff]
          %v1185 = vld [vmem:[#allocation2 + $0x70] sm:$0xff]
          %v1186 = vld [vmem:[#allocation2 + $0x78] sm:$0xff]
          %v1187 = vld [vmem:[#allocation2 + $0x80] sm:$0xff]
          %v1188 = vld [vmem:[#allocation2 + $0x88] sm:$0xff]
          %v1189 = vld [vmem:[#allocation2 + $0x90] sm:$0xff]
          %v1190 = vld [vmem:[#allocation2 + $0x98] sm:$0xff]
          %v1191 = vld [vmem:[#allocation2 + $0xa0] sm:$0xff]
          %v1192 = vld [vmem:[#allocation2 + $0xa8] sm:$0xff]
          %v1193 = vld [vmem:[#allocation2 + $0xb0] sm:$0xff]
          %v1194 = vld [vmem:[#allocation2 + $0xb8] sm:$0xff]
          %v1195 = vld [vmem:[#allocation2 + $0xc0] sm:$0xff]
          %v1196 = vld [vmem:[#allocation2 + $0xc8] sm:$0xff]
          %v1197 = vld [vmem:[#allocation2 + $0xd0] sm:$0xff]
          %v1198 = vld [vmem:[#allocation2 + $0xd8] sm:$0xff]
          %v1199 = vld [vmem:[#allocation2 + $0xe0] sm:$0xff]
          %v1200 = vld [vmem:[#allocation2 + $0xe8] sm:$0xff]
          %v1201 = vld [vmem:[#allocation2 + $0xf0] sm:$0xff]
          %v1202 = vld [vmem:[#allocation2 + $0xf8] sm:$0xff]
          %1203 = vst [vmem:[%s370] sm:$0xff] %v1171
          %1204 = vst [vmem:[%s370 + $0x8] sm:$0xff] %v1172
          %1205 = vst [vmem:[%s370 + $0x10] sm:$0xff] %v1173
          %1206 = vst [vmem:[%s370 + $0x18] sm:$0xff] %v1174
          %1207 = vst [vmem:[%s370 + $0x20] sm:$0xff] %v1175
          %1208 = vst [vmem:[%s370 + $0x28] sm:$0xff] %v1176
          %1209 = vst [vmem:[%s370 + $0x30] sm:$0xff] %v1177
          %1210 = vst [vmem:[%s370 + $0x38] sm:$0xff] %v1178
          %1211 = vst [vmem:[%s370 + $0x40] sm:$0xff] %v1179
          %1212 = vst [vmem:[%s370 + $0x48] sm:$0xff] %v1180
          %1213 = vst [vmem:[%s370 + $0x50] sm:$0xff] %v1181
          %1214 = vst [vmem:[%s370 + $0x58] sm:$0xff] %v1182
          %1215 = vst [vmem:[%s370 + $0x60] sm:$0xff] %v1183
          %1216 = vst [vmem:[%s370 + $0x68] sm:$0xff] %v1184
          %1217 = vst [vmem:[%s370 + $0x70] sm:$0xff] %v1185
          %1218 = vst [vmem:[%s370 + $0x78] sm:$0xff] %v1186
          %1219 = vst [vmem:[%s370 + $0x80] sm:$0xff] %v1187
          %1220 = vst [vmem:[%s370 + $0x88] sm:$0xff] %v1188
          %1221 = vst [vmem:[%s370 + $0x90] sm:$0xff] %v1189
          %1222 = vst [vmem:[%s370 + $0x98] sm:$0xff] %v1190
          %1223 = vst [vmem:[%s370 + $0xa0] sm:$0xff] %v1191
          %1224 = vst [vmem:[%s370 + $0xa8] sm:$0xff] %v1192
          %1225 = vst [vmem:[%s370 + $0xb0] sm:$0xff] %v1193
          %1226 = vst [vmem:[%s370 + $0xb8] sm:$0xff] %v1194
          %1227 = vst [vmem:[%s370 + $0xc0] sm:$0xff] %v1195
          %1228 = vst [vmem:[%s370 + $0xc8] sm:$0xff] %v1196
          %1229 = vst [vmem:[%s370 + $0xd0] sm:$0xff] %v1197
          %1230 = vst [vmem:[%s370 + $0xd8] sm:$0xff] %v1198
          %1231 = vst [vmem:[%s370 + $0xe0] sm:$0xff] %v1199
          %1232 = vst [vmem:[%s370 + $0xe8] sm:$0xff] %v1200
          %1233 = vst [vmem:[%s370 + $0xf0] sm:$0xff] %v1201
          %1234 = vst [vmem:[%s370 + $0xf8] sm:$0xff] %v1202
        $region60: #{qwen_decoder_layer.9} parent=35 // pred_fallthru
          _
        %s1235 = sand.u32 %s170, 1
        %s1236 = scalar_lea.sflag [#allocation5], %s1235
        %s1237 = sand.u32 %s170, 1
        %s1238 = smul.addr %s1237, 256
        %s1239 = scalar_lea.vmem [#allocation11], %s1238
        // Predicated region
        $region61: #{qwen_decoder_layer.9} parent=35 // pred_check
          %p1240 = pneg %p180
        $region62: #{qwen_decoder_layer.9} parent=35 // pred_check_branch
          %1242 = sbr.rel (%p1240) target = $region64
        $region63: #{qwen_decoder_layer.9} parent=35 // pred_region
          %s1243 = smul.u32 32, %s32
          %s1245 = ssub.s32 4096, 4096
          %1246 = vsyncadd %s1236, %s1245
          %s1247 = sadd.s32 %s33, %s1243
          %s1248 = smul.addr %s1247, 128
          %s1249 = scalar_lea.hbm %s4, %s1248
          %s1250 = sshll.u32 %s1239, 4
          %s1251 = int_to_ptr.vmem [resolvable:$true] %s1250
          %1256 = dma.vmem_to_hbm [thread:$0]  %s1251, 4096, %s1249, %s1236, 128, 128, 8
        $region64: #{qwen_decoder_layer.9} parent=35 // pred_fallthru
          _
      $region36: #{qwen_decoder_layer.9} parent=5 // pred_fallthru
        _
      %p1257 = scmp.le.s32.totalorder 2, %s22
      // Predicated region
      $region65: #{qwen_decoder_layer.9} parent=5 // pred_check
        %p1258 = pneg %p1257
      $region66: #{qwen_decoder_layer.9} parent=5 // pred_check_branch
        %1260 = sbr.rel (%p1258) target = $region68
      $region67: #{qwen_decoder_layer.9} parent=5 // pred_region
        %s1261 = ssub.s32 %s22, 2
        // Predicated region
        $region69: #{qwen_decoder_layer.9} parent=67 // pred_check
          %p1262 = pneg %p186
        $region70: #{qwen_decoder_layer.9} parent=67 // pred_check_branch
          %1264 = sbr.rel (%p1262) target = $region72
        $region71: #{qwen_decoder_layer.9} parent=67 // pred_region
          %s1265 = sand.u32 %s171, 1
          %s1266 = scalar_lea.sflag [#allocation5], %s1265
          %s1267 = sand.u32 %s171, 1
          %s1268 = smul.addr %s1267, 256
          %s1269 = scalar_lea.vmem [#allocation11], %s1268
          %1270 = dma.done %s1266, 4096
        $region72: #{qwen_decoder_layer.9} parent=67 // pred_fallthru
          _
      $region68: #{qwen_decoder_layer.9} parent=5 // pred_fallthru
        _
    $region6: #{qwen_decoder_layer.9} parent=1 // loop_footer
      %s26 = sadd.s32 1, %s22
    $region7: #{qwen_decoder_layer.9} parent=1 // loop_footer_branch
      %21 = sbr.rel target = $region3
    $region8: #{qwen_decoder_layer.9} parent=1 // loop_exit
      _
    %1271 = vsyncpa [#allocation4], 1
    %s1272 = scalar_lea.sflag [#allocation4], 1
    %1273 = vsyncpa %s1272, 1
    %1274 = vsyncpa [#allocation7], 1
    %s1275 = scalar_lea.sflag [#allocation7], 1
    %1276 = vsyncpa %s1275, 1
    %1277 = vsyncpa [#allocation10], 1
    %s1278 = scalar_lea.sflag [#allocation10], 1
    %1279 = vsyncpa %s1278, 1
    %1280 = vsyncpa [#allocation5], 1
    %s1281 = scalar_lea.sflag [#allocation5], 1
    %1282 = vsyncpa %s1281, 1

</llo_original>
